<compile_context>
chip_gen: v5e
topology: v5e:2x2
jax: 0.10.0
libtpu: 0.0.40
codegen_flags: <defaults>
</compile_context>

<pallas_src>
import jax
import jax.numpy as jnp
from jax.experimental import pallas as pl
from jax.experimental.pallas import tpu as pltpu

LANE = 128  # TPU lane width; channel dims are zero-padded to this inside VMEM.


# ------------------------------ helpers -------------------------------------

def _pick_batch_block(n):
    """Images per grid step: fold batch into the matmul M dim, but keep >=2
    grid steps when possible so both v7x TensorCores get work."""
    if n <= 1:
        return max(n, 1)
    target = min(8, max(1, n // 2))
    for nb in range(target, 0, -1):
        if n % nb == 0:
            return nb
    return 1


def _conv_bn_relu_pool(pad_ref, hh, ww, w_ref, scale_ref, shift_ref):
    """One conv stage, fully in VMEM.

    pad_ref:   [NB, hh+2, ww+2, LANE] f32  zero halo, interior = input activation
    w_ref:     [9, LANE, LANE]        bf16 per-tap weight matrices (tap = kh*3+kw)
    scale_ref: [1, LANE]              f32  gamma / sqrt(running_var + eps)
    shift_ref: [1, LANE]              f32  beta + (conv_bias - mean) * scale
    returns:   [NB, hh//2, ww//2, LANE] f32 pooled activation (padded lanes stay 0)
    """
    nb = pad_ref.shape[0]
    ho, wo = hh // 2, ww // 2

    xp = pad_ref[...]                                   # [NB, hh+2, ww+2, LANE] f32
    # Three W-shifted copies built ONCE (the only sublane-misaligned relayouts);
    # each of the 9 taps below slices only along the leading H axis (free).
    xs = [xp[:, :, kw:kw + ww, :].astype(jnp.bfloat16) for kw in range(3)]

    acc = jnp.zeros((nb * hh * ww, LANE), jnp.float32)
    for kh in range(3):
        for kw in range(3):
            patch = xs[kw][:, kh:kh + hh, :, :].reshape(nb * hh * ww, LANE)
            acc = acc + jnp.dot(patch, w_ref[kh * 3 + kw],
                                preferred_element_type=jnp.float32)

    # Folded BN + ReLU in f32 (no bf16 VPU on v5e), then 2x2/stride-2 max-pool.
    y = jnp.maximum(acc * scale_ref[...] + shift_ref[...], 0.0)
    y = y.reshape(nb * ho, 2, wo, 2, LANE)
    y = jnp.maximum(y[:, 0], y[:, 1])                   # pool rows   -> [nb*ho, wo, 2, LANE]
    y = jnp.maximum(y[:, :, 0], y[:, :, 1])             # pool cols   -> [nb*ho, wo, LANE]
    return y.reshape(nb, ho, wo, LANE)


# ------------------------------ fused kernel --------------------------------

def _cnn4c_kernel(x_ref,
                  w1_ref, s1_ref, t1_ref,
                  w2_ref, s2_ref, t2_ref,
                  w3_ref, s3_ref, t3_ref,
                  w4_ref, s4_ref, t4_ref,
                  fc1w_ref, fc1b_ref, fc2w_ref, fc2b_ref,
                  o_ref,
                  pad1_ref, pad2_ref, pad3_ref, pad4_ref):
    nb, h0, w0, c_raw = x_ref.shape

    # Stage-1 input prep entirely in VMEM: zero halo + zero channel-pad to 128
    # lanes, raw f32 pixels stored into the interior lanes [0:3].
    pad1_ref[...] = jnp.zeros_like(pad1_ref)
    pad1_ref[:, 1:h0 + 1, 1:w0 + 1, 0:c_raw] = x_ref[...]
    a = _conv_bn_relu_pool(pad1_ref, h0, w0, w1_ref, s1_ref, t1_ref)

    h1, w1 = h0 // 2, w0 // 2
    pad2_ref[...] = jnp.zeros_like(pad2_ref)
    pad2_ref[:, 1:h1 + 1, 1:w1 + 1, :] = a
    a = _conv_bn_relu_pool(pad2_ref, h1, w1, w2_ref, s2_ref, t2_ref)

    h2, w2 = h1 // 2, w1 // 2
    pad3_ref[...] = jnp.zeros_like(pad3_ref)
    pad3_ref[:, 1:h2 + 1, 1:w2 + 1, :] = a
    a = _conv_bn_relu_pool(pad3_ref, h2, w2, w3_ref, s3_ref, t3_ref)

    h3, w3 = h2 // 2, w2 // 2
    pad4_ref[...] = jnp.zeros_like(pad4_ref)
    pad4_ref[:, 1:h3 + 1, 1:w3 + 1, :] = a
    a = _conv_bn_relu_pool(pad4_ref, h3, w3, w4_ref, s4_ref, t4_ref)  # [nb, sp, sp, LANE]

    # MLP head fused in: fc1 matmul + ReLU (+ identity dropout) + fc2 as a VPU
    # reduction (an N=1 matmul would waste the MXU).  fc1 weights were
    # pre-permuted to consume the NHWC channel-padded flatten directly.
    sp = h3 // 2
    feat = a.reshape(nb, sp * sp * LANE).astype(jnp.bfloat16)
    hid = jnp.dot(feat, fc1w_ref[...], preferred_element_type=jnp.float32)
    hid = jnp.maximum(hid + fc1b_ref[...], 0.0)
    # TODO(synk): F.dropout(p=0.5) is identity in eval mode; train-mode dropout not implemented.
    out = jnp.sum(hid * fc2w_ref[...], axis=-1, keepdims=True) + fc2b_ref[...]
    o_ref[...] = out.reshape(o_ref.shape)


# ------------------------------ wrapper --------------------------------------

def cnn4c_pallas(x_nhwc, p):
    n, h, w, c = x_nhwc.shape
    assert h == w and h % 16 == 0, "image size must be square and divisible by 2**4"
    nb = _pick_batch_block(n)
    steps = n // nb
    sp = h // 16

    const2 = lambda b: (0, 0)
    const3 = lambda b: (0, 0, 0)
    in_specs = [pl.BlockSpec((nb, h, w, c), lambda b: (b, 0, 0, 0))]
    for _ in range(4):  # weights / scale / shift: constant index_map -> VMEM-resident
        in_specs += [pl.BlockSpec((9, LANE, LANE), const3),
                     pl.BlockSpec((1, LANE), const2),
                     pl.BlockSpec((1, LANE), const2)]
    in_specs += [pl.BlockSpec((sp * sp * LANE, 512), const2),
                 pl.BlockSpec((1, 512), const2),
                 pl.BlockSpec((1, 512), const2),
                 pl.BlockSpec((1, 1), const2)]

    # Per-stage halo-padded activation scratch (inter-stage data never hits HBM).
    scratch = [pltpu.VMEM((nb, h // d + 2, w // d + 2, LANE), jnp.float32)
               for d in (1, 2, 4, 8)]

    out = pl.pallas_call(
        _cnn4c_kernel,
        out_shape=jax.ShapeDtypeStruct((steps, nb, 1), jnp.float32),
        grid=(steps,),
        in_specs=in_specs,
        out_specs=pl.BlockSpec((1, nb, 1), lambda b: (b, 0, 0)),
        scratch_shapes=scratch,
        compiler_params=pltpu.CompilerParams(
            dimension_semantics=("parallel",),
            vmem_limit_bytes=48 * 1024 * 1024,   # headroom under v7x's 64 MiB
        ),
    )(x_nhwc,
      p["wtaps1"], p["scale1"], p["shift1"],
      p["wtaps2"], p["scale2"], p["shift2"],
      p["wtaps3"], p["scale3"], p["shift3"],
      p["wtaps4"], p["scale4"], p["shift4"],
      p["fc1_w"], p["fc1_b"], p["fc2_w"], p["fc2_b"])
    return out.reshape(n, 1)


@jax.jit
def cnn_4c_forward(prepared, x_nchw):
    """Forward pass of CNN_4C. x_nchw: [N, 3, H, W] f32 -> [N, 1] f32."""
    # NCHW -> NHWC is the only wrapper-side op: one tiny transpose of the raw
    # input (no 128-channel / halo padding is materialized in HBM).
    x = jnp.transpose(x_nchw, (0, 2, 3, 1))
    return cnn4c_pallas(x, prepared)


# ------------------------------ parameters -----------------------------------

def init_params(key, out_1, out_2, out_3, out_4, image_size):
    """Deterministic synthetic parameters with the same shapes as CNN_4C.__init__."""
    final_sp = image_size // (2 ** 4)
    feat = out_4 * final_sp * final_sp
    chans = [(3, out_1), (out_1, out_2), (out_2, out_3), (out_3, out_4)]
    params = {}
    for i, (cin, cout) in enumerate(chans, start=1):
        key, k1, k2, k3, k4, k5, k6 = jax.random.split(key, 7)
        params[f"conv{i}_w"] = 0.1 * jax.random.normal(k1, (cout, cin, 3, 3), jnp.float32)
        params[f"conv{i}_b"] = 0.05 * jax.random.normal(k2, (cout,), jnp.float32)
        params[f"bn{i}_gamma"] = 1.0 + 0.1 * jax.random.normal(k3, (cout,), jnp.float32)
        params[f"bn{i}_beta"] = 0.1 * jax.random.normal(k4, (cout,), jnp.float32)
        params[f"bn{i}_mean"] = 0.05 * jax.random.normal(k5, (cout,), jnp.float32)
        params[f"bn{i}_var"] = 1.0 + 0.1 * jnp.abs(jax.random.normal(k6, (cout,), jnp.float32))
    key, k1, k2, k3, k4 = jax.random.split(key, 5)
    # fc1_w stored as [in_features, 512] (torch fc1.weight.T); feature index
    # follows torch's NCHW flatten order: c*sp*sp + h*sp + w.
    params["fc1_w"] = 0.05 * jax.random.normal(k1, (feat, 512), jnp.float32)
    params["fc1_b"] = 0.05 * jax.random.normal(k2, (512,), jnp.float32)
    params["fc2_w"] = 0.05 * jax.random.normal(k3, (512, 1), jnp.float32)
    params["fc2_b"] = 0.05 * jax.random.normal(k4, (1,), jnp.float32)
    return params


def prepare_params(raw, image_size, eps=1e-5):
    """One-time fold: BN->scale/shift, per-tap conv matrices, 128-lane padding,
    bf16 matmul operands, fc1 row permutation for the NHWC/padded flatten."""
    sp = image_size // (2 ** 4)
    prep = {}
    for i in range(1, 5):
        w = raw[f"conv{i}_w"]                      # [Cout, Cin, 3, 3]
        cout, cin = w.shape[0], w.shape[1]
        scale = raw[f"bn{i}_gamma"] / jnp.sqrt(raw[f"bn{i}_var"] + eps)
        shift = raw[f"bn{i}_beta"] + (raw[f"conv{i}_b"] - raw[f"bn{i}_mean"]) * scale
        # [Cout, Cin, 3, 3] -> [3, 3, Cin, Cout] -> [9, Cin, Cout], zero-pad to 128.
        wt = jnp.transpose(w, (2, 3, 1, 0)).reshape(9, cin, cout)
        wt = jnp.pad(wt, ((0, 0), (0, LANE - cin), (0, LANE - cout)))
        prep[f"wtaps{i}"] = wt.astype(jnp.bfloat16)
        prep[f"scale{i}"] = jnp.pad(scale, (0, LANE - cout)).reshape(1, LANE).astype(jnp.float32)
        prep[f"shift{i}"] = jnp.pad(shift, (0, LANE - cout)).reshape(1, LANE).astype(jnp.float32)
    out_4 = raw["conv4_w"].shape[0]
    # fc1 rows: torch order (c, h, w) -> NHWC channel-padded order (h, w, c_pad).
    w1 = raw["fc1_w"].reshape(out_4, sp, sp, 512).transpose(1, 2, 0, 3)
    w1 = jnp.pad(w1, ((0, 0), (0, 0), (0, LANE - out_4), (0, 0)))
    prep["fc1_w"] = w1.reshape(sp * sp * LANE, 512).astype(jnp.bfloat16)
    prep["fc1_b"] = raw["fc1_b"].reshape(1, 512).astype(jnp.float32)
    prep["fc2_w"] = raw["fc2_w"].reshape(1, 512).astype(jnp.float32)
    prep["fc2_b"] = raw["fc2_b"].reshape(1, 1).astype(jnp.float32)
    return prep


# ------------------------------ main ------------------------------------------

if __name__ == "__main__":
    key = jax.random.PRNGKey(0)
    key_p, key_x = jax.random.split(key)

    out_1, out_2, out_3, out_4, image_size = 8, 16, 16, 32, 16
    raw_params = init_params(key_p, out_1, out_2, out_3, out_4, image_size)
    prepared = prepare_params(raw_params, image_size)

    x = jax.random.normal(key_x, (2, 3, image_size, image_size), jnp.float32)

    y = cnn_4c_forward(prepared, x)
    jax.block_until_ready(y)
    assert y.shape == (2, 1), y.shape
    assert bool(jnp.all(jnp.isfinite(y)))
    print("KERNEL_OK")
</pallas_src>

<mosaic_0001>
module attributes {stable_mosaic.version = 11 : i64} {
  func.func @_cnn4c_kernel(%arg0: i32, %arg1: memref<1x16x16x3xf32, #tpu.memory_space<vmem>>, %arg2: memref<9x128x128xbf16, #tpu.memory_space<vmem>>, %arg3: memref<1x128xf32, #tpu.memory_space<vmem>>, %arg4: memref<1x128xf32, #tpu.memory_space<vmem>>, %arg5: memref<9x128x128xbf16, #tpu.memory_space<vmem>>, %arg6: memref<1x128xf32, #tpu.memory_space<vmem>>, %arg7: memref<1x128xf32, #tpu.memory_space<vmem>>, %arg8: memref<9x128x128xbf16, #tpu.memory_space<vmem>>, %arg9: memref<1x128xf32, #tpu.memory_space<vmem>>, %arg10: memref<1x128xf32, #tpu.memory_space<vmem>>, %arg11: memref<9x128x128xbf16, #tpu.memory_space<vmem>>, %arg12: memref<1x128xf32, #tpu.memory_space<vmem>>, %arg13: memref<1x128xf32, #tpu.memory_space<vmem>>, %arg14: memref<128x512xbf16, #tpu.memory_space<vmem>>, %arg15: memref<1x512xf32, #tpu.memory_space<vmem>>, %arg16: memref<1x512xf32, #tpu.memory_space<vmem>>, %arg17: memref<1x1xf32, #tpu.memory_space<vmem>>, %arg18: memref<1x1x1xf32, #tpu.memory_space<vmem>>, %arg19: memref<1x18x18x128xf32, #tpu.memory_space<vmem>>, %arg20: memref<1x10x10x128xf32, #tpu.memory_space<vmem>>, %arg21: memref<1x6x6x128xf32, #tpu.memory_space<vmem>>, %arg22: memref<1x4x4x128xf32, #tpu.memory_space<vmem>>) attributes {dimension_semantics = [#tpu.dimension_semantics<parallel>], iteration_bounds = array<i64: 2>, scalar_prefetch = 0 : i64, scratch_operands = 4 : i64, tpu.core_type = #tpu.core_type<tc>, window_params = [{transform_indices = @transform_0, window_bounds = array<i64: 1, 16, 16, 3>}, {pipeline_mode = #tpu.pipeline_mode<synchronous>, transform_indices = @transform_1, window_bounds = array<i64: 9, 128, 128>}, {pipeline_mode = #tpu.pipeline_mode<synchronous>, transform_indices = @transform_2, window_bounds = array<i64: 1, 128>}, {pipeline_mode = #tpu.pipeline_mode<synchronous>, transform_indices = @transform_3, window_bounds = array<i64: 1, 128>}, {pipeline_mode = #tpu.pipeline_mode<synchronous>, transform_indices = @transform_4, window_bounds = array<i64: 9, 128, 128>}, {pipeline_mode = #tpu.pipeline_mode<synchronous>, transform_indices = @transform_5, window_bounds = array<i64: 1, 128>}, {pipeline_mode = #tpu.pipeline_mode<synchronous>, transform_indices = @transform_6, window_bounds = array<i64: 1, 128>}, {pipeline_mode = #tpu.pipeline_mode<synchronous>, transform_indices = @transform_7, window_bounds = array<i64: 9, 128, 128>}, {pipeline_mode = #tpu.pipeline_mode<synchronous>, transform_indices = @transform_8, window_bounds = array<i64: 1, 128>}, {pipeline_mode = #tpu.pipeline_mode<synchronous>, transform_indices = @transform_9, window_bounds = array<i64: 1, 128>}, {pipeline_mode = #tpu.pipeline_mode<synchronous>, transform_indices = @transform_10, window_bounds = array<i64: 9, 128, 128>}, {pipeline_mode = #tpu.pipeline_mode<synchronous>, transform_indices = @transform_11, window_bounds = array<i64: 1, 128>}, {pipeline_mode = #tpu.pipeline_mode<synchronous>, transform_indices = @transform_12, window_bounds = array<i64: 1, 128>}, {pipeline_mode = #tpu.pipeline_mode<synchronous>, transform_indices = @transform_13, window_bounds = array<i64: 128, 512>}, {pipeline_mode = #tpu.pipeline_mode<synchronous>, transform_indices = @transform_14, window_bounds = array<i64: 1, 512>}, {pipeline_mode = #tpu.pipeline_mode<synchronous>, transform_indices = @transform_15, window_bounds = array<i64: 1, 512>}, {pipeline_mode = #tpu.pipeline_mode<synchronous>, transform_indices = @transform_16, window_bounds = array<i64: 1, 1>}, {transform_indices = @transform_17, window_bounds = array<i64: 1, 1, 1>}]} {
    %cst = arith.constant 0.000000e+00 : f32
    %0 = vector.broadcast %cst : f32 to vector<1x18x18x128xf32>
    %c0 = arith.constant 0 : index
    %c0_0 = arith.constant 0 : index
    %c0_1 = arith.constant 0 : index
    %c0_2 = arith.constant 0 : index
    %1 = vector.load %arg19[%c0, %c0_0, %c0_1, %c0_2] : memref<1x18x18x128xf32, #tpu.memory_space<vmem>>, vector<1x18x18x128xf32>
    tpu.vector_store %arg19[%c0, %c0_0, %c0_1, %c0_2], %0 {strides = array<i32>} : memref<1x18x18x128xf32, #tpu.memory_space<vmem>>, vector<1x18x18x128xf32>,
    %c0_3 = arith.constant 0 : index
    %c0_4 = arith.constant 0 : index
    %c0_5 = arith.constant 0 : index
    %c0_6 = arith.constant 0 : index
    %2 = vector.load %arg1[%c0_3, %c0_4, %c0_5, %c0_6] : memref<1x16x16x3xf32, #tpu.memory_space<vmem>>, vector<1x16x16x3xf32>
    %c0_7 = arith.constant 0 : index
    %c1 = arith.constant 1 : index
    %c1_8 = arith.constant 1 : index
    %c0_9 = arith.constant 0 : index
    %3 = vector.load %arg19[%c0_7, %c1, %c1_8, %c0_9] : memref<1x18x18x128xf32, #tpu.memory_space<vmem>>, vector<1x16x16x3xf32>
    tpu.vector_store %arg19[%c0_7, %c1, %c1_8, %c0_9], %2 {strides = array<i32>} : memref<1x18x18x128xf32, #tpu.memory_space<vmem>>, vector<1x16x16x3xf32>,
    %c0_10 = arith.constant 0 : index
    %c0_11 = arith.constant 0 : index
    %c0_12 = arith.constant 0 : index
    %c0_13 = arith.constant 0 : index
    %4 = vector.load %arg19[%c0_10, %c0_11, %c0_12, %c0_13] : memref<1x18x18x128xf32, #tpu.memory_space<vmem>>, vector<1x18x18x128xf32>
    %5 = vector.extract_strided_slice %4 {offsets = [0, 0, 0, 0], sizes = [1, 18, 16, 128], strides = [1, 1, 1, 1]} : vector<1x18x18x128xf32> to vector<1x18x16x128xf32>
    %6 = arith.truncf %5 : vector<1x18x16x128xf32> to vector<1x18x16x128xbf16>
    %7 = vector.extract_strided_slice %4 {offsets = [0, 0, 1, 0], sizes = [1, 18, 16, 128], strides = [1, 1, 1, 1]} : vector<1x18x18x128xf32> to vector<1x18x16x128xf32>
    %8 = arith.truncf %7 : vector<1x18x16x128xf32> to vector<1x18x16x128xbf16>
    %9 = vector.extract_strided_slice %4 {offsets = [0, 0, 2, 0], sizes = [1, 18, 16, 128], strides = [1, 1, 1, 1]} : vector<1x18x18x128xf32> to vector<1x18x16x128xf32>
    %10 = arith.truncf %9 : vector<1x18x16x128xf32> to vector<1x18x16x128xbf16>
    %cst_14 = arith.constant 0.000000e+00 : f32
    %11 = vector.broadcast %cst_14 : f32 to vector<256x128xf32>
    %12 = vector.extract_strided_slice %6 {offsets = [0, 0, 0, 0], sizes = [1, 16, 16, 128], strides = [1, 1, 1, 1]} : vector<1x18x16x128xbf16> to vector<1x16x16x128xbf16>
    %13 = vector.shape_cast %12 : vector<1x16x16x128xbf16> to vector<256x128xbf16>
    %c0_15 = arith.constant 0 : index
    %c0_16 = arith.constant 0 : index
    %c0_17 = arith.constant 0 : index
    %14 = vector.load %arg2[%c0_15, %c0_16, %c0_17] : memref<9x128x128xbf16, #tpu.memory_space<vmem>>, vector<1x128x128xbf16>
    %15 = vector.shape_cast %14 : vector<1x128x128xbf16> to vector<128x128xbf16>
    %cst_18 = arith.constant dense<0.000000e+00> : vector<256x128xf32>
    %16 = tpu.matmul %13, %15, %cst_18 {dimension_numbers = #tpu.dot_dimension_numbers<[1], [0], [0], [1], [0, 0, 1, 1], [], []>} : vector<256x128xbf16>, vector<128x128xbf16>, vector<256x128xf32> -> vector<256x128xf32>
    %17 = arith.addf %11, %16 : vector<256x128xf32>
    %18 = vector.extract_strided_slice %8 {offsets = [0, 0, 0, 0], sizes = [1, 16, 16, 128], strides = [1, 1, 1, 1]} : vector<1x18x16x128xbf16> to vector<1x16x16x128xbf16>
    %19 = vector.shape_cast %18 : vector<1x16x16x128xbf16> to vector<256x128xbf16>
    %c1_19 = arith.constant 1 : index
    %c0_20 = arith.constant 0 : index
    %c0_21 = arith.constant 0 : index
    %20 = vector.load %arg2[%c1_19, %c0_20, %c0_21] : memref<9x128x128xbf16, #tpu.memory_space<vmem>>, vector<1x128x128xbf16>
    %21 = vector.shape_cast %20 : vector<1x128x128xbf16> to vector<128x128xbf16>
    %cst_22 = arith.constant dense<0.000000e+00> : vector<256x128xf32>
    %22 = tpu.matmul %19, %21, %cst_22 {dimension_numbers = #tpu.dot_dimension_numbers<[1], [0], [0], [1], [0, 0, 1, 1], [], []>} : vector<256x128xbf16>, vector<128x128xbf16>, vector<256x128xf32> -> vector<256x128xf32>
    %23 = arith.addf %17, %22 : vector<256x128xf32>
    %24 = vector.extract_strided_slice %10 {offsets = [0, 0, 0, 0], sizes = [1, 16, 16, 128], strides = [1, 1, 1, 1]} : vector<1x18x16x128xbf16> to vector<1x16x16x128xbf16>
    %25 = vector.shape_cast %24 : vector<1x16x16x128xbf16> to vector<256x128xbf16>
    %c2 = arith.constant 2 : index
    %c0_23 = arith.constant 0 : index
    %c0_24 = arith.constant 0 : index
    %26 = vector.load %arg2[%c2, %c0_23, %c0_24] : memref<9x128x128xbf16, #tpu.memory_space<vmem>>, vector<1x128x128xbf16>
    %27 = vector.shape_cast %26 : vector<1x128x128xbf16> to vector<128x128xbf16>
    %cst_25 = arith.constant dense<0.000000e+00> : vector<256x128xf32>
    %28 = tpu.matmul %25, %27, %cst_25 {dimension_numbers = #tpu.dot_dimension_numbers<[1], [0], [0], [1], [0, 0, 1, 1], [], []>} : vector<256x128xbf16>, vector<128x128xbf16>, vector<256x128xf32> -> vector<256x128xf32>
    %29 = arith.addf %23, %28 : vector<256x128xf32>
    %30 = vector.extract_strided_slice %6 {offsets = [0, 1, 0, 0], sizes = [1, 16, 16, 128], strides = [1, 1, 1, 1]} : vector<1x18x16x128xbf16> to vector<1x16x16x128xbf16>
    %31 = vector.shape_cast %30 : vector<1x16x16x128xbf16> to vector<256x128xbf16>
    %c3 = arith.constant 3 : index
    %c0_26 = arith.constant 0 : index
    %c0_27 = arith.constant 0 : index
    %32 = vector.load %arg2[%c3, %c0_26, %c0_27] : memref<9x128x128xbf16, #tpu.memory_space<vmem>>, vector<1x128x128xbf16>
    %33 = vector.shape_cast %32 : vector<1x128x128xbf16> to vector<128x128xbf16>
    %cst_28 = arith.constant dense<0.000000e+00> : vector<256x128xf32>
    %34 = tpu.matmul %31, %33, %cst_28 {dimension_numbers = #tpu.dot_dimension_numbers<[1], [0], [0], [1], [0, 0, 1, 1], [], []>} : vector<256x128xbf16>, vector<128x128xbf16>, vector<256x128xf32> -> vector<256x128xf32>
    %35 = arith.addf %29, %34 : vector<256x128xf32>
    %36 = vector.extract_strided_slice %8 {offsets = [0, 1, 0, 0], sizes = [1, 16, 16, 128], strides = [1, 1, 1, 1]} : vector<1x18x16x128xbf16> to vector<1x16x16x128xbf16>
    %37 = vector.shape_cast %36 : vector<1x16x16x128xbf16> to vector<256x128xbf16>
    %c4 = arith.constant 4 : index
    %c0_29 = arith.constant 0 : index
    %c0_30 = arith.constant 0 : index
    %38 = vector.load %arg2[%c4, %c0_29, %c0_30] : memref<9x128x128xbf16, #tpu.memory_space<vmem>>, vector<1x128x128xbf16>
    %39 = vector.shape_cast %38 : vector<1x128x128xbf16> to vector<128x128xbf16>
    %cst_31 = arith.constant dense<0.000000e+00> : vector<256x128xf32>
    %40 = tpu.matmul %37, %39, %cst_31 {dimension_numbers = #tpu.dot_dimension_numbers<[1], [0], [0], [1], [0, 0, 1, 1], [], []>} : vector<256x128xbf16>, vector<128x128xbf16>, vector<256x128xf32> -> vector<256x128xf32>
    %41 = arith.addf %35, %40 : vector<256x128xf32>
    %42 = vector.extract_strided_slice %10 {offsets = [0, 1, 0, 0], sizes = [1, 16, 16, 128], strides = [1, 1, 1, 1]} : vector<1x18x16x128xbf16> to vector<1x16x16x128xbf16>
    %43 = vector.shape_cast %42 : vector<1x16x16x128xbf16> to vector<256x128xbf16>
    %c5 = arith.constant 5 : index
    %c0_32 = arith.constant 0 : index
    %c0_33 = arith.constant 0 : index
    %44 = vector.load %arg2[%c5, %c0_32, %c0_33] : memref<9x128x128xbf16, #tpu.memory_space<vmem>>, vector<1x128x128xbf16>
    %45 = vector.shape_cast %44 : vector<1x128x128xbf16> to vector<128x128xbf16>
    %cst_34 = arith.constant dense<0.000000e+00> : vector<256x128xf32>
    %46 = tpu.matmul %43, %45, %cst_34 {dimension_numbers = #tpu.dot_dimension_numbers<[1], [0], [0], [1], [0, 0, 1, 1], [], []>} : vector<256x128xbf16>, vector<128x128xbf16>, vector<256x128xf32> -> vector<256x128xf32>
    %47 = arith.addf %41, %46 : vector<256x128xf32>
    %48 = vector.extract_strided_slice %6 {offsets = [0, 2, 0, 0], sizes = [1, 16, 16, 128], strides = [1, 1, 1, 1]} : vector<1x18x16x128xbf16> to vector<1x16x16x128xbf16>
    %49 = vector.shape_cast %48 : vector<1x16x16x128xbf16> to vector<256x128xbf16>
    %c6 = arith.constant 6 : index
    %c0_35 = arith.constant 0 : index
    %c0_36 = arith.constant 0 : index
    %50 = vector.load %arg2[%c6, %c0_35, %c0_36] : memref<9x128x128xbf16, #tpu.memory_space<vmem>>, vector<1x128x128xbf16>
    %51 = vector.shape_cast %50 : vector<1x128x128xbf16> to vector<128x128xbf16>
    %cst_37 = arith.constant dense<0.000000e+00> : vector<256x128xf32>
    %52 = tpu.matmul %49, %51, %cst_37 {dimension_numbers = #tpu.dot_dimension_numbers<[1], [0], [0], [1], [0, 0, 1, 1], [], []>} : vector<256x128xbf16>, vector<128x128xbf16>, vector<256x128xf32> -> vector<256x128xf32>
    %53 = arith.addf %47, %52 : vector<256x128xf32>
    %54 = vector.extract_strided_slice %8 {offsets = [0, 2, 0, 0], sizes = [1, 16, 16, 128], strides = [1, 1, 1, 1]} : vector<1x18x16x128xbf16> to vector<1x16x16x128xbf16>
    %55 = vector.shape_cast %54 : vector<1x16x16x128xbf16> to vector<256x128xbf16>
    %c7 = arith.constant 7 : index
    %c0_38 = arith.constant 0 : index
    %c0_39 = arith.constant 0 : index
    %56 = vector.load %arg2[%c7, %c0_38, %c0_39] : memref<9x128x128xbf16, #tpu.memory_space<vmem>>, vector<1x128x128xbf16>
    %57 = vector.shape_cast %56 : vector<1x128x128xbf16> to vector<128x128xbf16>
    %cst_40 = arith.constant dense<0.000000e+00> : vector<256x128xf32>
    %58 = tpu.matmul %55, %57, %cst_40 {dimension_numbers = #tpu.dot_dimension_numbers<[1], [0], [0], [1], [0, 0, 1, 1], [], []>} : vector<256x128xbf16>, vector<128x128xbf16>, vector<256x128xf32> -> vector<256x128xf32>
    %59 = arith.addf %53, %58 : vector<256x128xf32>
    %60 = vector.extract_strided_slice %10 {offsets = [0, 2, 0, 0], sizes = [1, 16, 16, 128], strides = [1, 1, 1, 1]} : vector<1x18x16x128xbf16> to vector<1x16x16x128xbf16>
    %61 = vector.shape_cast %60 : vector<1x16x16x128xbf16> to vector<256x128xbf16>
    %c8 = arith.constant 8 : index
    %c0_41 = arith.constant 0 : index
    %c0_42 = arith.constant 0 : index
    %62 = vector.load %arg2[%c8, %c0_41, %c0_42] : memref<9x128x128xbf16, #tpu.memory_space<vmem>>, vector<1x128x128xbf16>
    %63 = vector.shape_cast %62 : vector<1x128x128xbf16> to vector<128x128xbf16>
    %cst_43 = arith.constant dense<0.000000e+00> : vector<256x128xf32>
    %64 = tpu.matmul %61, %63, %cst_43 {dimension_numbers = #tpu.dot_dimension_numbers<[1], [0], [0], [1], [0, 0, 1, 1], [], []>} : vector<256x128xbf16>, vector<128x128xbf16>, vector<256x128xf32> -> vector<256x128xf32>
    %65 = arith.addf %59, %64 : vector<256x128xf32>
    %c0_44 = arith.constant 0 : index
    %c0_45 = arith.constant 0 : index
    %66 = vector.load %arg3[%c0_44, %c0_45] : memref<1x128xf32, #tpu.memory_space<vmem>>, vector<1x128xf32>
    %67 = vector.broadcast %66 : vector<1x128xf32> to vector<256x128xf32>
    %68 = arith.mulf %65, %67 : vector<256x128xf32>
    %c0_46 = arith.constant 0 : index
    %c0_47 = arith.constant 0 : index
    %69 = vector.load %arg4[%c0_46, %c0_47] : memref<1x128xf32, #tpu.memory_space<vmem>>, vector<1x128xf32>
    %70 = vector.broadcast %69 : vector<1x128xf32> to vector<256x128xf32>
    %71 = arith.addf %68, %70 : vector<256x128xf32>
    %cst_48 = arith.constant 0.000000e+00 : f32
    %72 = vector.broadcast %cst_48 : f32 to vector<256x128xf32>
    %73 = arith.maximumf %71, %72 : vector<256x128xf32>
    %74 = vector.shape_cast %73 : vector<256x128xf32> to vector<8x2x8x2x128xf32>
    %75 = vector.extract_strided_slice %74 {offsets = [0, 0, 0, 0, 0], sizes = [8, 1, 8, 2, 128], strides = [1, 1, 1, 1, 1]} : vector<8x2x8x2x128xf32> to vector<8x1x8x2x128xf32>
    %76 = vector.shape_cast %75 : vector<8x1x8x2x128xf32> to vector<8x8x2x128xf32>
    %77 = vector.extract_strided_slice %74 {offsets = [0, 1, 0, 0, 0], sizes = [8, 1, 8, 2, 128], strides = [1, 1, 1, 1, 1]} : vector<8x2x8x2x128xf32> to vector<8x1x8x2x128xf32>
    %78 = vector.shape_cast %77 : vector<8x1x8x2x128xf32> to vector<8x8x2x128xf32>
    %79 = arith.maximumf %76, %78 : vector<8x8x2x128xf32>
    %80 = vector.extract_strided_slice %79 {offsets = [0, 0, 0, 0], sizes = [8, 8, 1, 128], strides = [1, 1, 1, 1]} : vector<8x8x2x128xf32> to vector<8x8x1x128xf32>
    %81 = vector.shape_cast %80 : vector<8x8x1x128xf32> to vector<8x8x128xf32>
    %82 = vector.extract_strided_slice %79 {offsets = [0, 0, 1, 0], sizes = [8, 8, 1, 128], strides = [1, 1, 1, 1]} : vector<8x8x2x128xf32> to vector<8x8x1x128xf32>
    %83 = vector.shape_cast %82 : vector<8x8x1x128xf32> to vector<8x8x128xf32>
    %84 = arith.maximumf %81, %83 : vector<8x8x128xf32>
    %85 = vector.shape_cast %84 : vector<8x8x128xf32> to vector<1x8x8x128xf32>
    %cst_49 = arith.constant 0.000000e+00 : f32
    %86 = vector.broadcast %cst_49 : f32 to vector<1x10x10x128xf32>
    %c0_50 = arith.constant 0 : index
    %c0_51 = arith.constant 0 : index
    %c0_52 = arith.constant 0 : index
    %c0_53 = arith.constant 0 : index
    %87 = vector.load %arg20[%c0_50, %c0_51, %c0_52, %c0_53] : memref<1x10x10x128xf32, #tpu.memory_space<vmem>>, vector<1x10x10x128xf32>
    tpu.vector_store %arg20[%c0_50, %c0_51, %c0_52, %c0_53], %86 {strides = array<i32>} : memref<1x10x10x128xf32, #tpu.memory_space<vmem>>, vector<1x10x10x128xf32>,
    %c0_54 = arith.constant 0 : index
    %c1_55 = arith.constant 1 : index
    %c1_56 = arith.constant 1 : index
    %c0_57 = arith.constant 0 : index
    %88 = vector.load %arg20[%c0_54, %c1_55, %c1_56, %c0_57] : memref<1x10x10x128xf32, #tpu.memory_space<vmem>>, vector<1x8x8x128xf32>
    tpu.vector_store %arg20[%c0_54, %c1_55, %c1_56, %c0_57], %85 {strides = array<i32>} : memref<1x10x10x128xf32, #tpu.memory_space<vmem>>, vector<1x8x8x128xf32>,
    %c0_58 = arith.constant 0 : index
    %c0_59 = arith.constant 0 : index
    %c0_60 = arith.constant 0 : index
    %c0_61 = arith.constant 0 : index
    %89 = vector.load %arg20[%c0_58, %c0_59, %c0_60, %c0_61] : memref<1x10x10x128xf32, #tpu.memory_space<vmem>>, vector<1x10x10x128xf32>
    %90 = vector.extract_strided_slice %89 {offsets = [0, 0, 0, 0], sizes = [1, 10, 8, 128], strides = [1, 1, 1, 1]} : vector<1x10x10x128xf32> to vector<1x10x8x128xf32>
    %91 = arith.truncf %90 : vector<1x10x8x128xf32> to vector<1x10x8x128xbf16>
    %92 = vector.extract_strided_slice %89 {offsets = [0, 0, 1, 0], sizes = [1, 10, 8, 128], strides = [1, 1, 1, 1]} : vector<1x10x10x128xf32> to vector<1x10x8x128xf32>
    %93 = arith.truncf %92 : vector<1x10x8x128xf32> to vector<1x10x8x128xbf16>
    %94 = vector.extract_strided_slice %89 {offsets = [0, 0, 2, 0], sizes = [1, 10, 8, 128], strides = [1, 1, 1, 1]} : vector<1x10x10x128xf32> to vector<1x10x8x128xf32>
    %95 = arith.truncf %94 : vector<1x10x8x128xf32> to vector<1x10x8x128xbf16>
    %cst_62 = arith.constant 0.000000e+00 : f32
    %96 = vector.broadcast %cst_62 : f32 to vector<64x128xf32>
    %97 = vector.extract_strided_slice %91 {offsets = [0, 0, 0, 0], sizes = [1, 8, 8, 128], strides = [1, 1, 1, 1]} : vector<1x10x8x128xbf16> to vector<1x8x8x128xbf16>
    %98 = vector.shape_cast %97 : vector<1x8x8x128xbf16> to vector<64x128xbf16>
    %c0_63 = arith.constant 0 : index
    %c0_64 = arith.constant 0 : index
    %c0_65 = arith.constant 0 : index
    %99 = vector.load %arg5[%c0_63, %c0_64, %c0_65] : memref<9x128x128xbf16, #tpu.memory_space<vmem>>, vector<1x128x128xbf16>
    %100 = vector.shape_cast %99 : vector<1x128x128xbf16> to vector<128x128xbf16>
    %cst_66 = arith.constant dense<0.000000e+00> : vector<64x128xf32>
    %101 = tpu.matmul %98, %100, %cst_66 {dimension_numbers = #tpu.dot_dimension_numbers<[1], [0], [0], [1], [0, 0, 1, 1], [], []>} : vector<64x128xbf16>, vector<128x128xbf16>, vector<64x128xf32> -> vector<64x128xf32>
    %102 = arith.addf %96, %101 : vector<64x128xf32>
    %103 = vector.extract_strided_slice %93 {offsets = [0, 0, 0, 0], sizes = [1, 8, 8, 128], strides = [1, 1, 1, 1]} : vector<1x10x8x128xbf16> to vector<1x8x8x128xbf16>
    %104 = vector.shape_cast %103 : vector<1x8x8x128xbf16> to vector<64x128xbf16>
    %c1_67 = arith.constant 1 : index
    %c0_68 = arith.constant 0 : index
    %c0_69 = arith.constant 0 : index
    %105 = vector.load %arg5[%c1_67, %c0_68, %c0_69] : memref<9x128x128xbf16, #tpu.memory_space<vmem>>, vector<1x128x128xbf16>
    %106 = vector.shape_cast %105 : vector<1x128x128xbf16> to vector<128x128xbf16>
    %cst_70 = arith.constant dense<0.000000e+00> : vector<64x128xf32>
    %107 = tpu.matmul %104, %106, %cst_70 {dimension_numbers = #tpu.dot_dimension_numbers<[1], [0], [0], [1], [0, 0, 1, 1], [], []>} : vector<64x128xbf16>, vector<128x128xbf16>, vector<64x128xf32> -> vector<64x128xf32>
    %108 = arith.addf %102, %107 : vector<64x128xf32>
    %109 = vector.extract_strided_slice %95 {offsets = [0, 0, 0, 0], sizes = [1, 8, 8, 128], strides = [1, 1, 1, 1]} : vector<1x10x8x128xbf16> to vector<1x8x8x128xbf16>
    %110 = vector.shape_cast %109 : vector<1x8x8x128xbf16> to vector<64x128xbf16>
    %c2_71 = arith.constant 2 : index
    %c0_72 = arith.constant 0 : index
    %c0_73 = arith.constant 0 : index
    %111 = vector.load %arg5[%c2_71, %c0_72, %c0_73] : memref<9x128x128xbf16, #tpu.memory_space<vmem>>, vector<1x128x128xbf16>
    %112 = vector.shape_cast %111 : vector<1x128x128xbf16> to vector<128x128xbf16>
    %cst_74 = arith.constant dense<0.000000e+00> : vector<64x128xf32>
    %113 = tpu.matmul %110, %112, %cst_74 {dimension_numbers = #tpu.dot_dimension_numbers<[1], [0], [0], [1], [0, 0, 1, 1], [], []>} : vector<64x128xbf16>, vector<128x128xbf16>, vector<64x128xf32> -> vector<64x128xf32>
    %114 = arith.addf %108, %113 : vector<64x128xf32>
    %115 = vector.extract_strided_slice %91 {offsets = [0, 1, 0, 0], sizes = [1, 8, 8, 128], strides = [1, 1, 1, 1]} : vector<1x10x8x128xbf16> to vector<1x8x8x128xbf16>
    %116 = vector.shape_cast %115 : vector<1x8x8x128xbf16> to vector<64x128xbf16>
    %c3_75 = arith.constant 3 : index
    %c0_76 = arith.constant 0 : index
    %c0_77 = arith.constant 0 : index
    %117 = vector.load %arg5[%c3_75, %c0_76, %c0_77] : memref<9x128x128xbf16, #tpu.memory_space<vmem>>, vector<1x128x128xbf16>
    %118 = vector.shape_cast %117 : vector<1x128x128xbf16> to vector<128x128xbf16>
    %cst_78 = arith.constant dense<0.000000e+00> : vector<64x128xf32>
    %119 = tpu.matmul %116, %118, %cst_78 {dimension_numbers = #tpu.dot_dimension_numbers<[1], [0], [0], [1], [0, 0, 1, 1], [], []>} : vector<64x128xbf16>, vector<128x128xbf16>, vector<64x128xf32> -> vector<64x128xf32>
    %120 = arith.addf %114, %119 : vector<64x128xf32>
    %121 = vector.extract_strided_slice %93 {offsets = [0, 1, 0, 0], sizes = [1, 8, 8, 128], strides = [1, 1, 1, 1]} : vector<1x10x8x128xbf16> to vector<1x8x8x128xbf16>
    %122 = vector.shape_cast %121 : vector<1x8x8x128xbf16> to vector<64x128xbf16>
    %c4_79 = arith.constant 4 : index
    %c0_80 = arith.constant 0 : index
    %c0_81 = arith.constant 0 : index
    %123 = vector.load %arg5[%c4_79, %c0_80, %c0_81] : memref<9x128x128xbf16, #tpu.memory_space<vmem>>, vector<1x128x128xbf16>
    %124 = vector.shape_cast %123 : vector<1x128x128xbf16> to vector<128x128xbf16>
    %cst_82 = arith.constant dense<0.000000e+00> : vector<64x128xf32>
    %125 = tpu.matmul %122, %124, %cst_82 {dimension_numbers = #tpu.dot_dimension_numbers<[1], [0], [0], [1], [0, 0, 1, 1], [], []>} : vector<64x128xbf16>, vector<128x128xbf16>, vector<64x128xf32> -> vector<64x128xf32>
    %126 = arith.addf %120, %125 : vector<64x128xf32>
    %127 = vector.extract_strided_slice %95 {offsets = [0, 1, 0, 0], sizes = [1, 8, 8, 128], strides = [1, 1, 1, 1]} : vector<1x10x8x128xbf16> to vector<1x8x8x128xbf16>
    %128 = vector.shape_cast %127 : vector<1x8x8x128xbf16> to vector<64x128xbf16>
    %c5_83 = arith.constant 5 : index
    %c0_84 = arith.constant 0 : index
    %c0_85 = arith.constant 0 : index
    %129 = vector.load %arg5[%c5_83, %c0_84, %c0_85] : memref<9x128x128xbf16, #tpu.memory_space<vmem>>, vector<1x128x128xbf16>
    %130 = vector.shape_cast %129 : vector<1x128x128xbf16> to vector<128x128xbf16>
    %cst_86 = arith.constant dense<0.000000e+00> : vector<64x128xf32>
    %131 = tpu.matmul %128, %130, %cst_86 {dimension_numbers = #tpu.dot_dimension_numbers<[1], [0], [0], [1], [0, 0, 1, 1], [], []>} : vector<64x128xbf16>, vector<128x128xbf16>, vector<64x128xf32> -> vector<64x128xf32>
    %132 = arith.addf %126, %131 : vector<64x128xf32>
    %133 = vector.extract_strided_slice %91 {offsets = [0, 2, 0, 0], sizes = [1, 8, 8, 128], strides = [1, 1, 1, 1]} : vector<1x10x8x128xbf16> to vector<1x8x8x128xbf16>
    %134 = vector.shape_cast %133 : vector<1x8x8x128xbf16> to vector<64x128xbf16>
    %c6_87 = arith.constant 6 : index
    %c0_88 = arith.constant 0 : index
    %c0_89 = arith.constant 0 : index
    %135 = vector.load %arg5[%c6_87, %c0_88, %c0_89] : memref<9x128x128xbf16, #tpu.memory_space<vmem>>, vector<1x128x128xbf16>
    %136 = vector.shape_cast %135 : vector<1x128x128xbf16> to vector<128x128xbf16>
    %cst_90 = arith.constant dense<0.000000e+00> : vector<64x128xf32>
    %137 = tpu.matmul %134, %136, %cst_90 {dimension_numbers = #tpu.dot_dimension_numbers<[1], [0], [0], [1], [0, 0, 1, 1], [], []>} : vector<64x128xbf16>, vector<128x128xbf16>, vector<64x128xf32> -> vector<64x128xf32>
    %138 = arith.addf %132, %137 : vector<64x128xf32>
    %139 = vector.extract_strided_slice %93 {offsets = [0, 2, 0, 0], sizes = [1, 8, 8, 128], strides = [1, 1, 1, 1]} : vector<1x10x8x128xbf16> to vector<1x8x8x128xbf16>
    %140 = vector.shape_cast %139 : vector<1x8x8x128xbf16> to vector<64x128xbf16>
    %c7_91 = arith.constant 7 : index
    %c0_92 = arith.constant 0 : index
    %c0_93 = arith.constant 0 : index
    %141 = vector.load %arg5[%c7_91, %c0_92, %c0_93] : memref<9x128x128xbf16, #tpu.memory_space<vmem>>, vector<1x128x128xbf16>
    %142 = vector.shape_cast %141 : vector<1x128x128xbf16> to vector<128x128xbf16>
    %cst_94 = arith.constant dense<0.000000e+00> : vector<64x128xf32>
    %143 = tpu.matmul %140, %142, %cst_94 {dimension_numbers = #tpu.dot_dimension_numbers<[1], [0], [0], [1], [0, 0, 1, 1], [], []>} : vector<64x128xbf16>, vector<128x128xbf16>, vector<64x128xf32> -> vector<64x128xf32>
    %144 = arith.addf %138, %143 : vector<64x128xf32>
    %145 = vector.extract_strided_slice %95 {offsets = [0, 2, 0, 0], sizes = [1, 8, 8, 128], strides = [1, 1, 1, 1]} : vector<1x10x8x128xbf16> to vector<1x8x8x128xbf16>
    %146 = vector.shape_cast %145 : vector<1x8x8x128xbf16> to vector<64x128xbf16>
    %c8_95 = arith.constant 8 : index
    %c0_96 = arith.constant 0 : index
    %c0_97 = arith.constant 0 : index
    %147 = vector.load %arg5[%c8_95, %c0_96, %c0_97] : memref<9x128x128xbf16, #tpu.memory_space<vmem>>, vector<1x128x128xbf16>
    %148 = vector.shape_cast %147 : vector<1x128x128xbf16> to vector<128x128xbf16>
    %cst_98 = arith.constant dense<0.000000e+00> : vector<64x128xf32>
    %149 = tpu.matmul %146, %148, %cst_98 {dimension_numbers = #tpu.dot_dimension_numbers<[1], [0], [0], [1], [0, 0, 1, 1], [], []>} : vector<64x128xbf16>, vector<128x128xbf16>, vector<64x128xf32> -> vector<64x128xf32>
    %150 = arith.addf %144, %149 : vector<64x128xf32>
    %c0_99 = arith.constant 0 : index
    %c0_100 = arith.constant 0 : index
    %151 = vector.load %arg6[%c0_99, %c0_100] : memref<1x128xf32, #tpu.memory_space<vmem>>, vector<1x128xf32>
    %152 = vector.broadcast %151 : vector<1x128xf32> to vector<64x128xf32>
    %153 = arith.mulf %150, %152 : vector<64x128xf32>
    %c0_101 = arith.constant 0 : index
    %c0_102 = arith.constant 0 : index
    %154 = vector.load %arg7[%c0_101, %c0_102] : memref<1x128xf32, #tpu.memory_space<vmem>>, vector<1x128xf32>
    %155 = vector.broadcast %154 : vector<1x128xf32> to vector<64x128xf32>
    %156 = arith.addf %153, %155 : vector<64x128xf32>
    %cst_103 = arith.constant 0.000000e+00 : f32
    %157 = vector.broadcast %cst_103 : f32 to vector<64x128xf32>
    %158 = arith.maximumf %156, %157 : vector<64x128xf32>
    %159 = vector.shape_cast %158 : vector<64x128xf32> to vector<4x2x4x2x128xf32>
    %160 = vector.extract_strided_slice %159 {offsets = [0, 0, 0, 0, 0], sizes = [4, 1, 4, 2, 128], strides = [1, 1, 1, 1, 1]} : vector<4x2x4x2x128xf32> to vector<4x1x4x2x128xf32>
    %161 = vector.shape_cast %160 : vector<4x1x4x2x128xf32> to vector<4x4x2x128xf32>
    %162 = vector.extract_strided_slice %159 {offsets = [0, 1, 0, 0, 0], sizes = [4, 1, 4, 2, 128], strides = [1, 1, 1, 1, 1]} : vector<4x2x4x2x128xf32> to vector<4x1x4x2x128xf32>
    %163 = vector.shape_cast %162 : vector<4x1x4x2x128xf32> to vector<4x4x2x128xf32>
    %164 = arith.maximumf %161, %163 : vector<4x4x2x128xf32>
    %165 = vector.extract_strided_slice %164 {offsets = [0, 0, 0, 0], sizes = [4, 4, 1, 128], strides = [1, 1, 1, 1]} : vector<4x4x2x128xf32> to vector<4x4x1x128xf32>
    %166 = vector.shape_cast %165 : vector<4x4x1x128xf32> to vector<4x4x128xf32>
    %167 = vector.extract_strided_slice %164 {offsets = [0, 0, 1, 0], sizes = [4, 4, 1, 128], strides = [1, 1, 1, 1]} : vector<4x4x2x128xf32> to vector<4x4x1x128xf32>
    %168 = vector.shape_cast %167 : vector<4x4x1x128xf32> to vector<4x4x128xf32>
    %169 = arith.maximumf %166, %168 : vector<4x4x128xf32>
    %170 = vector.shape_cast %169 : vector<4x4x128xf32> to vector<1x4x4x128xf32>
    %cst_104 = arith.constant 0.000000e+00 : f32
    %171 = vector.broadcast %cst_104 : f32 to vector<1x6x6x128xf32>
    %c0_105 = arith.constant 0 : index
    %c0_106 = arith.constant 0 : index
    %c0_107 = arith.constant 0 : index
    %c0_108 = arith.constant 0 : index
    %172 = vector.load %arg21[%c0_105, %c0_106, %c0_107, %c0_108] : memref<1x6x6x128xf32, #tpu.memory_space<vmem>>, vector<1x6x6x128xf32>
    tpu.vector_store %arg21[%c0_105, %c0_106, %c0_107, %c0_108], %171 {strides = array<i32>} : memref<1x6x6x128xf32, #tpu.memory_space<vmem>>, vector<1x6x6x128xf32>,
    %c0_109 = arith.constant 0 : index
    %c1_110 = arith.constant 1 : index
    %c1_111 = arith.constant 1 : index
    %c0_112 = arith.constant 0 : index
    %173 = vector.load %arg21[%c0_109, %c1_110, %c1_111, %c0_112] : memref<1x6x6x128xf32, #tpu.memory_space<vmem>>, vector<1x4x4x128xf32>
    tpu.vector_store %arg21[%c0_109, %c1_110, %c1_111, %c0_112], %170 {strides = array<i32>} : memref<1x6x6x128xf32, #tpu.memory_space<vmem>>, vector<1x4x4x128xf32>,
    %c0_113 = arith.constant 0 : index
    %c0_114 = arith.constant 0 : index
    %c0_115 = arith.constant 0 : index
    %c0_116 = arith.constant 0 : index
    %174 = vector.load %arg21[%c0_113, %c0_114, %c0_115, %c0_116] : memref<1x6x6x128xf32, #tpu.memory_space<vmem>>, vector<1x6x6x128xf32>
    %175 = vector.extract_strided_slice %174 {offsets = [0, 0, 0, 0], sizes = [1, 6, 4, 128], strides = [1, 1, 1, 1]} : vector<1x6x6x128xf32> to vector<1x6x4x128xf32>
    %176 = arith.truncf %175 : vector<1x6x4x128xf32> to vector<1x6x4x128xbf16>
    %177 = vector.extract_strided_slice %174 {offsets = [0, 0, 1, 0], sizes = [1, 6, 4, 128], strides = [1, 1, 1, 1]} : vector<1x6x6x128xf32> to vector<1x6x4x128xf32>
    %178 = arith.truncf %177 : vector<1x6x4x128xf32> to vector<1x6x4x128xbf16>
    %179 = vector.extract_strided_slice %174 {offsets = [0, 0, 2, 0], sizes = [1, 6, 4, 128], strides = [1, 1, 1, 1]} : vector<1x6x6x128xf32> to vector<1x6x4x128xf32>
    %180 = arith.truncf %179 : vector<1x6x4x128xf32> to vector<1x6x4x128xbf16>
    %cst_117 = arith.constant 0.000000e+00 : f32
    %181 = vector.broadcast %cst_117 : f32 to vector<16x128xf32>
    %182 = vector.extract_strided_slice %176 {offsets = [0, 0, 0, 0], sizes = [1, 4, 4, 128], strides = [1, 1, 1, 1]} : vector<1x6x4x128xbf16> to vector<1x4x4x128xbf16>
    %183 = vector.shape_cast %182 : vector<1x4x4x128xbf16> to vector<16x128xbf16>
    %c0_118 = arith.constant 0 : index
    %c0_119 = arith.constant 0 : index
    %c0_120 = arith.constant 0 : index
    %184 = vector.load %arg8[%c0_118, %c0_119, %c0_120] : memref<9x128x128xbf16, #tpu.memory_space<vmem>>, vector<1x128x128xbf16>
    %185 = vector.shape_cast %184 : vector<1x128x128xbf16> to vector<128x128xbf16>
    %cst_121 = arith.constant dense<0.000000e+00> : vector<16x128xf32>
    %186 = tpu.matmul %183, %185, %cst_121 {dimension_numbers = #tpu.dot_dimension_numbers<[1], [0], [0], [1], [0, 0, 1, 1], [], []>} : vector<16x128xbf16>, vector<128x128xbf16>, vector<16x128xf32> -> vector<16x128xf32>
    %187 = arith.addf %181, %186 : vector<16x128xf32>
    %188 = vector.extract_strided_slice %178 {offsets = [0, 0, 0, 0], sizes = [1, 4, 4, 128], strides = [1, 1, 1, 1]} : vector<1x6x4x128xbf16> to vector<1x4x4x128xbf16>
    %189 = vector.shape_cast %188 : vector<1x4x4x128xbf16> to vector<16x128xbf16>
    %c1_122 = arith.constant 1 : index
    %c0_123 = arith.constant 0 : index
    %c0_124 = arith.constant 0 : index
    %190 = vector.load %arg8[%c1_122, %c0_123, %c0_124] : memref<9x128x128xbf16, #tpu.memory_space<vmem>>, vector<1x128x128xbf16>
    %191 = vector.shape_cast %190 : vector<1x128x128xbf16> to vector<128x128xbf16>
    %cst_125 = arith.constant dense<0.000000e+00> : vector<16x128xf32>
    %192 = tpu.matmul %189, %191, %cst_125 {dimension_numbers = #tpu.dot_dimension_numbers<[1], [0], [0], [1], [0, 0, 1, 1], [], []>} : vector<16x128xbf16>, vector<128x128xbf16>, vector<16x128xf32> -> vector<16x128xf32>
    %193 = arith.addf %187, %192 : vector<16x128xf32>
    %194 = vector.extract_strided_slice %180 {offsets = [0, 0, 0, 0], sizes = [1, 4, 4, 128], strides = [1, 1, 1, 1]} : vector<1x6x4x128xbf16> to vector<1x4x4x128xbf16>
    %195 = vector.shape_cast %194 : vector<1x4x4x128xbf16> to vector<16x128xbf16>
    %c2_126 = arith.constant 2 : index
    %c0_127 = arith.constant 0 : index
    %c0_128 = arith.constant 0 : index
    %196 = vector.load %arg8[%c2_126, %c0_127, %c0_128] : memref<9x128x128xbf16, #tpu.memory_space<vmem>>, vector<1x128x128xbf16>
    %197 = vector.shape_cast %196 : vector<1x128x128xbf16> to vector<128x128xbf16>
    %cst_129 = arith.constant dense<0.000000e+00> : vector<16x128xf32>
    %198 = tpu.matmul %195, %197, %cst_129 {dimension_numbers = #tpu.dot_dimension_numbers<[1], [0], [0], [1], [0, 0, 1, 1], [], []>} : vector<16x128xbf16>, vector<128x128xbf16>, vector<16x128xf32> -> vector<16x128xf32>
    %199 = arith.addf %193, %198 : vector<16x128xf32>
    %200 = vector.extract_strided_slice %176 {offsets = [0, 1, 0, 0], sizes = [1, 4, 4, 128], strides = [1, 1, 1, 1]} : vector<1x6x4x128xbf16> to vector<1x4x4x128xbf16>
    %201 = vector.shape_cast %200 : vector<1x4x4x128xbf16> to vector<16x128xbf16>
    %c3_130 = arith.constant 3 : index
    %c0_131 = arith.constant 0 : index
    %c0_132 = arith.constant 0 : index
    %202 = vector.load %arg8[%c3_130, %c0_131, %c0_132] : memref<9x128x128xbf16, #tpu.memory_space<vmem>>, vector<1x128x128xbf16>
    %203 = vector.shape_cast %202 : vector<1x128x128xbf16> to vector<128x128xbf16>
    %cst_133 = arith.constant dense<0.000000e+00> : vector<16x128xf32>
    %204 = tpu.matmul %201, %203, %cst_133 {dimension_numbers = #tpu.dot_dimension_numbers<[1], [0], [0], [1], [0, 0, 1, 1], [], []>} : vector<16x128xbf16>, vector<128x128xbf16>, vector<16x128xf32> -> vector<16x128xf32>
    %205 = arith.addf %199, %204 : vector<16x128xf32>
    %206 = vector.extract_strided_slice %178 {offsets = [0, 1, 0, 0], sizes = [1, 4, 4, 128], strides = [1, 1, 1, 1]} : vector<1x6x4x128xbf16> to vector<1x4x4x128xbf16>
    %207 = vector.shape_cast %206 : vector<1x4x4x128xbf16> to vector<16x128xbf16>
    %c4_134 = arith.constant 4 : index
    %c0_135 = arith.constant 0 : index
    %c0_136 = arith.constant 0 : index
    %208 = vector.load %arg8[%c4_134, %c0_135, %c0_136] : memref<9x128x128xbf16, #tpu.memory_space<vmem>>, vector<1x128x128xbf16>
    %209 = vector.shape_cast %208 : vector<1x128x128xbf16> to vector<128x128xbf16>
    %cst_137 = arith.constant dense<0.000000e+00> : vector<16x128xf32>
    %210 = tpu.matmul %207, %209, %cst_137 {dimension_numbers = #tpu.dot_dimension_numbers<[1], [0], [0], [1], [0, 0, 1, 1], [], []>} : vector<16x128xbf16>, vector<128x128xbf16>, vector<16x128xf32> -> vector<16x128xf32>
    %211 = arith.addf %205, %210 : vector<16x128xf32>
    %212 = vector.extract_strided_slice %180 {offsets = [0, 1, 0, 0], sizes = [1, 4, 4, 128], strides = [1, 1, 1, 1]} : vector<1x6x4x128xbf16> to vector<1x4x4x128xbf16>
    %213 = vector.shape_cast %212 : vector<1x4x4x128xbf16> to vector<16x128xbf16>
    %c5_138 = arith.constant 5 : index
    %c0_139 = arith.constant 0 : index
    %c0_140 = arith.constant 0 : index
    %214 = vector.load %arg8[%c5_138, %c0_139, %c0_140] : memref<9x128x128xbf16, #tpu.memory_space<vmem>>, vector<1x128x128xbf16>
    %215 = vector.shape_cast %214 : vector<1x128x128xbf16> to vector<128x128xbf16>
    %cst_141 = arith.constant dense<0.000000e+00> : vector<16x128xf32>
    %216 = tpu.matmul %213, %215, %cst_141 {dimension_numbers = #tpu.dot_dimension_numbers<[1], [0], [0], [1], [0, 0, 1, 1], [], []>} : vector<16x128xbf16>, vector<128x128xbf16>, vector<16x128xf32> -> vector<16x128xf32>
    %217 = arith.addf %211, %216 : vector<16x128xf32>
    %218 = vector.extract_strided_slice %176 {offsets = [0, 2, 0, 0], sizes = [1, 4, 4, 128], strides = [1, 1, 1, 1]} : vector<1x6x4x128xbf16> to vector<1x4x4x128xbf16>
    %219 = vector.shape_cast %218 : vector<1x4x4x128xbf16> to vector<16x128xbf16>
    %c6_142 = arith.constant 6 : index
    %c0_143 = arith.constant 0 : index
    %c0_144 = arith.constant 0 : index
    %220 = vector.load %arg8[%c6_142, %c0_143, %c0_144] : memref<9x128x128xbf16, #tpu.memory_space<vmem>>, vector<1x128x128xbf16>
    %221 = vector.shape_cast %220 : vector<1x128x128xbf16> to vector<128x128xbf16>
    %cst_145 = arith.constant dense<0.000000e+00> : vector<16x128xf32>
    %222 = tpu.matmul %219, %221, %cst_145 {dimension_numbers = #tpu.dot_dimension_numbers<[1], [0], [0], [1], [0, 0, 1, 1], [], []>} : vector<16x128xbf16>, vector<128x128xbf16>, vector<16x128xf32> -> vector<16x128xf32>
    %223 = arith.addf %217, %222 : vector<16x128xf32>
    %224 = vector.extract_strided_slice %178 {offsets = [0, 2, 0, 0], sizes = [1, 4, 4, 128], strides = [1, 1, 1, 1]} : vector<1x6x4x128xbf16> to vector<1x4x4x128xbf16>
    %225 = vector.shape_cast %224 : vector<1x4x4x128xbf16> to vector<16x128xbf16>
    %c7_146 = arith.constant 7 : index
    %c0_147 = arith.constant 0 : index
    %c0_148 = arith.constant 0 : index
    %226 = vector.load %arg8[%c7_146, %c0_147, %c0_148] : memref<9x128x128xbf16, #tpu.memory_space<vmem>>, vector<1x128x128xbf16>
    %227 = vector.shape_cast %226 : vector<1x128x128xbf16> to vector<128x128xbf16>
    %cst_149 = arith.constant dense<0.000000e+00> : vector<16x128xf32>
    %228 = tpu.matmul %225, %227, %cst_149 {dimension_numbers = #tpu.dot_dimension_numbers<[1], [0], [0], [1], [0, 0, 1, 1], [], []>} : vector<16x128xbf16>, vector<128x128xbf16>, vector<16x128xf32> -> vector<16x128xf32>
    %229 = arith.addf %223, %228 : vector<16x128xf32>
    %230 = vector.extract_strided_slice %180 {offsets = [0, 2, 0, 0], sizes = [1, 4, 4, 128], strides = [1, 1, 1, 1]} : vector<1x6x4x128xbf16> to vector<1x4x4x128xbf16>
    %231 = vector.shape_cast %230 : vector<1x4x4x128xbf16> to vector<16x128xbf16>
    %c8_150 = arith.constant 8 : index
    %c0_151 = arith.constant 0 : index
    %c0_152 = arith.constant 0 : index
    %232 = vector.load %arg8[%c8_150, %c0_151, %c0_152] : memref<9x128x128xbf16, #tpu.memory_space<vmem>>, vector<1x128x128xbf16>
    %233 = vector.shape_cast %232 : vector<1x128x128xbf16> to vector<128x128xbf16>
    %cst_153 = arith.constant dense<0.000000e+00> : vector<16x128xf32>
    %234 = tpu.matmul %231, %233, %cst_153 {dimension_numbers = #tpu.dot_dimension_numbers<[1], [0], [0], [1], [0, 0, 1, 1], [], []>} : vector<16x128xbf16>, vector<128x128xbf16>, vector<16x128xf32> -> vector<16x128xf32>
    %235 = arith.addf %229, %234 : vector<16x128xf32>
    %c0_154 = arith.constant 0 : index
    %c0_155 = arith.constant 0 : index
    %236 = vector.load %arg9[%c0_154, %c0_155] : memref<1x128xf32, #tpu.memory_space<vmem>>, vector<1x128xf32>
    %237 = vector.broadcast %236 : vector<1x128xf32> to vector<16x128xf32>
    %238 = arith.mulf %235, %237 : vector<16x128xf32>
    %c0_156 = arith.constant 0 : index
    %c0_157 = arith.constant 0 : index
    %239 = vector.load %arg10[%c0_156, %c0_157] : memref<1x128xf32, #tpu.memory_space<vmem>>, vector<1x128xf32>
    %240 = vector.broadcast %239 : vector<1x128xf32> to vector<16x128xf32>
    %241 = arith.addf %238, %240 : vector<16x128xf32>
    %cst_158 = arith.constant 0.000000e+00 : f32
    %242 = vector.broadcast %cst_158 : f32 to vector<16x128xf32>
    %243 = arith.maximumf %241, %242 : vector<16x128xf32>
    %244 = vector.shape_cast %243 : vector<16x128xf32> to vector<2x2x2x2x128xf32>
    %245 = vector.extract_strided_slice %244 {offsets = [0, 0, 0, 0, 0], sizes = [2, 1, 2, 2, 128], strides = [1, 1, 1, 1, 1]} : vector<2x2x2x2x128xf32> to vector<2x1x2x2x128xf32>
    %246 = vector.shape_cast %245 : vector<2x1x2x2x128xf32> to vector<2x2x2x128xf32>
    %247 = vector.extract_strided_slice %244 {offsets = [0, 1, 0, 0, 0], sizes = [2, 1, 2, 2, 128], strides = [1, 1, 1, 1, 1]} : vector<2x2x2x2x128xf32> to vector<2x1x2x2x128xf32>
    %248 = vector.shape_cast %247 : vector<2x1x2x2x128xf32> to vector<2x2x2x128xf32>
    %249 = arith.maximumf %246, %248 : vector<2x2x2x128xf32>
    %250 = vector.extract_strided_slice %249 {offsets = [0, 0, 0, 0], sizes = [2, 2, 1, 128], strides = [1, 1, 1, 1]} : vector<2x2x2x128xf32> to vector<2x2x1x128xf32>
    %251 = vector.shape_cast %250 : vector<2x2x1x128xf32> to vector<2x2x128xf32>
    %252 = vector.extract_strided_slice %249 {offsets = [0, 0, 1, 0], sizes = [2, 2, 1, 128], strides = [1, 1, 1, 1]} : vector<2x2x2x128xf32> to vector<2x2x1x128xf32>
    %253 = vector.shape_cast %252 : vector<2x2x1x128xf32> to vector<2x2x128xf32>
    %254 = arith.maximumf %251, %253 : vector<2x2x128xf32>
    %255 = vector.shape_cast %254 : vector<2x2x128xf32> to vector<1x2x2x128xf32>
    %cst_159 = arith.constant 0.000000e+00 : f32
    %256 = vector.broadcast %cst_159 : f32 to vector<1x4x4x128xf32>
    %c0_160 = arith.constant 0 : index
    %c0_161 = arith.constant 0 : index
    %c0_162 = arith.constant 0 : index
    %c0_163 = arith.constant 0 : index
    %257 = vector.load %arg22[%c0_160, %c0_161, %c0_162, %c0_163] : memref<1x4x4x128xf32, #tpu.memory_space<vmem>>, vector<1x4x4x128xf32>
    tpu.vector_store %arg22[%c0_160, %c0_161, %c0_162, %c0_163], %256 {strides = array<i32>} : memref<1x4x4x128xf32, #tpu.memory_space<vmem>>, vector<1x4x4x128xf32>,
    %c0_164 = arith.constant 0 : index
    %c1_165 = arith.constant 1 : index
    %c1_166 = arith.constant 1 : index
    %c0_167 = arith.constant 0 : index
    %258 = vector.load %arg22[%c0_164, %c1_165, %c1_166, %c0_167] : memref<1x4x4x128xf32, #tpu.memory_space<vmem>>, vector<1x2x2x128xf32>
    tpu.vector_store %arg22[%c0_164, %c1_165, %c1_166, %c0_167], %255 {strides = array<i32>} : memref<1x4x4x128xf32, #tpu.memory_space<vmem>>, vector<1x2x2x128xf32>,
    %c0_168 = arith.constant 0 : index
    %c0_169 = arith.constant 0 : index
    %c0_170 = arith.constant 0 : index
    %c0_171 = arith.constant 0 : index
    %259 = vector.load %arg22[%c0_168, %c0_169, %c0_170, %c0_171] : memref<1x4x4x128xf32, #tpu.memory_space<vmem>>, vector<1x4x4x128xf32>
    %260 = vector.extract_strided_slice %259 {offsets = [0, 0, 0, 0], sizes = [1, 4, 2, 128], strides = [1, 1, 1, 1]} : vector<1x4x4x128xf32> to vector<1x4x2x128xf32>
    %261 = arith.truncf %260 : vector<1x4x2x128xf32> to vector<1x4x2x128xbf16>
    %262 = vector.extract_strided_slice %259 {offsets = [0, 0, 1, 0], sizes = [1, 4, 2, 128], strides = [1, 1, 1, 1]} : vector<1x4x4x128xf32> to vector<1x4x2x128xf32>
    %263 = arith.truncf %262 : vector<1x4x2x128xf32> to vector<1x4x2x128xbf16>
    %264 = vector.extract_strided_slice %259 {offsets = [0, 0, 2, 0], sizes = [1, 4, 2, 128], strides = [1, 1, 1, 1]} : vector<1x4x4x128xf32> to vector<1x4x2x128xf32>
    %265 = arith.truncf %264 : vector<1x4x2x128xf32> to vector<1x4x2x128xbf16>
    %cst_172 = arith.constant 0.000000e+00 : f32
    %266 = vector.broadcast %cst_172 : f32 to vector<4x128xf32>
    %267 = vector.extract_strided_slice %261 {offsets = [0, 0, 0, 0], sizes = [1, 2, 2, 128], strides = [1, 1, 1, 1]} : vector<1x4x2x128xbf16> to vector<1x2x2x128xbf16>
    %268 = vector.shape_cast %267 : vector<1x2x2x128xbf16> to vector<4x128xbf16>
    %c0_173 = arith.constant 0 : index
    %c0_174 = arith.constant 0 : index
    %c0_175 = arith.constant 0 : index
    %269 = vector.load %arg11[%c0_173, %c0_174, %c0_175] : memref<9x128x128xbf16, #tpu.memory_space<vmem>>, vector<1x128x128xbf16>
    %270 = vector.shape_cast %269 : vector<1x128x128xbf16> to vector<128x128xbf16>
    %cst_176 = arith.constant dense<0.000000e+00> : vector<4x128xf32>
    %271 = tpu.matmul %268, %270, %cst_176 {dimension_numbers = #tpu.dot_dimension_numbers<[1], [0], [0], [1], [0, 0, 1, 1], [], []>} : vector<4x128xbf16>, vector<128x128xbf16>, vector<4x128xf32> -> vector<4x128xf32>
    %272 = arith.addf %266, %271 : vector<4x128xf32>
    %273 = vector.extract_strided_slice %263 {offsets = [0, 0, 0, 0], sizes = [1, 2, 2, 128], strides = [1, 1, 1, 1]} : vector<1x4x2x128xbf16> to vector<1x2x2x128xbf16>
    %274 = vector.shape_cast %273 : vector<1x2x2x128xbf16> to vector<4x128xbf16>
    %c1_177 = arith.constant 1 : index
    %c0_178 = arith.constant 0 : index
    %c0_179 = arith.constant 0 : index
    %275 = vector.load %arg11[%c1_177, %c0_178, %c0_179] : memref<9x128x128xbf16, #tpu.memory_space<vmem>>, vector<1x128x128xbf16>
    %276 = vector.shape_cast %275 : vector<1x128x128xbf16> to vector<128x128xbf16>
    %cst_180 = arith.constant dense<0.000000e+00> : vector<4x128xf32>
    %277 = tpu.matmul %274, %276, %cst_180 {dimension_numbers = #tpu.dot_dimension_numbers<[1], [0], [0], [1], [0, 0, 1, 1], [], []>} : vector<4x128xbf16>, vector<128x128xbf16>, vector<4x128xf32> -> vector<4x128xf32>
    %278 = arith.addf %272, %277 : vector<4x128xf32>
    %279 = vector.extract_strided_slice %265 {offsets = [0, 0, 0, 0], sizes = [1, 2, 2, 128], strides = [1, 1, 1, 1]} : vector<1x4x2x128xbf16> to vector<1x2x2x128xbf16>
    %280 = vector.shape_cast %279 : vector<1x2x2x128xbf16> to vector<4x128xbf16>
    %c2_181 = arith.constant 2 : index
    %c0_182 = arith.constant 0 : index
    %c0_183 = arith.constant 0 : index
    %281 = vector.load %arg11[%c2_181, %c0_182, %c0_183] : memref<9x128x128xbf16, #tpu.memory_space<vmem>>, vector<1x128x128xbf16>
    %282 = vector.shape_cast %281 : vector<1x128x128xbf16> to vector<128x128xbf16>
    %cst_184 = arith.constant dense<0.000000e+00> : vector<4x128xf32>
    %283 = tpu.matmul %280, %282, %cst_184 {dimension_numbers = #tpu.dot_dimension_numbers<[1], [0], [0], [1], [0, 0, 1, 1], [], []>} : vector<4x128xbf16>, vector<128x128xbf16>, vector<4x128xf32> -> vector<4x128xf32>
    %284 = arith.addf %278, %283 : vector<4x128xf32>
    %285 = vector.extract_strided_slice %261 {offsets = [0, 1, 0, 0], sizes = [1, 2, 2, 128], strides = [1, 1, 1, 1]} : vector<1x4x2x128xbf16> to vector<1x2x2x128xbf16>
    %286 = vector.shape_cast %285 : vector<1x2x2x128xbf16> to vector<4x128xbf16>
    %c3_185 = arith.constant 3 : index
    %c0_186 = arith.constant 0 : index
    %c0_187 = arith.constant 0 : index
    %287 = vector.load %arg11[%c3_185, %c0_186, %c0_187] : memref<9x128x128xbf16, #tpu.memory_space<vmem>>, vector<1x128x128xbf16>
    %288 = vector.shape_cast %287 : vector<1x128x128xbf16> to vector<128x128xbf16>
    %cst_188 = arith.constant dense<0.000000e+00> : vector<4x128xf32>
    %289 = tpu.matmul %286, %288, %cst_188 {dimension_numbers = #tpu.dot_dimension_numbers<[1], [0], [0], [1], [0, 0, 1, 1], [], []>} : vector<4x128xbf16>, vector<128x128xbf16>, vector<4x128xf32> -> vector<4x128xf32>
    %290 = arith.addf %284, %289 : vector<4x128xf32>
    %291 = vector.extract_strided_slice %263 {offsets = [0, 1, 0, 0], sizes = [1, 2, 2, 128], strides = [1, 1, 1, 1]} : vector<1x4x2x128xbf16> to vector<1x2x2x128xbf16>
    %292 = vector.shape_cast %291 : vector<1x2x2x128xbf16> to vector<4x128xbf16>
    %c4_189 = arith.constant 4 : index
    %c0_190 = arith.constant 0 : index
    %c0_191 = arith.constant 0 : index
    %293 = vector.load %arg11[%c4_189, %c0_190, %c0_191] : memref<9x128x128xbf16, #tpu.memory_space<vmem>>, vector<1x128x128xbf16>
    %294 = vector.shape_cast %293 : vector<1x128x128xbf16> to vector<128x128xbf16>
    %cst_192 = arith.constant dense<0.000000e+00> : vector<4x128xf32>
    %295 = tpu.matmul %292, %294, %cst_192 {dimension_numbers = #tpu.dot_dimension_numbers<[1], [0], [0], [1], [0, 0, 1, 1], [], []>} : vector<4x128xbf16>, vector<128x128xbf16>, vector<4x128xf32> -> vector<4x128xf32>
    %296 = arith.addf %290, %295 : vector<4x128xf32>
    %297 = vector.extract_strided_slice %265 {offsets = [0, 1, 0, 0], sizes = [1, 2, 2, 128], strides = [1, 1, 1, 1]} : vector<1x4x2x128xbf16> to vector<1x2x2x128xbf16>
    %298 = vector.shape_cast %297 : vector<1x2x2x128xbf16> to vector<4x128xbf16>
    %c5_193 = arith.constant 5 : index
    %c0_194 = arith.constant 0 : index
    %c0_195 = arith.constant 0 : index
    %299 = vector.load %arg11[%c5_193, %c0_194, %c0_195] : memref<9x128x128xbf16, #tpu.memory_space<vmem>>, vector<1x128x128xbf16>
    %300 = vector.shape_cast %299 : vector<1x128x128xbf16> to vector<128x128xbf16>
    %cst_196 = arith.constant dense<0.000000e+00> : vector<4x128xf32>
    %301 = tpu.matmul %298, %300, %cst_196 {dimension_numbers = #tpu.dot_dimension_numbers<[1], [0], [0], [1], [0, 0, 1, 1], [], []>} : vector<4x128xbf16>, vector<128x128xbf16>, vector<4x128xf32> -> vector<4x128xf32>
    %302 = arith.addf %296, %301 : vector<4x128xf32>
    %303 = vector.extract_strided_slice %261 {offsets = [0, 2, 0, 0], sizes = [1, 2, 2, 128], strides = [1, 1, 1, 1]} : vector<1x4x2x128xbf16> to vector<1x2x2x128xbf16>
    %304 = vector.shape_cast %303 : vector<1x2x2x128xbf16> to vector<4x128xbf16>
    %c6_197 = arith.constant 6 : index
    %c0_198 = arith.constant 0 : index
    %c0_199 = arith.constant 0 : index
    %305 = vector.load %arg11[%c6_197, %c0_198, %c0_199] : memref<9x128x128xbf16, #tpu.memory_space<vmem>>, vector<1x128x128xbf16>
    %306 = vector.shape_cast %305 : vector<1x128x128xbf16> to vector<128x128xbf16>
    %cst_200 = arith.constant dense<0.000000e+00> : vector<4x128xf32>
    %307 = tpu.matmul %304, %306, %cst_200 {dimension_numbers = #tpu.dot_dimension_numbers<[1], [0], [0], [1], [0, 0, 1, 1], [], []>} : vector<4x128xbf16>, vector<128x128xbf16>, vector<4x128xf32> -> vector<4x128xf32>
    %308 = arith.addf %302, %307 : vector<4x128xf32>
    %309 = vector.extract_strided_slice %263 {offsets = [0, 2, 0, 0], sizes = [1, 2, 2, 128], strides = [1, 1, 1, 1]} : vector<1x4x2x128xbf16> to vector<1x2x2x128xbf16>
    %310 = vector.shape_cast %309 : vector<1x2x2x128xbf16> to vector<4x128xbf16>
    %c7_201 = arith.constant 7 : index
    %c0_202 = arith.constant 0 : index
    %c0_203 = arith.constant 0 : index
    %311 = vector.load %arg11[%c7_201, %c0_202, %c0_203] : memref<9x128x128xbf16, #tpu.memory_space<vmem>>, vector<1x128x128xbf16>
    %312 = vector.shape_cast %311 : vector<1x128x128xbf16> to vector<128x128xbf16>
    %cst_204 = arith.constant dense<0.000000e+00> : vector<4x128xf32>
    %313 = tpu.matmul %310, %312, %cst_204 {dimension_numbers = #tpu.dot_dimension_numbers<[1], [0], [0], [1], [0, 0, 1, 1], [], []>} : vector<4x128xbf16>, vector<128x128xbf16>, vector<4x128xf32> -> vector<4x128xf32>
    %314 = arith.addf %308, %313 : vector<4x128xf32>
    %315 = vector.extract_strided_slice %265 {offsets = [0, 2, 0, 0], sizes = [1, 2, 2, 128], strides = [1, 1, 1, 1]} : vector<1x4x2x128xbf16> to vector<1x2x2x128xbf16>
    %316 = vector.shape_cast %315 : vector<1x2x2x128xbf16> to vector<4x128xbf16>
    %c8_205 = arith.constant 8 : index
    %c0_206 = arith.constant 0 : index
    %c0_207 = arith.constant 0 : index
    %317 = vector.load %arg11[%c8_205, %c0_206, %c0_207] : memref<9x128x128xbf16, #tpu.memory_space<vmem>>, vector<1x128x128xbf16>
    %318 = vector.shape_cast %317 : vector<1x128x128xbf16> to vector<128x128xbf16>
    %cst_208 = arith.constant dense<0.000000e+00> : vector<4x128xf32>
    %319 = tpu.matmul %316, %318, %cst_208 {dimension_numbers = #tpu.dot_dimension_numbers<[1], [0], [0], [1], [0, 0, 1, 1], [], []>} : vector<4x128xbf16>, vector<128x128xbf16>, vector<4x128xf32> -> vector<4x128xf32>
    %320 = arith.addf %314, %319 : vector<4x128xf32>
    %c0_209 = arith.constant 0 : index
    %c0_210 = arith.constant 0 : index
    %321 = vector.load %arg12[%c0_209, %c0_210] : memref<1x128xf32, #tpu.memory_space<vmem>>, vector<1x128xf32>
    %322 = vector.broadcast %321 : vector<1x128xf32> to vector<4x128xf32>
    %323 = arith.mulf %320, %322 : vector<4x128xf32>
    %c0_211 = arith.constant 0 : index
    %c0_212 = arith.constant 0 : index
    %324 = vector.load %arg13[%c0_211, %c0_212] : memref<1x128xf32, #tpu.memory_space<vmem>>, vector<1x128xf32>
    %325 = vector.broadcast %324 : vector<1x128xf32> to vector<4x128xf32>
    %326 = arith.addf %323, %325 : vector<4x128xf32>
    %cst_213 = arith.constant 0.000000e+00 : f32
    %327 = vector.broadcast %cst_213 : f32 to vector<4x128xf32>
    %328 = arith.maximumf %326, %327 : vector<4x128xf32>
    %329 = vector.shape_cast %328 : vector<4x128xf32> to vector<1x2x1x2x128xf32>
    %330 = vector.extract_strided_slice %329 {offsets = [0, 0, 0, 0, 0], sizes = [1, 1, 1, 2, 128], strides = [1, 1, 1, 1, 1]} : vector<1x2x1x2x128xf32> to vector<1x1x1x2x128xf32>
    %331 = vector.shape_cast %330 : vector<1x1x1x2x128xf32> to vector<1x1x2x128xf32>
    %332 = vector.extract_strided_slice %329 {offsets = [0, 1, 0, 0, 0], sizes = [1, 1, 1, 2, 128], strides = [1, 1, 1, 1, 1]} : vector<1x2x1x2x128xf32> to vector<1x1x1x2x128xf32>
    %333 = vector.shape_cast %332 : vector<1x1x1x2x128xf32> to vector<1x1x2x128xf32>
    %334 = arith.maximumf %331, %333 : vector<1x1x2x128xf32>
    %335 = vector.extract_strided_slice %334 {offsets = [0, 0, 0, 0], sizes = [1, 1, 1, 128], strides = [1, 1, 1, 1]} : vector<1x1x2x128xf32> to vector<1x1x1x128xf32>
    %336 = vector.shape_cast %335 : vector<1x1x1x128xf32> to vector<1x1x128xf32>
    %337 = vector.extract_strided_slice %334 {offsets = [0, 0, 1, 0], sizes = [1, 1, 1, 128], strides = [1, 1, 1, 1]} : vector<1x1x2x128xf32> to vector<1x1x1x128xf32>
    %338 = vector.shape_cast %337 : vector<1x1x1x128xf32> to vector<1x1x128xf32>
    %339 = arith.maximumf %336, %338 : vector<1x1x128xf32>
    %340 = vector.shape_cast %339 : vector<1x1x128xf32> to vector<1x1x1x128xf32>
    %341 = vector.shape_cast %340 : vector<1x1x1x128xf32> to vector<1x128xf32>
    %342 = arith.truncf %341 : vector<1x128xf32> to vector<1x128xbf16>
    %c0_214 = arith.constant 0 : index
    %c0_215 = arith.constant 0 : index
    %343 = vector.load %arg14[%c0_214, %c0_215] : memref<128x512xbf16, #tpu.memory_space<vmem>>, vector<128x512xbf16>
    %cst_216 = arith.constant dense<0.000000e+00> : vector<1x512xf32>
    %344 = tpu.matmul %342, %343, %cst_216 {dimension_numbers = #tpu.dot_dimension_numbers<[1], [0], [0], [1], [0, 0, 1, 1], [], []>} : vector<1x128xbf16>, vector<128x512xbf16>, vector<1x512xf32> -> vector<1x512xf32>
    %c0_217 = arith.constant 0 : index
    %c0_218 = arith.constant 0 : index
    %345 = vector.load %arg15[%c0_217, %c0_218] : memref<1x512xf32, #tpu.memory_space<vmem>>, vector<1x512xf32>
    %346 = arith.addf %344, %345 : vector<1x512xf32>
    %cst_219 = arith.constant 0.000000e+00 : f32
    %347 = vector.broadcast %cst_219 : f32 to vector<1x512xf32>
    %348 = arith.maximumf %346, %347 : vector<1x512xf32>
    %c0_220 = arith.constant 0 : index
    %c0_221 = arith.constant 0 : index
    %349 = vector.load %arg16[%c0_220, %c0_221] : memref<1x512xf32, #tpu.memory_space<vmem>>, vector<1x512xf32>
    %350 = arith.mulf %348, %349 : vector<1x512xf32>
    %cst_222 = arith.constant dense<0.000000e+00> : vector<1xf32>
    %351 = vector.multi_reduction <add>, %350, %cst_222 [1] : vector<1x512xf32> to vector<1xf32>
    %352 = vector.shape_cast %351 : vector<1xf32> to vector<1x1xf32>
    %c0_223 = arith.constant 0 : index
    %c0_224 = arith.constant 0 : index
    %353 = vector.load %arg17[%c0_223, %c0_224] : memref<1x1xf32, #tpu.memory_space<vmem>>, vector<1x1xf32>
    %354 = arith.addf %352, %353 : vector<1x1xf32>
    %355 = vector.shape_cast %354 : vector<1x1xf32> to vector<1x1x1xf32>
    %c0_225 = arith.constant 0 : index
    %c0_226 = arith.constant 0 : index
    %c0_227 = arith.constant 0 : index
    %356 = vector.load %arg18[%c0_225, %c0_226, %c0_227] : memref<1x1x1xf32, #tpu.memory_space<vmem>>, vector<1x1x1xf32>
    tpu.vector_store %arg18[%c0_225, %c0_226, %c0_227], %355 {strides = array<i32>} : memref<1x1x1xf32, #tpu.memory_space<vmem>>, vector<1x1x1xf32>,
    return
  }
  func.func @transform_0(%arg0: i32) -> (i32, i32, i32, i32) {
    %c0_i32 = arith.constant 0 : i32
    %c0_i32_0 = arith.constant 0 : i32
    %c0_i32_1 = arith.constant 0 : i32
    %c0_i32_2 = arith.constant 0 : i32
    return %arg0, %c0_i32, %c0_i32_0, %c0_i32_1 : i32, i32, i32, i32
  }
  func.func @transform_1(%arg0: i32) -> (i32, i32, i32) {
    %c0_i32 = arith.constant 0 : i32
    %c0_i32_0 = arith.constant 0 : i32
    %c0_i32_1 = arith.constant 0 : i32
    %c0_i32_2 = arith.constant 0 : i32
    return %c0_i32, %c0_i32_0, %c0_i32_1 : i32, i32, i32
  }
  func.func @transform_2(%arg0: i32) -> (i32, i32) {
    %c0_i32 = arith.constant 0 : i32
    %c0_i32_0 = arith.constant 0 : i32
    %c0_i32_1 = arith.constant 0 : i32
    return %c0_i32, %c0_i32_0 : i32, i32
  }
  func.func @transform_3(%arg0: i32) -> (i32, i32) {
    %c0_i32 = arith.constant 0 : i32
    %c0_i32_0 = arith.constant 0 : i32
    %c0_i32_1 = arith.constant 0 : i32
    return %c0_i32, %c0_i32_0 : i32, i32
  }
  func.func @transform_4(%arg0: i32) -> (i32, i32, i32) {
    %c0_i32 = arith.constant 0 : i32
    %c0_i32_0 = arith.constant 0 : i32
    %c0_i32_1 = arith.constant 0 : i32
    %c0_i32_2 = arith.constant 0 : i32
    return %c0_i32, %c0_i32_0, %c0_i32_1 : i32, i32, i32
  }
  func.func @transform_5(%arg0: i32) -> (i32, i32) {
    %c0_i32 = arith.constant 0 : i32
    %c0_i32_0 = arith.constant 0 : i32
    %c0_i32_1 = arith.constant 0 : i32
    return %c0_i32, %c0_i32_0 : i32, i32
  }
  func.func @transform_6(%arg0: i32) -> (i32, i32) {
    %c0_i32 = arith.constant 0 : i32
    %c0_i32_0 = arith.constant 0 : i32
    %c0_i32_1 = arith.constant 0 : i32
    return %c0_i32, %c0_i32_0 : i32, i32
  }
  func.func @transform_7(%arg0: i32) -> (i32, i32, i32) {
    %c0_i32 = arith.constant 0 : i32
    %c0_i32_0 = arith.constant 0 : i32
    %c0_i32_1 = arith.constant 0 : i32
    %c0_i32_2 = arith.constant 0 : i32
    return %c0_i32, %c0_i32_0, %c0_i32_1 : i32, i32, i32
  }
  func.func @transform_8(%arg0: i32) -> (i32, i32) {
    %c0_i32 = arith.constant 0 : i32
    %c0_i32_0 = arith.constant 0 : i32
    %c0_i32_1 = arith.constant 0 : i32
    return %c0_i32, %c0_i32_0 : i32, i32
  }
  func.func @transform_9(%arg0: i32) -> (i32, i32) {
    %c0_i32 = arith.constant 0 : i32
    %c0_i32_0 = arith.constant 0 : i32
    %c0_i32_1 = arith.constant 0 : i32
    return %c0_i32, %c0_i32_0 : i32, i32
  }
  func.func @transform_10(%arg0: i32) -> (i32, i32, i32) {
    %c0_i32 = arith.constant 0 : i32
    %c0_i32_0 = arith.constant 0 : i32
    %c0_i32_1 = arith.constant 0 : i32
    %c0_i32_2 = arith.constant 0 : i32
    return %c0_i32, %c0_i32_0, %c0_i32_1 : i32, i32, i32
  }
  func.func @transform_11(%arg0: i32) -> (i32, i32) {
    %c0_i32 = arith.constant 0 : i32
    %c0_i32_0 = arith.constant 0 : i32
    %c0_i32_1 = arith.constant 0 : i32
    return %c0_i32, %c0_i32_0 : i32, i32
  }
  func.func @transform_12(%arg0: i32) -> (i32, i32) {
    %c0_i32 = arith.constant 0 : i32
    %c0_i32_0 = arith.constant 0 : i32
    %c0_i32_1 = arith.constant 0 : i32
    return %c0_i32, %c0_i32_0 : i32, i32
  }
  func.func @transform_13(%arg0: i32) -> (i32, i32) {
    %c0_i32 = arith.constant 0 : i32
    %c0_i32_0 = arith.constant 0 : i32
    %c0_i32_1 = arith.constant 0 : i32
    return %c0_i32, %c0_i32_0 : i32, i32
  }
  func.func @transform_14(%arg0: i32) -> (i32, i32) {
    %c0_i32 = arith.constant 0 : i32
    %c0_i32_0 = arith.constant 0 : i32
    %c0_i32_1 = arith.constant 0 : i32
    return %c0_i32, %c0_i32_0 : i32, i32
  }
  func.func @transform_15(%arg0: i32) -> (i32, i32) {
    %c0_i32 = arith.constant 0 : i32
    %c0_i32_0 = arith.constant 0 : i32
    %c0_i32_1 = arith.constant 0 : i32
    return %c0_i32, %c0_i32_0 : i32, i32
  }
  func.func @transform_16(%arg0: i32) -> (i32, i32) {
    %c0_i32 = arith.constant 0 : i32
    %c0_i32_0 = arith.constant 0 : i32
    %c0_i32_1 = arith.constant 0 : i32
    return %c0_i32, %c0_i32_0 : i32, i32
  }
  func.func @transform_17(%arg0: i32) -> (i32, i32, i32) {
    %c0_i32 = arith.constant 0 : i32
    %c0_i32_0 = arith.constant 0 : i32
    %c0_i32_1 = arith.constant 0 : i32
    return %arg0, %c0_i32, %c0_i32_0 : i32, i32, i32
  }
}

</mosaic_0001>

<llo_original>
// kernel: cnn_4c_forward.1
$region0: #{cnn_4c_forward.1}
  #allocation0 [shape = 'u32[]', space=smem, size = 0x4, offset = 0x4, fixed_abs, tag = 'smem constant byte address 0x4 - core index']
  #allocation1 [shape = 'u32[72,128]{1,0:T(1,128)}', space=vmem, size = 0x9000, scoped, tag = 'internal scratch']
  #allocation2 [shape = 'f32[1,18,18,128]{3,2,1,0:T(8,128)}', space=vmem, size = 0x36000, scoped, tag = 'scratch operand']
  #allocation3 [shape = 'f32[1,10,10,128]{3,2,1,0:T(8,128)}', space=vmem, size = 0x14000, scoped, tag = 'scratch operand']
  #allocation4 [shape = 'f32[1,6,6,128]{3,2,1,0:T(8,128)}', space=vmem, size = 0x6000, scoped, tag = 'scratch operand']
  #allocation5 [shape = 'f32[1,4,4,128]{3,2,1,0:T(4,128)}', space=vmem, size = 0x2000, scoped, tag = 'scratch operand']
  #allocation6 [shape = 'f32[1,1]{1,0:T(1,128)S(1)}', space=vmem, size = 0x200, scoped, tag = 'scoped memory for cnn_4c_forward.1']
  %s0 = inlined_call_operand.vmem [shape: f32[2,16,16,3], index: 0, kind: input, shape index: {}]
  %s1 = inlined_call_operand.vmem [shape: bf16[9,128,128], index: 1, kind: input, shape index: {}]
  %s2 = inlined_call_operand.vmem [shape: f32[1,128], index: 2, kind: input, shape index: {}]
  %s3 = inlined_call_operand.vmem [shape: f32[1,128], index: 3, kind: input, shape index: {}]
  %s4 = inlined_call_operand.hbm [shape: bf16[9,128,128], index: 4, kind: input, shape index: {}]
  %s5 = inlined_call_operand.vmem [shape: f32[1,128], index: 5, kind: input, shape index: {}]
  %s6 = inlined_call_operand.vmem [shape: f32[1,128], index: 6, kind: input, shape index: {}]
  %s7 = inlined_call_operand.hbm [shape: bf16[9,128,128], index: 7, kind: input, shape index: {}]
  %s8 = inlined_call_operand.vmem [shape: f32[1,128], index: 8, kind: input, shape index: {}]
  %s9 = inlined_call_operand.vmem [shape: f32[1,128], index: 9, kind: input, shape index: {}]
  %s10 = inlined_call_operand.hbm [shape: bf16[9,128,128], index: 10, kind: input, shape index: {}]
  %s11 = inlined_call_operand.vmem [shape: f32[1,128], index: 11, kind: input, shape index: {}]
  %s12 = inlined_call_operand.vmem [shape: f32[1,128], index: 12, kind: input, shape index: {}]
  %s13 = inlined_call_operand.hbm [shape: bf16[128,512], index: 13, kind: input, shape index: {}]
  %s14 = inlined_call_operand.vmem [shape: f32[1,512], index: 14, kind: input, shape index: {}]
  %s15 = inlined_call_operand.vmem [shape: f32[1,512], index: 15, kind: input, shape index: {}]
  %s16 = inlined_call_operand.<no memory space> [shape: f32[1,1], index: 16, kind: input, shape index: {}]
  %s17 = inlined_call_operand.vmem [shape: f32[2,1,1], index: 17, kind: output, shape index: {}]
  %s18 = sld [smem:[#allocation0]]
  $region117: #{cnn_4c_forward.1} parent=0
    _
  %s20 = ssub.s32 1, %s18
  %s21 = scalar_select 0, %s20, %s18
  %v22 = vstv %s16
  %23 = vst [vmem:[#allocation6] sm:$0x1] %v22
  $region1: #{cnn_4c_forward.1} parent=0
    #allocation7 [shape = 'u8[294912]{0}', space=vmem, size = 0x48000, scoped, tag = 'input window, operand 4, single buffered']
    #allocation8 [shape = 's32[2]{0}', space=sflag, size = 0x8, scoped, tag = 'scoped memory for cnn_4c_forward.1']
    #allocation9 [shape = 'u8[294912]{0}', space=vmem, size = 0x48000, scoped, tag = 'input window, operand 7, single buffered']
    #allocation10 [shape = 's32[1]{0}', space=sflag, size = 0x4, scoped, tag = 'scoped memory for cnn_4c_forward.1']
    #allocation11 [shape = 'u8[294912]{0}', space=vmem, size = 0x48000, scoped, tag = 'input window, operand 10, single buffered']
    #allocation12 [shape = 'u8[131072]{0}', space=vmem, size = 0x20000, scoped, tag = 'input window, operand 13, single buffered']
    #allocation13 [shape = 's32[1]{0}', space=sflag, size = 0x4, scoped, tag = 'scoped memory for cnn_4c_forward.1']
    %24 = vsyncpa [#allocation8], 0
    %25 = vsyncpa [#allocation10], 0
    %26 = vsyncpa [#allocation13], 0
    loop: start=0, step=1, limit=4
    $region2: #{cnn_4c_forward.1} parent=1 // loop_pre_header
      _
    $region3: #{cnn_4c_forward.1} parent=1 // loop_header
      %s28 = sphi 0, %s32
      %p29 = scmp.ge.s32.totalorder %s28, 4
      %s38 = sphi 0, %s40
      %s41 = sphi 0, %s38
      %s42 = sphi 0, %s41
      %s58 = sphi 0, %s42
      %s62 = sphi 0, %s62
      %s64 = sphi 0, %s62
      %s65 = sphi 0, %s64
      %s79 = sphi 0, %s65
      %s83 = sphi 0, %s83
      %s85 = sphi 0, %s83
      %s86 = sphi 0, %s85
      %s100 = sphi 0, %s86
      %s104 = sphi 0, %s104
      %s106 = sphi 0, %s104
      %s107 = sphi 0, %s106
      %s121 = sphi 0, %s107
      %s125 = sphi 0, %s125
      %s127 = sphi 0, %s125
      %s128 = sphi 0, %s127
      %s142 = sphi 0, %s128
      %s146 = sphi 0, %s146
      %s148 = sphi 0, %s146
      %s149 = sphi 0, %s148
      %s163 = sphi 0, %s149
      %s167 = sphi 0, %s167
      %s169 = sphi 0, %s167
      %s170 = sphi 0, %s169
      %s184 = sphi 0, %s170
      %s188 = sphi 0, %s188
      %s190 = sphi 0, %s188
      %s191 = sphi 0, %s190
      %s205 = sphi 0, %s191
      %s209 = sphi 0, %s209
      %s211 = sphi 0, %s209
      %s212 = sphi 0, %s211
      %s226 = sphi 0, %s212
      %s230 = sphi 0, %s230
      %s232 = sphi 0, %s230
      %s233 = sphi 0, %s232
      %s247 = sphi 0, %s233
      %s251 = sphi 0, %s251
      %s253 = sphi 0, %s251
      %s254 = sphi 0, %s253
      %s268 = sphi 0, %s254
      %s272 = sphi 0, %s272
      %s274 = sphi 0, %s272
      %s275 = sphi 0, %s274
      %s289 = sphi 0, %s275
      %s293 = sphi 0, %s293
      %s295 = sphi 0, %s293
      %s296 = sphi 0, %s295
      %s310 = sphi 0, %s296
      %s314 = sphi 0, %s314
      %s316 = sphi 0, %s314
      %s317 = sphi 0, %s316
      %s331 = sphi 0, %s317
      %s335 = sphi 0, %s335
      %s337 = sphi 0, %s335
      %s338 = sphi 0, %s337
      %s352 = sphi 0, %s338
      %s356 = sphi 0, %s356
      %s358 = sphi 0, %s356
      %s359 = sphi 0, %s358
      %s373 = sphi 0, %s359
      %s377 = sphi 0, %s377
      %s379 = sphi 0, %s377
      %s380 = sphi 0, %s379
      %s394 = sphi 0, %s380
      %s400 = sphi 0, %s402
      %s403 = sphi 0, %s400
      %s404 = sphi 0, %s403
      %s420 = sphi 0, %s404
    $region4: #{cnn_4c_forward.1} parent=1 // loop_header_branch
      %31 = sbr.rel (%p29) target = $region8
    $region5: #{cnn_4c_forward.1} parent=1 // loop_body
      %s33 = ssub.s32 %s28, 1
      %s34 = ssub.s32 %s28, 2
      %s35 = sadd.s32 %s28, 1
      %s36 = ssub.s32 %s28, %s35
      %p37 = scmp.eq.s32.totalorder %s36, 0
      %s39 = sadd.s32 %s38, 1
      %s40 = scalar_select %p37, %s38, %s39
      %p43 = pneg %p37
      %p44 = scmp.eq.s32.totalorder %s28, 1
      %p45 = por %p43, %p44
      %p46 = scmp.ne.s32.totalorder %s38, %s41
      %p47 = scmp.eq.s32.totalorder %s28, 0
      %p48 = por %p46, %p47
      %p49 = scmp.ne.s32.totalorder %s38, %s41
      %p50 = scmp.eq.s32.totalorder %s33, 1
      %p51 = por %p49, %p50
      %p52 = scmp.ne.s32.totalorder %s41, %s42
      %p53 = scmp.eq.s32.totalorder %s33, 0
      %p54 = por %p52, %p53
      %p55 = scmp.ne.s32.totalorder %s41, %s42
      %p56 = scmp.eq.s32.totalorder %s34, 1
      %p57 = por %p55, %p56
      %p59 = scmp.ne.s32.totalorder %s42, %s58
      %p60 = scmp.eq.s32.totalorder %s34, 0
      %p61 = por %p59, %p60
      %s63 = sadd.s32 %s62, 1
      %p66 = scmp.eq.s32.totalorder %s28, 1
      %p67 = scmp.ne.s32.totalorder %s62, %s64
      %p68 = scmp.eq.s32.totalorder %s28, 0
      %p69 = por %p67, %p68
      %p70 = scmp.ne.s32.totalorder %s62, %s64
      %p71 = scmp.eq.s32.totalorder %s33, 1
      %p72 = por %p70, %p71
      %p73 = scmp.ne.s32.totalorder %s64, %s65
      %p74 = scmp.eq.s32.totalorder %s33, 0
      %p75 = por %p73, %p74
      %p76 = scmp.ne.s32.totalorder %s64, %s65
      %p77 = scmp.eq.s32.totalorder %s34, 1
      %p78 = por %p76, %p77
      %p80 = scmp.ne.s32.totalorder %s65, %s79
      %p81 = scmp.eq.s32.totalorder %s34, 0
      %p82 = por %p80, %p81
      %s84 = sadd.s32 %s83, 1
      %p87 = scmp.eq.s32.totalorder %s28, 1
      %p88 = scmp.ne.s32.totalorder %s83, %s85
      %p89 = scmp.eq.s32.totalorder %s28, 0
      %p90 = por %p88, %p89
      %p91 = scmp.ne.s32.totalorder %s83, %s85
      %p92 = scmp.eq.s32.totalorder %s33, 1
      %p93 = por %p91, %p92
      %p94 = scmp.ne.s32.totalorder %s85, %s86
      %p95 = scmp.eq.s32.totalorder %s33, 0
      %p96 = por %p94, %p95
      %p97 = scmp.ne.s32.totalorder %s85, %s86
      %p98 = scmp.eq.s32.totalorder %s34, 1
      %p99 = por %p97, %p98
      %p101 = scmp.ne.s32.totalorder %s86, %s100
      %p102 = scmp.eq.s32.totalorder %s34, 0
      %p103 = por %p101, %p102
      %s105 = sadd.s32 %s104, 1
      %p108 = scmp.eq.s32.totalorder %s28, 1
      %p109 = scmp.ne.s32.totalorder %s104, %s106
      %p110 = scmp.eq.s32.totalorder %s28, 0
      %p111 = por %p109, %p110
      %p112 = scmp.ne.s32.totalorder %s104, %s106
      %p113 = scmp.eq.s32.totalorder %s33, 1
      %p114 = por %p112, %p113
      %p115 = scmp.ne.s32.totalorder %s106, %s107
      %p116 = scmp.eq.s32.totalorder %s33, 0
      %p117 = por %p115, %p116
      %p118 = scmp.ne.s32.totalorder %s106, %s107
      %p119 = scmp.eq.s32.totalorder %s34, 1
      %p120 = por %p118, %p119
      %p122 = scmp.ne.s32.totalorder %s107, %s121
      %p123 = scmp.eq.s32.totalorder %s34, 0
      %p124 = por %p122, %p123
      %s126 = sadd.s32 %s125, 1
      %p129 = scmp.eq.s32.totalorder %s28, 1
      %p130 = scmp.ne.s32.totalorder %s125, %s127
      %p131 = scmp.eq.s32.totalorder %s28, 0
      %p132 = por %p130, %p131
      %p133 = scmp.ne.s32.totalorder %s125, %s127
      %p134 = scmp.eq.s32.totalorder %s33, 1
      %p135 = por %p133, %p134
      %p136 = scmp.ne.s32.totalorder %s127, %s128
      %p137 = scmp.eq.s32.totalorder %s33, 0
      %p138 = por %p136, %p137
      %p139 = scmp.ne.s32.totalorder %s127, %s128
      %p140 = scmp.eq.s32.totalorder %s34, 1
      %p141 = por %p139, %p140
      %p143 = scmp.ne.s32.totalorder %s128, %s142
      %p144 = scmp.eq.s32.totalorder %s34, 0
      %p145 = por %p143, %p144
      %s147 = sadd.s32 %s146, 1
      %p150 = scmp.eq.s32.totalorder %s28, 1
      %p151 = scmp.ne.s32.totalorder %s146, %s148
      %p152 = scmp.eq.s32.totalorder %s28, 0
      %p153 = por %p151, %p152
      %p154 = scmp.ne.s32.totalorder %s146, %s148
      %p155 = scmp.eq.s32.totalorder %s33, 1
      %p156 = por %p154, %p155
      %p157 = scmp.ne.s32.totalorder %s148, %s149
      %p158 = scmp.eq.s32.totalorder %s33, 0
      %p159 = por %p157, %p158
      %p160 = scmp.ne.s32.totalorder %s148, %s149
      %p161 = scmp.eq.s32.totalorder %s34, 1
      %p162 = por %p160, %p161
      %p164 = scmp.ne.s32.totalorder %s149, %s163
      %p165 = scmp.eq.s32.totalorder %s34, 0
      %p166 = por %p164, %p165
      %s168 = sadd.s32 %s167, 1
      %p171 = scmp.eq.s32.totalorder %s28, 1
      %p172 = scmp.ne.s32.totalorder %s167, %s169
      %p173 = scmp.eq.s32.totalorder %s28, 0
      %p174 = por %p172, %p173
      %p175 = scmp.ne.s32.totalorder %s167, %s169
      %p176 = scmp.eq.s32.totalorder %s33, 1
      %p177 = por %p175, %p176
      %p178 = scmp.ne.s32.totalorder %s169, %s170
      %p179 = scmp.eq.s32.totalorder %s33, 0
      %p180 = por %p178, %p179
      %p181 = scmp.ne.s32.totalorder %s169, %s170
      %p182 = scmp.eq.s32.totalorder %s34, 1
      %p183 = por %p181, %p182
      %p185 = scmp.ne.s32.totalorder %s170, %s184
      %p186 = scmp.eq.s32.totalorder %s34, 0
      %p187 = por %p185, %p186
      %s189 = sadd.s32 %s188, 1
      %p192 = scmp.eq.s32.totalorder %s28, 1
      %p193 = scmp.ne.s32.totalorder %s188, %s190
      %p194 = scmp.eq.s32.totalorder %s28, 0
      %p195 = por %p193, %p194
      %p196 = scmp.ne.s32.totalorder %s188, %s190
      %p197 = scmp.eq.s32.totalorder %s33, 1
      %p198 = por %p196, %p197
      %p199 = scmp.ne.s32.totalorder %s190, %s191
      %p200 = scmp.eq.s32.totalorder %s33, 0
      %p201 = por %p199, %p200
      %p202 = scmp.ne.s32.totalorder %s190, %s191
      %p203 = scmp.eq.s32.totalorder %s34, 1
      %p204 = por %p202, %p203
      %p206 = scmp.ne.s32.totalorder %s191, %s205
      %p207 = scmp.eq.s32.totalorder %s34, 0
      %p208 = por %p206, %p207
      %s210 = sadd.s32 %s209, 1
      %p213 = scmp.eq.s32.totalorder %s28, 1
      %p214 = scmp.ne.s32.totalorder %s209, %s211
      %p215 = scmp.eq.s32.totalorder %s28, 0
      %p216 = por %p214, %p215
      %p217 = scmp.ne.s32.totalorder %s209, %s211
      %p218 = scmp.eq.s32.totalorder %s33, 1
      %p219 = por %p217, %p218
      %p220 = scmp.ne.s32.totalorder %s211, %s212
      %p221 = scmp.eq.s32.totalorder %s33, 0
      %p222 = por %p220, %p221
      %p223 = scmp.ne.s32.totalorder %s211, %s212
      %p224 = scmp.eq.s32.totalorder %s34, 1
      %p225 = por %p223, %p224
      %p227 = scmp.ne.s32.totalorder %s212, %s226
      %p228 = scmp.eq.s32.totalorder %s34, 0
      %p229 = por %p227, %p228
      %s231 = sadd.s32 %s230, 1
      %p234 = scmp.eq.s32.totalorder %s28, 1
      %p235 = scmp.ne.s32.totalorder %s230, %s232
      %p236 = scmp.eq.s32.totalorder %s28, 0
      %p237 = por %p235, %p236
      %p238 = scmp.ne.s32.totalorder %s230, %s232
      %p239 = scmp.eq.s32.totalorder %s33, 1
      %p240 = por %p238, %p239
      %p241 = scmp.ne.s32.totalorder %s232, %s233
      %p242 = scmp.eq.s32.totalorder %s33, 0
      %p243 = por %p241, %p242
      %p244 = scmp.ne.s32.totalorder %s232, %s233
      %p245 = scmp.eq.s32.totalorder %s34, 1
      %p246 = por %p244, %p245
      %p248 = scmp.ne.s32.totalorder %s233, %s247
      %p249 = scmp.eq.s32.totalorder %s34, 0
      %p250 = por %p248, %p249
      %s252 = sadd.s32 %s251, 1
      %p255 = scmp.eq.s32.totalorder %s28, 1
      %p256 = scmp.ne.s32.totalorder %s251, %s253
      %p257 = scmp.eq.s32.totalorder %s28, 0
      %p258 = por %p256, %p257
      %p259 = scmp.ne.s32.totalorder %s251, %s253
      %p260 = scmp.eq.s32.totalorder %s33, 1
      %p261 = por %p259, %p260
      %p262 = scmp.ne.s32.totalorder %s253, %s254
      %p263 = scmp.eq.s32.totalorder %s33, 0
      %p264 = por %p262, %p263
      %p265 = scmp.ne.s32.totalorder %s253, %s254
      %p266 = scmp.eq.s32.totalorder %s34, 1
      %p267 = por %p265, %p266
      %p269 = scmp.ne.s32.totalorder %s254, %s268
      %p270 = scmp.eq.s32.totalorder %s34, 0
      %p271 = por %p269, %p270
      %s273 = sadd.s32 %s272, 1
      %p276 = scmp.eq.s32.totalorder %s28, 1
      %p277 = scmp.ne.s32.totalorder %s272, %s274
      %p278 = scmp.eq.s32.totalorder %s28, 0
      %p279 = por %p277, %p278
      %p280 = scmp.ne.s32.totalorder %s272, %s274
      %p281 = scmp.eq.s32.totalorder %s33, 1
      %p282 = por %p280, %p281
      %p283 = scmp.ne.s32.totalorder %s274, %s275
      %p284 = scmp.eq.s32.totalorder %s33, 0
      %p285 = por %p283, %p284
      %p286 = scmp.ne.s32.totalorder %s274, %s275
      %p287 = scmp.eq.s32.totalorder %s34, 1
      %p288 = por %p286, %p287
      %p290 = scmp.ne.s32.totalorder %s275, %s289
      %p291 = scmp.eq.s32.totalorder %s34, 0
      %p292 = por %p290, %p291
      %s294 = sadd.s32 %s293, 1
      %p297 = scmp.eq.s32.totalorder %s28, 1
      %p298 = scmp.ne.s32.totalorder %s293, %s295
      %p299 = scmp.eq.s32.totalorder %s28, 0
      %p300 = por %p298, %p299
      %p301 = scmp.ne.s32.totalorder %s293, %s295
      %p302 = scmp.eq.s32.totalorder %s33, 1
      %p303 = por %p301, %p302
      %p304 = scmp.ne.s32.totalorder %s295, %s296
      %p305 = scmp.eq.s32.totalorder %s33, 0
      %p306 = por %p304, %p305
      %p307 = scmp.ne.s32.totalorder %s295, %s296
      %p308 = scmp.eq.s32.totalorder %s34, 1
      %p309 = por %p307, %p308
      %p311 = scmp.ne.s32.totalorder %s296, %s310
      %p312 = scmp.eq.s32.totalorder %s34, 0
      %p313 = por %p311, %p312
      %s315 = sadd.s32 %s314, 1
      %p318 = scmp.eq.s32.totalorder %s28, 1
      %p319 = scmp.ne.s32.totalorder %s314, %s316
      %p320 = scmp.eq.s32.totalorder %s28, 0
      %p321 = por %p319, %p320
      %p322 = scmp.ne.s32.totalorder %s314, %s316
      %p323 = scmp.eq.s32.totalorder %s33, 1
      %p324 = por %p322, %p323
      %p325 = scmp.ne.s32.totalorder %s316, %s317
      %p326 = scmp.eq.s32.totalorder %s33, 0
      %p327 = por %p325, %p326
      %p328 = scmp.ne.s32.totalorder %s316, %s317
      %p329 = scmp.eq.s32.totalorder %s34, 1
      %p330 = por %p328, %p329
      %p332 = scmp.ne.s32.totalorder %s317, %s331
      %p333 = scmp.eq.s32.totalorder %s34, 0
      %p334 = por %p332, %p333
      %s336 = sadd.s32 %s335, 1
      %p339 = scmp.eq.s32.totalorder %s28, 1
      %p340 = scmp.ne.s32.totalorder %s335, %s337
      %p341 = scmp.eq.s32.totalorder %s28, 0
      %p342 = por %p340, %p341
      %p343 = scmp.ne.s32.totalorder %s335, %s337
      %p344 = scmp.eq.s32.totalorder %s33, 1
      %p345 = por %p343, %p344
      %p346 = scmp.ne.s32.totalorder %s337, %s338
      %p347 = scmp.eq.s32.totalorder %s33, 0
      %p348 = por %p346, %p347
      %p349 = scmp.ne.s32.totalorder %s337, %s338
      %p350 = scmp.eq.s32.totalorder %s34, 1
      %p351 = por %p349, %p350
      %p353 = scmp.ne.s32.totalorder %s338, %s352
      %p354 = scmp.eq.s32.totalorder %s34, 0
      %p355 = por %p353, %p354
      %s357 = sadd.s32 %s356, 1
      %p360 = scmp.eq.s32.totalorder %s28, 1
      %p361 = scmp.ne.s32.totalorder %s356, %s358
      %p362 = scmp.eq.s32.totalorder %s28, 0
      %p363 = por %p361, %p362
      %p364 = scmp.ne.s32.totalorder %s356, %s358
      %p365 = scmp.eq.s32.totalorder %s33, 1
      %p366 = por %p364, %p365
      %p367 = scmp.ne.s32.totalorder %s358, %s359
      %p368 = scmp.eq.s32.totalorder %s33, 0
      %p369 = por %p367, %p368
      %p370 = scmp.ne.s32.totalorder %s358, %s359
      %p371 = scmp.eq.s32.totalorder %s34, 1
      %p372 = por %p370, %p371
      %p374 = scmp.ne.s32.totalorder %s359, %s373
      %p375 = scmp.eq.s32.totalorder %s34, 0
      %p376 = por %p374, %p375
      %s378 = sadd.s32 %s377, 1
      %p381 = scmp.eq.s32.totalorder %s28, 1
      %p382 = scmp.ne.s32.totalorder %s377, %s379
      %p383 = scmp.eq.s32.totalorder %s28, 0
      %p384 = por %p382, %p383
      %p385 = scmp.ne.s32.totalorder %s377, %s379
      %p386 = scmp.eq.s32.totalorder %s33, 1
      %p387 = por %p385, %p386
      %p388 = scmp.ne.s32.totalorder %s379, %s380
      %p389 = scmp.eq.s32.totalorder %s33, 0
      %p390 = por %p388, %p389
      %p391 = scmp.ne.s32.totalorder %s379, %s380
      %p392 = scmp.eq.s32.totalorder %s34, 1
      %p393 = por %p391, %p392
      %p395 = scmp.ne.s32.totalorder %s380, %s394
      %p396 = scmp.eq.s32.totalorder %s34, 0
      %p397 = por %p395, %p396
      %s398 = ssub.s32 %s28, %s35
      %p399 = scmp.eq.s32.totalorder %s398, 0
      %s401 = sadd.s32 %s400, 1
      %s402 = scalar_select %p399, %s400, %s401
      %p405 = pneg %p399
      %p406 = scmp.eq.s32.totalorder %s28, 1
      %p407 = por %p405, %p406
      %p408 = scmp.ne.s32.totalorder %s400, %s403
      %p409 = scmp.eq.s32.totalorder %s28, 0
      %p410 = por %p408, %p409
      %p411 = scmp.ne.s32.totalorder %s400, %s403
      %p412 = scmp.eq.s32.totalorder %s33, 1
      %p413 = por %p411, %p412
      %p414 = scmp.ne.s32.totalorder %s403, %s404
      %p415 = scmp.eq.s32.totalorder %s33, 0
      %p416 = por %p414, %p415
      %p417 = scmp.ne.s32.totalorder %s403, %s404
      %p418 = scmp.eq.s32.totalorder %s34, 1
      %p419 = por %p417, %p418
      %p421 = scmp.ne.s32.totalorder %s404, %s420
      %p422 = scmp.eq.s32.totalorder %s34, 0
      %p423 = por %p421, %p422
      %p424 = scmp.le.s32.totalorder 1, %s28
      %p425 = scmp.lt.s32.totalorder %s28, 3
      %p426 = pnand %p424, %p425
      %p427 = pneg %p426
      // Predicated region
      $region9: #{cnn_4c_forward.1} parent=5 // pred_check
        _
      $region10: #{cnn_4c_forward.1} parent=5 // pred_check_branch
        %429 = sbr.rel (%p426) target = $region12
      $region11: #{cnn_4c_forward.1} parent=5 // pred_region
        %s430 = ssub.s32 %s28, 1
        // Predicated region
        $region13: #{cnn_4c_forward.1} parent=11 // pred_check
          %p431 = pneg %p75
        $region14: #{cnn_4c_forward.1} parent=11 // pred_check_branch
          %433 = sbr.rel (%p431) target = $region16
        $region15: #{cnn_4c_forward.1} parent=11 // pred_region
          _
        $region16: #{cnn_4c_forward.1} parent=11 // pred_fallthru
          _
        // Predicated region
        $region17: #{cnn_4c_forward.1} parent=11 // pred_check
          %p434 = pneg %p96
        $region18: #{cnn_4c_forward.1} parent=11 // pred_check_branch
          %436 = sbr.rel (%p434) target = $region20
        $region19: #{cnn_4c_forward.1} parent=11 // pred_region
          _
        $region20: #{cnn_4c_forward.1} parent=11 // pred_fallthru
          _
        // Predicated region
        $region21: #{cnn_4c_forward.1} parent=11 // pred_check
          %p437 = pneg %p117
        $region22: #{cnn_4c_forward.1} parent=11 // pred_check_branch
          %439 = sbr.rel (%p437) target = $region24
        $region23: #{cnn_4c_forward.1} parent=11 // pred_region
          _
        $region24: #{cnn_4c_forward.1} parent=11 // pred_fallthru
          _
        // Predicated region
        $region25: #{cnn_4c_forward.1} parent=11 // pred_check
          %p440 = pneg %p138
        $region26: #{cnn_4c_forward.1} parent=11 // pred_check_branch
          %442 = sbr.rel (%p440) target = $region28
        $region27: #{cnn_4c_forward.1} parent=11 // pred_region
          %444 = vsyncadd [#allocation8], 0
          %s445 = sshll.u32 %s4, 4
          %s446 = int_to_ptr.hbm [resolvable:$true] %s445
          %s447 = sshll.u32 [#allocation7], 4
          %s448 = int_to_ptr.vmem [resolvable:$true] %s447
          %453 = dma.hbm_to_vmem [thread:$0]  %s446, 9216, %s448, [#allocation8], 64, 64, 4
        $region28: #{cnn_4c_forward.1} parent=11 // pred_fallthru
          _
        // Predicated region
        $region29: #{cnn_4c_forward.1} parent=11 // pred_check
          %p454 = pneg %p159
        $region30: #{cnn_4c_forward.1} parent=11 // pred_check_branch
          %456 = sbr.rel (%p454) target = $region32
        $region31: #{cnn_4c_forward.1} parent=11 // pred_region
          _
        $region32: #{cnn_4c_forward.1} parent=11 // pred_fallthru
          _
        // Predicated region
        $region33: #{cnn_4c_forward.1} parent=11 // pred_check
          %p457 = pneg %p180
        $region34: #{cnn_4c_forward.1} parent=11 // pred_check_branch
          %459 = sbr.rel (%p457) target = $region36
        $region35: #{cnn_4c_forward.1} parent=11 // pred_region
          _
        $region36: #{cnn_4c_forward.1} parent=11 // pred_fallthru
          _
        // Predicated region
        $region37: #{cnn_4c_forward.1} parent=11 // pred_check
          %p460 = pneg %p201
        $region38: #{cnn_4c_forward.1} parent=11 // pred_check_branch
          %462 = sbr.rel (%p460) target = $region40
        $region39: #{cnn_4c_forward.1} parent=11 // pred_region
          %464 = vsyncadd [#allocation10], 0
          %s465 = sshll.u32 %s7, 4
          %s466 = int_to_ptr.hbm [resolvable:$true] %s465
          %s467 = sshll.u32 [#allocation9], 4
          %s468 = int_to_ptr.vmem [resolvable:$true] %s467
          %473 = dma.hbm_to_vmem [thread:$0]  %s466, 9216, %s468, [#allocation10], 64, 64, 4
        $region40: #{cnn_4c_forward.1} parent=11 // pred_fallthru
          _
        // Predicated region
        $region41: #{cnn_4c_forward.1} parent=11 // pred_check
          %p474 = pneg %p222
        $region42: #{cnn_4c_forward.1} parent=11 // pred_check_branch
          %476 = sbr.rel (%p474) target = $region44
        $region43: #{cnn_4c_forward.1} parent=11 // pred_region
          _
        $region44: #{cnn_4c_forward.1} parent=11 // pred_fallthru
          _
        // Predicated region
        $region45: #{cnn_4c_forward.1} parent=11 // pred_check
          %p477 = pneg %p243
        $region46: #{cnn_4c_forward.1} parent=11 // pred_check_branch
          %479 = sbr.rel (%p477) target = $region48
        $region47: #{cnn_4c_forward.1} parent=11 // pred_region
          _
        $region48: #{cnn_4c_forward.1} parent=11 // pred_fallthru
          _
        // Predicated region
        $region49: #{cnn_4c_forward.1} parent=11 // pred_check
          %p480 = pneg %p264
        $region50: #{cnn_4c_forward.1} parent=11 // pred_check_branch
          %482 = sbr.rel (%p480) target = $region52
        $region51: #{cnn_4c_forward.1} parent=11 // pred_region
          %484 = vsyncadd [#allocation10], 0
          %s485 = sshll.u32 %s10, 4
          %s486 = int_to_ptr.hbm [resolvable:$true] %s485
          %s487 = sshll.u32 [#allocation11], 4
          %s488 = int_to_ptr.vmem [resolvable:$true] %s487
          %493 = dma.hbm_to_vmem [thread:$0]  %s486, 9216, %s488, [#allocation10], 64, 64, 4
        $region52: #{cnn_4c_forward.1} parent=11 // pred_fallthru
          _
        // Predicated region
        $region53: #{cnn_4c_forward.1} parent=11 // pred_check
          %p494 = pneg %p285
        $region54: #{cnn_4c_forward.1} parent=11 // pred_check_branch
          %496 = sbr.rel (%p494) target = $region56
        $region55: #{cnn_4c_forward.1} parent=11 // pred_region
          _
        $region56: #{cnn_4c_forward.1} parent=11 // pred_fallthru
          _
        // Predicated region
        $region57: #{cnn_4c_forward.1} parent=11 // pred_check
          %p497 = pneg %p306
        $region58: #{cnn_4c_forward.1} parent=11 // pred_check_branch
          %499 = sbr.rel (%p497) target = $region60
        $region59: #{cnn_4c_forward.1} parent=11 // pred_region
          _
        $region60: #{cnn_4c_forward.1} parent=11 // pred_fallthru
          _
        // Predicated region
        $region61: #{cnn_4c_forward.1} parent=11 // pred_check
          %p500 = pneg %p327
        $region62: #{cnn_4c_forward.1} parent=11 // pred_check_branch
          %502 = sbr.rel (%p500) target = $region64
        $region63: #{cnn_4c_forward.1} parent=11 // pred_region
          %504 = vsyncadd [#allocation13], 0
          %s505 = sshll.u32 %s13, 4
          %s506 = int_to_ptr.hbm [resolvable:$true] %s505
          %s507 = sshll.u32 [#allocation12], 4
          %s508 = int_to_ptr.vmem [resolvable:$true] %s507
          %513 = dma.hbm_to_vmem [thread:$0]  %s506, 4096, %s508, [#allocation13], 256, 256, 16
        $region64: #{cnn_4c_forward.1} parent=11 // pred_fallthru
          _
        // Predicated region
        $region65: #{cnn_4c_forward.1} parent=11 // pred_check
          %p514 = pneg %p348
        $region66: #{cnn_4c_forward.1} parent=11 // pred_check_branch
          %516 = sbr.rel (%p514) target = $region68
        $region67: #{cnn_4c_forward.1} parent=11 // pred_region
          _
        $region68: #{cnn_4c_forward.1} parent=11 // pred_fallthru
          _
        // Predicated region
        $region69: #{cnn_4c_forward.1} parent=11 // pred_check
          %p517 = pneg %p369
        $region70: #{cnn_4c_forward.1} parent=11 // pred_check_branch
          %519 = sbr.rel (%p517) target = $region72
        $region71: #{cnn_4c_forward.1} parent=11 // pred_region
          _
        $region72: #{cnn_4c_forward.1} parent=11 // pred_fallthru
          _
        // Predicated region
        $region73: #{cnn_4c_forward.1} parent=11 // pred_check
          %p520 = pneg %p390
        $region74: #{cnn_4c_forward.1} parent=11 // pred_check_branch
          %522 = sbr.rel (%p520) target = $region76
        $region75: #{cnn_4c_forward.1} parent=11 // pred_region
          _
        $region76: #{cnn_4c_forward.1} parent=11 // pred_fallthru
          _
      $region12: #{cnn_4c_forward.1} parent=5 // pred_fallthru
        _
      %p523 = scmp.lt.s32.totalorder %s28, 2
      // Predicated region
      $region77: #{cnn_4c_forward.1} parent=5 // pred_check
        %p524 = pneg %p523
      $region78: #{cnn_4c_forward.1} parent=5 // pred_check_branch
        %526 = sbr.rel (%p524) target = $region80
      $region79: #{cnn_4c_forward.1} parent=5 // pred_region
        // Predicated region
        $region81: #{cnn_4c_forward.1} parent=79 // pred_check
          %p527 = pneg %p48
        $region82: #{cnn_4c_forward.1} parent=79 // pred_check_branch
          %529 = sbr.rel (%p527) target = $region84
        $region83: #{cnn_4c_forward.1} parent=79 // pred_region
          %p530 = scmp.lt.s32.totalorder %s28, 1
          %s531 = scalar_select %p530, %s28, 1
          %s532 = smul.addr %s531, 32
          %s533 = smul.addr %s532, 8
          %s534 = scalar_lea.vmem %s0, %s533
        $region84: #{cnn_4c_forward.1} parent=79 // pred_fallthru
          _
      $region80: #{cnn_4c_forward.1} parent=5 // pred_fallthru
        _
      %p535 = scmp.le.s32.totalorder 1, %s28
      %p536 = scmp.lt.s32.totalorder %s28, 3
      %p537 = pnand %p535, %p536
      %p538 = pneg %p537
      // Predicated region
      $region85: #{cnn_4c_forward.1} parent=5 // pred_check
        _
      $region86: #{cnn_4c_forward.1} parent=5 // pred_check_branch
        %540 = sbr.rel (%p537) target = $region88
      $region87: #{cnn_4c_forward.1} parent=5 // pred_region
        %s541 = ssub.s32 %s28, 1
        // Predicated region
        $region89: #{cnn_4c_forward.1} parent=87 // pred_check
          %p542 = pneg %p138
        $region90: #{cnn_4c_forward.1} parent=87 // pred_check_branch
          %544 = sbr.rel (%p542) target = $region92
        $region91: #{cnn_4c_forward.1} parent=87 // pred_region
          %546 = dma.done [#allocation8], 9216
        $region92: #{cnn_4c_forward.1} parent=87 // pred_fallthru
          _
        // Predicated region
        $region93: #{cnn_4c_forward.1} parent=87 // pred_check
          %p547 = pneg %p201
        $region94: #{cnn_4c_forward.1} parent=87 // pred_check_branch
          %549 = sbr.rel (%p547) target = $region96
        $region95: #{cnn_4c_forward.1} parent=87 // pred_region
          %551 = dma.done [#allocation10], 9216
        $region96: #{cnn_4c_forward.1} parent=87 // pred_fallthru
          _
        // Predicated region
        $region97: #{cnn_4c_forward.1} parent=87 // pred_check
          %p552 = pneg %p264
        $region98: #{cnn_4c_forward.1} parent=87 // pred_check_branch
          %554 = sbr.rel (%p552) target = $region100
        $region99: #{cnn_4c_forward.1} parent=87 // pred_region
          %556 = dma.done [#allocation10], 9216
        $region100: #{cnn_4c_forward.1} parent=87 // pred_fallthru
          _
        // Predicated region
        $region101: #{cnn_4c_forward.1} parent=87 // pred_check
          %p557 = pneg %p327
        $region102: #{cnn_4c_forward.1} parent=87 // pred_check_branch
          %559 = sbr.rel (%p557) target = $region104
        $region103: #{cnn_4c_forward.1} parent=87 // pred_region
          %561 = dma.done [#allocation13], 4096
        $region104: #{cnn_4c_forward.1} parent=87 // pred_fallthru
          _
        %p562 = scmp.lt.s32.totalorder %s33, 1
        %s563 = scalar_select %p562, %s33, 1
        %s564 = smul.addr %s563, 32
        %s565 = smul.addr %s564, 8
        %s566 = scalar_lea.vmem %s0, %s565
        %p567 = pneg %p54
        %p568 = pneg %p51
        %p569 = pneg %p75
        %p570 = pneg %p72
        %p571 = pneg %p96
        %p572 = pneg %p93
        %p573 = pneg %p117
        %p574 = pneg %p114
        %p575 = pneg %p138
        %p576 = pneg %p135
        %p577 = pneg %p159
        %p578 = pneg %p156
        %p579 = pneg %p180
        %p580 = pneg %p177
        %p581 = pneg %p201
        %p582 = pneg %p198
        %p583 = pneg %p222
        %p584 = pneg %p219
        %p585 = pneg %p243
        %p586 = pneg %p240
        %p587 = pneg %p264
        %p588 = pneg %p261
        %p589 = pneg %p285
        %p590 = pneg %p282
        %p591 = pneg %p306
        %p592 = pneg %p303
        %p593 = pneg %p327
        %p594 = pneg %p324
        %p595 = pneg %p348
        %p596 = pneg %p345
        %p597 = pneg %p369
        %p598 = pneg %p366
        %p599 = pneg %p390
        %p600 = pneg %p387
        %p601 = pneg %p416
        %p602 = pneg %p413
        %p603 = scmp.lt.s32.totalorder %s33, 1
        %s604 = scalar_select %p603, %s33, 1
        %s605 = scalar_lea.vmem %s17, %s604
        %p606 = scmp.lt.s32.totalorder %s33, 1
        %s607 = scalar_select %p606, %s33, 1
        %s608 = smul.addr %s607, 32
        %s609 = smul.addr %s608, 8
        %s610 = scalar_lea.vmem %s0, %s609
        %p611 = scmp.lt.s32.totalorder %s33, 1
        %s612 = scalar_select %p611, %s33, 1
        %s613 = scalar_lea.vmem %s17, %s612
        %614 = vst [vmem:[#allocation2] sm:$0xff] 0.0
        %615 = vst [vmem:[#allocation2 + $0x8] sm:$0xff] 0.0
        %616 = vst [vmem:[#allocation2 + $0x10] sm:$0x3] 0.0
        %617 = vst [vmem:[#allocation2 + $0x18] sm:$0xff] 0.0
        %618 = vst [vmem:[#allocation2 + $0x20] sm:$0xff] 0.0
        %619 = vst [vmem:[#allocation2 + $0x28] sm:$0x3] 0.0
        %620 = vst [vmem:[#allocation2 + $0x30] sm:$0xff] 0.0
        %621 = vst [vmem:[#allocation2 + $0x38] sm:$0xff] 0.0
        %622 = vst [vmem:[#allocation2 + $0x40] sm:$0x3] 0.0
        %623 = vst [vmem:[#allocation2 + $0x48] sm:$0xff] 0.0
        %624 = vst [vmem:[#allocation2 + $0x50] sm:$0xff] 0.0
        %625 = vst [vmem:[#allocation2 + $0x58] sm:$0x3] 0.0
        %626 = vst [vmem:[#allocation2 + $0x60] sm:$0xff] 0.0
        %627 = vst [vmem:[#allocation2 + $0x68] sm:$0xff] 0.0
        %628 = vst [vmem:[#allocation2 + $0x70] sm:$0x3] 0.0
        %629 = vst [vmem:[#allocation2 + $0x78] sm:$0xff] 0.0
        %630 = vst [vmem:[#allocation2 + $0x80] sm:$0xff] 0.0
        %631 = vst [vmem:[#allocation2 + $0x88] sm:$0x3] 0.0
        %632 = vst [vmem:[#allocation2 + $0x90] sm:$0xff] 0.0
        %633 = vst [vmem:[#allocation2 + $0x98] sm:$0xff] 0.0
        %634 = vst [vmem:[#allocation2 + $0xa0] sm:$0x3] 0.0
        %635 = vst [vmem:[#allocation2 + $0xa8] sm:$0xff] 0.0
        %636 = vst [vmem:[#allocation2 + $0xb0] sm:$0xff] 0.0
        %637 = vst [vmem:[#allocation2 + $0xb8] sm:$0x3] 0.0
        %638 = vst [vmem:[#allocation2 + $0xc0] sm:$0xff] 0.0
        %639 = vst [vmem:[#allocation2 + $0xc8] sm:$0xff] 0.0
        %640 = vst [vmem:[#allocation2 + $0xd0] sm:$0x3] 0.0
        %641 = vst [vmem:[#allocation2 + $0xd8] sm:$0xff] 0.0
        %642 = vst [vmem:[#allocation2 + $0xe0] sm:$0xff] 0.0
        %643 = vst [vmem:[#allocation2 + $0xe8] sm:$0x3] 0.0
        %644 = vst [vmem:[#allocation2 + $0xf0] sm:$0xff] 0.0
        %645 = vst [vmem:[#allocation2 + $0xf8] sm:$0xff] 0.0
        %646 = vst [vmem:[#allocation2 + $0x100] sm:$0x3] 0.0
        %647 = vst [vmem:[#allocation2 + $0x108] sm:$0xff] 0.0
        %648 = vst [vmem:[#allocation2 + $0x110] sm:$0xff] 0.0
        %649 = vst [vmem:[#allocation2 + $0x118] sm:$0x3] 0.0
        %650 = vst [vmem:[#allocation2 + $0x120] sm:$0xff] 0.0
        %651 = vst [vmem:[#allocation2 + $0x128] sm:$0xff] 0.0
        %652 = vst [vmem:[#allocation2 + $0x130] sm:$0x3] 0.0
        %653 = vst [vmem:[#allocation2 + $0x138] sm:$0xff] 0.0
        %654 = vst [vmem:[#allocation2 + $0x140] sm:$0xff] 0.0
        %655 = vst [vmem:[#allocation2 + $0x148] sm:$0x3] 0.0
        %656 = vst [vmem:[#allocation2 + $0x150] sm:$0xff] 0.0
        %657 = vst [vmem:[#allocation2 + $0x158] sm:$0xff] 0.0
        %658 = vst [vmem:[#allocation2 + $0x160] sm:$0x3] 0.0
        %659 = vst [vmem:[#allocation2 + $0x168] sm:$0xff] 0.0
        %660 = vst [vmem:[#allocation2 + $0x170] sm:$0xff] 0.0
        %661 = vst [vmem:[#allocation2 + $0x178] sm:$0x3] 0.0
        %662 = vst [vmem:[#allocation2 + $0x180] sm:$0xff] 0.0
        %663 = vst [vmem:[#allocation2 + $0x188] sm:$0xff] 0.0
        %664 = vst [vmem:[#allocation2 + $0x190] sm:$0x3] 0.0
        %665 = vst [vmem:[#allocation2 + $0x198] sm:$0xff] 0.0
        %666 = vst [vmem:[#allocation2 + $0x1a0] sm:$0xff] 0.0
        %667 = vst [vmem:[#allocation2 + $0x1a8] sm:$0x3] 0.0
        %v668 = vld [vmem:[%s610] sm:$0xff]
        %v669 = vld [vmem:[%s610 + $0x8] sm:$0xff]
        %v670 = vld [vmem:[%s610 + $0x10] sm:$0xff]
        %v671 = vld [vmem:[%s610 + $0x18] sm:$0xff]
        %v672 = vld [vmem:[%s610 + $0x20] sm:$0xff]
        %v673 = vld [vmem:[%s610 + $0x28] sm:$0xff]
        %v674 = vld [vmem:[%s610 + $0x30] sm:$0xff]
        %v675 = vld [vmem:[%s610 + $0x38] sm:$0xff]
        %v676 = vld [vmem:[%s610 + $0x40] sm:$0xff]
        %v677 = vld [vmem:[%s610 + $0x48] sm:$0xff]
        %v678 = vld [vmem:[%s610 + $0x50] sm:$0xff]
        %v679 = vld [vmem:[%s610 + $0x58] sm:$0xff]
        %v680 = vld [vmem:[%s610 + $0x60] sm:$0xff]
        %v681 = vld [vmem:[%s610 + $0x68] sm:$0xff]
        %v682 = vld [vmem:[%s610 + $0x70] sm:$0xff]
        %v683 = vld [vmem:[%s610 + $0x78] sm:$0xff]
        %v684 = vld [vmem:[%s610 + $0x80] sm:$0xff]
        %v685 = vld [vmem:[%s610 + $0x88] sm:$0xff]
        %v686 = vld [vmem:[%s610 + $0x90] sm:$0xff]
        %v687 = vld [vmem:[%s610 + $0x98] sm:$0xff]
        %v688 = vld [vmem:[%s610 + $0xa0] sm:$0xff]
        %v689 = vld [vmem:[%s610 + $0xa8] sm:$0xff]
        %v690 = vld [vmem:[%s610 + $0xb0] sm:$0xff]
        %v691 = vld [vmem:[%s610 + $0xb8] sm:$0xff]
        %v692 = vld [vmem:[%s610 + $0xc0] sm:$0xff]
        %v693 = vld [vmem:[%s610 + $0xc8] sm:$0xff]
        %v694 = vld [vmem:[%s610 + $0xd0] sm:$0xff]
        %v695 = vld [vmem:[%s610 + $0xd8] sm:$0xff]
        %v696 = vld [vmem:[%s610 + $0xe0] sm:$0xff]
        %v697 = vld [vmem:[%s610 + $0xe8] sm:$0xff]
        %v698 = vld [vmem:[%s610 + $0xf0] sm:$0xff]
        %v699 = vld [vmem:[%s610 + $0xf8] sm:$0xff]
        %s700 = scalar_lea.vmem [#allocation2], 24
        %vm701 = vcmask 23552
        %702 = vst.msk [vmem:[%s700 + $0x1] sm:$0xff] %vm701, %v668
        %703 = vst.msk [vmem:[%s700 + $0x9] sm:$0xff] %vm701, %v669
        %704 = vst.msk [vmem:[%s700 + $0x19] sm:$0xff] %vm701, %v670
        %705 = vst.msk [vmem:[%s700 + $0x21] sm:$0xff] %vm701, %v671
        %706 = vst.msk [vmem:[%s700 + $0x31] sm:$0xff] %vm701, %v672
        %707 = vst.msk [vmem:[%s700 + $0x39] sm:$0xff] %vm701, %v673
        %708 = vst.msk [vmem:[%s700 + $0x49] sm:$0xff] %vm701, %v674
        %709 = vst.msk [vmem:[%s700 + $0x51] sm:$0xff] %vm701, %v675
        %710 = vst.msk [vmem:[%s700 + $0x61] sm:$0xff] %vm701, %v676
        %711 = vst.msk [vmem:[%s700 + $0x69] sm:$0xff] %vm701, %v677
        %712 = vst.msk [vmem:[%s700 + $0x79] sm:$0xff] %vm701, %v678
        %713 = vst.msk [vmem:[%s700 + $0x81] sm:$0xff] %vm701, %v679
        %714 = vst.msk [vmem:[%s700 + $0x91] sm:$0xff] %vm701, %v680
        %715 = vst.msk [vmem:[%s700 + $0x99] sm:$0xff] %vm701, %v681
        %716 = vst.msk [vmem:[%s700 + $0xa9] sm:$0xff] %vm701, %v682
        %717 = vst.msk [vmem:[%s700 + $0xb1] sm:$0xff] %vm701, %v683
        %718 = vst.msk [vmem:[%s700 + $0xc1] sm:$0xff] %vm701, %v684
        %719 = vst.msk [vmem:[%s700 + $0xc9] sm:$0xff] %vm701, %v685
        %720 = vst.msk [vmem:[%s700 + $0xd9] sm:$0xff] %vm701, %v686
        %721 = vst.msk [vmem:[%s700 + $0xe1] sm:$0xff] %vm701, %v687
        %722 = vst.msk [vmem:[%s700 + $0xf1] sm:$0xff] %vm701, %v688
        %723 = vst.msk [vmem:[%s700 + $0xf9] sm:$0xff] %vm701, %v689
        %724 = vst.msk [vmem:[%s700 + $0x109] sm:$0xff] %vm701, %v690
        %725 = vst.msk [vmem:[%s700 + $0x111] sm:$0xff] %vm701, %v691
        %726 = vst.msk [vmem:[%s700 + $0x121] sm:$0xff] %vm701, %v692
        %727 = vst.msk [vmem:[%s700 + $0x129] sm:$0xff] %vm701, %v693
        %728 = vst.msk [vmem:[%s700 + $0x139] sm:$0xff] %vm701, %v694
        %729 = vst.msk [vmem:[%s700 + $0x141] sm:$0xff] %vm701, %v695
        %730 = vst.msk [vmem:[%s700 + $0x151] sm:$0xff] %vm701, %v696
        %731 = vst.msk [vmem:[%s700 + $0x159] sm:$0xff] %vm701, %v697
        %732 = vst.msk [vmem:[%s700 + $0x169] sm:$0xff] %vm701, %v698
        %733 = vst.msk [vmem:[%s700 + $0x171] sm:$0xff] %vm701, %v699
        %v734 = vld [vmem:[#allocation2] sm:$0xff]
        %v735 = vld [vmem:[#allocation2 + $0x8] sm:$0xff]
        %v736 = vld [vmem:[#allocation2 + $0x10] sm:$0x3]
        %v737 = vld [vmem:[#allocation2 + $0x18] sm:$0xff]
        %v738 = vld [vmem:[#allocation2 + $0x20] sm:$0xff]
        %v739 = vld [vmem:[#allocation2 + $0x28] sm:$0x3]
        %v740 = vld [vmem:[#allocation2 + $0x30] sm:$0xff]
        %v741 = vld [vmem:[#allocation2 + $0x38] sm:$0xff]
        %v742 = vld [vmem:[#allocation2 + $0x40] sm:$0x3]
        %v743 = vld [vmem:[#allocation2 + $0x48] sm:$0xff]
        %v744 = vld [vmem:[#allocation2 + $0x50] sm:$0xff]
        %v745 = vld [vmem:[#allocation2 + $0x58] sm:$0x3]
        %v746 = vld [vmem:[#allocation2 + $0x60] sm:$0xff]
        %v747 = vld [vmem:[#allocation2 + $0x68] sm:$0xff]
        %v748 = vld [vmem:[#allocation2 + $0x70] sm:$0x3]
        %v749 = vld [vmem:[#allocation2 + $0x78] sm:$0xff]
        %v750 = vld [vmem:[#allocation2 + $0x80] sm:$0xff]
        %v751 = vld [vmem:[#allocation2 + $0x88] sm:$0x3]
        %v752 = vld [vmem:[#allocation2 + $0x90] sm:$0xff]
        %v753 = vld [vmem:[#allocation2 + $0x98] sm:$0xff]
        %v754 = vld [vmem:[#allocation2 + $0xa0] sm:$0x3]
        %v755 = vld [vmem:[#allocation2 + $0xa8] sm:$0xff]
        %v756 = vld [vmem:[#allocation2 + $0xb0] sm:$0xff]
        %v757 = vld [vmem:[#allocation2 + $0xb8] sm:$0x3]
        %v758 = vld [vmem:[#allocation2 + $0xc0] sm:$0xff]
        %v759 = vld [vmem:[#allocation2 + $0xc8] sm:$0xff]
        %v760 = vld [vmem:[#allocation2 + $0xd0] sm:$0x3]
        %v761 = vld [vmem:[#allocation2 + $0xd8] sm:$0xff]
        %v762 = vld [vmem:[#allocation2 + $0xe0] sm:$0xff]
        %v763 = vld [vmem:[#allocation2 + $0xe8] sm:$0x3]
        %v764 = vld [vmem:[#allocation2 + $0xf0] sm:$0xff]
        %v765 = vld [vmem:[#allocation2 + $0xf8] sm:$0xff]
        %v766 = vld [vmem:[#allocation2 + $0x100] sm:$0x3]
        %v767 = vld [vmem:[#allocation2 + $0x108] sm:$0xff]
        %v768 = vld [vmem:[#allocation2 + $0x110] sm:$0xff]
        %v769 = vld [vmem:[#allocation2 + $0x118] sm:$0x3]
        %v770 = vld [vmem:[#allocation2 + $0x120] sm:$0xff]
        %v771 = vld [vmem:[#allocation2 + $0x128] sm:$0xff]
        %v772 = vld [vmem:[#allocation2 + $0x130] sm:$0x3]
        %v773 = vld [vmem:[#allocation2 + $0x138] sm:$0xff]
        %v774 = vld [vmem:[#allocation2 + $0x140] sm:$0xff]
        %v775 = vld [vmem:[#allocation2 + $0x148] sm:$0x3]
        %v776 = vld [vmem:[#allocation2 + $0x150] sm:$0xff]
        %v777 = vld [vmem:[#allocation2 + $0x158] sm:$0xff]
        %v778 = vld [vmem:[#allocation2 + $0x160] sm:$0x3]
        %v779 = vld [vmem:[#allocation2 + $0x168] sm:$0xff]
        %v780 = vld [vmem:[#allocation2 + $0x170] sm:$0xff]
        %v781 = vld [vmem:[#allocation2 + $0x178] sm:$0x3]
        %v782 = vld [vmem:[#allocation2 + $0x180] sm:$0xff]
        %v783 = vld [vmem:[#allocation2 + $0x188] sm:$0xff]
        %v784 = vld [vmem:[#allocation2 + $0x190] sm:$0x3]
        %v785 = vld [vmem:[#allocation2 + $0x198] sm:$0xff]
        %v786 = vld [vmem:[#allocation2 + $0x1a0] sm:$0xff]
        %v787 = vld [vmem:[#allocation2 + $0x1a8] sm:$0x3]
        %v788 = vpack.c.bf16 %v734, %v734
        %v789 = vpack.c.bf16 %v735, %v735
        %v790 = vpack.c.bf16 %v737, %v737
        %v791 = vpack.c.bf16 %v738, %v738
        %v792 = vpack.c.bf16 %v740, %v740
        %v793 = vpack.c.bf16 %v741, %v741
        %v794 = vpack.c.bf16 %v743, %v743
        %v795 = vpack.c.bf16 %v744, %v744
        %v796 = vpack.c.bf16 %v746, %v746
        %v797 = vpack.c.bf16 %v747, %v747
        %v798 = vpack.c.bf16 %v749, %v749
        %v799 = vpack.c.bf16 %v750, %v750
        %v800 = vpack.c.bf16 %v752, %v752
        %v801 = vpack.c.bf16 %v753, %v753
        %v802 = vpack.c.bf16 %v755, %v755
        %v803 = vpack.c.bf16 %v756, %v756
        %v804 = vpack.c.bf16 %v758, %v758
        %v805 = vpack.c.bf16 %v759, %v759
        %v806 = vpack.c.bf16 %v761, %v761
        %v807 = vpack.c.bf16 %v762, %v762
        %v808 = vpack.c.bf16 %v764, %v764
        %v809 = vpack.c.bf16 %v765, %v765
        %v810 = vpack.c.bf16 %v767, %v767
        %v811 = vpack.c.bf16 %v768, %v768
        %v812 = vpack.c.bf16 %v770, %v770
        %v813 = vpack.c.bf16 %v771, %v771
        %v814 = vpack.c.bf16 %v773, %v773
        %v815 = vpack.c.bf16 %v774, %v774
        %v816 = vpack.c.bf16 %v776, %v776
        %v817 = vpack.c.bf16 %v777, %v777
        %v818 = vpack.c.bf16 %v779, %v779
        %v819 = vpack.c.bf16 %v780, %v780
        %v820 = vpack.c.bf16 %v782, %v782
        %v821 = vpack.c.bf16 %v783, %v783
        %v822 = vpack.c.bf16 %v785, %v785
        %v823 = vpack.c.bf16 %v786, %v786
        %v824 = vpack.c.bf16 %v736, %v736
        %v825 = vpack.c.bf16 %v739, %v739
        %v826 = vpack.c.bf16 %v742, %v742
        %v827 = vpack.c.bf16 %v745, %v745
        %v828 = vpack.c.bf16 %v748, %v748
        %v829 = vpack.c.bf16 %v751, %v751
        %v830 = vpack.c.bf16 %v754, %v754
        %v831 = vpack.c.bf16 %v757, %v757
        %v832 = vpack.c.bf16 %v760, %v760
        %v833 = vpack.c.bf16 %v763, %v763
        %v834 = vpack.c.bf16 %v766, %v766
        %v835 = vpack.c.bf16 %v769, %v769
        %v836 = vpack.c.bf16 %v772, %v772
        %v837 = vpack.c.bf16 %v775, %v775
        %v838 = vpack.c.bf16 %v778, %v778
        %v839 = vpack.c.bf16 %v781, %v781
        %v840 = vpack.c.bf16 %v784, %v784
        %v841 = vpack.c.bf16 %v787, %v787
        %v842 = vld [vmem:[%s1] sm:$0xf]
        %v843 = vld [vmem:[%s1 + $0x4] sm:$0xf]
        %v844 = vld [vmem:[%s1 + $0x8] sm:$0xf]
        %v845 = vld [vmem:[%s1 + $0xc] sm:$0xf]
        %v846 = vld [vmem:[%s1 + $0x10] sm:$0xf]
        %v847 = vld [vmem:[%s1 + $0x14] sm:$0xf]
        %v848 = vld [vmem:[%s1 + $0x18] sm:$0xf]
        %v849 = vld [vmem:[%s1 + $0x1c] sm:$0xf]
        %v850 = vld [vmem:[%s1 + $0x20] sm:$0xf]
        %v851 = vld [vmem:[%s1 + $0x24] sm:$0xf]
        %v852 = vld [vmem:[%s1 + $0x28] sm:$0xf]
        %v853 = vld [vmem:[%s1 + $0x2c] sm:$0xf]
        %v854 = vld [vmem:[%s1 + $0x30] sm:$0xf]
        %v855 = vld [vmem:[%s1 + $0x34] sm:$0xf]
        %v856 = vld [vmem:[%s1 + $0x38] sm:$0xf]
        %v857 = vld [vmem:[%s1 + $0x3c] sm:$0xf]
        %vm858 = vsmask.f32 3328
        %vm859 = vsmask.f32 7440
        %vm860 = vmor %vm858, %vm859
        %v862 = vshrl.u32 %v788, 16
        %v864 = vrot.slane %v862, 4
        %v865 = vshll.u32 %v788, 16
        %v867 = vrot.slane %v865, 5
        %v868 = vor.u32 %v864, %v867
        %v869 = vrot.slane %v868, 4
        %v871 = vshll.u32 %v789, 16
        %v873 = vrot.slane %v871, 5
        %v874 = vsel %vm860, %v869, %v873
        %v875 = vshrl.u32 %v789, 16
        %v877 = vrot.slane %v875, 4
        %v878 = vor.u32 %v877, %v873
        %v879 = vrot.slane %v878, 4
        %v881 = vshll.u32 %v824, 16
        %v883 = vrot.slane %v881, 5
        %v884 = vsel %vm860, %v879, %v883
        %v886 = vshrl.u32 %v790, 16
        %v888 = vrot.slane %v886, 4
        %v889 = vshll.u32 %v790, 16
        %v891 = vrot.slane %v889, 5
        %v892 = vor.u32 %v888, %v891
        %v893 = vrot.slane %v892, 4
        %v895 = vshll.u32 %v791, 16
        %v897 = vrot.slane %v895, 5
        %v898 = vsel %vm860, %v893, %v897
        %v899 = vshrl.u32 %v791, 16
        %v901 = vrot.slane %v899, 4
        %v902 = vor.u32 %v901, %v897
        %v903 = vrot.slane %v902, 4
        %v905 = vshll.u32 %v825, 16
        %v907 = vrot.slane %v905, 5
        %v908 = vsel %vm860, %v903, %v907
        %v910 = vshrl.u32 %v792, 16
        %v912 = vrot.slane %v910, 4
        %v913 = vshll.u32 %v792, 16
        %v915 = vrot.slane %v913, 5
        %v916 = vor.u32 %v912, %v915
        %v917 = vrot.slane %v916, 4
        %v919 = vshll.u32 %v793, 16
        %v921 = vrot.slane %v919, 5
        %v922 = vsel %vm860, %v917, %v921
        %v923 = vshrl.u32 %v793, 16
        %v925 = vrot.slane %v923, 4
        %v926 = vor.u32 %v925, %v921
        %v927 = vrot.slane %v926, 4
        %v929 = vshll.u32 %v826, 16
        %v931 = vrot.slane %v929, 5
        %v932 = vsel %vm860, %v927, %v931
        %v934 = vshrl.u32 %v794, 16
        %v936 = vrot.slane %v934, 4
        %v937 = vshll.u32 %v794, 16
        %v939 = vrot.slane %v937, 5
        %v940 = vor.u32 %v936, %v939
        %v941 = vrot.slane %v940, 4
        %v943 = vshll.u32 %v795, 16
        %v945 = vrot.slane %v943, 5
        %v946 = vsel %vm860, %v941, %v945
        %v947 = vshrl.u32 %v795, 16
        %v949 = vrot.slane %v947, 4
        %v950 = vor.u32 %v949, %v945
        %v951 = vrot.slane %v950, 4
        %v953 = vshll.u32 %v827, 16
        %v955 = vrot.slane %v953, 5
        %v956 = vsel %vm860, %v951, %v955
        %v958 = vshrl.u32 %v796, 16
        %v960 = vrot.slane %v958, 4
        %v961 = vshll.u32 %v796, 16
        %v963 = vrot.slane %v961, 5
        %v964 = vor.u32 %v960, %v963
        %v965 = vrot.slane %v964, 4
        %v967 = vshll.u32 %v797, 16
        %v969 = vrot.slane %v967, 5
        %v970 = vsel %vm860, %v965, %v969
        %v971 = vshrl.u32 %v797, 16
        %v973 = vrot.slane %v971, 4
        %v974 = vor.u32 %v973, %v969
        %v975 = vrot.slane %v974, 4
        %v977 = vshll.u32 %v828, 16
        %v979 = vrot.slane %v977, 5
        %v980 = vsel %vm860, %v975, %v979
        %v982 = vshrl.u32 %v798, 16
        %v984 = vrot.slane %v982, 4
        %v985 = vshll.u32 %v798, 16
        %v987 = vrot.slane %v985, 5
        %v988 = vor.u32 %v984, %v987
        %v989 = vrot.slane %v988, 4
        %v991 = vshll.u32 %v799, 16
        %v993 = vrot.slane %v991, 5
        %v994 = vsel %vm860, %v989, %v993
        %v995 = vshrl.u32 %v799, 16
        %v997 = vrot.slane %v995, 4
        %v998 = vor.u32 %v997, %v993
        %v999 = vrot.slane %v998, 4
        %v1001 = vshll.u32 %v829, 16
        %v1003 = vrot.slane %v1001, 5
        %v1004 = vsel %vm860, %v999, %v1003
        %v1006 = vshrl.u32 %v800, 16
        %v1008 = vrot.slane %v1006, 4
        %v1009 = vshll.u32 %v800, 16
        %v1011 = vrot.slane %v1009, 5
        %v1012 = vor.u32 %v1008, %v1011
        %v1013 = vrot.slane %v1012, 4
        %v1015 = vshll.u32 %v801, 16
        %v1017 = vrot.slane %v1015, 5
        %v1018 = vsel %vm860, %v1013, %v1017
        %v1019 = vshrl.u32 %v801, 16
        %v1021 = vrot.slane %v1019, 4
        %v1022 = vor.u32 %v1021, %v1017
        %v1023 = vrot.slane %v1022, 4
        %v1025 = vshll.u32 %v830, 16
        %v1027 = vrot.slane %v1025, 5
        %v1028 = vsel %vm860, %v1023, %v1027
        %v1030 = vshrl.u32 %v802, 16
        %v1032 = vrot.slane %v1030, 4
        %v1033 = vshll.u32 %v802, 16
        %v1035 = vrot.slane %v1033, 5
        %v1036 = vor.u32 %v1032, %v1035
        %v1037 = vrot.slane %v1036, 4
        %v1039 = vshll.u32 %v803, 16
        %v1041 = vrot.slane %v1039, 5
        %v1042 = vsel %vm860, %v1037, %v1041
        %v1043 = vshrl.u32 %v803, 16
        %v1045 = vrot.slane %v1043, 4
        %v1046 = vor.u32 %v1045, %v1041
        %v1047 = vrot.slane %v1046, 4
        %v1049 = vshll.u32 %v831, 16
        %v1051 = vrot.slane %v1049, 5
        %v1052 = vsel %vm860, %v1047, %v1051
        %v1054 = vshrl.u32 %v804, 16
        %v1056 = vrot.slane %v1054, 4
        %v1057 = vshll.u32 %v804, 16
        %v1059 = vrot.slane %v1057, 5
        %v1060 = vor.u32 %v1056, %v1059
        %v1061 = vrot.slane %v1060, 4
        %v1063 = vshll.u32 %v805, 16
        %v1065 = vrot.slane %v1063, 5
        %v1066 = vsel %vm860, %v1061, %v1065
        %v1067 = vshrl.u32 %v805, 16
        %v1069 = vrot.slane %v1067, 4
        %v1070 = vor.u32 %v1069, %v1065
        %v1071 = vrot.slane %v1070, 4
        %v1073 = vshll.u32 %v832, 16
        %v1075 = vrot.slane %v1073, 5
        %v1076 = vsel %vm860, %v1071, %v1075
        %v1078 = vshrl.u32 %v806, 16
        %v1080 = vrot.slane %v1078, 4
        %v1081 = vshll.u32 %v806, 16
        %v1083 = vrot.slane %v1081, 5
        %v1084 = vor.u32 %v1080, %v1083
        %v1085 = vrot.slane %v1084, 4
        %v1087 = vshll.u32 %v807, 16
        %v1089 = vrot.slane %v1087, 5
        %v1090 = vsel %vm860, %v1085, %v1089
        %v1091 = vshrl.u32 %v807, 16
        %v1093 = vrot.slane %v1091, 4
        %v1094 = vor.u32 %v1093, %v1089
        %v1095 = vrot.slane %v1094, 4
        %v1097 = vshll.u32 %v833, 16
        %v1099 = vrot.slane %v1097, 5
        %v1100 = vsel %vm860, %v1095, %v1099
        %v1102 = vshrl.u32 %v808, 16
        %v1104 = vrot.slane %v1102, 4
        %v1105 = vshll.u32 %v808, 16
        %v1107 = vrot.slane %v1105, 5
        %v1108 = vor.u32 %v1104, %v1107
        %v1109 = vrot.slane %v1108, 4
        %v1111 = vshll.u32 %v809, 16
        %v1113 = vrot.slane %v1111, 5
        %v1114 = vsel %vm860, %v1109, %v1113
        %v1115 = vshrl.u32 %v809, 16
        %v1117 = vrot.slane %v1115, 4
        %v1118 = vor.u32 %v1117, %v1113
        %v1119 = vrot.slane %v1118, 4
        %v1121 = vshll.u32 %v834, 16
        %v1123 = vrot.slane %v1121, 5
        %v1124 = vsel %vm860, %v1119, %v1123
        %v1126 = vshrl.u32 %v810, 16
        %v1128 = vrot.slane %v1126, 4
        %v1129 = vshll.u32 %v810, 16
        %v1131 = vrot.slane %v1129, 5
        %v1132 = vor.u32 %v1128, %v1131
        %v1133 = vrot.slane %v1132, 4
        %v1135 = vshll.u32 %v811, 16
        %v1137 = vrot.slane %v1135, 5
        %v1138 = vsel %vm860, %v1133, %v1137
        %v1139 = vshrl.u32 %v811, 16
        %v1141 = vrot.slane %v1139, 4
        %v1142 = vor.u32 %v1141, %v1137
        %v1143 = vrot.slane %v1142, 4
        %v1145 = vshll.u32 %v835, 16
        %v1147 = vrot.slane %v1145, 5
        %v1148 = vsel %vm860, %v1143, %v1147
        %v1150 = vshrl.u32 %v812, 16
        %v1152 = vrot.slane %v1150, 4
        %v1153 = vshll.u32 %v812, 16
        %v1155 = vrot.slane %v1153, 5
        %v1156 = vor.u32 %v1152, %v1155
        %v1157 = vrot.slane %v1156, 4
        %v1159 = vshll.u32 %v813, 16
        %v1161 = vrot.slane %v1159, 5
        %v1162 = vsel %vm860, %v1157, %v1161
        %v1163 = vshrl.u32 %v813, 16
        %v1165 = vrot.slane %v1163, 4
        %v1166 = vor.u32 %v1165, %v1161
        %v1167 = vrot.slane %v1166, 4
        %v1169 = vshll.u32 %v836, 16
        %v1171 = vrot.slane %v1169, 5
        %v1172 = vsel %vm860, %v1167, %v1171
        %v1174 = vshrl.u32 %v814, 16
        %v1176 = vrot.slane %v1174, 4
        %v1177 = vshll.u32 %v814, 16
        %v1179 = vrot.slane %v1177, 5
        %v1180 = vor.u32 %v1176, %v1179
        %v1181 = vrot.slane %v1180, 4
        %v1183 = vshll.u32 %v815, 16
        %v1185 = vrot.slane %v1183, 5
        %v1186 = vsel %vm860, %v1181, %v1185
        %v1187 = vshrl.u32 %v815, 16
        %v1189 = vrot.slane %v1187, 4
        %v1190 = vor.u32 %v1189, %v1185
        %v1191 = vrot.slane %v1190, 4
        %v1193 = vshll.u32 %v837, 16
        %v1195 = vrot.slane %v1193, 5
        %v1196 = vsel %vm860, %v1191, %v1195
        %v1198 = vshrl.u32 %v816, 16
        %v1200 = vrot.slane %v1198, 4
        %v1201 = vshll.u32 %v816, 16
        %v1203 = vrot.slane %v1201, 5
        %v1204 = vor.u32 %v1200, %v1203
        %v1205 = vrot.slane %v1204, 4
        %v1207 = vshll.u32 %v817, 16
        %v1209 = vrot.slane %v1207, 5
        %v1210 = vsel %vm860, %v1205, %v1209
        %v1211 = vshrl.u32 %v817, 16
        %v1213 = vrot.slane %v1211, 4
        %v1214 = vor.u32 %v1213, %v1209
        %v1215 = vrot.slane %v1214, 4
        %v1217 = vshll.u32 %v838, 16
        %v1219 = vrot.slane %v1217, 5
        %v1220 = vsel %vm860, %v1215, %v1219
        %v1222 = vshrl.u32 %v818, 16
        %v1224 = vrot.slane %v1222, 4
        %v1225 = vshll.u32 %v818, 16
        %v1227 = vrot.slane %v1225, 5
        %v1228 = vor.u32 %v1224, %v1227
        %v1229 = vrot.slane %v1228, 4
        %v1231 = vshll.u32 %v819, 16
        %v1233 = vrot.slane %v1231, 5
        %v1234 = vsel %vm860, %v1229, %v1233
        %v1235 = vshrl.u32 %v819, 16
        %v1237 = vrot.slane %v1235, 4
        %v1238 = vor.u32 %v1237, %v1233
        %v1239 = vrot.slane %v1238, 4
        %v1241 = vshll.u32 %v839, 16
        %v1243 = vrot.slane %v1241, 5
        %v1244 = vsel %vm860, %v1239, %v1243
        %s1245 = scalar_lea.vmem %s1, 64
        %v1246 = vld [vmem:[%s1245] sm:$0xf]
        %v1247 = vld [vmem:[%s1245 + $0x4] sm:$0xf]
        %v1248 = vld [vmem:[%s1245 + $0x8] sm:$0xf]
        %v1249 = vld [vmem:[%s1245 + $0xc] sm:$0xf]
        %v1250 = vld [vmem:[%s1245 + $0x10] sm:$0xf]
        %v1251 = vld [vmem:[%s1245 + $0x14] sm:$0xf]
        %v1252 = vld [vmem:[%s1245 + $0x18] sm:$0xf]
        %v1253 = vld [vmem:[%s1245 + $0x1c] sm:$0xf]
        %v1254 = vld [vmem:[%s1245 + $0x20] sm:$0xf]
        %v1255 = vld [vmem:[%s1245 + $0x24] sm:$0xf]
        %v1256 = vld [vmem:[%s1245 + $0x28] sm:$0xf]
        %v1257 = vld [vmem:[%s1245 + $0x2c] sm:$0xf]
        %v1258 = vld [vmem:[%s1245 + $0x30] sm:$0xf]
        %v1259 = vld [vmem:[%s1245 + $0x34] sm:$0xf]
        %v1260 = vld [vmem:[%s1245 + $0x38] sm:$0xf]
        %v1261 = vld [vmem:[%s1245 + $0x3c] sm:$0xf]
        %v1262 = vunpack.c.l.b16 %v874
        %v1263 = vunpack.c.l.b16 %v884
        %v1264 = vunpack.c.l.b16 %v898
        %v1265 = vunpack.c.l.b16 %v908
        %v1266 = vunpack.c.l.b16 %v922
        %v1267 = vunpack.c.l.b16 %v932
        %v1268 = vunpack.c.l.b16 %v946
        %v1269 = vunpack.c.l.b16 %v956
        %v1270 = vunpack.c.l.b16 %v970
        %v1271 = vunpack.c.l.b16 %v980
        %v1272 = vunpack.c.l.b16 %v994
        %v1273 = vunpack.c.l.b16 %v1004
        %v1274 = vunpack.c.l.b16 %v1018
        %v1275 = vunpack.c.l.b16 %v1028
        %v1276 = vunpack.c.l.b16 %v1042
        %v1277 = vunpack.c.l.b16 %v1052
        %v1278 = vunpack.c.l.b16 %v1066
        %v1279 = vunpack.c.l.b16 %v1076
        %v1280 = vunpack.c.l.b16 %v1090
        %v1281 = vunpack.c.l.b16 %v1100
        %v1282 = vunpack.c.l.b16 %v1114
        %v1283 = vunpack.c.l.b16 %v1124
        %v1284 = vunpack.c.l.b16 %v1138
        %v1285 = vunpack.c.l.b16 %v1148
        %v1286 = vunpack.c.l.b16 %v1162
        %v1287 = vunpack.c.l.b16 %v1172
        %v1288 = vunpack.c.l.b16 %v1186
        %v1289 = vunpack.c.l.b16 %v1196
        %v1290 = vunpack.c.l.b16 %v1210
        %v1291 = vunpack.c.l.b16 %v1220
        %v1292 = vunpack.c.l.b16 %v1234
        %v1293 = vunpack.c.l.b16 %v1244
        %v1294 = vpack.c.b16 %v1263, %v1262
        %v1295 = vpack.c.b16 %v1265, %v1264
        %v1296 = vpack.c.b16 %v1267, %v1266
        %v1297 = vpack.c.b16 %v1269, %v1268
        %v1298 = vpack.c.b16 %v1271, %v1270
        %v1299 = vpack.c.b16 %v1273, %v1272
        %v1300 = vpack.c.b16 %v1275, %v1274
        %v1301 = vpack.c.b16 %v1277, %v1276
        %v1302 = vpack.c.b16 %v1279, %v1278
        %v1303 = vpack.c.b16 %v1281, %v1280
        %v1304 = vpack.c.b16 %v1283, %v1282
        %v1305 = vpack.c.b16 %v1285, %v1284
        %v1306 = vpack.c.b16 %v1287, %v1286
        %v1307 = vpack.c.b16 %v1289, %v1288
        %v1308 = vpack.c.b16 %v1291, %v1290
        %v1309 = vpack.c.b16 %v1293, %v1292
        %v1342 = vunpack.c.l.b16 %v1246
        %v1343 = vunpack.c.l.b16 %v1247
        %v1344 = vunpack.c.l.b16 %v1248
        %v1345 = vunpack.c.l.b16 %v1249
        %v1346 = vunpack.c.l.b16 %v1250
        %v1347 = vunpack.c.l.b16 %v1251
        %v1348 = vunpack.c.l.b16 %v1252
        %v1349 = vunpack.c.l.b16 %v1253
        %v1350 = vunpack.c.l.b16 %v1254
        %v1351 = vunpack.c.l.b16 %v1255
        %v1352 = vunpack.c.l.b16 %v1256
        %v1353 = vunpack.c.l.b16 %v1257
        %v1354 = vunpack.c.l.b16 %v1258
        %v1355 = vunpack.c.l.b16 %v1259
        %v1356 = vunpack.c.l.b16 %v1260
        %v1357 = vunpack.c.l.b16 %v1261
        %v1358 = vpack.c.b16 %v1343, %v1342
        %v1359 = vpack.c.b16 %v1345, %v1344
        %v1360 = vpack.c.b16 %v1347, %v1346
        %v1361 = vpack.c.b16 %v1349, %v1348
        %v1362 = vpack.c.b16 %v1351, %v1350
        %v1363 = vpack.c.b16 %v1353, %v1352
        %v1364 = vpack.c.b16 %v1355, %v1354
        %v1365 = vpack.c.b16 %v1357, %v1356
        %1374 = vmatpush.bf16.msra.mxu0 %v1365
        %1375 = vmatpush.bf16.msra.mxu0 %v1364
        %1376 = vmatpush.bf16.msra.mxu0 %v1363
        %1377 = vmatpush.bf16.msra.mxu0 %v1362
        %1378 = vmatpush.bf16.msra.mxu0 %v1361
        %1379 = vmatpush.bf16.msra.mxu0 %v1360
        %1380 = vmatpush.bf16.msra.mxu0 %v1359
        %1381 = vmatpush.bf16.msra.mxu0 %v1358
        %1382 = vmatmul.bf16.gmra.mxu0 %v1294
        %v1383 = vpop.f32.mrf.mxu0
        %v1384 = vadd.f32 0.0, %v1383
        %v1385 = vpop.f32.mrf.mxu0
        %v1386 = vadd.f32 0.0, %v1385
        %1387 = vmatmul.bf16.gmra.mxu0 %v1295
        %v1388 = vpop.f32.mrf.mxu0
        %v1389 = vadd.f32 0.0, %v1388
        %v1390 = vpop.f32.mrf.mxu0
        %v1391 = vadd.f32 0.0, %v1390
        %1392 = vmatmul.bf16.gmra.mxu0 %v1296
        %v1393 = vpop.f32.mrf.mxu0
        %v1394 = vadd.f32 0.0, %v1393
        %v1395 = vpop.f32.mrf.mxu0
        %v1396 = vadd.f32 0.0, %v1395
        %1397 = vmatmul.bf16.gmra.mxu0 %v1297
        %v1398 = vpop.f32.mrf.mxu0
        %v1399 = vadd.f32 0.0, %v1398
        %v1400 = vpop.f32.mrf.mxu0
        %v1401 = vadd.f32 0.0, %v1400
        %1402 = vmatmul.bf16.gmra.mxu0 %v1298
        %v1403 = vpop.f32.mrf.mxu0
        %v1404 = vadd.f32 0.0, %v1403
        %v1405 = vpop.f32.mrf.mxu0
        %v1406 = vadd.f32 0.0, %v1405
        %1407 = vmatmul.bf16.gmra.mxu0 %v1299
        %v1408 = vpop.f32.mrf.mxu0
        %v1409 = vadd.f32 0.0, %v1408
        %v1410 = vpop.f32.mrf.mxu0
        %v1411 = vadd.f32 0.0, %v1410
        %1412 = vmatmul.bf16.gmra.mxu0 %v1300
        %v1413 = vpop.f32.mrf.mxu0
        %v1414 = vadd.f32 0.0, %v1413
        %v1415 = vpop.f32.mrf.mxu0
        %v1416 = vadd.f32 0.0, %v1415
        %1417 = vmatmul.bf16.gmra.mxu0 %v1301
        %v1418 = vpop.f32.mrf.mxu0
        %v1419 = vadd.f32 0.0, %v1418
        %v1420 = vpop.f32.mrf.mxu0
        %v1421 = vadd.f32 0.0, %v1420
        %1422 = vmatmul.bf16.gmra.mxu0 %v1302
        %v1423 = vpop.f32.mrf.mxu0
        %v1424 = vadd.f32 0.0, %v1423
        %v1425 = vpop.f32.mrf.mxu0
        %v1426 = vadd.f32 0.0, %v1425
        %1427 = vmatmul.bf16.gmra.mxu0 %v1303
        %v1428 = vpop.f32.mrf.mxu0
        %v1429 = vadd.f32 0.0, %v1428
        %v1430 = vpop.f32.mrf.mxu0
        %v1431 = vadd.f32 0.0, %v1430
        %1432 = vmatmul.bf16.gmra.mxu0 %v1304
        %v1433 = vpop.f32.mrf.mxu0
        %v1434 = vadd.f32 0.0, %v1433
        %v1435 = vpop.f32.mrf.mxu0
        %v1436 = vadd.f32 0.0, %v1435
        %1437 = vmatmul.bf16.gmra.mxu0 %v1305
        %v1438 = vpop.f32.mrf.mxu0
        %v1439 = vadd.f32 0.0, %v1438
        %v1440 = vpop.f32.mrf.mxu0
        %v1441 = vadd.f32 0.0, %v1440
        %1442 = vmatmul.bf16.gmra.mxu0 %v1306
        %v1443 = vpop.f32.mrf.mxu0
        %v1444 = vadd.f32 0.0, %v1443
        %v1445 = vpop.f32.mrf.mxu0
        %v1446 = vadd.f32 0.0, %v1445
        %1447 = vmatmul.bf16.gmra.mxu0 %v1307
        %v1448 = vpop.f32.mrf.mxu0
        %v1449 = vadd.f32 0.0, %v1448
        %v1450 = vpop.f32.mrf.mxu0
        %v1451 = vadd.f32 0.0, %v1450
        %1452 = vmatmul.bf16.gmra.mxu0 %v1308
        %v1453 = vpop.f32.mrf.mxu0
        %v1454 = vadd.f32 0.0, %v1453
        %v1455 = vpop.f32.mrf.mxu0
        %v1456 = vadd.f32 0.0, %v1455
        %1457 = vmatmul.bf16.gmra.mxu0 %v1309
        %v1458 = vpop.f32.mrf.mxu0
        %v1459 = vadd.f32 0.0, %v1458
        %v1460 = vpop.f32.mrf.mxu0
        %v1461 = vadd.f32 0.0, %v1460
        %1462 = vdwg.mxu0
        %v1495 = vunpack.c.l.b16 %v788
        %v1496 = vunpack.c.l.b16 %v789
        %v1497 = vunpack.c.l.b16 %v790
        %v1498 = vunpack.c.l.b16 %v791
        %v1499 = vunpack.c.l.b16 %v792
        %v1500 = vunpack.c.l.b16 %v793
        %v1501 = vunpack.c.l.b16 %v794
        %v1502 = vunpack.c.l.b16 %v795
        %v1503 = vunpack.c.l.b16 %v796
        %v1504 = vunpack.c.l.b16 %v797
        %v1505 = vunpack.c.l.b16 %v798
        %v1506 = vunpack.c.l.b16 %v799
        %v1507 = vunpack.c.l.b16 %v800
        %v1508 = vunpack.c.l.b16 %v801
        %v1509 = vunpack.c.l.b16 %v802
        %v1510 = vunpack.c.l.b16 %v803
        %v1511 = vunpack.c.l.b16 %v804
        %v1512 = vunpack.c.l.b16 %v805
        %v1513 = vunpack.c.l.b16 %v806
        %v1514 = vunpack.c.l.b16 %v807
        %v1515 = vunpack.c.l.b16 %v808
        %v1516 = vunpack.c.l.b16 %v809
        %v1517 = vunpack.c.l.b16 %v810
        %v1518 = vunpack.c.l.b16 %v811
        %v1519 = vunpack.c.l.b16 %v812
        %v1520 = vunpack.c.l.b16 %v813
        %v1521 = vunpack.c.l.b16 %v814
        %v1522 = vunpack.c.l.b16 %v815
        %v1523 = vunpack.c.l.b16 %v816
        %v1524 = vunpack.c.l.b16 %v817
        %v1525 = vunpack.c.l.b16 %v818
        %v1526 = vunpack.c.l.b16 %v819
        %v1527 = vpack.c.b16 %v1496, %v1495
        %v1528 = vpack.c.b16 %v1498, %v1497
        %v1529 = vpack.c.b16 %v1500, %v1499
        %v1530 = vpack.c.b16 %v1502, %v1501
        %v1531 = vpack.c.b16 %v1504, %v1503
        %v1532 = vpack.c.b16 %v1506, %v1505
        %v1533 = vpack.c.b16 %v1508, %v1507
        %v1534 = vpack.c.b16 %v1510, %v1509
        %v1535 = vpack.c.b16 %v1512, %v1511
        %v1536 = vpack.c.b16 %v1514, %v1513
        %v1537 = vpack.c.b16 %v1516, %v1515
        %v1538 = vpack.c.b16 %v1518, %v1517
        %v1539 = vpack.c.b16 %v1520, %v1519
        %v1540 = vpack.c.b16 %v1522, %v1521
        %v1541 = vpack.c.b16 %v1524, %v1523
        %v1542 = vpack.c.b16 %v1526, %v1525
        %v1575 = vunpack.c.l.b16 %v842
        %v1576 = vunpack.c.l.b16 %v843
        %v1577 = vunpack.c.l.b16 %v844
        %v1578 = vunpack.c.l.b16 %v845
        %v1579 = vunpack.c.l.b16 %v846
        %v1580 = vunpack.c.l.b16 %v847
        %v1581 = vunpack.c.l.b16 %v848
        %v1582 = vunpack.c.l.b16 %v849
        %v1583 = vunpack.c.l.b16 %v850
        %v1584 = vunpack.c.l.b16 %v851
        %v1585 = vunpack.c.l.b16 %v852
        %v1586 = vunpack.c.l.b16 %v853
        %v1587 = vunpack.c.l.b16 %v854
        %v1588 = vunpack.c.l.b16 %v855
        %v1589 = vunpack.c.l.b16 %v856
        %v1590 = vunpack.c.l.b16 %v857
        %v1591 = vpack.c.b16 %v1576, %v1575
        %v1592 = vpack.c.b16 %v1578, %v1577
        %v1593 = vpack.c.b16 %v1580, %v1579
        %v1594 = vpack.c.b16 %v1582, %v1581
        %v1595 = vpack.c.b16 %v1584, %v1583
        %v1596 = vpack.c.b16 %v1586, %v1585
        %v1597 = vpack.c.b16 %v1588, %v1587
        %v1598 = vpack.c.b16 %v1590, %v1589
        %1607 = vmatpush.bf16.msra.mxu0 %v1598
        %1608 = vmatpush.bf16.msra.mxu0 %v1597
        %1609 = vmatpush.bf16.msra.mxu0 %v1596
        %1610 = vmatpush.bf16.msra.mxu0 %v1595
        %1611 = vmatpush.bf16.msra.mxu0 %v1594
        %1612 = vmatpush.bf16.msra.mxu0 %v1593
        %1613 = vmatpush.bf16.msra.mxu0 %v1592
        %1614 = vmatpush.bf16.msra.mxu0 %v1591
        %1615 = vmatmul.bf16.gmra.mxu0 %v1527
        %v1616 = vpop.f32.mrf.mxu0
        %v1617 = vadd.f32 %v1384, %v1616
        %v1618 = vpop.f32.mrf.mxu0
        %v1619 = vadd.f32 %v1386, %v1618
        %1620 = vmatmul.bf16.gmra.mxu0 %v1528
        %v1621 = vpop.f32.mrf.mxu0
        %v1622 = vadd.f32 %v1389, %v1621
        %v1623 = vpop.f32.mrf.mxu0
        %v1624 = vadd.f32 %v1391, %v1623
        %1625 = vmatmul.bf16.gmra.mxu0 %v1529
        %v1626 = vpop.f32.mrf.mxu0
        %v1627 = vadd.f32 %v1394, %v1626
        %v1628 = vpop.f32.mrf.mxu0
        %v1629 = vadd.f32 %v1396, %v1628
        %1630 = vmatmul.bf16.gmra.mxu0 %v1530
        %v1631 = vpop.f32.mrf.mxu0
        %v1632 = vadd.f32 %v1399, %v1631
        %v1633 = vpop.f32.mrf.mxu0
        %v1634 = vadd.f32 %v1401, %v1633
        %1635 = vmatmul.bf16.gmra.mxu0 %v1531
        %v1636 = vpop.f32.mrf.mxu0
        %v1637 = vadd.f32 %v1404, %v1636
        %v1638 = vpop.f32.mrf.mxu0
        %v1639 = vadd.f32 %v1406, %v1638
        %1640 = vmatmul.bf16.gmra.mxu0 %v1532
        %v1641 = vpop.f32.mrf.mxu0
        %v1642 = vadd.f32 %v1409, %v1641
        %v1643 = vpop.f32.mrf.mxu0
        %v1644 = vadd.f32 %v1411, %v1643
        %1645 = vmatmul.bf16.gmra.mxu0 %v1533
        %v1646 = vpop.f32.mrf.mxu0
        %v1647 = vadd.f32 %v1414, %v1646
        %v1648 = vpop.f32.mrf.mxu0
        %v1649 = vadd.f32 %v1416, %v1648
        %1650 = vmatmul.bf16.gmra.mxu0 %v1534
        %v1651 = vpop.f32.mrf.mxu0
        %v1652 = vadd.f32 %v1419, %v1651
        %v1653 = vpop.f32.mrf.mxu0
        %v1654 = vadd.f32 %v1421, %v1653
        %1655 = vmatmul.bf16.gmra.mxu0 %v1535
        %v1656 = vpop.f32.mrf.mxu0
        %v1657 = vadd.f32 %v1424, %v1656
        %v1658 = vpop.f32.mrf.mxu0
        %v1659 = vadd.f32 %v1426, %v1658
        %1660 = vmatmul.bf16.gmra.mxu0 %v1536
        %v1661 = vpop.f32.mrf.mxu0
        %v1662 = vadd.f32 %v1429, %v1661
        %v1663 = vpop.f32.mrf.mxu0
        %v1664 = vadd.f32 %v1431, %v1663
        %1665 = vmatmul.bf16.gmra.mxu0 %v1537
        %v1666 = vpop.f32.mrf.mxu0
        %v1667 = vadd.f32 %v1434, %v1666
        %v1668 = vpop.f32.mrf.mxu0
        %v1669 = vadd.f32 %v1436, %v1668
        %1670 = vmatmul.bf16.gmra.mxu0 %v1538
        %v1671 = vpop.f32.mrf.mxu0
        %v1672 = vadd.f32 %v1439, %v1671
        %v1673 = vpop.f32.mrf.mxu0
        %v1674 = vadd.f32 %v1441, %v1673
        %1675 = vmatmul.bf16.gmra.mxu0 %v1539
        %v1676 = vpop.f32.mrf.mxu0
        %v1677 = vadd.f32 %v1444, %v1676
        %v1678 = vpop.f32.mrf.mxu0
        %v1679 = vadd.f32 %v1446, %v1678
        %1680 = vmatmul.bf16.gmra.mxu0 %v1540
        %v1681 = vpop.f32.mrf.mxu0
        %v1682 = vadd.f32 %v1449, %v1681
        %v1683 = vpop.f32.mrf.mxu0
        %v1684 = vadd.f32 %v1451, %v1683
        %1685 = vmatmul.bf16.gmra.mxu0 %v1541
        %v1686 = vpop.f32.mrf.mxu0
        %v1687 = vadd.f32 %v1454, %v1686
        %v1688 = vpop.f32.mrf.mxu0
        %v1689 = vadd.f32 %v1456, %v1688
        %1690 = vmatmul.bf16.gmra.mxu0 %v1542
        %v1691 = vpop.f32.mrf.mxu0
        %v1692 = vadd.f32 %v1459, %v1691
        %v1693 = vpop.f32.mrf.mxu0
        %v1694 = vadd.f32 %v1461, %v1693
        %1695 = vdwg.mxu0
        %vm1712 = vcmask 1042432
        %vm1713 = vcmask 1046532
        %vm1714 = vmor %vm1712, %vm1713
        %v1715 = vrot.slane %v788, 5
        %v1716 = vrot.slane %v1715, 4
        %v1717 = vrot.slane %v789, 5
        %v1718 = vsel %vm1714, %v1716, %v1717
        %v1719 = vrot.slane %v1717, 4
        %v1720 = vrot.slane %v824, 5
        %v1721 = vsel %vm1714, %v1719, %v1720
        %v1722 = vrot.slane %v790, 5
        %v1723 = vrot.slane %v1722, 4
        %v1724 = vrot.slane %v791, 5
        %v1725 = vsel %vm1714, %v1723, %v1724
        %v1726 = vrot.slane %v1724, 4
        %v1727 = vrot.slane %v825, 5
        %v1728 = vsel %vm1714, %v1726, %v1727
        %v1729 = vrot.slane %v792, 5
        %v1730 = vrot.slane %v1729, 4
        %v1731 = vrot.slane %v793, 5
        %v1732 = vsel %vm1714, %v1730, %v1731
        %v1733 = vrot.slane %v1731, 4
        %v1734 = vrot.slane %v826, 5
        %v1735 = vsel %vm1714, %v1733, %v1734
        %v1736 = vrot.slane %v794, 5
        %v1737 = vrot.slane %v1736, 4
        %v1738 = vrot.slane %v795, 5
        %v1739 = vsel %vm1714, %v1737, %v1738
        %v1740 = vrot.slane %v1738, 4
        %v1741 = vrot.slane %v827, 5
        %v1742 = vsel %vm1714, %v1740, %v1741
        %v1743 = vrot.slane %v796, 5
        %v1744 = vrot.slane %v1743, 4
        %v1745 = vrot.slane %v797, 5
        %v1746 = vsel %vm1714, %v1744, %v1745
        %v1747 = vrot.slane %v1745, 4
        %v1748 = vrot.slane %v828, 5
        %v1749 = vsel %vm1714, %v1747, %v1748
        %v1750 = vrot.slane %v798, 5
        %v1751 = vrot.slane %v1750, 4
        %v1752 = vrot.slane %v799, 5
        %v1753 = vsel %vm1714, %v1751, %v1752
        %v1754 = vrot.slane %v1752, 4
        %v1755 = vrot.slane %v829, 5
        %v1756 = vsel %vm1714, %v1754, %v1755
        %v1757 = vrot.slane %v800, 5
        %v1758 = vrot.slane %v1757, 4
        %v1759 = vrot.slane %v801, 5
        %v1760 = vsel %vm1714, %v1758, %v1759
        %v1761 = vrot.slane %v1759, 4
        %v1762 = vrot.slane %v830, 5
        %v1763 = vsel %vm1714, %v1761, %v1762
        %v1764 = vrot.slane %v802, 5
        %v1765 = vrot.slane %v1764, 4
        %v1766 = vrot.slane %v803, 5
        %v1767 = vsel %vm1714, %v1765, %v1766
        %v1768 = vrot.slane %v1766, 4
        %v1769 = vrot.slane %v831, 5
        %v1770 = vsel %vm1714, %v1768, %v1769
        %v1771 = vrot.slane %v804, 5
        %v1772 = vrot.slane %v1771, 4
        %v1773 = vrot.slane %v805, 5
        %v1774 = vsel %vm1714, %v1772, %v1773
        %v1775 = vrot.slane %v1773, 4
        %v1776 = vrot.slane %v832, 5
        %v1777 = vsel %vm1714, %v1775, %v1776
        %v1778 = vrot.slane %v806, 5
        %v1779 = vrot.slane %v1778, 4
        %v1780 = vrot.slane %v807, 5
        %v1781 = vsel %vm1714, %v1779, %v1780
        %v1782 = vrot.slane %v1780, 4
        %v1783 = vrot.slane %v833, 5
        %v1784 = vsel %vm1714, %v1782, %v1783
        %v1785 = vrot.slane %v808, 5
        %v1786 = vrot.slane %v1785, 4
        %v1787 = vrot.slane %v809, 5
        %v1788 = vsel %vm1714, %v1786, %v1787
        %v1789 = vrot.slane %v1787, 4
        %v1790 = vrot.slane %v834, 5
        %v1791 = vsel %vm1714, %v1789, %v1790
        %v1792 = vrot.slane %v810, 5
        %v1793 = vrot.slane %v1792, 4
        %v1794 = vrot.slane %v811, 5
        %v1795 = vsel %vm1714, %v1793, %v1794
        %v1796 = vrot.slane %v1794, 4
        %v1797 = vrot.slane %v835, 5
        %v1798 = vsel %vm1714, %v1796, %v1797
        %v1799 = vrot.slane %v812, 5
        %v1800 = vrot.slane %v1799, 4
        %v1801 = vrot.slane %v813, 5
        %v1802 = vsel %vm1714, %v1800, %v1801
        %v1803 = vrot.slane %v1801, 4
        %v1804 = vrot.slane %v836, 5
        %v1805 = vsel %vm1714, %v1803, %v1804
        %v1806 = vrot.slane %v814, 5
        %v1807 = vrot.slane %v1806, 4
        %v1808 = vrot.slane %v815, 5
        %v1809 = vsel %vm1714, %v1807, %v1808
        %v1810 = vrot.slane %v1808, 4
        %v1811 = vrot.slane %v837, 5
        %v1812 = vsel %vm1714, %v1810, %v1811
        %v1813 = vrot.slane %v816, 5
        %v1814 = vrot.slane %v1813, 4
        %v1815 = vrot.slane %v817, 5
        %v1816 = vsel %vm1714, %v1814, %v1815
        %v1817 = vrot.slane %v1815, 4
        %v1818 = vrot.slane %v838, 5
        %v1819 = vsel %vm1714, %v1817, %v1818
        %v1820 = vrot.slane %v818, 5
        %v1821 = vrot.slane %v1820, 4
        %v1822 = vrot.slane %v819, 5
        %v1823 = vsel %vm1714, %v1821, %v1822
        %v1824 = vrot.slane %v1822, 4
        %v1825 = vrot.slane %v839, 5
        %v1826 = vsel %vm1714, %v1824, %v1825
        %s1827 = scalar_lea.vmem %s1, 128
        %v1828 = vld [vmem:[%s1827] sm:$0xf]
        %v1829 = vld [vmem:[%s1827 + $0x4] sm:$0xf]
        %v1830 = vld [vmem:[%s1827 + $0x8] sm:$0xf]
        %v1831 = vld [vmem:[%s1827 + $0xc] sm:$0xf]
        %v1832 = vld [vmem:[%s1827 + $0x10] sm:$0xf]
        %v1833 = vld [vmem:[%s1827 + $0x14] sm:$0xf]
        %v1834 = vld [vmem:[%s1827 + $0x18] sm:$0xf]
        %v1835 = vld [vmem:[%s1827 + $0x1c] sm:$0xf]
        %v1836 = vld [vmem:[%s1827 + $0x20] sm:$0xf]
        %v1837 = vld [vmem:[%s1827 + $0x24] sm:$0xf]
        %v1838 = vld [vmem:[%s1827 + $0x28] sm:$0xf]
        %v1839 = vld [vmem:[%s1827 + $0x2c] sm:$0xf]
        %v1840 = vld [vmem:[%s1827 + $0x30] sm:$0xf]
        %v1841 = vld [vmem:[%s1827 + $0x34] sm:$0xf]
        %v1842 = vld [vmem:[%s1827 + $0x38] sm:$0xf]
        %v1843 = vld [vmem:[%s1827 + $0x3c] sm:$0xf]
        %v1844 = vunpack.c.l.b16 %v1718
        %v1845 = vunpack.c.l.b16 %v1721
        %v1846 = vunpack.c.l.b16 %v1725
        %v1847 = vunpack.c.l.b16 %v1728
        %v1848 = vunpack.c.l.b16 %v1732
        %v1849 = vunpack.c.l.b16 %v1735
        %v1850 = vunpack.c.l.b16 %v1739
        %v1851 = vunpack.c.l.b16 %v1742
        %v1852 = vunpack.c.l.b16 %v1746
        %v1853 = vunpack.c.l.b16 %v1749
        %v1854 = vunpack.c.l.b16 %v1753
        %v1855 = vunpack.c.l.b16 %v1756
        %v1856 = vunpack.c.l.b16 %v1760
        %v1857 = vunpack.c.l.b16 %v1763
        %v1858 = vunpack.c.l.b16 %v1767
        %v1859 = vunpack.c.l.b16 %v1770
        %v1860 = vunpack.c.l.b16 %v1774
        %v1861 = vunpack.c.l.b16 %v1777
        %v1862 = vunpack.c.l.b16 %v1781
        %v1863 = vunpack.c.l.b16 %v1784
        %v1864 = vunpack.c.l.b16 %v1788
        %v1865 = vunpack.c.l.b16 %v1791
        %v1866 = vunpack.c.l.b16 %v1795
        %v1867 = vunpack.c.l.b16 %v1798
        %v1868 = vunpack.c.l.b16 %v1802
        %v1869 = vunpack.c.l.b16 %v1805
        %v1870 = vunpack.c.l.b16 %v1809
        %v1871 = vunpack.c.l.b16 %v1812
        %v1872 = vunpack.c.l.b16 %v1816
        %v1873 = vunpack.c.l.b16 %v1819
        %v1874 = vunpack.c.l.b16 %v1823
        %v1875 = vunpack.c.l.b16 %v1826
        %v1876 = vpack.c.b16 %v1845, %v1844
        %v1877 = vpack.c.b16 %v1847, %v1846
        %v1878 = vpack.c.b16 %v1849, %v1848
        %v1879 = vpack.c.b16 %v1851, %v1850
        %v1880 = vpack.c.b16 %v1853, %v1852
        %v1881 = vpack.c.b16 %v1855, %v1854
        %v1882 = vpack.c.b16 %v1857, %v1856
        %v1883 = vpack.c.b16 %v1859, %v1858
        %v1884 = vpack.c.b16 %v1861, %v1860
        %v1885 = vpack.c.b16 %v1863, %v1862
        %v1886 = vpack.c.b16 %v1865, %v1864
        %v1887 = vpack.c.b16 %v1867, %v1866
        %v1888 = vpack.c.b16 %v1869, %v1868
        %v1889 = vpack.c.b16 %v1871, %v1870
        %v1890 = vpack.c.b16 %v1873, %v1872
        %v1891 = vpack.c.b16 %v1875, %v1874
        %v1924 = vunpack.c.l.b16 %v1828
        %v1925 = vunpack.c.l.b16 %v1829
        %v1926 = vunpack.c.l.b16 %v1830
        %v1927 = vunpack.c.l.b16 %v1831
        %v1928 = vunpack.c.l.b16 %v1832
        %v1929 = vunpack.c.l.b16 %v1833
        %v1930 = vunpack.c.l.b16 %v1834
        %v1931 = vunpack.c.l.b16 %v1835
        %v1932 = vunpack.c.l.b16 %v1836
        %v1933 = vunpack.c.l.b16 %v1837
        %v1934 = vunpack.c.l.b16 %v1838
        %v1935 = vunpack.c.l.b16 %v1839
        %v1936 = vunpack.c.l.b16 %v1840
        %v1937 = vunpack.c.l.b16 %v1841
        %v1938 = vunpack.c.l.b16 %v1842
        %v1939 = vunpack.c.l.b16 %v1843
        %v1940 = vpack.c.b16 %v1925, %v1924
        %v1941 = vpack.c.b16 %v1927, %v1926
        %v1942 = vpack.c.b16 %v1929, %v1928
        %v1943 = vpack.c.b16 %v1931, %v1930
        %v1944 = vpack.c.b16 %v1933, %v1932
        %v1945 = vpack.c.b16 %v1935, %v1934
        %v1946 = vpack.c.b16 %v1937, %v1936
        %v1947 = vpack.c.b16 %v1939, %v1938
        %1956 = vmatpush.bf16.msra.mxu0 %v1947
        %1957 = vmatpush.bf16.msra.mxu0 %v1946
        %1958 = vmatpush.bf16.msra.mxu0 %v1945
        %1959 = vmatpush.bf16.msra.mxu0 %v1944
        %1960 = vmatpush.bf16.msra.mxu0 %v1943
        %1961 = vmatpush.bf16.msra.mxu0 %v1942
        %1962 = vmatpush.bf16.msra.mxu0 %v1941
        %1963 = vmatpush.bf16.msra.mxu0 %v1940
        %1964 = vmatmul.bf16.gmra.mxu0 %v1876
        %v1965 = vpop.f32.mrf.mxu0
        %v1966 = vadd.f32 0.0, %v1965
        %v1967 = vpop.f32.mrf.mxu0
        %v1968 = vadd.f32 0.0, %v1967
        %1969 = vmatmul.bf16.gmra.mxu0 %v1877
        %v1970 = vpop.f32.mrf.mxu0
        %v1971 = vadd.f32 0.0, %v1970
        %v1972 = vpop.f32.mrf.mxu0
        %v1973 = vadd.f32 0.0, %v1972
        %1974 = vmatmul.bf16.gmra.mxu0 %v1878
        %v1975 = vpop.f32.mrf.mxu0
        %v1976 = vadd.f32 0.0, %v1975
        %v1977 = vpop.f32.mrf.mxu0
        %v1978 = vadd.f32 0.0, %v1977
        %1979 = vmatmul.bf16.gmra.mxu0 %v1879
        %v1980 = vpop.f32.mrf.mxu0
        %v1981 = vadd.f32 0.0, %v1980
        %v1982 = vpop.f32.mrf.mxu0
        %v1983 = vadd.f32 0.0, %v1982
        %1984 = vmatmul.bf16.gmra.mxu0 %v1880
        %v1985 = vpop.f32.mrf.mxu0
        %v1986 = vadd.f32 0.0, %v1985
        %v1987 = vpop.f32.mrf.mxu0
        %v1988 = vadd.f32 0.0, %v1987
        %1989 = vmatmul.bf16.gmra.mxu0 %v1881
        %v1990 = vpop.f32.mrf.mxu0
        %v1991 = vadd.f32 0.0, %v1990
        %v1992 = vpop.f32.mrf.mxu0
        %v1993 = vadd.f32 0.0, %v1992
        %1994 = vmatmul.bf16.gmra.mxu0 %v1882
        %v1995 = vpop.f32.mrf.mxu0
        %v1996 = vadd.f32 0.0, %v1995
        %v1997 = vpop.f32.mrf.mxu0
        %v1998 = vadd.f32 0.0, %v1997
        %1999 = vmatmul.bf16.gmra.mxu0 %v1883
        %v2000 = vpop.f32.mrf.mxu0
        %v2001 = vadd.f32 0.0, %v2000
        %v2002 = vpop.f32.mrf.mxu0
        %v2003 = vadd.f32 0.0, %v2002
        %2004 = vmatmul.bf16.gmra.mxu0 %v1884
        %v2005 = vpop.f32.mrf.mxu0
        %v2006 = vadd.f32 0.0, %v2005
        %v2007 = vpop.f32.mrf.mxu0
        %v2008 = vadd.f32 0.0, %v2007
        %2009 = vmatmul.bf16.gmra.mxu0 %v1885
        %v2010 = vpop.f32.mrf.mxu0
        %v2011 = vadd.f32 0.0, %v2010
        %v2012 = vpop.f32.mrf.mxu0
        %v2013 = vadd.f32 0.0, %v2012
        %2014 = vmatmul.bf16.gmra.mxu0 %v1886
        %v2015 = vpop.f32.mrf.mxu0
        %v2016 = vadd.f32 0.0, %v2015
        %v2017 = vpop.f32.mrf.mxu0
        %v2018 = vadd.f32 0.0, %v2017
        %2019 = vmatmul.bf16.gmra.mxu0 %v1887
        %v2020 = vpop.f32.mrf.mxu0
        %v2021 = vadd.f32 0.0, %v2020
        %v2022 = vpop.f32.mrf.mxu0
        %v2023 = vadd.f32 0.0, %v2022
        %2024 = vmatmul.bf16.gmra.mxu0 %v1888
        %v2025 = vpop.f32.mrf.mxu0
        %v2026 = vadd.f32 0.0, %v2025
        %v2027 = vpop.f32.mrf.mxu0
        %v2028 = vadd.f32 0.0, %v2027
        %2029 = vmatmul.bf16.gmra.mxu0 %v1889
        %v2030 = vpop.f32.mrf.mxu0
        %v2031 = vadd.f32 0.0, %v2030
        %v2032 = vpop.f32.mrf.mxu0
        %v2033 = vadd.f32 0.0, %v2032
        %2034 = vmatmul.bf16.gmra.mxu0 %v1890
        %v2035 = vpop.f32.mrf.mxu0
        %v2036 = vadd.f32 0.0, %v2035
        %v2037 = vpop.f32.mrf.mxu0
        %v2038 = vadd.f32 0.0, %v2037
        %2039 = vmatmul.bf16.gmra.mxu0 %v1891
        %v2040 = vpop.f32.mrf.mxu0
        %v2041 = vadd.f32 0.0, %v2040
        %v2042 = vpop.f32.mrf.mxu0
        %v2043 = vadd.f32 0.0, %v2042
        %2044 = vdwg.mxu0
        %v2045 = vadd.f32 %v1617, %v1966
        %v2046 = vadd.f32 %v1619, %v1968
        %v2047 = vadd.f32 %v1622, %v1971
        %v2048 = vadd.f32 %v1624, %v1973
        %v2049 = vadd.f32 %v1627, %v1976
        %v2050 = vadd.f32 %v1629, %v1978
        %v2051 = vadd.f32 %v1632, %v1981
        %v2052 = vadd.f32 %v1634, %v1983
        %v2053 = vadd.f32 %v1637, %v1986
        %v2054 = vadd.f32 %v1639, %v1988
        %v2055 = vadd.f32 %v1642, %v1991
        %v2056 = vadd.f32 %v1644, %v1993
        %v2057 = vadd.f32 %v1647, %v1996
        %v2058 = vadd.f32 %v1649, %v1998
        %v2059 = vadd.f32 %v1652, %v2001
        %v2060 = vadd.f32 %v1654, %v2003
        %v2061 = vadd.f32 %v1657, %v2006
        %v2062 = vadd.f32 %v1659, %v2008
        %v2063 = vadd.f32 %v1662, %v2011
        %v2064 = vadd.f32 %v1664, %v2013
        %v2065 = vadd.f32 %v1667, %v2016
        %v2066 = vadd.f32 %v1669, %v2018
        %v2067 = vadd.f32 %v1672, %v2021
        %v2068 = vadd.f32 %v1674, %v2023
        %v2069 = vadd.f32 %v1677, %v2026
        %v2070 = vadd.f32 %v1679, %v2028
        %v2071 = vadd.f32 %v1682, %v2031
        %v2072 = vadd.f32 %v1684, %v2033
        %v2073 = vadd.f32 %v1687, %v2036
        %v2074 = vadd.f32 %v1689, %v2038
        %v2075 = vadd.f32 %v1692, %v2041
        %v2076 = vadd.f32 %v1694, %v2043
        %s2077 = scalar_lea.vmem %s1, 192
        %v2078 = vld [vmem:[%s2077] sm:$0xf]
        %v2079 = vld [vmem:[%s2077 + $0x4] sm:$0xf]
        %v2080 = vld [vmem:[%s2077 + $0x8] sm:$0xf]
        %v2081 = vld [vmem:[%s2077 + $0xc] sm:$0xf]
        %v2082 = vld [vmem:[%s2077 + $0x10] sm:$0xf]
        %v2083 = vld [vmem:[%s2077 + $0x14] sm:$0xf]
        %v2084 = vld [vmem:[%s2077 + $0x18] sm:$0xf]
        %v2085 = vld [vmem:[%s2077 + $0x1c] sm:$0xf]
        %v2086 = vld [vmem:[%s2077 + $0x20] sm:$0xf]
        %v2087 = vld [vmem:[%s2077 + $0x24] sm:$0xf]
        %v2088 = vld [vmem:[%s2077 + $0x28] sm:$0xf]
        %v2089 = vld [vmem:[%s2077 + $0x2c] sm:$0xf]
        %v2090 = vld [vmem:[%s2077 + $0x30] sm:$0xf]
        %v2091 = vld [vmem:[%s2077 + $0x34] sm:$0xf]
        %v2092 = vld [vmem:[%s2077 + $0x38] sm:$0xf]
        %v2093 = vld [vmem:[%s2077 + $0x3c] sm:$0xf]
        %v2096 = vunpack.c.l.b16 %v820
        %v2097 = vunpack.c.l.b16 %v821
        %v2098 = vpack.c.b16 %v2097, %v2096
        %v2116 = vunpack.c.l.b16 %v2078
        %v2117 = vunpack.c.l.b16 %v2079
        %v2118 = vunpack.c.l.b16 %v2080
        %v2119 = vunpack.c.l.b16 %v2081
        %v2120 = vunpack.c.l.b16 %v2082
        %v2121 = vunpack.c.l.b16 %v2083
        %v2122 = vunpack.c.l.b16 %v2084
        %v2123 = vunpack.c.l.b16 %v2085
        %v2124 = vunpack.c.l.b16 %v2086
        %v2125 = vunpack.c.l.b16 %v2087
        %v2126 = vunpack.c.l.b16 %v2088
        %v2127 = vunpack.c.l.b16 %v2089
        %v2128 = vunpack.c.l.b16 %v2090
        %v2129 = vunpack.c.l.b16 %v2091
        %v2130 = vunpack.c.l.b16 %v2092
        %v2131 = vunpack.c.l.b16 %v2093
        %v2132 = vpack.c.b16 %v2117, %v2116
        %v2133 = vpack.c.b16 %v2119, %v2118
        %v2134 = vpack.c.b16 %v2121, %v2120
        %v2135 = vpack.c.b16 %v2123, %v2122
        %v2136 = vpack.c.b16 %v2125, %v2124
        %v2137 = vpack.c.b16 %v2127, %v2126
        %v2138 = vpack.c.b16 %v2129, %v2128
        %v2139 = vpack.c.b16 %v2131, %v2130
        %2148 = vmatpush.bf16.msra.mxu0 %v2139
        %2149 = vmatpush.bf16.msra.mxu0 %v2138
        %2150 = vmatpush.bf16.msra.mxu0 %v2137
        %2151 = vmatpush.bf16.msra.mxu0 %v2136
        %2152 = vmatpush.bf16.msra.mxu0 %v2135
        %2153 = vmatpush.bf16.msra.mxu0 %v2134
        %2154 = vmatpush.bf16.msra.mxu0 %v2133
        %2155 = vmatpush.bf16.msra.mxu0 %v2132
        %2156 = vmatmul.bf16.gmra.mxu0 %v1528
        %v2157 = vpop.f32.mrf.mxu0
        %v2158 = vadd.f32 0.0, %v2157
        %v2159 = vpop.f32.mrf.mxu0
        %v2160 = vadd.f32 0.0, %v2159
        %2161 = vmatmul.bf16.gmra.mxu0 %v1529
        %v2162 = vpop.f32.mrf.mxu0
        %v2163 = vadd.f32 0.0, %v2162
        %v2164 = vpop.f32.mrf.mxu0
        %v2165 = vadd.f32 0.0, %v2164
        %2166 = vmatmul.bf16.gmra.mxu0 %v1530
        %v2167 = vpop.f32.mrf.mxu0
        %v2168 = vadd.f32 0.0, %v2167
        %v2169 = vpop.f32.mrf.mxu0
        %v2170 = vadd.f32 0.0, %v2169
        %2171 = vmatmul.bf16.gmra.mxu0 %v1531
        %v2172 = vpop.f32.mrf.mxu0
        %v2173 = vadd.f32 0.0, %v2172
        %v2174 = vpop.f32.mrf.mxu0
        %v2175 = vadd.f32 0.0, %v2174
        %2176 = vmatmul.bf16.gmra.mxu0 %v1532
        %v2177 = vpop.f32.mrf.mxu0
        %v2178 = vadd.f32 0.0, %v2177
        %v2179 = vpop.f32.mrf.mxu0
        %v2180 = vadd.f32 0.0, %v2179
        %2181 = vmatmul.bf16.gmra.mxu0 %v1533
        %v2182 = vpop.f32.mrf.mxu0
        %v2183 = vadd.f32 0.0, %v2182
        %v2184 = vpop.f32.mrf.mxu0
        %v2185 = vadd.f32 0.0, %v2184
        %2186 = vmatmul.bf16.gmra.mxu0 %v1534
        %v2187 = vpop.f32.mrf.mxu0
        %v2188 = vadd.f32 0.0, %v2187
        %v2189 = vpop.f32.mrf.mxu0
        %v2190 = vadd.f32 0.0, %v2189
        %2191 = vmatmul.bf16.gmra.mxu0 %v1535
        %v2192 = vpop.f32.mrf.mxu0
        %v2193 = vadd.f32 0.0, %v2192
        %v2194 = vpop.f32.mrf.mxu0
        %v2195 = vadd.f32 0.0, %v2194
        %2196 = vmatmul.bf16.gmra.mxu0 %v1536
        %v2197 = vpop.f32.mrf.mxu0
        %v2198 = vadd.f32 0.0, %v2197
        %v2199 = vpop.f32.mrf.mxu0
        %v2200 = vadd.f32 0.0, %v2199
        %2201 = vmatmul.bf16.gmra.mxu0 %v1537
        %v2202 = vpop.f32.mrf.mxu0
        %v2203 = vadd.f32 0.0, %v2202
        %v2204 = vpop.f32.mrf.mxu0
        %v2205 = vadd.f32 0.0, %v2204
        %2206 = vmatmul.bf16.gmra.mxu0 %v1538
        %v2207 = vpop.f32.mrf.mxu0
        %v2208 = vadd.f32 0.0, %v2207
        %v2209 = vpop.f32.mrf.mxu0
        %v2210 = vadd.f32 0.0, %v2209
        %2211 = vmatmul.bf16.gmra.mxu0 %v1539
        %v2212 = vpop.f32.mrf.mxu0
        %v2213 = vadd.f32 0.0, %v2212
        %v2214 = vpop.f32.mrf.mxu0
        %v2215 = vadd.f32 0.0, %v2214
        %2216 = vmatmul.bf16.gmra.mxu0 %v1540
        %v2217 = vpop.f32.mrf.mxu0
        %v2218 = vadd.f32 0.0, %v2217
        %v2219 = vpop.f32.mrf.mxu0
        %v2220 = vadd.f32 0.0, %v2219
        %2221 = vmatmul.bf16.gmra.mxu0 %v1541
        %v2222 = vpop.f32.mrf.mxu0
        %v2223 = vadd.f32 0.0, %v2222
        %v2224 = vpop.f32.mrf.mxu0
        %v2225 = vadd.f32 0.0, %v2224
        %2226 = vmatmul.bf16.gmra.mxu0 %v1542
        %v2227 = vpop.f32.mrf.mxu0
        %v2228 = vadd.f32 0.0, %v2227
        %v2229 = vpop.f32.mrf.mxu0
        %v2230 = vadd.f32 0.0, %v2229
        %2231 = vmatmul.bf16.gmra.mxu0 %v2098
        %v2232 = vpop.f32.mrf.mxu0
        %v2233 = vadd.f32 0.0, %v2232
        %v2234 = vpop.f32.mrf.mxu0
        %v2235 = vadd.f32 0.0, %v2234
        %2236 = vdwg.mxu0
        %v2237 = vadd.f32 %v2045, %v2158
        %v2238 = vadd.f32 %v2046, %v2160
        %v2239 = vadd.f32 %v2047, %v2163
        %v2240 = vadd.f32 %v2048, %v2165
        %v2241 = vadd.f32 %v2049, %v2168
        %v2242 = vadd.f32 %v2050, %v2170
        %v2243 = vadd.f32 %v2051, %v2173
        %v2244 = vadd.f32 %v2052, %v2175
        %v2245 = vadd.f32 %v2053, %v2178
        %v2246 = vadd.f32 %v2054, %v2180
        %v2247 = vadd.f32 %v2055, %v2183
        %v2248 = vadd.f32 %v2056, %v2185
        %v2249 = vadd.f32 %v2057, %v2188
        %v2250 = vadd.f32 %v2058, %v2190
        %v2251 = vadd.f32 %v2059, %v2193
        %v2252 = vadd.f32 %v2060, %v2195
        %v2253 = vadd.f32 %v2061, %v2198
        %v2254 = vadd.f32 %v2062, %v2200
        %v2255 = vadd.f32 %v2063, %v2203
        %v2256 = vadd.f32 %v2064, %v2205
        %v2257 = vadd.f32 %v2065, %v2208
        %v2258 = vadd.f32 %v2066, %v2210
        %v2259 = vadd.f32 %v2067, %v2213
        %v2260 = vadd.f32 %v2068, %v2215
        %v2261 = vadd.f32 %v2069, %v2218
        %v2262 = vadd.f32 %v2070, %v2220
        %v2263 = vadd.f32 %v2071, %v2223
        %v2264 = vadd.f32 %v2072, %v2225
        %v2265 = vadd.f32 %v2073, %v2228
        %v2266 = vadd.f32 %v2074, %v2230
        %v2267 = vadd.f32 %v2075, %v2233
        %v2268 = vadd.f32 %v2076, %v2235
        %v2270 = vshrl.u32 %v820, 16
        %v2272 = vrot.slane %v2270, 4
        %v2273 = vshll.u32 %v820, 16
        %v2275 = vrot.slane %v2273, 5
        %v2276 = vor.u32 %v2272, %v2275
        %v2277 = vrot.slane %v2276, 4
        %v2279 = vshll.u32 %v821, 16
        %v2281 = vrot.slane %v2279, 5
        %v2282 = vsel %vm860, %v2277, %v2281
        %v2283 = vshrl.u32 %v821, 16
        %v2285 = vrot.slane %v2283, 4
        %v2286 = vor.u32 %v2285, %v2281
        %v2287 = vrot.slane %v2286, 4
        %v2289 = vshll.u32 %v840, 16
        %v2291 = vrot.slane %v2289, 5
        %v2292 = vsel %vm860, %v2287, %v2291
        %s2293 = scalar_lea.vmem %s1, 256
        %v2294 = vld [vmem:[%s2293] sm:$0xf]
        %v2295 = vld [vmem:[%s2293 + $0x4] sm:$0xf]
        %v2296 = vld [vmem:[%s2293 + $0x8] sm:$0xf]
        %v2297 = vld [vmem:[%s2293 + $0xc] sm:$0xf]
        %v2298 = vld [vmem:[%s2293 + $0x10] sm:$0xf]
        %v2299 = vld [vmem:[%s2293 + $0x14] sm:$0xf]
        %v2300 = vld [vmem:[%s2293 + $0x18] sm:$0xf]
        %v2301 = vld [vmem:[%s2293 + $0x1c] sm:$0xf]
        %v2302 = vld [vmem:[%s2293 + $0x20] sm:$0xf]
        %v2303 = vld [vmem:[%s2293 + $0x24] sm:$0xf]
        %v2304 = vld [vmem:[%s2293 + $0x28] sm:$0xf]
        %v2305 = vld [vmem:[%s2293 + $0x2c] sm:$0xf]
        %v2306 = vld [vmem:[%s2293 + $0x30] sm:$0xf]
        %v2307 = vld [vmem:[%s2293 + $0x34] sm:$0xf]
        %v2308 = vld [vmem:[%s2293 + $0x38] sm:$0xf]
        %v2309 = vld [vmem:[%s2293 + $0x3c] sm:$0xf]
        %v2310 = vunpack.c.l.b16 %v2282
        %v2311 = vunpack.c.l.b16 %v2292
        %v2312 = vpack.c.b16 %v2311, %v2310
        %v2330 = vunpack.c.l.b16 %v2294
        %v2331 = vunpack.c.l.b16 %v2295
        %v2332 = vunpack.c.l.b16 %v2296
        %v2333 = vunpack.c.l.b16 %v2297
        %v2334 = vunpack.c.l.b16 %v2298
        %v2335 = vunpack.c.l.b16 %v2299
        %v2336 = vunpack.c.l.b16 %v2300
        %v2337 = vunpack.c.l.b16 %v2301
        %v2338 = vunpack.c.l.b16 %v2302
        %v2339 = vunpack.c.l.b16 %v2303
        %v2340 = vunpack.c.l.b16 %v2304
        %v2341 = vunpack.c.l.b16 %v2305
        %v2342 = vunpack.c.l.b16 %v2306
        %v2343 = vunpack.c.l.b16 %v2307
        %v2344 = vunpack.c.l.b16 %v2308
        %v2345 = vunpack.c.l.b16 %v2309
        %v2346 = vpack.c.b16 %v2331, %v2330
        %v2347 = vpack.c.b16 %v2333, %v2332
        %v2348 = vpack.c.b16 %v2335, %v2334
        %v2349 = vpack.c.b16 %v2337, %v2336
        %v2350 = vpack.c.b16 %v2339, %v2338
        %v2351 = vpack.c.b16 %v2341, %v2340
        %v2352 = vpack.c.b16 %v2343, %v2342
        %v2353 = vpack.c.b16 %v2345, %v2344
        %2362 = vmatpush.bf16.msra.mxu0 %v2353
        %2363 = vmatpush.bf16.msra.mxu0 %v2352
        %2364 = vmatpush.bf16.msra.mxu0 %v2351
        %2365 = vmatpush.bf16.msra.mxu0 %v2350
        %2366 = vmatpush.bf16.msra.mxu0 %v2349
        %2367 = vmatpush.bf16.msra.mxu0 %v2348
        %2368 = vmatpush.bf16.msra.mxu0 %v2347
        %2369 = vmatpush.bf16.msra.mxu0 %v2346
        %2370 = vmatmul.bf16.gmra.mxu0 %v1295
        %v2371 = vpop.f32.mrf.mxu0
        %v2372 = vadd.f32 0.0, %v2371
        %v2373 = vpop.f32.mrf.mxu0
        %v2374 = vadd.f32 0.0, %v2373
        %2375 = vmatmul.bf16.gmra.mxu0 %v1296
        %v2376 = vpop.f32.mrf.mxu0
        %v2377 = vadd.f32 0.0, %v2376
        %v2378 = vpop.f32.mrf.mxu0
        %v2379 = vadd.f32 0.0, %v2378
        %2380 = vmatmul.bf16.gmra.mxu0 %v1297
        %v2381 = vpop.f32.mrf.mxu0
        %v2382 = vadd.f32 0.0, %v2381
        %v2383 = vpop.f32.mrf.mxu0
        %v2384 = vadd.f32 0.0, %v2383
        %2385 = vmatmul.bf16.gmra.mxu0 %v1298
        %v2386 = vpop.f32.mrf.mxu0
        %v2387 = vadd.f32 0.0, %v2386
        %v2388 = vpop.f32.mrf.mxu0
        %v2389 = vadd.f32 0.0, %v2388
        %2390 = vmatmul.bf16.gmra.mxu0 %v1299
        %v2391 = vpop.f32.mrf.mxu0
        %v2392 = vadd.f32 0.0, %v2391
        %v2393 = vpop.f32.mrf.mxu0
        %v2394 = vadd.f32 0.0, %v2393
        %2395 = vmatmul.bf16.gmra.mxu0 %v1300
        %v2396 = vpop.f32.mrf.mxu0
        %v2397 = vadd.f32 0.0, %v2396
        %v2398 = vpop.f32.mrf.mxu0
        %v2399 = vadd.f32 0.0, %v2398
        %2400 = vmatmul.bf16.gmra.mxu0 %v1301
        %v2401 = vpop.f32.mrf.mxu0
        %v2402 = vadd.f32 0.0, %v2401
        %v2403 = vpop.f32.mrf.mxu0
        %v2404 = vadd.f32 0.0, %v2403
        %2405 = vmatmul.bf16.gmra.mxu0 %v1302
        %v2406 = vpop.f32.mrf.mxu0
        %v2407 = vadd.f32 0.0, %v2406
        %v2408 = vpop.f32.mrf.mxu0
        %v2409 = vadd.f32 0.0, %v2408
        %2410 = vmatmul.bf16.gmra.mxu0 %v1303
        %v2411 = vpop.f32.mrf.mxu0
        %v2412 = vadd.f32 0.0, %v2411
        %v2413 = vpop.f32.mrf.mxu0
        %v2414 = vadd.f32 0.0, %v2413
        %2415 = vmatmul.bf16.gmra.mxu0 %v1304
        %v2416 = vpop.f32.mrf.mxu0
        %v2417 = vadd.f32 0.0, %v2416
        %v2418 = vpop.f32.mrf.mxu0
        %v2419 = vadd.f32 0.0, %v2418
        %2420 = vmatmul.bf16.gmra.mxu0 %v1305
        %v2421 = vpop.f32.mrf.mxu0
        %v2422 = vadd.f32 0.0, %v2421
        %v2423 = vpop.f32.mrf.mxu0
        %v2424 = vadd.f32 0.0, %v2423
        %2425 = vmatmul.bf16.gmra.mxu0 %v1306
        %v2426 = vpop.f32.mrf.mxu0
        %v2427 = vadd.f32 0.0, %v2426
        %v2428 = vpop.f32.mrf.mxu0
        %v2429 = vadd.f32 0.0, %v2428
        %2430 = vmatmul.bf16.gmra.mxu0 %v1307
        %v2431 = vpop.f32.mrf.mxu0
        %v2432 = vadd.f32 0.0, %v2431
        %v2433 = vpop.f32.mrf.mxu0
        %v2434 = vadd.f32 0.0, %v2433
        %2435 = vmatmul.bf16.gmra.mxu0 %v1308
        %v2436 = vpop.f32.mrf.mxu0
        %v2437 = vadd.f32 0.0, %v2436
        %v2438 = vpop.f32.mrf.mxu0
        %v2439 = vadd.f32 0.0, %v2438
        %2440 = vmatmul.bf16.gmra.mxu0 %v1309
        %v2441 = vpop.f32.mrf.mxu0
        %v2442 = vadd.f32 0.0, %v2441
        %v2443 = vpop.f32.mrf.mxu0
        %v2444 = vadd.f32 0.0, %v2443
        %2445 = vmatmul.bf16.gmra.mxu0 %v2312
        %v2446 = vpop.f32.mrf.mxu0
        %v2447 = vadd.f32 0.0, %v2446
        %v2448 = vpop.f32.mrf.mxu0
        %v2449 = vadd.f32 0.0, %v2448
        %2450 = vdwg.mxu0
        %v2451 = vadd.f32 %v2237, %v2372
        %v2452 = vadd.f32 %v2238, %v2374
        %v2453 = vadd.f32 %v2239, %v2377
        %v2454 = vadd.f32 %v2240, %v2379
        %v2455 = vadd.f32 %v2241, %v2382
        %v2456 = vadd.f32 %v2242, %v2384
        %v2457 = vadd.f32 %v2243, %v2387
        %v2458 = vadd.f32 %v2244, %v2389
        %v2459 = vadd.f32 %v2245, %v2392
        %v2460 = vadd.f32 %v2246, %v2394
        %v2461 = vadd.f32 %v2247, %v2397
        %v2462 = vadd.f32 %v2248, %v2399
        %v2463 = vadd.f32 %v2249, %v2402
        %v2464 = vadd.f32 %v2250, %v2404
        %v2465 = vadd.f32 %v2251, %v2407
        %v2466 = vadd.f32 %v2252, %v2409
        %v2467 = vadd.f32 %v2253, %v2412
        %v2468 = vadd.f32 %v2254, %v2414
        %v2469 = vadd.f32 %v2255, %v2417
        %v2470 = vadd.f32 %v2256, %v2419
        %v2471 = vadd.f32 %v2257, %v2422
        %v2472 = vadd.f32 %v2258, %v2424
        %v2473 = vadd.f32 %v2259, %v2427
        %v2474 = vadd.f32 %v2260, %v2429
        %v2475 = vadd.f32 %v2261, %v2432
        %v2476 = vadd.f32 %v2262, %v2434
        %v2477 = vadd.f32 %v2263, %v2437
        %v2478 = vadd.f32 %v2264, %v2439
        %v2479 = vadd.f32 %v2265, %v2442
        %v2480 = vadd.f32 %v2266, %v2444
        %v2481 = vadd.f32 %v2267, %v2447
        %v2482 = vadd.f32 %v2268, %v2449
        %v2484 = vrot.slane %v820, 5
        %v2485 = vrot.slane %v2484, 4
        %v2486 = vrot.slane %v821, 5
        %v2487 = vsel %vm1714, %v2485, %v2486
        %v2488 = vrot.slane %v2486, 4
        %v2489 = vrot.slane %v840, 5
        %v2490 = vsel %vm1714, %v2488, %v2489
        %s2491 = scalar_lea.vmem %s1, 320
        %v2492 = vld [vmem:[%s2491] sm:$0xf]
        %v2493 = vld [vmem:[%s2491 + $0x4] sm:$0xf]
        %v2494 = vld [vmem:[%s2491 + $0x8] sm:$0xf]
        %v2495 = vld [vmem:[%s2491 + $0xc] sm:$0xf]
        %v2496 = vld [vmem:[%s2491 + $0x10] sm:$0xf]
        %v2497 = vld [vmem:[%s2491 + $0x14] sm:$0xf]
        %v2498 = vld [vmem:[%s2491 + $0x18] sm:$0xf]
        %v2499 = vld [vmem:[%s2491 + $0x1c] sm:$0xf]
        %v2500 = vld [vmem:[%s2491 + $0x20] sm:$0xf]
        %v2501 = vld [vmem:[%s2491 + $0x24] sm:$0xf]
        %v2502 = vld [vmem:[%s2491 + $0x28] sm:$0xf]
        %v2503 = vld [vmem:[%s2491 + $0x2c] sm:$0xf]
        %v2504 = vld [vmem:[%s2491 + $0x30] sm:$0xf]
        %v2505 = vld [vmem:[%s2491 + $0x34] sm:$0xf]
        %v2506 = vld [vmem:[%s2491 + $0x38] sm:$0xf]
        %v2507 = vld [vmem:[%s2491 + $0x3c] sm:$0xf]
        %v2508 = vunpack.c.l.b16 %v2487
        %v2509 = vunpack.c.l.b16 %v2490
        %v2510 = vpack.c.b16 %v2509, %v2508
        %v2528 = vunpack.c.l.b16 %v2492
        %v2529 = vunpack.c.l.b16 %v2493
        %v2530 = vunpack.c.l.b16 %v2494
        %v2531 = vunpack.c.l.b16 %v2495
        %v2532 = vunpack.c.l.b16 %v2496
        %v2533 = vunpack.c.l.b16 %v2497
        %v2534 = vunpack.c.l.b16 %v2498
        %v2535 = vunpack.c.l.b16 %v2499
        %v2536 = vunpack.c.l.b16 %v2500
        %v2537 = vunpack.c.l.b16 %v2501
        %v2538 = vunpack.c.l.b16 %v2502
        %v2539 = vunpack.c.l.b16 %v2503
        %v2540 = vunpack.c.l.b16 %v2504
        %v2541 = vunpack.c.l.b16 %v2505
        %v2542 = vunpack.c.l.b16 %v2506
        %v2543 = vunpack.c.l.b16 %v2507
        %v2544 = vpack.c.b16 %v2529, %v2528
        %v2545 = vpack.c.b16 %v2531, %v2530
        %v2546 = vpack.c.b16 %v2533, %v2532
        %v2547 = vpack.c.b16 %v2535, %v2534
        %v2548 = vpack.c.b16 %v2537, %v2536
        %v2549 = vpack.c.b16 %v2539, %v2538
        %v2550 = vpack.c.b16 %v2541, %v2540
        %v2551 = vpack.c.b16 %v2543, %v2542
        %2560 = vmatpush.bf16.msra.mxu0 %v2551
        %2561 = vmatpush.bf16.msra.mxu0 %v2550
        %2562 = vmatpush.bf16.msra.mxu0 %v2549
        %2563 = vmatpush.bf16.msra.mxu0 %v2548
        %2564 = vmatpush.bf16.msra.mxu0 %v2547
        %2565 = vmatpush.bf16.msra.mxu0 %v2546
        %2566 = vmatpush.bf16.msra.mxu0 %v2545
        %2567 = vmatpush.bf16.msra.mxu0 %v2544
        %2568 = vmatmul.bf16.gmra.mxu0 %v1877
        %v2569 = vpop.f32.mrf.mxu0
        %v2570 = vadd.f32 0.0, %v2569
        %v2571 = vpop.f32.mrf.mxu0
        %v2572 = vadd.f32 0.0, %v2571
        %2573 = vmatmul.bf16.gmra.mxu0 %v1878
        %v2574 = vpop.f32.mrf.mxu0
        %v2575 = vadd.f32 0.0, %v2574
        %v2576 = vpop.f32.mrf.mxu0
        %v2577 = vadd.f32 0.0, %v2576
        %2578 = vmatmul.bf16.gmra.mxu0 %v1879
        %v2579 = vpop.f32.mrf.mxu0
        %v2580 = vadd.f32 0.0, %v2579
        %v2581 = vpop.f32.mrf.mxu0
        %v2582 = vadd.f32 0.0, %v2581
        %2583 = vmatmul.bf16.gmra.mxu0 %v1880
        %v2584 = vpop.f32.mrf.mxu0
        %v2585 = vadd.f32 0.0, %v2584
        %v2586 = vpop.f32.mrf.mxu0
        %v2587 = vadd.f32 0.0, %v2586
        %2588 = vmatmul.bf16.gmra.mxu0 %v1881
        %v2589 = vpop.f32.mrf.mxu0
        %v2590 = vadd.f32 0.0, %v2589
        %v2591 = vpop.f32.mrf.mxu0
        %v2592 = vadd.f32 0.0, %v2591
        %2593 = vmatmul.bf16.gmra.mxu0 %v1882
        %v2594 = vpop.f32.mrf.mxu0
        %v2595 = vadd.f32 0.0, %v2594
        %v2596 = vpop.f32.mrf.mxu0
        %v2597 = vadd.f32 0.0, %v2596
        %2598 = vmatmul.bf16.gmra.mxu0 %v1883
        %v2599 = vpop.f32.mrf.mxu0
        %v2600 = vadd.f32 0.0, %v2599
        %v2601 = vpop.f32.mrf.mxu0
        %v2602 = vadd.f32 0.0, %v2601
        %2603 = vmatmul.bf16.gmra.mxu0 %v1884
        %v2604 = vpop.f32.mrf.mxu0
        %v2605 = vadd.f32 0.0, %v2604
        %v2606 = vpop.f32.mrf.mxu0
        %v2607 = vadd.f32 0.0, %v2606
        %2608 = vmatmul.bf16.gmra.mxu0 %v1885
        %v2609 = vpop.f32.mrf.mxu0
        %v2610 = vadd.f32 0.0, %v2609
        %v2611 = vpop.f32.mrf.mxu0
        %v2612 = vadd.f32 0.0, %v2611
        %2613 = vmatmul.bf16.gmra.mxu0 %v1886
        %v2614 = vpop.f32.mrf.mxu0
        %v2615 = vadd.f32 0.0, %v2614
        %v2616 = vpop.f32.mrf.mxu0
        %v2617 = vadd.f32 0.0, %v2616
        %2618 = vmatmul.bf16.gmra.mxu0 %v1887
        %v2619 = vpop.f32.mrf.mxu0
        %v2620 = vadd.f32 0.0, %v2619
        %v2621 = vpop.f32.mrf.mxu0
        %v2622 = vadd.f32 0.0, %v2621
        %2623 = vmatmul.bf16.gmra.mxu0 %v1888
        %v2624 = vpop.f32.mrf.mxu0
        %v2625 = vadd.f32 0.0, %v2624
        %v2626 = vpop.f32.mrf.mxu0
        %v2627 = vadd.f32 0.0, %v2626
        %2628 = vmatmul.bf16.gmra.mxu0 %v1889
        %v2629 = vpop.f32.mrf.mxu0
        %v2630 = vadd.f32 0.0, %v2629
        %v2631 = vpop.f32.mrf.mxu0
        %v2632 = vadd.f32 0.0, %v2631
        %2633 = vmatmul.bf16.gmra.mxu0 %v1890
        %v2634 = vpop.f32.mrf.mxu0
        %v2635 = vadd.f32 0.0, %v2634
        %v2636 = vpop.f32.mrf.mxu0
        %v2637 = vadd.f32 0.0, %v2636
        %2638 = vmatmul.bf16.gmra.mxu0 %v1891
        %v2639 = vpop.f32.mrf.mxu0
        %v2640 = vadd.f32 0.0, %v2639
        %v2641 = vpop.f32.mrf.mxu0
        %v2642 = vadd.f32 0.0, %v2641
        %2643 = vmatmul.bf16.gmra.mxu0 %v2510
        %v2644 = vpop.f32.mrf.mxu0
        %v2645 = vadd.f32 0.0, %v2644
        %v2646 = vpop.f32.mrf.mxu0
        %v2647 = vadd.f32 0.0, %v2646
        %2648 = vdwg.mxu0
        %v2649 = vadd.f32 %v2451, %v2570
        %v2650 = vadd.f32 %v2452, %v2572
        %v2651 = vadd.f32 %v2453, %v2575
        %v2652 = vadd.f32 %v2454, %v2577
        %v2653 = vadd.f32 %v2455, %v2580
        %v2654 = vadd.f32 %v2456, %v2582
        %v2655 = vadd.f32 %v2457, %v2585
        %v2656 = vadd.f32 %v2458, %v2587
        %v2657 = vadd.f32 %v2459, %v2590
        %v2658 = vadd.f32 %v2460, %v2592
        %v2659 = vadd.f32 %v2461, %v2595
        %v2660 = vadd.f32 %v2462, %v2597
        %v2661 = vadd.f32 %v2463, %v2600
        %v2662 = vadd.f32 %v2464, %v2602
        %v2663 = vadd.f32 %v2465, %v2605
        %v2664 = vadd.f32 %v2466, %v2607
        %v2665 = vadd.f32 %v2467, %v2610
        %v2666 = vadd.f32 %v2468, %v2612
        %v2667 = vadd.f32 %v2469, %v2615
        %v2668 = vadd.f32 %v2470, %v2617
        %v2669 = vadd.f32 %v2471, %v2620
        %v2670 = vadd.f32 %v2472, %v2622
        %v2671 = vadd.f32 %v2473, %v2625
        %v2672 = vadd.f32 %v2474, %v2627
        %v2673 = vadd.f32 %v2475, %v2630
        %v2674 = vadd.f32 %v2476, %v2632
        %v2675 = vadd.f32 %v2477, %v2635
        %v2676 = vadd.f32 %v2478, %v2637
        %v2677 = vadd.f32 %v2479, %v2640
        %v2678 = vadd.f32 %v2480, %v2642
        %v2679 = vadd.f32 %v2481, %v2645
        %v2680 = vadd.f32 %v2482, %v2647
        %s2681 = scalar_lea.vmem %s1, 384
        %v2682 = vld [vmem:[%s2681] sm:$0xf]
        %v2683 = vld [vmem:[%s2681 + $0x4] sm:$0xf]
        %v2684 = vld [vmem:[%s2681 + $0x8] sm:$0xf]
        %v2685 = vld [vmem:[%s2681 + $0xc] sm:$0xf]
        %v2686 = vld [vmem:[%s2681 + $0x10] sm:$0xf]
        %v2687 = vld [vmem:[%s2681 + $0x14] sm:$0xf]
        %v2688 = vld [vmem:[%s2681 + $0x18] sm:$0xf]
        %v2689 = vld [vmem:[%s2681 + $0x1c] sm:$0xf]
        %v2690 = vld [vmem:[%s2681 + $0x20] sm:$0xf]
        %v2691 = vld [vmem:[%s2681 + $0x24] sm:$0xf]
        %v2692 = vld [vmem:[%s2681 + $0x28] sm:$0xf]
        %v2693 = vld [vmem:[%s2681 + $0x2c] sm:$0xf]
        %v2694 = vld [vmem:[%s2681 + $0x30] sm:$0xf]
        %v2695 = vld [vmem:[%s2681 + $0x34] sm:$0xf]
        %v2696 = vld [vmem:[%s2681 + $0x38] sm:$0xf]
        %v2697 = vld [vmem:[%s2681 + $0x3c] sm:$0xf]
        %v2700 = vunpack.c.l.b16 %v822
        %v2701 = vunpack.c.l.b16 %v823
        %v2702 = vpack.c.b16 %v2701, %v2700
        %v2720 = vunpack.c.l.b16 %v2682
        %v2721 = vunpack.c.l.b16 %v2683
        %v2722 = vunpack.c.l.b16 %v2684
        %v2723 = vunpack.c.l.b16 %v2685
        %v2724 = vunpack.c.l.b16 %v2686
        %v2725 = vunpack.c.l.b16 %v2687
        %v2726 = vunpack.c.l.b16 %v2688
        %v2727 = vunpack.c.l.b16 %v2689
        %v2728 = vunpack.c.l.b16 %v2690
        %v2729 = vunpack.c.l.b16 %v2691
        %v2730 = vunpack.c.l.b16 %v2692
        %v2731 = vunpack.c.l.b16 %v2693
        %v2732 = vunpack.c.l.b16 %v2694
        %v2733 = vunpack.c.l.b16 %v2695
        %v2734 = vunpack.c.l.b16 %v2696
        %v2735 = vunpack.c.l.b16 %v2697
        %v2736 = vpack.c.b16 %v2721, %v2720
        %v2737 = vpack.c.b16 %v2723, %v2722
        %v2738 = vpack.c.b16 %v2725, %v2724
        %v2739 = vpack.c.b16 %v2727, %v2726
        %v2740 = vpack.c.b16 %v2729, %v2728
        %v2741 = vpack.c.b16 %v2731, %v2730
        %v2742 = vpack.c.b16 %v2733, %v2732
        %v2743 = vpack.c.b16 %v2735, %v2734
        %2752 = vmatpush.bf16.msra.mxu0 %v2743
        %2753 = vmatpush.bf16.msra.mxu0 %v2742
        %2754 = vmatpush.bf16.msra.mxu0 %v2741
        %2755 = vmatpush.bf16.msra.mxu0 %v2740
        %2756 = vmatpush.bf16.msra.mxu0 %v2739
        %2757 = vmatpush.bf16.msra.mxu0 %v2738
        %2758 = vmatpush.bf16.msra.mxu0 %v2737
        %2759 = vmatpush.bf16.msra.mxu0 %v2736
        %2760 = vmatmul.bf16.gmra.mxu0 %v1529
        %v2761 = vpop.f32.mrf.mxu0
        %v2762 = vadd.f32 0.0, %v2761
        %v2763 = vpop.f32.mrf.mxu0
        %v2764 = vadd.f32 0.0, %v2763
        %2765 = vmatmul.bf16.gmra.mxu0 %v1530
        %v2766 = vpop.f32.mrf.mxu0
        %v2767 = vadd.f32 0.0, %v2766
        %v2768 = vpop.f32.mrf.mxu0
        %v2769 = vadd.f32 0.0, %v2768
        %2770 = vmatmul.bf16.gmra.mxu0 %v1531
        %v2771 = vpop.f32.mrf.mxu0
        %v2772 = vadd.f32 0.0, %v2771
        %v2773 = vpop.f32.mrf.mxu0
        %v2774 = vadd.f32 0.0, %v2773
        %2775 = vmatmul.bf16.gmra.mxu0 %v1532
        %v2776 = vpop.f32.mrf.mxu0
        %v2777 = vadd.f32 0.0, %v2776
        %v2778 = vpop.f32.mrf.mxu0
        %v2779 = vadd.f32 0.0, %v2778
        %2780 = vmatmul.bf16.gmra.mxu0 %v1533
        %v2781 = vpop.f32.mrf.mxu0
        %v2782 = vadd.f32 0.0, %v2781
        %v2783 = vpop.f32.mrf.mxu0
        %v2784 = vadd.f32 0.0, %v2783
        %2785 = vmatmul.bf16.gmra.mxu0 %v1534
        %v2786 = vpop.f32.mrf.mxu0
        %v2787 = vadd.f32 0.0, %v2786
        %v2788 = vpop.f32.mrf.mxu0
        %v2789 = vadd.f32 0.0, %v2788
        %2790 = vmatmul.bf16.gmra.mxu0 %v1535
        %v2791 = vpop.f32.mrf.mxu0
        %v2792 = vadd.f32 0.0, %v2791
        %v2793 = vpop.f32.mrf.mxu0
        %v2794 = vadd.f32 0.0, %v2793
        %2795 = vmatmul.bf16.gmra.mxu0 %v1536
        %v2796 = vpop.f32.mrf.mxu0
        %v2797 = vadd.f32 0.0, %v2796
        %v2798 = vpop.f32.mrf.mxu0
        %v2799 = vadd.f32 0.0, %v2798
        %2800 = vmatmul.bf16.gmra.mxu0 %v1537
        %v2801 = vpop.f32.mrf.mxu0
        %v2802 = vadd.f32 0.0, %v2801
        %v2803 = vpop.f32.mrf.mxu0
        %v2804 = vadd.f32 0.0, %v2803
        %2805 = vmatmul.bf16.gmra.mxu0 %v1538
        %v2806 = vpop.f32.mrf.mxu0
        %v2807 = vadd.f32 0.0, %v2806
        %v2808 = vpop.f32.mrf.mxu0
        %v2809 = vadd.f32 0.0, %v2808
        %2810 = vmatmul.bf16.gmra.mxu0 %v1539
        %v2811 = vpop.f32.mrf.mxu0
        %v2812 = vadd.f32 0.0, %v2811
        %v2813 = vpop.f32.mrf.mxu0
        %v2814 = vadd.f32 0.0, %v2813
        %2815 = vmatmul.bf16.gmra.mxu0 %v1540
        %v2816 = vpop.f32.mrf.mxu0
        %v2817 = vadd.f32 0.0, %v2816
        %v2818 = vpop.f32.mrf.mxu0
        %v2819 = vadd.f32 0.0, %v2818
        %2820 = vmatmul.bf16.gmra.mxu0 %v1541
        %v2821 = vpop.f32.mrf.mxu0
        %v2822 = vadd.f32 0.0, %v2821
        %v2823 = vpop.f32.mrf.mxu0
        %v2824 = vadd.f32 0.0, %v2823
        %2825 = vmatmul.bf16.gmra.mxu0 %v1542
        %v2826 = vpop.f32.mrf.mxu0
        %v2827 = vadd.f32 0.0, %v2826
        %v2828 = vpop.f32.mrf.mxu0
        %v2829 = vadd.f32 0.0, %v2828
        %2830 = vmatmul.bf16.gmra.mxu0 %v2098
        %v2831 = vpop.f32.mrf.mxu0
        %v2832 = vadd.f32 0.0, %v2831
        %v2833 = vpop.f32.mrf.mxu0
        %v2834 = vadd.f32 0.0, %v2833
        %2835 = vmatmul.bf16.gmra.mxu0 %v2702
        %v2836 = vpop.f32.mrf.mxu0
        %v2837 = vadd.f32 0.0, %v2836
        %v2838 = vpop.f32.mrf.mxu0
        %v2839 = vadd.f32 0.0, %v2838
        %2840 = vdwg.mxu0
        %v2841 = vadd.f32 %v2649, %v2762
        %v2842 = vadd.f32 %v2650, %v2764
        %v2843 = vadd.f32 %v2651, %v2767
        %v2844 = vadd.f32 %v2652, %v2769
        %v2845 = vadd.f32 %v2653, %v2772
        %v2846 = vadd.f32 %v2654, %v2774
        %v2847 = vadd.f32 %v2655, %v2777
        %v2848 = vadd.f32 %v2656, %v2779
        %v2849 = vadd.f32 %v2657, %v2782
        %v2850 = vadd.f32 %v2658, %v2784
        %v2851 = vadd.f32 %v2659, %v2787
        %v2852 = vadd.f32 %v2660, %v2789
        %v2853 = vadd.f32 %v2661, %v2792
        %v2854 = vadd.f32 %v2662, %v2794
        %v2855 = vadd.f32 %v2663, %v2797
        %v2856 = vadd.f32 %v2664, %v2799
        %v2857 = vadd.f32 %v2665, %v2802
        %v2858 = vadd.f32 %v2666, %v2804
        %v2859 = vadd.f32 %v2667, %v2807
        %v2860 = vadd.f32 %v2668, %v2809
        %v2861 = vadd.f32 %v2669, %v2812
        %v2862 = vadd.f32 %v2670, %v2814
        %v2863 = vadd.f32 %v2671, %v2817
        %v2864 = vadd.f32 %v2672, %v2819
        %v2865 = vadd.f32 %v2673, %v2822
        %v2866 = vadd.f32 %v2674, %v2824
        %v2867 = vadd.f32 %v2675, %v2827
        %v2868 = vadd.f32 %v2676, %v2829
        %v2869 = vadd.f32 %v2677, %v2832
        %v2870 = vadd.f32 %v2678, %v2834
        %v2871 = vadd.f32 %v2679, %v2837
        %v2872 = vadd.f32 %v2680, %v2839
        %v2874 = vshrl.u32 %v822, 16
        %v2876 = vrot.slane %v2874, 4
        %v2877 = vshll.u32 %v822, 16
        %v2879 = vrot.slane %v2877, 5
        %v2880 = vor.u32 %v2876, %v2879
        %v2881 = vrot.slane %v2880, 4
        %v2883 = vshll.u32 %v823, 16
        %v2885 = vrot.slane %v2883, 5
        %v2886 = vsel %vm860, %v2881, %v2885
        %v2887 = vshrl.u32 %v823, 16
        %v2889 = vrot.slane %v2887, 4
        %v2890 = vor.u32 %v2889, %v2885
        %v2891 = vrot.slane %v2890, 4
        %v2893 = vshll.u32 %v841, 16
        %v2895 = vrot.slane %v2893, 5
        %v2896 = vsel %vm860, %v2891, %v2895
        %s2897 = scalar_lea.vmem %s1, 448
        %v2898 = vld [vmem:[%s2897] sm:$0xf]
        %v2899 = vld [vmem:[%s2897 + $0x4] sm:$0xf]
        %v2900 = vld [vmem:[%s2897 + $0x8] sm:$0xf]
        %v2901 = vld [vmem:[%s2897 + $0xc] sm:$0xf]
        %v2902 = vld [vmem:[%s2897 + $0x10] sm:$0xf]
        %v2903 = vld [vmem:[%s2897 + $0x14] sm:$0xf]
        %v2904 = vld [vmem:[%s2897 + $0x18] sm:$0xf]
        %v2905 = vld [vmem:[%s2897 + $0x1c] sm:$0xf]
        %v2906 = vld [vmem:[%s2897 + $0x20] sm:$0xf]
        %v2907 = vld [vmem:[%s2897 + $0x24] sm:$0xf]
        %v2908 = vld [vmem:[%s2897 + $0x28] sm:$0xf]
        %v2909 = vld [vmem:[%s2897 + $0x2c] sm:$0xf]
        %v2910 = vld [vmem:[%s2897 + $0x30] sm:$0xf]
        %v2911 = vld [vmem:[%s2897 + $0x34] sm:$0xf]
        %v2912 = vld [vmem:[%s2897 + $0x38] sm:$0xf]
        %v2913 = vld [vmem:[%s2897 + $0x3c] sm:$0xf]
        %v2914 = vunpack.c.l.b16 %v2886
        %v2915 = vunpack.c.l.b16 %v2896
        %v2916 = vpack.c.b16 %v2915, %v2914
        %v2934 = vunpack.c.l.b16 %v2898
        %v2935 = vunpack.c.l.b16 %v2899
        %v2936 = vunpack.c.l.b16 %v2900
        %v2937 = vunpack.c.l.b16 %v2901
        %v2938 = vunpack.c.l.b16 %v2902
        %v2939 = vunpack.c.l.b16 %v2903
        %v2940 = vunpack.c.l.b16 %v2904
        %v2941 = vunpack.c.l.b16 %v2905
        %v2942 = vunpack.c.l.b16 %v2906
        %v2943 = vunpack.c.l.b16 %v2907
        %v2944 = vunpack.c.l.b16 %v2908
        %v2945 = vunpack.c.l.b16 %v2909
        %v2946 = vunpack.c.l.b16 %v2910
        %v2947 = vunpack.c.l.b16 %v2911
        %v2948 = vunpack.c.l.b16 %v2912
        %v2949 = vunpack.c.l.b16 %v2913
        %v2950 = vpack.c.b16 %v2935, %v2934
        %v2951 = vpack.c.b16 %v2937, %v2936
        %v2952 = vpack.c.b16 %v2939, %v2938
        %v2953 = vpack.c.b16 %v2941, %v2940
        %v2954 = vpack.c.b16 %v2943, %v2942
        %v2955 = vpack.c.b16 %v2945, %v2944
        %v2956 = vpack.c.b16 %v2947, %v2946
        %v2957 = vpack.c.b16 %v2949, %v2948
        %2966 = vmatpush.bf16.msra.mxu0 %v2957
        %2967 = vmatpush.bf16.msra.mxu0 %v2956
        %2968 = vmatpush.bf16.msra.mxu0 %v2955
        %2969 = vmatpush.bf16.msra.mxu0 %v2954
        %2970 = vmatpush.bf16.msra.mxu0 %v2953
        %2971 = vmatpush.bf16.msra.mxu0 %v2952
        %2972 = vmatpush.bf16.msra.mxu0 %v2951
        %2973 = vmatpush.bf16.msra.mxu0 %v2950
        %2974 = vmatmul.bf16.gmra.mxu0 %v1296
        %v2975 = vpop.f32.mrf.mxu0
        %v2976 = vadd.f32 0.0, %v2975
        %v2977 = vpop.f32.mrf.mxu0
        %v2978 = vadd.f32 0.0, %v2977
        %2979 = vmatmul.bf16.gmra.mxu0 %v1297
        %v2980 = vpop.f32.mrf.mxu0
        %v2981 = vadd.f32 0.0, %v2980
        %v2982 = vpop.f32.mrf.mxu0
        %v2983 = vadd.f32 0.0, %v2982
        %2984 = vmatmul.bf16.gmra.mxu0 %v1298
        %v2985 = vpop.f32.mrf.mxu0
        %v2986 = vadd.f32 0.0, %v2985
        %v2987 = vpop.f32.mrf.mxu0
        %v2988 = vadd.f32 0.0, %v2987
        %2989 = vmatmul.bf16.gmra.mxu0 %v1299
        %v2990 = vpop.f32.mrf.mxu0
        %v2991 = vadd.f32 0.0, %v2990
        %v2992 = vpop.f32.mrf.mxu0
        %v2993 = vadd.f32 0.0, %v2992
        %2994 = vmatmul.bf16.gmra.mxu0 %v1300
        %v2995 = vpop.f32.mrf.mxu0
        %v2996 = vadd.f32 0.0, %v2995
        %v2997 = vpop.f32.mrf.mxu0
        %v2998 = vadd.f32 0.0, %v2997
        %2999 = vmatmul.bf16.gmra.mxu0 %v1301
        %v3000 = vpop.f32.mrf.mxu0
        %v3001 = vadd.f32 0.0, %v3000
        %v3002 = vpop.f32.mrf.mxu0
        %v3003 = vadd.f32 0.0, %v3002
        %3004 = vmatmul.bf16.gmra.mxu0 %v1302
        %v3005 = vpop.f32.mrf.mxu0
        %v3006 = vadd.f32 0.0, %v3005
        %v3007 = vpop.f32.mrf.mxu0
        %v3008 = vadd.f32 0.0, %v3007
        %3009 = vmatmul.bf16.gmra.mxu0 %v1303
        %v3010 = vpop.f32.mrf.mxu0
        %v3011 = vadd.f32 0.0, %v3010
        %v3012 = vpop.f32.mrf.mxu0
        %v3013 = vadd.f32 0.0, %v3012
        %3014 = vmatmul.bf16.gmra.mxu0 %v1304
        %v3015 = vpop.f32.mrf.mxu0
        %v3016 = vadd.f32 0.0, %v3015
        %v3017 = vpop.f32.mrf.mxu0
        %v3018 = vadd.f32 0.0, %v3017
        %3019 = vmatmul.bf16.gmra.mxu0 %v1305
        %v3020 = vpop.f32.mrf.mxu0
        %v3021 = vadd.f32 0.0, %v3020
        %v3022 = vpop.f32.mrf.mxu0
        %v3023 = vadd.f32 0.0, %v3022
        %3024 = vmatmul.bf16.gmra.mxu0 %v1306
        %v3025 = vpop.f32.mrf.mxu0
        %v3026 = vadd.f32 0.0, %v3025
        %v3027 = vpop.f32.mrf.mxu0
        %v3028 = vadd.f32 0.0, %v3027
        %3029 = vmatmul.bf16.gmra.mxu0 %v1307
        %v3030 = vpop.f32.mrf.mxu0
        %v3031 = vadd.f32 0.0, %v3030
        %v3032 = vpop.f32.mrf.mxu0
        %v3033 = vadd.f32 0.0, %v3032
        %3034 = vmatmul.bf16.gmra.mxu0 %v1308
        %v3035 = vpop.f32.mrf.mxu0
        %v3036 = vadd.f32 0.0, %v3035
        %v3037 = vpop.f32.mrf.mxu0
        %v3038 = vadd.f32 0.0, %v3037
        %3039 = vmatmul.bf16.gmra.mxu0 %v1309
        %v3040 = vpop.f32.mrf.mxu0
        %v3041 = vadd.f32 0.0, %v3040
        %v3042 = vpop.f32.mrf.mxu0
        %v3043 = vadd.f32 0.0, %v3042
        %3044 = vmatmul.bf16.gmra.mxu0 %v2312
        %v3045 = vpop.f32.mrf.mxu0
        %v3046 = vadd.f32 0.0, %v3045
        %v3047 = vpop.f32.mrf.mxu0
        %v3048 = vadd.f32 0.0, %v3047
        %3049 = vmatmul.bf16.gmra.mxu0 %v2916
        %v3050 = vpop.f32.mrf.mxu0
        %v3051 = vadd.f32 0.0, %v3050
        %v3052 = vpop.f32.mrf.mxu0
        %v3053 = vadd.f32 0.0, %v3052
        %3054 = vdwg.mxu0
        %v3055 = vadd.f32 %v2841, %v2976
        %v3056 = vadd.f32 %v2842, %v2978
        %v3057 = vadd.f32 %v2843, %v2981
        %v3058 = vadd.f32 %v2844, %v2983
        %v3059 = vadd.f32 %v2845, %v2986
        %v3060 = vadd.f32 %v2846, %v2988
        %v3061 = vadd.f32 %v2847, %v2991
        %v3062 = vadd.f32 %v2848, %v2993
        %v3063 = vadd.f32 %v2849, %v2996
        %v3064 = vadd.f32 %v2850, %v2998
        %v3065 = vadd.f32 %v2851, %v3001
        %v3066 = vadd.f32 %v2852, %v3003
        %v3067 = vadd.f32 %v2853, %v3006
        %v3068 = vadd.f32 %v2854, %v3008
        %v3069 = vadd.f32 %v2855, %v3011
        %v3070 = vadd.f32 %v2856, %v3013
        %v3071 = vadd.f32 %v2857, %v3016
        %v3072 = vadd.f32 %v2858, %v3018
        %v3073 = vadd.f32 %v2859, %v3021
        %v3074 = vadd.f32 %v2860, %v3023
        %v3075 = vadd.f32 %v2861, %v3026
        %v3076 = vadd.f32 %v2862, %v3028
        %v3077 = vadd.f32 %v2863, %v3031
        %v3078 = vadd.f32 %v2864, %v3033
        %v3079 = vadd.f32 %v2865, %v3036
        %v3080 = vadd.f32 %v2866, %v3038
        %v3081 = vadd.f32 %v2867, %v3041
        %v3082 = vadd.f32 %v2868, %v3043
        %v3083 = vadd.f32 %v2869, %v3046
        %v3084 = vadd.f32 %v2870, %v3048
        %v3085 = vadd.f32 %v2871, %v3051
        %v3086 = vadd.f32 %v2872, %v3053
        %v3088 = vrot.slane %v822, 5
        %v3089 = vrot.slane %v3088, 4
        %v3090 = vrot.slane %v823, 5
        %v3091 = vsel %vm1714, %v3089, %v3090
        %v3092 = vrot.slane %v3090, 4
        %v3093 = vrot.slane %v841, 5
        %v3094 = vsel %vm1714, %v3092, %v3093
        %s3095 = scalar_lea.vmem %s1, 512
        %v3096 = vld [vmem:[%s3095] sm:$0xf]
        %v3097 = vld [vmem:[%s3095 + $0x4] sm:$0xf]
        %v3098 = vld [vmem:[%s3095 + $0x8] sm:$0xf]
        %v3099 = vld [vmem:[%s3095 + $0xc] sm:$0xf]
        %v3100 = vld [vmem:[%s3095 + $0x10] sm:$0xf]
        %v3101 = vld [vmem:[%s3095 + $0x14] sm:$0xf]
        %v3102 = vld [vmem:[%s3095 + $0x18] sm:$0xf]
        %v3103 = vld [vmem:[%s3095 + $0x1c] sm:$0xf]
        %v3104 = vld [vmem:[%s3095 + $0x20] sm:$0xf]
        %v3105 = vld [vmem:[%s3095 + $0x24] sm:$0xf]
        %v3106 = vld [vmem:[%s3095 + $0x28] sm:$0xf]
        %v3107 = vld [vmem:[%s3095 + $0x2c] sm:$0xf]
        %v3108 = vld [vmem:[%s3095 + $0x30] sm:$0xf]
        %v3109 = vld [vmem:[%s3095 + $0x34] sm:$0xf]
        %v3110 = vld [vmem:[%s3095 + $0x38] sm:$0xf]
        %v3111 = vld [vmem:[%s3095 + $0x3c] sm:$0xf]
        %v3112 = vunpack.c.l.b16 %v3091
        %v3113 = vunpack.c.l.b16 %v3094
        %v3114 = vpack.c.b16 %v3113, %v3112
        %v3132 = vunpack.c.l.b16 %v3096
        %v3133 = vunpack.c.l.b16 %v3097
        %v3134 = vunpack.c.l.b16 %v3098
        %v3135 = vunpack.c.l.b16 %v3099
        %v3136 = vunpack.c.l.b16 %v3100
        %v3137 = vunpack.c.l.b16 %v3101
        %v3138 = vunpack.c.l.b16 %v3102
        %v3139 = vunpack.c.l.b16 %v3103
        %v3140 = vunpack.c.l.b16 %v3104
        %v3141 = vunpack.c.l.b16 %v3105
        %v3142 = vunpack.c.l.b16 %v3106
        %v3143 = vunpack.c.l.b16 %v3107
        %v3144 = vunpack.c.l.b16 %v3108
        %v3145 = vunpack.c.l.b16 %v3109
        %v3146 = vunpack.c.l.b16 %v3110
        %v3147 = vunpack.c.l.b16 %v3111
        %v3148 = vpack.c.b16 %v3133, %v3132
        %v3149 = vpack.c.b16 %v3135, %v3134
        %v3150 = vpack.c.b16 %v3137, %v3136
        %v3151 = vpack.c.b16 %v3139, %v3138
        %v3152 = vpack.c.b16 %v3141, %v3140
        %v3153 = vpack.c.b16 %v3143, %v3142
        %v3154 = vpack.c.b16 %v3145, %v3144
        %v3155 = vpack.c.b16 %v3147, %v3146
        %3164 = vmatpush.bf16.msra.mxu0 %v3155
        %3165 = vmatpush.bf16.msra.mxu0 %v3154
        %3166 = vmatpush.bf16.msra.mxu0 %v3153
        %3167 = vmatpush.bf16.msra.mxu0 %v3152
        %3168 = vmatpush.bf16.msra.mxu0 %v3151
        %3169 = vmatpush.bf16.msra.mxu0 %v3150
        %3170 = vmatpush.bf16.msra.mxu0 %v3149
        %3171 = vmatpush.bf16.msra.mxu0 %v3148
        %3172 = vmatmul.bf16.gmra.mxu0 %v1878
        %v3173 = vpop.f32.mrf.mxu0
        %v3174 = vadd.f32 0.0, %v3173
        %v3175 = vpop.f32.mrf.mxu0
        %v3176 = vadd.f32 0.0, %v3175
        %3177 = vmatmul.bf16.gmra.mxu0 %v1879
        %v3178 = vpop.f32.mrf.mxu0
        %v3179 = vadd.f32 0.0, %v3178
        %v3180 = vpop.f32.mrf.mxu0
        %v3181 = vadd.f32 0.0, %v3180
        %3182 = vmatmul.bf16.gmra.mxu0 %v1880
        %v3183 = vpop.f32.mrf.mxu0
        %v3184 = vadd.f32 0.0, %v3183
        %v3185 = vpop.f32.mrf.mxu0
        %v3186 = vadd.f32 0.0, %v3185
        %3187 = vmatmul.bf16.gmra.mxu0 %v1881
        %v3188 = vpop.f32.mrf.mxu0
        %v3189 = vadd.f32 0.0, %v3188
        %v3190 = vpop.f32.mrf.mxu0
        %v3191 = vadd.f32 0.0, %v3190
        %3192 = vmatmul.bf16.gmra.mxu0 %v1882
        %v3193 = vpop.f32.mrf.mxu0
        %v3194 = vadd.f32 0.0, %v3193
        %v3195 = vpop.f32.mrf.mxu0
        %v3196 = vadd.f32 0.0, %v3195
        %3197 = vmatmul.bf16.gmra.mxu0 %v1883
        %v3198 = vpop.f32.mrf.mxu0
        %v3199 = vadd.f32 0.0, %v3198
        %v3200 = vpop.f32.mrf.mxu0
        %v3201 = vadd.f32 0.0, %v3200
        %3202 = vmatmul.bf16.gmra.mxu0 %v1884
        %v3203 = vpop.f32.mrf.mxu0
        %v3204 = vadd.f32 0.0, %v3203
        %v3205 = vpop.f32.mrf.mxu0
        %v3206 = vadd.f32 0.0, %v3205
        %3207 = vmatmul.bf16.gmra.mxu0 %v1885
        %v3208 = vpop.f32.mrf.mxu0
        %v3209 = vadd.f32 0.0, %v3208
        %v3210 = vpop.f32.mrf.mxu0
        %v3211 = vadd.f32 0.0, %v3210
        %3212 = vmatmul.bf16.gmra.mxu0 %v1886
        %v3213 = vpop.f32.mrf.mxu0
        %v3214 = vadd.f32 0.0, %v3213
        %v3215 = vpop.f32.mrf.mxu0
        %v3216 = vadd.f32 0.0, %v3215
        %3217 = vmatmul.bf16.gmra.mxu0 %v1887
        %v3218 = vpop.f32.mrf.mxu0
        %v3219 = vadd.f32 0.0, %v3218
        %v3220 = vpop.f32.mrf.mxu0
        %v3221 = vadd.f32 0.0, %v3220
        %3222 = vmatmul.bf16.gmra.mxu0 %v1888
        %v3223 = vpop.f32.mrf.mxu0
        %v3224 = vadd.f32 0.0, %v3223
        %v3225 = vpop.f32.mrf.mxu0
        %v3226 = vadd.f32 0.0, %v3225
        %3227 = vmatmul.bf16.gmra.mxu0 %v1889
        %v3228 = vpop.f32.mrf.mxu0
        %v3229 = vadd.f32 0.0, %v3228
        %v3230 = vpop.f32.mrf.mxu0
        %v3231 = vadd.f32 0.0, %v3230
        %3232 = vmatmul.bf16.gmra.mxu0 %v1890
        %v3233 = vpop.f32.mrf.mxu0
        %v3234 = vadd.f32 0.0, %v3233
        %v3235 = vpop.f32.mrf.mxu0
        %v3236 = vadd.f32 0.0, %v3235
        %3237 = vmatmul.bf16.gmra.mxu0 %v1891
        %v3238 = vpop.f32.mrf.mxu0
        %v3239 = vadd.f32 0.0, %v3238
        %v3240 = vpop.f32.mrf.mxu0
        %v3241 = vadd.f32 0.0, %v3240
        %3242 = vmatmul.bf16.gmra.mxu0 %v2510
        %v3243 = vpop.f32.mrf.mxu0
        %v3244 = vadd.f32 0.0, %v3243
        %v3245 = vpop.f32.mrf.mxu0
        %v3246 = vadd.f32 0.0, %v3245
        %3247 = vmatmul.bf16.gmra.mxu0 %v3114
        %v3248 = vpop.f32.mrf.mxu0
        %v3249 = vadd.f32 0.0, %v3248
        %v3250 = vpop.f32.mrf.mxu0
        %v3251 = vadd.f32 0.0, %v3250
        %3252 = vdwg.mxu0
        %v3253 = vadd.f32 %v3055, %v3174
        %v3254 = vadd.f32 %v3056, %v3176
        %v3255 = vadd.f32 %v3057, %v3179
        %v3256 = vadd.f32 %v3058, %v3181
        %v3257 = vadd.f32 %v3059, %v3184
        %v3258 = vadd.f32 %v3060, %v3186
        %v3259 = vadd.f32 %v3061, %v3189
        %v3260 = vadd.f32 %v3062, %v3191
        %v3261 = vadd.f32 %v3063, %v3194
        %v3262 = vadd.f32 %v3064, %v3196
        %v3263 = vadd.f32 %v3065, %v3199
        %v3264 = vadd.f32 %v3066, %v3201
        %v3265 = vadd.f32 %v3067, %v3204
        %v3266 = vadd.f32 %v3068, %v3206
        %v3267 = vadd.f32 %v3069, %v3209
        %v3268 = vadd.f32 %v3070, %v3211
        %v3269 = vadd.f32 %v3071, %v3214
        %v3270 = vadd.f32 %v3072, %v3216
        %v3271 = vadd.f32 %v3073, %v3219
        %v3272 = vadd.f32 %v3074, %v3221
        %v3273 = vadd.f32 %v3075, %v3224
        %v3274 = vadd.f32 %v3076, %v3226
        %v3275 = vadd.f32 %v3077, %v3229
        %v3276 = vadd.f32 %v3078, %v3231
        %v3277 = vadd.f32 %v3079, %v3234
        %v3278 = vadd.f32 %v3080, %v3236
        %v3279 = vadd.f32 %v3081, %v3239
        %v3280 = vadd.f32 %v3082, %v3241
        %v3281 = vadd.f32 %v3083, %v3244
        %v3282 = vadd.f32 %v3084, %v3246
        %v3283 = vadd.f32 %v3085, %v3249
        %v3284 = vadd.f32 %v3086, %v3251
        %v3285 = vld [vmem:[%s2] sm:$0x1]
        %v3287 = vperm.slane %v3285, 0
        %v3289 = vmul.f32 %v3253, %v3287
        %v3290 = vmul.f32 %v3254, %v3287
        %v3291 = vmul.f32 %v3255, %v3287
        %v3292 = vmul.f32 %v3256, %v3287
        %v3293 = vmul.f32 %v3257, %v3287
        %v3294 = vmul.f32 %v3258, %v3287
        %v3295 = vmul.f32 %v3259, %v3287
        %v3296 = vmul.f32 %v3260, %v3287
        %v3297 = vmul.f32 %v3261, %v3287
        %v3298 = vmul.f32 %v3262, %v3287
        %v3299 = vmul.f32 %v3263, %v3287
        %v3300 = vmul.f32 %v3264, %v3287
        %v3301 = vmul.f32 %v3265, %v3287
        %v3302 = vmul.f32 %v3266, %v3287
        %v3303 = vmul.f32 %v3267, %v3287
        %v3304 = vmul.f32 %v3268, %v3287
        %v3305 = vmul.f32 %v3269, %v3287
        %v3306 = vmul.f32 %v3270, %v3287
        %v3307 = vmul.f32 %v3271, %v3287
        %v3308 = vmul.f32 %v3272, %v3287
        %v3309 = vmul.f32 %v3273, %v3287
        %v3310 = vmul.f32 %v3274, %v3287
        %v3311 = vmul.f32 %v3275, %v3287
        %v3312 = vmul.f32 %v3276, %v3287
        %v3313 = vmul.f32 %v3277, %v3287
        %v3314 = vmul.f32 %v3278, %v3287
        %v3315 = vmul.f32 %v3279, %v3287
        %v3316 = vmul.f32 %v3280, %v3287
        %v3317 = vmul.f32 %v3281, %v3287
        %v3318 = vmul.f32 %v3282, %v3287
        %v3319 = vmul.f32 %v3283, %v3287
        %v3320 = vmul.f32 %v3284, %v3287
        %v3321 = vld [vmem:[%s3] sm:$0x1]
        %v3323 = vperm.slane %v3321, 0
        %v3325 = vadd.f32 %v3289, %v3323
        %v3326 = vadd.f32 %v3290, %v3323
        %v3327 = vadd.f32 %v3291, %v3323
        %v3328 = vadd.f32 %v3292, %v3323
        %v3329 = vadd.f32 %v3293, %v3323
        %v3330 = vadd.f32 %v3294, %v3323
        %v3331 = vadd.f32 %v3295, %v3323
        %v3332 = vadd.f32 %v3296, %v3323
        %v3333 = vadd.f32 %v3297, %v3323
        %v3334 = vadd.f32 %v3298, %v3323
        %v3335 = vadd.f32 %v3299, %v3323
        %v3336 = vadd.f32 %v3300, %v3323
        %v3337 = vadd.f32 %v3301, %v3323
        %v3338 = vadd.f32 %v3302, %v3323
        %v3339 = vadd.f32 %v3303, %v3323
        %v3340 = vadd.f32 %v3304, %v3323
        %v3341 = vadd.f32 %v3305, %v3323
        %v3342 = vadd.f32 %v3306, %v3323
        %v3343 = vadd.f32 %v3307, %v3323
        %v3344 = vadd.f32 %v3308, %v3323
        %v3345 = vadd.f32 %v3309, %v3323
        %v3346 = vadd.f32 %v3310, %v3323
        %v3347 = vadd.f32 %v3311, %v3323
        %v3348 = vadd.f32 %v3312, %v3323
        %v3349 = vadd.f32 %v3313, %v3323
        %v3350 = vadd.f32 %v3314, %v3323
        %v3351 = vadd.f32 %v3315, %v3323
        %v3352 = vadd.f32 %v3316, %v3323
        %v3353 = vadd.f32 %v3317, %v3323
        %v3354 = vadd.f32 %v3318, %v3323
        %v3355 = vadd.f32 %v3319, %v3323
        %v3356 = vadd.f32 %v3320, %v3323
        %v3357 = vmax.f32 %v3325, 0.0
        %v3358 = vmax.f32 %v3326, 0.0
        %v3359 = vmax.f32 %v3327, 0.0
        %v3360 = vmax.f32 %v3328, 0.0
        %v3361 = vmax.f32 %v3329, 0.0
        %v3362 = vmax.f32 %v3330, 0.0
        %v3363 = vmax.f32 %v3331, 0.0
        %v3364 = vmax.f32 %v3332, 0.0
        %v3365 = vmax.f32 %v3333, 0.0
        %v3366 = vmax.f32 %v3334, 0.0
        %v3367 = vmax.f32 %v3335, 0.0
        %v3368 = vmax.f32 %v3336, 0.0
        %v3369 = vmax.f32 %v3337, 0.0
        %v3370 = vmax.f32 %v3338, 0.0
        %v3371 = vmax.f32 %v3339, 0.0
        %v3372 = vmax.f32 %v3340, 0.0
        %v3373 = vmax.f32 %v3341, 0.0
        %v3374 = vmax.f32 %v3342, 0.0
        %v3375 = vmax.f32 %v3343, 0.0
        %v3376 = vmax.f32 %v3344, 0.0
        %v3377 = vmax.f32 %v3345, 0.0
        %v3378 = vmax.f32 %v3346, 0.0
        %v3379 = vmax.f32 %v3347, 0.0
        %v3380 = vmax.f32 %v3348, 0.0
        %v3381 = vmax.f32 %v3349, 0.0
        %v3382 = vmax.f32 %v3350, 0.0
        %v3383 = vmax.f32 %v3351, 0.0
        %v3384 = vmax.f32 %v3352, 0.0
        %v3385 = vmax.f32 %v3353, 0.0
        %v3386 = vmax.f32 %v3354, 0.0
        %v3387 = vmax.f32 %v3355, 0.0
        %v3388 = vmax.f32 %v3356, 0.0
        %v3421 = vrot.slane %v3357, 2
        %v3422 = vrot.slane %v3357, 4
        %v3423 = vrot.slane %v3357, 6
        %v3424 = vrot.slane %v3358, 2
        %v3425 = vrot.slane %v3358, 4
        %v3426 = vrot.slane %v3358, 6
        %v3427 = vrot.slane %v3359, 2
        %v3428 = vrot.slane %v3359, 4
        %v3429 = vrot.slane %v3359, 6
        %v3430 = vrot.slane %v3360, 2
        %v3431 = vrot.slane %v3360, 4
        %v3432 = vrot.slane %v3360, 6
        %v3433 = vrot.slane %v3361, 2
        %v3434 = vrot.slane %v3361, 4
        %v3435 = vrot.slane %v3361, 6
        %v3436 = vrot.slane %v3362, 2
        %v3437 = vrot.slane %v3362, 4
        %v3438 = vrot.slane %v3362, 6
        %v3439 = vrot.slane %v3363, 2
        %v3440 = vrot.slane %v3363, 4
        %v3441 = vrot.slane %v3363, 6
        %v3442 = vrot.slane %v3364, 2
        %v3443 = vrot.slane %v3364, 4
        %v3444 = vrot.slane %v3364, 6
        %v3445 = vrot.slane %v3365, 2
        %v3446 = vrot.slane %v3365, 4
        %v3447 = vrot.slane %v3365, 6
        %v3448 = vrot.slane %v3366, 2
        %v3449 = vrot.slane %v3366, 4
        %v3450 = vrot.slane %v3366, 6
        %v3451 = vrot.slane %v3367, 2
        %v3452 = vrot.slane %v3367, 4
        %v3453 = vrot.slane %v3367, 6
        %v3454 = vrot.slane %v3368, 2
        %v3455 = vrot.slane %v3368, 4
        %v3456 = vrot.slane %v3368, 6
        %v3457 = vrot.slane %v3369, 2
        %v3458 = vrot.slane %v3369, 4
        %v3459 = vrot.slane %v3369, 6
        %v3460 = vrot.slane %v3370, 2
        %v3461 = vrot.slane %v3370, 4
        %v3462 = vrot.slane %v3370, 6
        %v3463 = vrot.slane %v3371, 2
        %v3464 = vrot.slane %v3371, 4
        %v3465 = vrot.slane %v3371, 6
        %v3466 = vrot.slane %v3372, 2
        %v3467 = vrot.slane %v3372, 4
        %v3468 = vrot.slane %v3372, 6
        %v3469 = vrot.slane %v3373, 2
        %v3470 = vrot.slane %v3373, 4
        %v3471 = vrot.slane %v3373, 6
        %v3472 = vrot.slane %v3374, 2
        %v3473 = vrot.slane %v3374, 4
        %v3474 = vrot.slane %v3374, 6
        %v3475 = vrot.slane %v3375, 2
        %v3476 = vrot.slane %v3375, 4
        %v3477 = vrot.slane %v3375, 6
        %v3478 = vrot.slane %v3376, 2
        %v3479 = vrot.slane %v3376, 4
        %v3480 = vrot.slane %v3376, 6
        %v3481 = vrot.slane %v3377, 2
        %v3482 = vrot.slane %v3377, 4
        %v3483 = vrot.slane %v3377, 6
        %v3484 = vrot.slane %v3378, 2
        %v3485 = vrot.slane %v3378, 4
        %v3486 = vrot.slane %v3378, 6
        %v3487 = vrot.slane %v3379, 2
        %v3488 = vrot.slane %v3379, 4
        %v3489 = vrot.slane %v3379, 6
        %v3490 = vrot.slane %v3380, 2
        %v3491 = vrot.slane %v3380, 4
        %v3492 = vrot.slane %v3380, 6
        %v3493 = vrot.slane %v3381, 2
        %v3494 = vrot.slane %v3381, 4
        %v3495 = vrot.slane %v3381, 6
        %v3496 = vrot.slane %v3382, 2
        %v3497 = vrot.slane %v3382, 4
        %v3498 = vrot.slane %v3382, 6
        %v3499 = vrot.slane %v3383, 2
        %v3500 = vrot.slane %v3383, 4
        %v3501 = vrot.slane %v3383, 6
        %v3502 = vrot.slane %v3384, 2
        %v3503 = vrot.slane %v3384, 4
        %v3504 = vrot.slane %v3384, 6
        %v3505 = vrot.slane %v3385, 2
        %v3506 = vrot.slane %v3385, 4
        %v3507 = vrot.slane %v3385, 6
        %v3508 = vrot.slane %v3386, 2
        %v3509 = vrot.slane %v3386, 4
        %v3510 = vrot.slane %v3386, 6
        %v3511 = vrot.slane %v3387, 2
        %v3512 = vrot.slane %v3387, 4
        %v3513 = vrot.slane %v3387, 6
        %v3514 = vrot.slane %v3388, 2
        %v3515 = vrot.slane %v3388, 4
        %v3516 = vrot.slane %v3388, 6
        %v3613 = vmax.f32 %v3357, %v3359
        %v3614 = vmax.f32 %v3421, %v3427
        %v3615 = vmax.f32 %v3422, %v3428
        %v3616 = vmax.f32 %v3423, %v3429
        %v3617 = vmax.f32 %v3358, %v3360
        %v3618 = vmax.f32 %v3424, %v3430
        %v3619 = vmax.f32 %v3425, %v3431
        %v3620 = vmax.f32 %v3426, %v3432
        %v3621 = vmax.f32 %v3361, %v3363
        %v3622 = vmax.f32 %v3433, %v3439
        %v3623 = vmax.f32 %v3434, %v3440
        %v3624 = vmax.f32 %v3435, %v3441
        %v3625 = vmax.f32 %v3362, %v3364
        %v3626 = vmax.f32 %v3436, %v3442
        %v3627 = vmax.f32 %v3437, %v3443
        %v3628 = vmax.f32 %v3438, %v3444
        %v3629 = vmax.f32 %v3365, %v3367
        %v3630 = vmax.f32 %v3445, %v3451
        %v3631 = vmax.f32 %v3446, %v3452
        %v3632 = vmax.f32 %v3447, %v3453
        %v3633 = vmax.f32 %v3366, %v3368
        %v3634 = vmax.f32 %v3448, %v3454
        %v3635 = vmax.f32 %v3449, %v3455
        %v3636 = vmax.f32 %v3450, %v3456
        %v3637 = vmax.f32 %v3369, %v3371
        %v3638 = vmax.f32 %v3457, %v3463
        %v3639 = vmax.f32 %v3458, %v3464
        %v3640 = vmax.f32 %v3459, %v3465
        %v3641 = vmax.f32 %v3370, %v3372
        %v3642 = vmax.f32 %v3460, %v3466
        %v3643 = vmax.f32 %v3461, %v3467
        %v3644 = vmax.f32 %v3462, %v3468
        %v3645 = vmax.f32 %v3373, %v3375
        %v3646 = vmax.f32 %v3469, %v3475
        %v3647 = vmax.f32 %v3470, %v3476
        %v3648 = vmax.f32 %v3471, %v3477
        %v3649 = vmax.f32 %v3374, %v3376
        %v3650 = vmax.f32 %v3472, %v3478
        %v3651 = vmax.f32 %v3473, %v3479
        %v3652 = vmax.f32 %v3474, %v3480
        %v3653 = vmax.f32 %v3377, %v3379
        %v3654 = vmax.f32 %v3481, %v3487
        %v3655 = vmax.f32 %v3482, %v3488
        %v3656 = vmax.f32 %v3483, %v3489
        %v3657 = vmax.f32 %v3378, %v3380
        %v3658 = vmax.f32 %v3484, %v3490
        %v3659 = vmax.f32 %v3485, %v3491
        %v3660 = vmax.f32 %v3486, %v3492
        %v3661 = vmax.f32 %v3381, %v3383
        %v3662 = vmax.f32 %v3493, %v3499
        %v3663 = vmax.f32 %v3494, %v3500
        %v3664 = vmax.f32 %v3495, %v3501
        %v3665 = vmax.f32 %v3382, %v3384
        %v3666 = vmax.f32 %v3496, %v3502
        %v3667 = vmax.f32 %v3497, %v3503
        %v3668 = vmax.f32 %v3498, %v3504
        %v3669 = vmax.f32 %v3385, %v3387
        %v3670 = vmax.f32 %v3505, %v3511
        %v3671 = vmax.f32 %v3506, %v3512
        %v3672 = vmax.f32 %v3507, %v3513
        %v3673 = vmax.f32 %v3386, %v3388
        %v3674 = vmax.f32 %v3508, %v3514
        %v3675 = vmax.f32 %v3509, %v3515
        %v3676 = vmax.f32 %v3510, %v3516
        %v3741 = vrot.slane %v3613, 7
        %v3742 = vrot.slane %v3741, 2
        %v3743 = vrot.slane %v3614, 7
        %v3744 = vrot.slane %v3743, 2
        %v3745 = vrot.slane %v3615, 7
        %v3746 = vrot.slane %v3745, 2
        %v3747 = vrot.slane %v3616, 7
        %v3748 = vrot.slane %v3747, 2
        %v3749 = vrot.slane %v3617, 7
        %v3750 = vrot.slane %v3749, 2
        %v3751 = vrot.slane %v3618, 7
        %v3752 = vrot.slane %v3751, 2
        %v3753 = vrot.slane %v3619, 7
        %v3754 = vrot.slane %v3753, 2
        %v3755 = vrot.slane %v3620, 7
        %v3756 = vrot.slane %v3755, 2
        %v3757 = vrot.slane %v3621, 7
        %v3758 = vrot.slane %v3757, 2
        %v3759 = vrot.slane %v3622, 7
        %v3760 = vrot.slane %v3759, 2
        %v3761 = vrot.slane %v3623, 7
        %v3762 = vrot.slane %v3761, 2
        %v3763 = vrot.slane %v3624, 7
        %v3764 = vrot.slane %v3763, 2
        %v3765 = vrot.slane %v3625, 7
        %v3766 = vrot.slane %v3765, 2
        %v3767 = vrot.slane %v3626, 7
        %v3768 = vrot.slane %v3767, 2
        %v3769 = vrot.slane %v3627, 7
        %v3770 = vrot.slane %v3769, 2
        %v3771 = vrot.slane %v3628, 7
        %v3772 = vrot.slane %v3771, 2
        %v3773 = vrot.slane %v3629, 7
        %v3774 = vrot.slane %v3773, 2
        %v3775 = vrot.slane %v3630, 7
        %v3776 = vrot.slane %v3775, 2
        %v3777 = vrot.slane %v3631, 7
        %v3778 = vrot.slane %v3777, 2
        %v3779 = vrot.slane %v3632, 7
        %v3780 = vrot.slane %v3779, 2
        %v3781 = vrot.slane %v3633, 7
        %v3782 = vrot.slane %v3781, 2
        %v3783 = vrot.slane %v3634, 7
        %v3784 = vrot.slane %v3783, 2
        %v3785 = vrot.slane %v3635, 7
        %v3786 = vrot.slane %v3785, 2
        %v3787 = vrot.slane %v3636, 7
        %v3788 = vrot.slane %v3787, 2
        %v3789 = vrot.slane %v3637, 7
        %v3790 = vrot.slane %v3789, 2
        %v3791 = vrot.slane %v3638, 7
        %v3792 = vrot.slane %v3791, 2
        %v3793 = vrot.slane %v3639, 7
        %v3794 = vrot.slane %v3793, 2
        %v3795 = vrot.slane %v3640, 7
        %v3796 = vrot.slane %v3795, 2
        %v3797 = vrot.slane %v3641, 7
        %v3798 = vrot.slane %v3797, 2
        %v3799 = vrot.slane %v3642, 7
        %v3800 = vrot.slane %v3799, 2
        %v3801 = vrot.slane %v3643, 7
        %v3802 = vrot.slane %v3801, 2
        %v3803 = vrot.slane %v3644, 7
        %v3804 = vrot.slane %v3803, 2
        %v3805 = vrot.slane %v3645, 7
        %v3806 = vrot.slane %v3805, 2
        %v3807 = vrot.slane %v3646, 7
        %v3808 = vrot.slane %v3807, 2
        %v3809 = vrot.slane %v3647, 7
        %v3810 = vrot.slane %v3809, 2
        %v3811 = vrot.slane %v3648, 7
        %v3812 = vrot.slane %v3811, 2
        %v3813 = vrot.slane %v3649, 7
        %v3814 = vrot.slane %v3813, 2
        %v3815 = vrot.slane %v3650, 7
        %v3816 = vrot.slane %v3815, 2
        %v3817 = vrot.slane %v3651, 7
        %v3818 = vrot.slane %v3817, 2
        %v3819 = vrot.slane %v3652, 7
        %v3820 = vrot.slane %v3819, 2
        %v3821 = vrot.slane %v3653, 7
        %v3822 = vrot.slane %v3821, 2
        %v3823 = vrot.slane %v3654, 7
        %v3824 = vrot.slane %v3823, 2
        %v3825 = vrot.slane %v3655, 7
        %v3826 = vrot.slane %v3825, 2
        %v3827 = vrot.slane %v3656, 7
        %v3828 = vrot.slane %v3827, 2
        %v3829 = vrot.slane %v3657, 7
        %v3830 = vrot.slane %v3829, 2
        %v3831 = vrot.slane %v3658, 7
        %v3832 = vrot.slane %v3831, 2
        %v3833 = vrot.slane %v3659, 7
        %v3834 = vrot.slane %v3833, 2
        %v3835 = vrot.slane %v3660, 7
        %v3836 = vrot.slane %v3835, 2
        %v3837 = vrot.slane %v3661, 7
        %v3838 = vrot.slane %v3837, 2
        %v3839 = vrot.slane %v3662, 7
        %v3840 = vrot.slane %v3839, 2
        %v3841 = vrot.slane %v3663, 7
        %v3842 = vrot.slane %v3841, 2
        %v3843 = vrot.slane %v3664, 7
        %v3844 = vrot.slane %v3843, 2
        %v3845 = vrot.slane %v3665, 7
        %v3846 = vrot.slane %v3845, 2
        %v3847 = vrot.slane %v3666, 7
        %v3848 = vrot.slane %v3847, 2
        %v3849 = vrot.slane %v3667, 7
        %v3850 = vrot.slane %v3849, 2
        %v3851 = vrot.slane %v3668, 7
        %v3852 = vrot.slane %v3851, 2
        %v3853 = vrot.slane %v3669, 7
        %v3854 = vrot.slane %v3853, 2
        %v3855 = vrot.slane %v3670, 7
        %v3856 = vrot.slane %v3855, 2
        %v3857 = vrot.slane %v3671, 7
        %v3858 = vrot.slane %v3857, 2
        %v3859 = vrot.slane %v3672, 7
        %v3860 = vrot.slane %v3859, 2
        %v3861 = vrot.slane %v3673, 7
        %v3862 = vrot.slane %v3861, 2
        %v3863 = vrot.slane %v3674, 7
        %v3864 = vrot.slane %v3863, 2
        %v3865 = vrot.slane %v3675, 7
        %v3866 = vrot.slane %v3865, 2
        %v3867 = vrot.slane %v3676, 7
        %v3868 = vrot.slane %v3867, 2
        %v3933 = vmax.f32 %v3613, %v3742
        %v3934 = vmax.f32 %v3614, %v3744
        %v3935 = vmax.f32 %v3615, %v3746
        %v3936 = vmax.f32 %v3616, %v3748
        %v3937 = vmax.f32 %v3617, %v3750
        %v3938 = vmax.f32 %v3618, %v3752
        %v3939 = vmax.f32 %v3619, %v3754
        %v3940 = vmax.f32 %v3620, %v3756
        %v3941 = vmax.f32 %v3621, %v3758
        %v3942 = vmax.f32 %v3622, %v3760
        %v3943 = vmax.f32 %v3623, %v3762
        %v3944 = vmax.f32 %v3624, %v3764
        %v3945 = vmax.f32 %v3625, %v3766
        %v3946 = vmax.f32 %v3626, %v3768
        %v3947 = vmax.f32 %v3627, %v3770
        %v3948 = vmax.f32 %v3628, %v3772
        %v3949 = vmax.f32 %v3629, %v3774
        %v3950 = vmax.f32 %v3630, %v3776
        %v3951 = vmax.f32 %v3631, %v3778
        %v3952 = vmax.f32 %v3632, %v3780
        %v3953 = vmax.f32 %v3633, %v3782
        %v3954 = vmax.f32 %v3634, %v3784
        %v3955 = vmax.f32 %v3635, %v3786
        %v3956 = vmax.f32 %v3636, %v3788
        %v3957 = vmax.f32 %v3637, %v3790
        %v3958 = vmax.f32 %v3638, %v3792
        %v3959 = vmax.f32 %v3639, %v3794
        %v3960 = vmax.f32 %v3640, %v3796
        %v3961 = vmax.f32 %v3641, %v3798
        %v3962 = vmax.f32 %v3642, %v3800
        %v3963 = vmax.f32 %v3643, %v3802
        %v3964 = vmax.f32 %v3644, %v3804
        %v3965 = vmax.f32 %v3645, %v3806
        %v3966 = vmax.f32 %v3646, %v3808
        %v3967 = vmax.f32 %v3647, %v3810
        %v3968 = vmax.f32 %v3648, %v3812
        %v3969 = vmax.f32 %v3649, %v3814
        %v3970 = vmax.f32 %v3650, %v3816
        %v3971 = vmax.f32 %v3651, %v3818
        %v3972 = vmax.f32 %v3652, %v3820
        %v3973 = vmax.f32 %v3653, %v3822
        %v3974 = vmax.f32 %v3654, %v3824
        %v3975 = vmax.f32 %v3655, %v3826
        %v3976 = vmax.f32 %v3656, %v3828
        %v3977 = vmax.f32 %v3657, %v3830
        %v3978 = vmax.f32 %v3658, %v3832
        %v3979 = vmax.f32 %v3659, %v3834
        %v3980 = vmax.f32 %v3660, %v3836
        %v3981 = vmax.f32 %v3661, %v3838
        %v3982 = vmax.f32 %v3662, %v3840
        %v3983 = vmax.f32 %v3663, %v3842
        %v3984 = vmax.f32 %v3664, %v3844
        %v3985 = vmax.f32 %v3665, %v3846
        %v3986 = vmax.f32 %v3666, %v3848
        %v3987 = vmax.f32 %v3667, %v3850
        %v3988 = vmax.f32 %v3668, %v3852
        %v3989 = vmax.f32 %v3669, %v3854
        %v3990 = vmax.f32 %v3670, %v3856
        %v3991 = vmax.f32 %v3671, %v3858
        %v3992 = vmax.f32 %v3672, %v3860
        %v3993 = vmax.f32 %v3673, %v3862
        %v3994 = vmax.f32 %v3674, %v3864
        %v3995 = vmax.f32 %v3675, %v3866
        %v3996 = vmax.f32 %v3676, %v3868
        %3997 = vst [vmem:[#allocation3] sm:$0xff] 0.0
        %3998 = vst [vmem:[#allocation3 + $0x8] sm:$0x3] 0.0
        %3999 = vst [vmem:[#allocation3 + $0x10] sm:$0xff] 0.0
        %4000 = vst [vmem:[#allocation3 + $0x18] sm:$0x3] 0.0
        %4001 = vst [vmem:[#allocation3 + $0x20] sm:$0xff] 0.0
        %4002 = vst [vmem:[#allocation3 + $0x28] sm:$0x3] 0.0
        %4003 = vst [vmem:[#allocation3 + $0x30] sm:$0xff] 0.0
        %4004 = vst [vmem:[#allocation3 + $0x38] sm:$0x3] 0.0
        %4005 = vst [vmem:[#allocation3 + $0x40] sm:$0xff] 0.0
        %4006 = vst [vmem:[#allocation3 + $0x48] sm:$0x3] 0.0
        %4007 = vst [vmem:[#allocation3 + $0x50] sm:$0xff] 0.0
        %4008 = vst [vmem:[#allocation3 + $0x58] sm:$0x3] 0.0
        %4009 = vst [vmem:[#allocation3 + $0x60] sm:$0xff] 0.0
        %4010 = vst [vmem:[#allocation3 + $0x68] sm:$0x3] 0.0
        %4011 = vst [vmem:[#allocation3 + $0x70] sm:$0xff] 0.0
        %4012 = vst [vmem:[#allocation3 + $0x78] sm:$0x3] 0.0
        %4013 = vst [vmem:[#allocation3 + $0x80] sm:$0xff] 0.0
        %4014 = vst [vmem:[#allocation3 + $0x88] sm:$0x3] 0.0
        %4015 = vst [vmem:[#allocation3 + $0x90] sm:$0xff] 0.0
        %4016 = vst [vmem:[#allocation3 + $0x98] sm:$0x3] 0.0
        %v4081 = vperm.slane %v3933, 0
        %v4082 = vperm.slane %v3934, 0
        %v4083 = vperm.slane %v3935, 0
        %v4084 = vperm.slane %v3936, 0
        %v4085 = vperm.slane %v3937, 0
        %v4086 = vperm.slane %v3938, 0
        %v4087 = vperm.slane %v3939, 0
        %v4088 = vperm.slane %v3940, 0
        %v4089 = vperm.slane %v3941, 0
        %v4090 = vperm.slane %v3942, 0
        %v4091 = vperm.slane %v3943, 0
        %v4092 = vperm.slane %v3944, 0
        %v4093 = vperm.slane %v3945, 0
        %v4094 = vperm.slane %v3946, 0
        %v4095 = vperm.slane %v3947, 0
        %v4096 = vperm.slane %v3948, 0
        %v4097 = vperm.slane %v3949, 0
        %v4098 = vperm.slane %v3950, 0
        %v4099 = vperm.slane %v3951, 0
        %v4100 = vperm.slane %v3952, 0
        %v4101 = vperm.slane %v3953, 0
        %v4102 = vperm.slane %v3954, 0
        %v4103 = vperm.slane %v3955, 0
        %v4104 = vperm.slane %v3956, 0
        %v4105 = vperm.slane %v3957, 0
        %v4106 = vperm.slane %v3958, 0
        %v4107 = vperm.slane %v3959, 0
        %v4108 = vperm.slane %v3960, 0
        %v4109 = vperm.slane %v3961, 0
        %v4110 = vperm.slane %v3962, 0
        %v4111 = vperm.slane %v3963, 0
        %v4112 = vperm.slane %v3964, 0
        %v4113 = vperm.slane %v3965, 0
        %v4114 = vperm.slane %v3966, 0
        %v4115 = vperm.slane %v3967, 0
        %v4116 = vperm.slane %v3968, 0
        %v4117 = vperm.slane %v3969, 0
        %v4118 = vperm.slane %v3970, 0
        %v4119 = vperm.slane %v3971, 0
        %v4120 = vperm.slane %v3972, 0
        %v4121 = vperm.slane %v3973, 0
        %v4122 = vperm.slane %v3974, 0
        %v4123 = vperm.slane %v3975, 0
        %v4124 = vperm.slane %v3976, 0
        %v4125 = vperm.slane %v3977, 0
        %v4126 = vperm.slane %v3978, 0
        %v4127 = vperm.slane %v3979, 0
        %v4128 = vperm.slane %v3980, 0
        %v4129 = vperm.slane %v3981, 0
        %v4130 = vperm.slane %v3982, 0
        %v4131 = vperm.slane %v3983, 0
        %v4132 = vperm.slane %v3984, 0
        %v4133 = vperm.slane %v3985, 0
        %v4134 = vperm.slane %v3986, 0
        %v4135 = vperm.slane %v3987, 0
        %v4136 = vperm.slane %v3988, 0
        %v4137 = vperm.slane %v3989, 0
        %v4138 = vperm.slane %v3990, 0
        %v4139 = vperm.slane %v3991, 0
        %v4140 = vperm.slane %v3992, 0
        %v4141 = vperm.slane %v3993, 0
        %v4142 = vperm.slane %v3994, 0
        %v4143 = vperm.slane %v3995, 0
        %v4144 = vperm.slane %v3996, 0
        %vm4145 = vcmask 1041409
        %v4146 = vsel %vm4145, %v4082, %v4081
        %vm4147 = vcmask 1042434
        %v4148 = vsel %vm4147, %v4083, %v4146
        %vm4149 = vcmask 1043459
        %v4150 = vsel %vm4149, %v4084, %v4148
        %vm4151 = vcmask 1044484
        %v4152 = vsel %vm4151, %v4085, %v4150
        %vm4153 = vcmask 1045509
        %v4154 = vsel %vm4153, %v4086, %v4152
        %vm4155 = vcmask 1046534
        %v4156 = vsel %vm4155, %v4087, %v4154
        %vm4157 = vcmask 1047559
        %v4158 = vsel %vm4157, %v4088, %v4156
        %v4159 = vsel %vm4145, %v4090, %v4089
        %v4160 = vsel %vm4147, %v4091, %v4159
        %v4161 = vsel %vm4149, %v4092, %v4160
        %v4162 = vsel %vm4151, %v4093, %v4161
        %v4163 = vsel %vm4153, %v4094, %v4162
        %v4164 = vsel %vm4155, %v4095, %v4163
        %v4165 = vsel %vm4157, %v4096, %v4164
        %v4166 = vsel %vm4145, %v4098, %v4097
        %v4167 = vsel %vm4147, %v4099, %v4166
        %v4168 = vsel %vm4149, %v4100, %v4167
        %v4169 = vsel %vm4151, %v4101, %v4168
        %v4170 = vsel %vm4153, %v4102, %v4169
        %v4171 = vsel %vm4155, %v4103, %v4170
        %v4172 = vsel %vm4157, %v4104, %v4171
        %v4173 = vsel %vm4145, %v4106, %v4105
        %v4174 = vsel %vm4147, %v4107, %v4173
        %v4175 = vsel %vm4149, %v4108, %v4174
        %v4176 = vsel %vm4151, %v4109, %v4175
        %v4177 = vsel %vm4153, %v4110, %v4176
        %v4178 = vsel %vm4155, %v4111, %v4177
        %v4179 = vsel %vm4157, %v4112, %v4178
        %v4180 = vsel %vm4145, %v4114, %v4113
        %v4181 = vsel %vm4147, %v4115, %v4180
        %v4182 = vsel %vm4149, %v4116, %v4181
        %v4183 = vsel %vm4151, %v4117, %v4182
        %v4184 = vsel %vm4153, %v4118, %v4183
        %v4185 = vsel %vm4155, %v4119, %v4184
        %v4186 = vsel %vm4157, %v4120, %v4185
        %v4187 = vsel %vm4145, %v4122, %v4121
        %v4188 = vsel %vm4147, %v4123, %v4187
        %v4189 = vsel %vm4149, %v4124, %v4188
        %v4190 = vsel %vm4151, %v4125, %v4189
        %v4191 = vsel %vm4153, %v4126, %v4190
        %v4192 = vsel %vm4155, %v4127, %v4191
        %v4193 = vsel %vm4157, %v4128, %v4192
        %v4194 = vsel %vm4145, %v4130, %v4129
        %v4195 = vsel %vm4147, %v4131, %v4194
        %v4196 = vsel %vm4149, %v4132, %v4195
        %v4197 = vsel %vm4151, %v4133, %v4196
        %v4198 = vsel %vm4153, %v4134, %v4197
        %v4199 = vsel %vm4155, %v4135, %v4198
        %v4200 = vsel %vm4157, %v4136, %v4199
        %v4201 = vsel %vm4145, %v4138, %v4137
        %v4202 = vsel %vm4147, %v4139, %v4201
        %v4203 = vsel %vm4149, %v4140, %v4202
        %v4204 = vsel %vm4151, %v4141, %v4203
        %v4205 = vsel %vm4153, %v4142, %v4204
        %v4206 = vsel %vm4155, %v4143, %v4205
        %v4207 = vsel %vm4157, %v4144, %v4206
        %s4216 = scalar_lea.vmem [#allocation3], 16
        %4217 = vst [vmem:[%s4216 + $0x1] sm:$0xff] %v4158
        %4218 = vst [vmem:[%s4216 + $0x11] sm:$0xff] %v4165
        %4219 = vst [vmem:[%s4216 + $0x21] sm:$0xff] %v4172
        %4220 = vst [vmem:[%s4216 + $0x31] sm:$0xff] %v4179
        %4221 = vst [vmem:[%s4216 + $0x41] sm:$0xff] %v4186
        %4222 = vst [vmem:[%s4216 + $0x51] sm:$0xff] %v4193
        %4223 = vst [vmem:[%s4216 + $0x61] sm:$0xff] %v4200
        %4224 = vst [vmem:[%s4216 + $0x71] sm:$0xff] %v4207
        %v4225 = vld [vmem:[#allocation3] sm:$0xff]
        %v4226 = vld [vmem:[#allocation3 + $0x8] sm:$0x3]
        %v4227 = vld [vmem:[#allocation3 + $0x10] sm:$0xff]
        %v4228 = vld [vmem:[#allocation3 + $0x18] sm:$0x3]
        %v4229 = vld [vmem:[#allocation3 + $0x20] sm:$0xff]
        %v4230 = vld [vmem:[#allocation3 + $0x28] sm:$0x3]
        %v4231 = vld [vmem:[#allocation3 + $0x30] sm:$0xff]
        %v4232 = vld [vmem:[#allocation3 + $0x38] sm:$0x3]
        %v4233 = vld [vmem:[#allocation3 + $0x40] sm:$0xff]
        %v4234 = vld [vmem:[#allocation3 + $0x48] sm:$0x3]
        %v4235 = vld [vmem:[#allocation3 + $0x50] sm:$0xff]
        %v4236 = vld [vmem:[#allocation3 + $0x58] sm:$0x3]
        %v4237 = vld [vmem:[#allocation3 + $0x60] sm:$0xff]
        %v4238 = vld [vmem:[#allocation3 + $0x68] sm:$0x3]
        %v4239 = vld [vmem:[#allocation3 + $0x70] sm:$0xff]
        %v4240 = vld [vmem:[#allocation3 + $0x78] sm:$0x3]
        %v4241 = vld [vmem:[#allocation3 + $0x80] sm:$0xff]
        %v4242 = vld [vmem:[#allocation3 + $0x88] sm:$0x3]
        %v4243 = vld [vmem:[#allocation3 + $0x90] sm:$0xff]
        %v4244 = vld [vmem:[#allocation3 + $0x98] sm:$0x3]
        %v4245 = vpack.c.bf16 %v4225, %v4225
        %v4246 = vpack.c.bf16 %v4227, %v4227
        %v4247 = vpack.c.bf16 %v4229, %v4229
        %v4248 = vpack.c.bf16 %v4231, %v4231
        %v4249 = vpack.c.bf16 %v4233, %v4233
        %v4250 = vpack.c.bf16 %v4235, %v4235
        %v4251 = vpack.c.bf16 %v4237, %v4237
        %v4252 = vpack.c.bf16 %v4239, %v4239
        %v4253 = vpack.c.bf16 %v4241, %v4241
        %v4254 = vpack.c.bf16 %v4243, %v4243
        %v4255 = vpack.c.bf16 %v4226, %v4226
        %v4256 = vpack.c.bf16 %v4228, %v4228
        %v4257 = vpack.c.bf16 %v4230, %v4230
        %v4258 = vpack.c.bf16 %v4232, %v4232
        %v4259 = vpack.c.bf16 %v4234, %v4234
        %v4260 = vpack.c.bf16 %v4236, %v4236
        %v4261 = vpack.c.bf16 %v4238, %v4238
        %v4262 = vpack.c.bf16 %v4240, %v4240
        %v4263 = vpack.c.bf16 %v4242, %v4242
        %v4264 = vpack.c.bf16 %v4244, %v4244
        %v4265 = vld [vmem:[#allocation7] sm:$0xf]
        %v4266 = vld [vmem:[#allocation7 + $0x4] sm:$0xf]
        %v4267 = vld [vmem:[#allocation7 + $0x8] sm:$0xf]
        %v4268 = vld [vmem:[#allocation7 + $0xc] sm:$0xf]
        %v4269 = vld [vmem:[#allocation7 + $0x10] sm:$0xf]
        %v4270 = vld [vmem:[#allocation7 + $0x14] sm:$0xf]
        %v4271 = vld [vmem:[#allocation7 + $0x18] sm:$0xf]
        %v4272 = vld [vmem:[#allocation7 + $0x1c] sm:$0xf]
        %v4273 = vld [vmem:[#allocation7 + $0x20] sm:$0xf]
        %v4274 = vld [vmem:[#allocation7 + $0x24] sm:$0xf]
        %v4275 = vld [vmem:[#allocation7 + $0x28] sm:$0xf]
        %v4276 = vld [vmem:[#allocation7 + $0x2c] sm:$0xf]
        %v4277 = vld [vmem:[#allocation7 + $0x30] sm:$0xf]
        %v4278 = vld [vmem:[#allocation7 + $0x34] sm:$0xf]
        %v4279 = vld [vmem:[#allocation7 + $0x38] sm:$0xf]
        %v4280 = vld [vmem:[#allocation7 + $0x3c] sm:$0xf]
        %v4282 = vshrl.u32 %v4245, 16
        %v4284 = vrot.slane %v4282, 4
        %v4285 = vshll.u32 %v4245, 16
        %v4287 = vrot.slane %v4285, 5
        %v4288 = vor.u32 %v4284, %v4287
        %v4289 = vrot.slane %v4288, 4
        %v4291 = vshll.u32 %v4255, 16
        %v4293 = vrot.slane %v4291, 5
        %v4294 = vsel %vm860, %v4289, %v4293
        %v4296 = vshrl.u32 %v4246, 16
        %v4298 = vrot.slane %v4296, 4
        %v4299 = vshll.u32 %v4246, 16
        %v4301 = vrot.slane %v4299, 5
        %v4302 = vor.u32 %v4298, %v4301
        %v4303 = vrot.slane %v4302, 4
        %v4305 = vshll.u32 %v4256, 16
        %v4307 = vrot.slane %v4305, 5
        %v4308 = vsel %vm860, %v4303, %v4307
        %v4310 = vshrl.u32 %v4247, 16
        %v4312 = vrot.slane %v4310, 4
        %v4313 = vshll.u32 %v4247, 16
        %v4315 = vrot.slane %v4313, 5
        %v4316 = vor.u32 %v4312, %v4315
        %v4317 = vrot.slane %v4316, 4
        %v4319 = vshll.u32 %v4257, 16
        %v4321 = vrot.slane %v4319, 5
        %v4322 = vsel %vm860, %v4317, %v4321
        %v4324 = vshrl.u32 %v4248, 16
        %v4326 = vrot.slane %v4324, 4
        %v4327 = vshll.u32 %v4248, 16
        %v4329 = vrot.slane %v4327, 5
        %v4330 = vor.u32 %v4326, %v4329
        %v4331 = vrot.slane %v4330, 4
        %v4333 = vshll.u32 %v4258, 16
        %v4335 = vrot.slane %v4333, 5
        %v4336 = vsel %vm860, %v4331, %v4335
        %v4338 = vshrl.u32 %v4249, 16
        %v4340 = vrot.slane %v4338, 4
        %v4341 = vshll.u32 %v4249, 16
        %v4343 = vrot.slane %v4341, 5
        %v4344 = vor.u32 %v4340, %v4343
        %v4345 = vrot.slane %v4344, 4
        %v4347 = vshll.u32 %v4259, 16
        %v4349 = vrot.slane %v4347, 5
        %v4350 = vsel %vm860, %v4345, %v4349
        %v4352 = vshrl.u32 %v4250, 16
        %v4354 = vrot.slane %v4352, 4
        %v4355 = vshll.u32 %v4250, 16
        %v4357 = vrot.slane %v4355, 5
        %v4358 = vor.u32 %v4354, %v4357
        %v4359 = vrot.slane %v4358, 4
        %v4361 = vshll.u32 %v4260, 16
        %v4363 = vrot.slane %v4361, 5
        %v4364 = vsel %vm860, %v4359, %v4363
        %v4366 = vshrl.u32 %v4251, 16
        %v4368 = vrot.slane %v4366, 4
        %v4369 = vshll.u32 %v4251, 16
        %v4371 = vrot.slane %v4369, 5
        %v4372 = vor.u32 %v4368, %v4371
        %v4373 = vrot.slane %v4372, 4
        %v4375 = vshll.u32 %v4261, 16
        %v4377 = vrot.slane %v4375, 5
        %v4378 = vsel %vm860, %v4373, %v4377
        %v4380 = vshrl.u32 %v4252, 16
        %v4382 = vrot.slane %v4380, 4
        %v4383 = vshll.u32 %v4252, 16
        %v4385 = vrot.slane %v4383, 5
        %v4386 = vor.u32 %v4382, %v4385
        %v4387 = vrot.slane %v4386, 4
        %v4389 = vshll.u32 %v4262, 16
        %v4391 = vrot.slane %v4389, 5
        %v4392 = vsel %vm860, %v4387, %v4391
        %s4393 = scalar_lea.vmem [#allocation7], 64
        %v4394 = vld [vmem:[%s4393] sm:$0xf]
        %v4395 = vld [vmem:[%s4393 + $0x4] sm:$0xf]
        %v4396 = vld [vmem:[%s4393 + $0x8] sm:$0xf]
        %v4397 = vld [vmem:[%s4393 + $0xc] sm:$0xf]
        %v4398 = vld [vmem:[%s4393 + $0x10] sm:$0xf]
        %v4399 = vld [vmem:[%s4393 + $0x14] sm:$0xf]
        %v4400 = vld [vmem:[%s4393 + $0x18] sm:$0xf]
        %v4401 = vld [vmem:[%s4393 + $0x1c] sm:$0xf]
        %v4402 = vld [vmem:[%s4393 + $0x20] sm:$0xf]
        %v4403 = vld [vmem:[%s4393 + $0x24] sm:$0xf]
        %v4404 = vld [vmem:[%s4393 + $0x28] sm:$0xf]
        %v4405 = vld [vmem:[%s4393 + $0x2c] sm:$0xf]
        %v4406 = vld [vmem:[%s4393 + $0x30] sm:$0xf]
        %v4407 = vld [vmem:[%s4393 + $0x34] sm:$0xf]
        %v4408 = vld [vmem:[%s4393 + $0x38] sm:$0xf]
        %v4409 = vld [vmem:[%s4393 + $0x3c] sm:$0xf]
        %v4410 = vunpack.c.l.b16 %v4294
        %v4411 = vunpack.c.l.b16 %v4308
        %v4412 = vunpack.c.l.b16 %v4322
        %v4413 = vunpack.c.l.b16 %v4336
        %v4414 = vunpack.c.l.b16 %v4350
        %v4415 = vunpack.c.l.b16 %v4364
        %v4416 = vunpack.c.l.b16 %v4378
        %v4417 = vunpack.c.l.b16 %v4392
        %v4418 = vpack.c.b16 %v4411, %v4410
        %v4419 = vpack.c.b16 %v4413, %v4412
        %v4420 = vpack.c.b16 %v4415, %v4414
        %v4421 = vpack.c.b16 %v4417, %v4416
        %v4442 = vunpack.c.l.b16 %v4394
        %v4443 = vunpack.c.l.b16 %v4395
        %v4444 = vunpack.c.l.b16 %v4396
        %v4445 = vunpack.c.l.b16 %v4397
        %v4446 = vunpack.c.l.b16 %v4398
        %v4447 = vunpack.c.l.b16 %v4399
        %v4448 = vunpack.c.l.b16 %v4400
        %v4449 = vunpack.c.l.b16 %v4401
        %v4450 = vunpack.c.l.b16 %v4402
        %v4451 = vunpack.c.l.b16 %v4403
        %v4452 = vunpack.c.l.b16 %v4404
        %v4453 = vunpack.c.l.b16 %v4405
        %v4454 = vunpack.c.l.b16 %v4406
        %v4455 = vunpack.c.l.b16 %v4407
        %v4456 = vunpack.c.l.b16 %v4408
        %v4457 = vunpack.c.l.b16 %v4409
        %v4458 = vpack.c.b16 %v4443, %v4442
        %v4459 = vpack.c.b16 %v4445, %v4444
        %v4460 = vpack.c.b16 %v4447, %v4446
        %v4461 = vpack.c.b16 %v4449, %v4448
        %v4462 = vpack.c.b16 %v4451, %v4450
        %v4463 = vpack.c.b16 %v4453, %v4452
        %v4464 = vpack.c.b16 %v4455, %v4454
        %v4465 = vpack.c.b16 %v4457, %v4456
        %4474 = vmatpush.bf16.msra.mxu0 %v4465
        %4475 = vmatpush.bf16.msra.mxu0 %v4464
        %4476 = vmatpush.bf16.msra.mxu0 %v4463
        %4477 = vmatpush.bf16.msra.mxu0 %v4462
        %4478 = vmatpush.bf16.msra.mxu0 %v4461
        %4479 = vmatpush.bf16.msra.mxu0 %v4460
        %4480 = vmatpush.bf16.msra.mxu0 %v4459
        %4481 = vmatpush.bf16.msra.mxu0 %v4458
        %4482 = vmatmul.bf16.gmra.mxu0 %v4418
        %v4483 = vpop.f32.mrf.mxu0
        %v4484 = vadd.f32 0.0, %v4483
        %v4485 = vpop.f32.mrf.mxu0
        %v4486 = vadd.f32 0.0, %v4485
        %4487 = vmatmul.bf16.gmra.mxu0 %v4419
        %v4488 = vpop.f32.mrf.mxu0
        %v4489 = vadd.f32 0.0, %v4488
        %v4490 = vpop.f32.mrf.mxu0
        %v4491 = vadd.f32 0.0, %v4490
        %4492 = vmatmul.bf16.gmra.mxu0 %v4420
        %v4493 = vpop.f32.mrf.mxu0
        %v4494 = vadd.f32 0.0, %v4493
        %v4495 = vpop.f32.mrf.mxu0
        %v4496 = vadd.f32 0.0, %v4495
        %4497 = vmatmul.bf16.gmra.mxu0 %v4421
        %v4498 = vpop.f32.mrf.mxu0
        %v4499 = vadd.f32 0.0, %v4498
        %v4500 = vpop.f32.mrf.mxu0
        %v4501 = vadd.f32 0.0, %v4500
        %4502 = vdwg.mxu0
        %v4511 = vunpack.c.l.b16 %v4245
        %v4512 = vunpack.c.l.b16 %v4246
        %v4513 = vunpack.c.l.b16 %v4247
        %v4514 = vunpack.c.l.b16 %v4248
        %v4515 = vunpack.c.l.b16 %v4249
        %v4516 = vunpack.c.l.b16 %v4250
        %v4517 = vunpack.c.l.b16 %v4251
        %v4518 = vunpack.c.l.b16 %v4252
        %v4519 = vpack.c.b16 %v4512, %v4511
        %v4520 = vpack.c.b16 %v4514, %v4513
        %v4521 = vpack.c.b16 %v4516, %v4515
        %v4522 = vpack.c.b16 %v4518, %v4517
        %v4543 = vunpack.c.l.b16 %v4265
        %v4544 = vunpack.c.l.b16 %v4266
        %v4545 = vunpack.c.l.b16 %v4267
        %v4546 = vunpack.c.l.b16 %v4268
        %v4547 = vunpack.c.l.b16 %v4269
        %v4548 = vunpack.c.l.b16 %v4270
        %v4549 = vunpack.c.l.b16 %v4271
        %v4550 = vunpack.c.l.b16 %v4272
        %v4551 = vunpack.c.l.b16 %v4273
        %v4552 = vunpack.c.l.b16 %v4274
        %v4553 = vunpack.c.l.b16 %v4275
        %v4554 = vunpack.c.l.b16 %v4276
        %v4555 = vunpack.c.l.b16 %v4277
        %v4556 = vunpack.c.l.b16 %v4278
        %v4557 = vunpack.c.l.b16 %v4279
        %v4558 = vunpack.c.l.b16 %v4280
        %v4559 = vpack.c.b16 %v4544, %v4543
        %v4560 = vpack.c.b16 %v4546, %v4545
        %v4561 = vpack.c.b16 %v4548, %v4547
        %v4562 = vpack.c.b16 %v4550, %v4549
        %v4563 = vpack.c.b16 %v4552, %v4551
        %v4564 = vpack.c.b16 %v4554, %v4553
        %v4565 = vpack.c.b16 %v4556, %v4555
        %v4566 = vpack.c.b16 %v4558, %v4557
        %4575 = vmatpush.bf16.msra.mxu0 %v4566
        %4576 = vmatpush.bf16.msra.mxu0 %v4565
        %4577 = vmatpush.bf16.msra.mxu0 %v4564
        %4578 = vmatpush.bf16.msra.mxu0 %v4563
        %4579 = vmatpush.bf16.msra.mxu0 %v4562
        %4580 = vmatpush.bf16.msra.mxu0 %v4561
        %4581 = vmatpush.bf16.msra.mxu0 %v4560
        %4582 = vmatpush.bf16.msra.mxu0 %v4559
        %4583 = vmatmul.bf16.gmra.mxu0 %v4519
        %v4584 = vpop.f32.mrf.mxu0
        %v4585 = vadd.f32 %v4484, %v4584
        %v4586 = vpop.f32.mrf.mxu0
        %v4587 = vadd.f32 %v4486, %v4586
        %4588 = vmatmul.bf16.gmra.mxu0 %v4520
        %v4589 = vpop.f32.mrf.mxu0
        %v4590 = vadd.f32 %v4489, %v4589
        %v4591 = vpop.f32.mrf.mxu0
        %v4592 = vadd.f32 %v4491, %v4591
        %4593 = vmatmul.bf16.gmra.mxu0 %v4521
        %v4594 = vpop.f32.mrf.mxu0
        %v4595 = vadd.f32 %v4494, %v4594
        %v4596 = vpop.f32.mrf.mxu0
        %v4597 = vadd.f32 %v4496, %v4596
        %4598 = vmatmul.bf16.gmra.mxu0 %v4522
        %v4599 = vpop.f32.mrf.mxu0
        %v4600 = vadd.f32 %v4499, %v4599
        %v4601 = vpop.f32.mrf.mxu0
        %v4602 = vadd.f32 %v4501, %v4601
        %4603 = vdwg.mxu0
        %v4612 = vrot.slane %v4245, 5
        %v4613 = vrot.slane %v4612, 4
        %v4614 = vrot.slane %v4255, 5
        %v4615 = vsel %vm1714, %v4613, %v4614
        %v4616 = vrot.slane %v4246, 5
        %v4617 = vrot.slane %v4616, 4
        %v4618 = vrot.slane %v4256, 5
        %v4619 = vsel %vm1714, %v4617, %v4618
        %v4620 = vrot.slane %v4247, 5
        %v4621 = vrot.slane %v4620, 4
        %v4622 = vrot.slane %v4257, 5
        %v4623 = vsel %vm1714, %v4621, %v4622
        %v4624 = vrot.slane %v4248, 5
        %v4625 = vrot.slane %v4624, 4
        %v4626 = vrot.slane %v4258, 5
        %v4627 = vsel %vm1714, %v4625, %v4626
        %v4628 = vrot.slane %v4249, 5
        %v4629 = vrot.slane %v4628, 4
        %v4630 = vrot.slane %v4259, 5
        %v4631 = vsel %vm1714, %v4629, %v4630
        %v4632 = vrot.slane %v4250, 5
        %v4633 = vrot.slane %v4632, 4
        %v4634 = vrot.slane %v4260, 5
        %v4635 = vsel %vm1714, %v4633, %v4634
        %v4636 = vrot.slane %v4251, 5
        %v4637 = vrot.slane %v4636, 4
        %v4638 = vrot.slane %v4261, 5
        %v4639 = vsel %vm1714, %v4637, %v4638
        %v4640 = vrot.slane %v4252, 5
        %v4641 = vrot.slane %v4640, 4
        %v4642 = vrot.slane %v4262, 5
        %v4643 = vsel %vm1714, %v4641, %v4642
        %s4644 = scalar_lea.vmem [#allocation7], 128
        %v4645 = vld [vmem:[%s4644] sm:$0xf]
        %v4646 = vld [vmem:[%s4644 + $0x4] sm:$0xf]
        %v4647 = vld [vmem:[%s4644 + $0x8] sm:$0xf]
        %v4648 = vld [vmem:[%s4644 + $0xc] sm:$0xf]
        %v4649 = vld [vmem:[%s4644 + $0x10] sm:$0xf]
        %v4650 = vld [vmem:[%s4644 + $0x14] sm:$0xf]
        %v4651 = vld [vmem:[%s4644 + $0x18] sm:$0xf]
        %v4652 = vld [vmem:[%s4644 + $0x1c] sm:$0xf]
        %v4653 = vld [vmem:[%s4644 + $0x20] sm:$0xf]
        %v4654 = vld [vmem:[%s4644 + $0x24] sm:$0xf]
        %v4655 = vld [vmem:[%s4644 + $0x28] sm:$0xf]
        %v4656 = vld [vmem:[%s4644 + $0x2c] sm:$0xf]
        %v4657 = vld [vmem:[%s4644 + $0x30] sm:$0xf]
        %v4658 = vld [vmem:[%s4644 + $0x34] sm:$0xf]
        %v4659 = vld [vmem:[%s4644 + $0x38] sm:$0xf]
        %v4660 = vld [vmem:[%s4644 + $0x3c] sm:$0xf]
        %v4661 = vunpack.c.l.b16 %v4615
        %v4662 = vunpack.c.l.b16 %v4619
        %v4663 = vunpack.c.l.b16 %v4623
        %v4664 = vunpack.c.l.b16 %v4627
        %v4665 = vunpack.c.l.b16 %v4631
        %v4666 = vunpack.c.l.b16 %v4635
        %v4667 = vunpack.c.l.b16 %v4639
        %v4668 = vunpack.c.l.b16 %v4643
        %v4669 = vpack.c.b16 %v4662, %v4661
        %v4670 = vpack.c.b16 %v4664, %v4663
        %v4671 = vpack.c.b16 %v4666, %v4665
        %v4672 = vpack.c.b16 %v4668, %v4667
        %v4693 = vunpack.c.l.b16 %v4645
        %v4694 = vunpack.c.l.b16 %v4646
        %v4695 = vunpack.c.l.b16 %v4647
        %v4696 = vunpack.c.l.b16 %v4648
        %v4697 = vunpack.c.l.b16 %v4649
        %v4698 = vunpack.c.l.b16 %v4650
        %v4699 = vunpack.c.l.b16 %v4651
        %v4700 = vunpack.c.l.b16 %v4652
        %v4701 = vunpack.c.l.b16 %v4653
        %v4702 = vunpack.c.l.b16 %v4654
        %v4703 = vunpack.c.l.b16 %v4655
        %v4704 = vunpack.c.l.b16 %v4656
        %v4705 = vunpack.c.l.b16 %v4657
        %v4706 = vunpack.c.l.b16 %v4658
        %v4707 = vunpack.c.l.b16 %v4659
        %v4708 = vunpack.c.l.b16 %v4660
        %v4709 = vpack.c.b16 %v4694, %v4693
        %v4710 = vpack.c.b16 %v4696, %v4695
        %v4711 = vpack.c.b16 %v4698, %v4697
        %v4712 = vpack.c.b16 %v4700, %v4699
        %v4713 = vpack.c.b16 %v4702, %v4701
        %v4714 = vpack.c.b16 %v4704, %v4703
        %v4715 = vpack.c.b16 %v4706, %v4705
        %v4716 = vpack.c.b16 %v4708, %v4707
        %4725 = vmatpush.bf16.msra.mxu0 %v4716
        %4726 = vmatpush.bf16.msra.mxu0 %v4715
        %4727 = vmatpush.bf16.msra.mxu0 %v4714
        %4728 = vmatpush.bf16.msra.mxu0 %v4713
        %4729 = vmatpush.bf16.msra.mxu0 %v4712
        %4730 = vmatpush.bf16.msra.mxu0 %v4711
        %4731 = vmatpush.bf16.msra.mxu0 %v4710
        %4732 = vmatpush.bf16.msra.mxu0 %v4709
        %4733 = vmatmul.bf16.gmra.mxu0 %v4669
        %v4734 = vpop.f32.mrf.mxu0
        %v4735 = vadd.f32 0.0, %v4734
        %v4736 = vpop.f32.mrf.mxu0
        %v4737 = vadd.f32 0.0, %v4736
        %4738 = vmatmul.bf16.gmra.mxu0 %v4670
        %v4739 = vpop.f32.mrf.mxu0
        %v4740 = vadd.f32 0.0, %v4739
        %v4741 = vpop.f32.mrf.mxu0
        %v4742 = vadd.f32 0.0, %v4741
        %4743 = vmatmul.bf16.gmra.mxu0 %v4671
        %v4744 = vpop.f32.mrf.mxu0
        %v4745 = vadd.f32 0.0, %v4744
        %v4746 = vpop.f32.mrf.mxu0
        %v4747 = vadd.f32 0.0, %v4746
        %4748 = vmatmul.bf16.gmra.mxu0 %v4672
        %v4749 = vpop.f32.mrf.mxu0
        %v4750 = vadd.f32 0.0, %v4749
        %v4751 = vpop.f32.mrf.mxu0
        %v4752 = vadd.f32 0.0, %v4751
        %4753 = vdwg.mxu0
        %v4754 = vadd.f32 %v4585, %v4735
        %v4755 = vadd.f32 %v4587, %v4737
        %v4756 = vadd.f32 %v4590, %v4740
        %v4757 = vadd.f32 %v4592, %v4742
        %v4758 = vadd.f32 %v4595, %v4745
        %v4759 = vadd.f32 %v4597, %v4747
        %v4760 = vadd.f32 %v4600, %v4750
        %v4761 = vadd.f32 %v4602, %v4752
        %s4762 = scalar_lea.vmem [#allocation7], 192
        %v4763 = vld [vmem:[%s4762] sm:$0xf]
        %v4764 = vld [vmem:[%s4762 + $0x4] sm:$0xf]
        %v4765 = vld [vmem:[%s4762 + $0x8] sm:$0xf]
        %v4766 = vld [vmem:[%s4762 + $0xc] sm:$0xf]
        %v4767 = vld [vmem:[%s4762 + $0x10] sm:$0xf]
        %v4768 = vld [vmem:[%s4762 + $0x14] sm:$0xf]
        %v4769 = vld [vmem:[%s4762 + $0x18] sm:$0xf]
        %v4770 = vld [vmem:[%s4762 + $0x1c] sm:$0xf]
        %v4771 = vld [vmem:[%s4762 + $0x20] sm:$0xf]
        %v4772 = vld [vmem:[%s4762 + $0x24] sm:$0xf]
        %v4773 = vld [vmem:[%s4762 + $0x28] sm:$0xf]
        %v4774 = vld [vmem:[%s4762 + $0x2c] sm:$0xf]
        %v4775 = vld [vmem:[%s4762 + $0x30] sm:$0xf]
        %v4776 = vld [vmem:[%s4762 + $0x34] sm:$0xf]
        %v4777 = vld [vmem:[%s4762 + $0x38] sm:$0xf]
        %v4778 = vld [vmem:[%s4762 + $0x3c] sm:$0xf]
        %v4780 = vunpack.c.l.b16 %v4253
        %v4781 = vpack.c.b16 %v4513, %v4512
        %v4782 = vpack.c.b16 %v4515, %v4514
        %v4783 = vpack.c.b16 %v4517, %v4516
        %v4784 = vpack.c.b16 %v4780, %v4518
        %v4805 = vunpack.c.l.b16 %v4763
        %v4806 = vunpack.c.l.b16 %v4764
        %v4807 = vunpack.c.l.b16 %v4765
        %v4808 = vunpack.c.l.b16 %v4766
        %v4809 = vunpack.c.l.b16 %v4767
        %v4810 = vunpack.c.l.b16 %v4768
        %v4811 = vunpack.c.l.b16 %v4769
        %v4812 = vunpack.c.l.b16 %v4770
        %v4813 = vunpack.c.l.b16 %v4771
        %v4814 = vunpack.c.l.b16 %v4772
        %v4815 = vunpack.c.l.b16 %v4773
        %v4816 = vunpack.c.l.b16 %v4774
        %v4817 = vunpack.c.l.b16 %v4775
        %v4818 = vunpack.c.l.b16 %v4776
        %v4819 = vunpack.c.l.b16 %v4777
        %v4820 = vunpack.c.l.b16 %v4778
        %v4821 = vpack.c.b16 %v4806, %v4805
        %v4822 = vpack.c.b16 %v4808, %v4807
        %v4823 = vpack.c.b16 %v4810, %v4809
        %v4824 = vpack.c.b16 %v4812, %v4811
        %v4825 = vpack.c.b16 %v4814, %v4813
        %v4826 = vpack.c.b16 %v4816, %v4815
        %v4827 = vpack.c.b16 %v4818, %v4817
        %v4828 = vpack.c.b16 %v4820, %v4819
        %4837 = vmatpush.bf16.msra.mxu0 %v4828
        %4838 = vmatpush.bf16.msra.mxu0 %v4827
        %4839 = vmatpush.bf16.msra.mxu0 %v4826
        %4840 = vmatpush.bf16.msra.mxu0 %v4825
        %4841 = vmatpush.bf16.msra.mxu0 %v4824
        %4842 = vmatpush.bf16.msra.mxu0 %v4823
        %4843 = vmatpush.bf16.msra.mxu0 %v4822
        %4844 = vmatpush.bf16.msra.mxu0 %v4821
        %4845 = vmatmul.bf16.gmra.mxu0 %v4781
        %v4846 = vpop.f32.mrf.mxu0
        %v4847 = vadd.f32 0.0, %v4846
        %v4848 = vpop.f32.mrf.mxu0
        %v4849 = vadd.f32 0.0, %v4848
        %4850 = vmatmul.bf16.gmra.mxu0 %v4782
        %v4851 = vpop.f32.mrf.mxu0
        %v4852 = vadd.f32 0.0, %v4851
        %v4853 = vpop.f32.mrf.mxu0
        %v4854 = vadd.f32 0.0, %v4853
        %4855 = vmatmul.bf16.gmra.mxu0 %v4783
        %v4856 = vpop.f32.mrf.mxu0
        %v4857 = vadd.f32 0.0, %v4856
        %v4858 = vpop.f32.mrf.mxu0
        %v4859 = vadd.f32 0.0, %v4858
        %4860 = vmatmul.bf16.gmra.mxu0 %v4784
        %v4861 = vpop.f32.mrf.mxu0
        %v4862 = vadd.f32 0.0, %v4861
        %v4863 = vpop.f32.mrf.mxu0
        %v4864 = vadd.f32 0.0, %v4863
        %4865 = vdwg.mxu0
        %v4866 = vadd.f32 %v4754, %v4847
        %v4867 = vadd.f32 %v4755, %v4849
        %v4868 = vadd.f32 %v4756, %v4852
        %v4869 = vadd.f32 %v4757, %v4854
        %v4870 = vadd.f32 %v4758, %v4857
        %v4871 = vadd.f32 %v4759, %v4859
        %v4872 = vadd.f32 %v4760, %v4862
        %v4873 = vadd.f32 %v4761, %v4864
        %v4875 = vshrl.u32 %v4253, 16
        %v4877 = vrot.slane %v4875, 4
        %v4878 = vshll.u32 %v4253, 16
        %v4880 = vrot.slane %v4878, 5
        %v4881 = vor.u32 %v4877, %v4880
        %v4882 = vrot.slane %v4881, 4
        %v4884 = vshll.u32 %v4263, 16
        %v4886 = vrot.slane %v4884, 5
        %v4887 = vsel %vm860, %v4882, %v4886
        %s4888 = scalar_lea.vmem [#allocation7], 256
        %v4889 = vld [vmem:[%s4888] sm:$0xf]
        %v4890 = vld [vmem:[%s4888 + $0x4] sm:$0xf]
        %v4891 = vld [vmem:[%s4888 + $0x8] sm:$0xf]
        %v4892 = vld [vmem:[%s4888 + $0xc] sm:$0xf]
        %v4893 = vld [vmem:[%s4888 + $0x10] sm:$0xf]
        %v4894 = vld [vmem:[%s4888 + $0x14] sm:$0xf]
        %v4895 = vld [vmem:[%s4888 + $0x18] sm:$0xf]
        %v4896 = vld [vmem:[%s4888 + $0x1c] sm:$0xf]
        %v4897 = vld [vmem:[%s4888 + $0x20] sm:$0xf]
        %v4898 = vld [vmem:[%s4888 + $0x24] sm:$0xf]
        %v4899 = vld [vmem:[%s4888 + $0x28] sm:$0xf]
        %v4900 = vld [vmem:[%s4888 + $0x2c] sm:$0xf]
        %v4901 = vld [vmem:[%s4888 + $0x30] sm:$0xf]
        %v4902 = vld [vmem:[%s4888 + $0x34] sm:$0xf]
        %v4903 = vld [vmem:[%s4888 + $0x38] sm:$0xf]
        %v4904 = vld [vmem:[%s4888 + $0x3c] sm:$0xf]
        %v4905 = vunpack.c.l.b16 %v4887
        %v4906 = vpack.c.b16 %v4412, %v4411
        %v4907 = vpack.c.b16 %v4414, %v4413
        %v4908 = vpack.c.b16 %v4416, %v4415
        %v4909 = vpack.c.b16 %v4905, %v4417
        %v4930 = vunpack.c.l.b16 %v4889
        %v4931 = vunpack.c.l.b16 %v4890
        %v4932 = vunpack.c.l.b16 %v4891
        %v4933 = vunpack.c.l.b16 %v4892
        %v4934 = vunpack.c.l.b16 %v4893
        %v4935 = vunpack.c.l.b16 %v4894
        %v4936 = vunpack.c.l.b16 %v4895
        %v4937 = vunpack.c.l.b16 %v4896
        %v4938 = vunpack.c.l.b16 %v4897
        %v4939 = vunpack.c.l.b16 %v4898
        %v4940 = vunpack.c.l.b16 %v4899
        %v4941 = vunpack.c.l.b16 %v4900
        %v4942 = vunpack.c.l.b16 %v4901
        %v4943 = vunpack.c.l.b16 %v4902
        %v4944 = vunpack.c.l.b16 %v4903
        %v4945 = vunpack.c.l.b16 %v4904
        %v4946 = vpack.c.b16 %v4931, %v4930
        %v4947 = vpack.c.b16 %v4933, %v4932
        %v4948 = vpack.c.b16 %v4935, %v4934
        %v4949 = vpack.c.b16 %v4937, %v4936
        %v4950 = vpack.c.b16 %v4939, %v4938
        %v4951 = vpack.c.b16 %v4941, %v4940
        %v4952 = vpack.c.b16 %v4943, %v4942
        %v4953 = vpack.c.b16 %v4945, %v4944
        %4962 = vmatpush.bf16.msra.mxu0 %v4953
        %4963 = vmatpush.bf16.msra.mxu0 %v4952
        %4964 = vmatpush.bf16.msra.mxu0 %v4951
        %4965 = vmatpush.bf16.msra.mxu0 %v4950
        %4966 = vmatpush.bf16.msra.mxu0 %v4949
        %4967 = vmatpush.bf16.msra.mxu0 %v4948
        %4968 = vmatpush.bf16.msra.mxu0 %v4947
        %4969 = vmatpush.bf16.msra.mxu0 %v4946
        %4970 = vmatmul.bf16.gmra.mxu0 %v4906
        %v4971 = vpop.f32.mrf.mxu0
        %v4972 = vadd.f32 0.0, %v4971
        %v4973 = vpop.f32.mrf.mxu0
        %v4974 = vadd.f32 0.0, %v4973
        %4975 = vmatmul.bf16.gmra.mxu0 %v4907
        %v4976 = vpop.f32.mrf.mxu0
        %v4977 = vadd.f32 0.0, %v4976
        %v4978 = vpop.f32.mrf.mxu0
        %v4979 = vadd.f32 0.0, %v4978
        %4980 = vmatmul.bf16.gmra.mxu0 %v4908
        %v4981 = vpop.f32.mrf.mxu0
        %v4982 = vadd.f32 0.0, %v4981
        %v4983 = vpop.f32.mrf.mxu0
        %v4984 = vadd.f32 0.0, %v4983
        %4985 = vmatmul.bf16.gmra.mxu0 %v4909
        %v4986 = vpop.f32.mrf.mxu0
        %v4987 = vadd.f32 0.0, %v4986
        %v4988 = vpop.f32.mrf.mxu0
        %v4989 = vadd.f32 0.0, %v4988
        %4990 = vdwg.mxu0
        %v4991 = vadd.f32 %v4866, %v4972
        %v4992 = vadd.f32 %v4867, %v4974
        %v4993 = vadd.f32 %v4868, %v4977
        %v4994 = vadd.f32 %v4869, %v4979
        %v4995 = vadd.f32 %v4870, %v4982
        %v4996 = vadd.f32 %v4871, %v4984
        %v4997 = vadd.f32 %v4872, %v4987
        %v4998 = vadd.f32 %v4873, %v4989
        %v5000 = vrot.slane %v4253, 5
        %v5001 = vrot.slane %v5000, 4
        %v5002 = vrot.slane %v4263, 5
        %v5003 = vsel %vm1714, %v5001, %v5002
        %s5004 = scalar_lea.vmem [#allocation7], 320
        %v5005 = vld [vmem:[%s5004] sm:$0xf]
        %v5006 = vld [vmem:[%s5004 + $0x4] sm:$0xf]
        %v5007 = vld [vmem:[%s5004 + $0x8] sm:$0xf]
        %v5008 = vld [vmem:[%s5004 + $0xc] sm:$0xf]
        %v5009 = vld [vmem:[%s5004 + $0x10] sm:$0xf]
        %v5010 = vld [vmem:[%s5004 + $0x14] sm:$0xf]
        %v5011 = vld [vmem:[%s5004 + $0x18] sm:$0xf]
        %v5012 = vld [vmem:[%s5004 + $0x1c] sm:$0xf]
        %v5013 = vld [vmem:[%s5004 + $0x20] sm:$0xf]
        %v5014 = vld [vmem:[%s5004 + $0x24] sm:$0xf]
        %v5015 = vld [vmem:[%s5004 + $0x28] sm:$0xf]
        %v5016 = vld [vmem:[%s5004 + $0x2c] sm:$0xf]
        %v5017 = vld [vmem:[%s5004 + $0x30] sm:$0xf]
        %v5018 = vld [vmem:[%s5004 + $0x34] sm:$0xf]
        %v5019 = vld [vmem:[%s5004 + $0x38] sm:$0xf]
        %v5020 = vld [vmem:[%s5004 + $0x3c] sm:$0xf]
        %v5021 = vunpack.c.l.b16 %v5003
        %v5022 = vpack.c.b16 %v4663, %v4662
        %v5023 = vpack.c.b16 %v4665, %v4664
        %v5024 = vpack.c.b16 %v4667, %v4666
        %v5025 = vpack.c.b16 %v5021, %v4668
        %v5046 = vunpack.c.l.b16 %v5005
        %v5047 = vunpack.c.l.b16 %v5006
        %v5048 = vunpack.c.l.b16 %v5007
        %v5049 = vunpack.c.l.b16 %v5008
        %v5050 = vunpack.c.l.b16 %v5009
        %v5051 = vunpack.c.l.b16 %v5010
        %v5052 = vunpack.c.l.b16 %v5011
        %v5053 = vunpack.c.l.b16 %v5012
        %v5054 = vunpack.c.l.b16 %v5013
        %v5055 = vunpack.c.l.b16 %v5014
        %v5056 = vunpack.c.l.b16 %v5015
        %v5057 = vunpack.c.l.b16 %v5016
        %v5058 = vunpack.c.l.b16 %v5017
        %v5059 = vunpack.c.l.b16 %v5018
        %v5060 = vunpack.c.l.b16 %v5019
        %v5061 = vunpack.c.l.b16 %v5020
        %v5062 = vpack.c.b16 %v5047, %v5046
        %v5063 = vpack.c.b16 %v5049, %v5048
        %v5064 = vpack.c.b16 %v5051, %v5050
        %v5065 = vpack.c.b16 %v5053, %v5052
        %v5066 = vpack.c.b16 %v5055, %v5054
        %v5067 = vpack.c.b16 %v5057, %v5056
        %v5068 = vpack.c.b16 %v5059, %v5058
        %v5069 = vpack.c.b16 %v5061, %v5060
        %5078 = vmatpush.bf16.msra.mxu0 %v5069
        %5079 = vmatpush.bf16.msra.mxu0 %v5068
        %5080 = vmatpush.bf16.msra.mxu0 %v5067
        %5081 = vmatpush.bf16.msra.mxu0 %v5066
        %5082 = vmatpush.bf16.msra.mxu0 %v5065
        %5083 = vmatpush.bf16.msra.mxu0 %v5064
        %5084 = vmatpush.bf16.msra.mxu0 %v5063
        %5085 = vmatpush.bf16.msra.mxu0 %v5062
        %5086 = vmatmul.bf16.gmra.mxu0 %v5022
        %v5087 = vpop.f32.mrf.mxu0
        %v5088 = vadd.f32 0.0, %v5087
        %v5089 = vpop.f32.mrf.mxu0
        %v5090 = vadd.f32 0.0, %v5089
        %5091 = vmatmul.bf16.gmra.mxu0 %v5023
        %v5092 = vpop.f32.mrf.mxu0
        %v5093 = vadd.f32 0.0, %v5092
        %v5094 = vpop.f32.mrf.mxu0
        %v5095 = vadd.f32 0.0, %v5094
        %5096 = vmatmul.bf16.gmra.mxu0 %v5024
        %v5097 = vpop.f32.mrf.mxu0
        %v5098 = vadd.f32 0.0, %v5097
        %v5099 = vpop.f32.mrf.mxu0
        %v5100 = vadd.f32 0.0, %v5099
        %5101 = vmatmul.bf16.gmra.mxu0 %v5025
        %v5102 = vpop.f32.mrf.mxu0
        %v5103 = vadd.f32 0.0, %v5102
        %v5104 = vpop.f32.mrf.mxu0
        %v5105 = vadd.f32 0.0, %v5104
        %5106 = vdwg.mxu0
        %v5107 = vadd.f32 %v4991, %v5088
        %v5108 = vadd.f32 %v4992, %v5090
        %v5109 = vadd.f32 %v4993, %v5093
        %v5110 = vadd.f32 %v4994, %v5095
        %v5111 = vadd.f32 %v4995, %v5098
        %v5112 = vadd.f32 %v4996, %v5100
        %v5113 = vadd.f32 %v4997, %v5103
        %v5114 = vadd.f32 %v4998, %v5105
        %s5115 = scalar_lea.vmem [#allocation7], 384
        %v5116 = vld [vmem:[%s5115] sm:$0xf]
        %v5117 = vld [vmem:[%s5115 + $0x4] sm:$0xf]
        %v5118 = vld [vmem:[%s5115 + $0x8] sm:$0xf]
        %v5119 = vld [vmem:[%s5115 + $0xc] sm:$0xf]
        %v5120 = vld [vmem:[%s5115 + $0x10] sm:$0xf]
        %v5121 = vld [vmem:[%s5115 + $0x14] sm:$0xf]
        %v5122 = vld [vmem:[%s5115 + $0x18] sm:$0xf]
        %v5123 = vld [vmem:[%s5115 + $0x1c] sm:$0xf]
        %v5124 = vld [vmem:[%s5115 + $0x20] sm:$0xf]
        %v5125 = vld [vmem:[%s5115 + $0x24] sm:$0xf]
        %v5126 = vld [vmem:[%s5115 + $0x28] sm:$0xf]
        %v5127 = vld [vmem:[%s5115 + $0x2c] sm:$0xf]
        %v5128 = vld [vmem:[%s5115 + $0x30] sm:$0xf]
        %v5129 = vld [vmem:[%s5115 + $0x34] sm:$0xf]
        %v5130 = vld [vmem:[%s5115 + $0x38] sm:$0xf]
        %v5131 = vld [vmem:[%s5115 + $0x3c] sm:$0xf]
        %v5133 = vunpack.c.l.b16 %v4254
        %v5134 = vpack.c.b16 %v5133, %v4780
        %v5152 = vunpack.c.l.b16 %v5116
        %v5153 = vunpack.c.l.b16 %v5117
        %v5154 = vunpack.c.l.b16 %v5118
        %v5155 = vunpack.c.l.b16 %v5119
        %v5156 = vunpack.c.l.b16 %v5120
        %v5157 = vunpack.c.l.b16 %v5121
        %v5158 = vunpack.c.l.b16 %v5122
        %v5159 = vunpack.c.l.b16 %v5123
        %v5160 = vunpack.c.l.b16 %v5124
        %v5161 = vunpack.c.l.b16 %v5125
        %v5162 = vunpack.c.l.b16 %v5126
        %v5163 = vunpack.c.l.b16 %v5127
        %v5164 = vunpack.c.l.b16 %v5128
        %v5165 = vunpack.c.l.b16 %v5129
        %v5166 = vunpack.c.l.b16 %v5130
        %v5167 = vunpack.c.l.b16 %v5131
        %v5168 = vpack.c.b16 %v5153, %v5152
        %v5169 = vpack.c.b16 %v5155, %v5154
        %v5170 = vpack.c.b16 %v5157, %v5156
        %v5171 = vpack.c.b16 %v5159, %v5158
        %v5172 = vpack.c.b16 %v5161, %v5160
        %v5173 = vpack.c.b16 %v5163, %v5162
        %v5174 = vpack.c.b16 %v5165, %v5164
        %v5175 = vpack.c.b16 %v5167, %v5166
        %5184 = vmatpush.bf16.msra.mxu0 %v5175
        %5185 = vmatpush.bf16.msra.mxu0 %v5174
        %5186 = vmatpush.bf16.msra.mxu0 %v5173
        %5187 = vmatpush.bf16.msra.mxu0 %v5172
        %5188 = vmatpush.bf16.msra.mxu0 %v5171
        %5189 = vmatpush.bf16.msra.mxu0 %v5170
        %5190 = vmatpush.bf16.msra.mxu0 %v5169
        %5191 = vmatpush.bf16.msra.mxu0 %v5168
        %5192 = vmatmul.bf16.gmra.mxu0 %v4520
        %v5193 = vpop.f32.mrf.mxu0
        %v5194 = vadd.f32 0.0, %v5193
        %v5195 = vpop.f32.mrf.mxu0
        %v5196 = vadd.f32 0.0, %v5195
        %5197 = vmatmul.bf16.gmra.mxu0 %v4521
        %v5198 = vpop.f32.mrf.mxu0
        %v5199 = vadd.f32 0.0, %v5198
        %v5200 = vpop.f32.mrf.mxu0
        %v5201 = vadd.f32 0.0, %v5200
        %5202 = vmatmul.bf16.gmra.mxu0 %v4522
        %v5203 = vpop.f32.mrf.mxu0
        %v5204 = vadd.f32 0.0, %v5203
        %v5205 = vpop.f32.mrf.mxu0
        %v5206 = vadd.f32 0.0, %v5205
        %5207 = vmatmul.bf16.gmra.mxu0 %v5134
        %v5208 = vpop.f32.mrf.mxu0
        %v5209 = vadd.f32 0.0, %v5208
        %v5210 = vpop.f32.mrf.mxu0
        %v5211 = vadd.f32 0.0, %v5210
        %5212 = vdwg.mxu0
        %v5213 = vadd.f32 %v5107, %v5194
        %v5214 = vadd.f32 %v5108, %v5196
        %v5215 = vadd.f32 %v5109, %v5199
        %v5216 = vadd.f32 %v5110, %v5201
        %v5217 = vadd.f32 %v5111, %v5204
        %v5218 = vadd.f32 %v5112, %v5206
        %v5219 = vadd.f32 %v5113, %v5209
        %v5220 = vadd.f32 %v5114, %v5211
        %v5222 = vshrl.u32 %v4254, 16
        %v5224 = vrot.slane %v5222, 4
        %v5225 = vshll.u32 %v4254, 16
        %v5227 = vrot.slane %v5225, 5
        %v5228 = vor.u32 %v5224, %v5227
        %v5229 = vrot.slane %v5228, 4
        %v5231 = vshll.u32 %v4264, 16
        %v5233 = vrot.slane %v5231, 5
        %v5234 = vsel %vm860, %v5229, %v5233
        %s5235 = scalar_lea.vmem [#allocation7], 448
        %v5236 = vld [vmem:[%s5235] sm:$0xf]
        %v5237 = vld [vmem:[%s5235 + $0x4] sm:$0xf]
        %v5238 = vld [vmem:[%s5235 + $0x8] sm:$0xf]
        %v5239 = vld [vmem:[%s5235 + $0xc] sm:$0xf]
        %v5240 = vld [vmem:[%s5235 + $0x10] sm:$0xf]
        %v5241 = vld [vmem:[%s5235 + $0x14] sm:$0xf]
        %v5242 = vld [vmem:[%s5235 + $0x18] sm:$0xf]
        %v5243 = vld [vmem:[%s5235 + $0x1c] sm:$0xf]
        %v5244 = vld [vmem:[%s5235 + $0x20] sm:$0xf]
        %v5245 = vld [vmem:[%s5235 + $0x24] sm:$0xf]
        %v5246 = vld [vmem:[%s5235 + $0x28] sm:$0xf]
        %v5247 = vld [vmem:[%s5235 + $0x2c] sm:$0xf]
        %v5248 = vld [vmem:[%s5235 + $0x30] sm:$0xf]
        %v5249 = vld [vmem:[%s5235 + $0x34] sm:$0xf]
        %v5250 = vld [vmem:[%s5235 + $0x38] sm:$0xf]
        %v5251 = vld [vmem:[%s5235 + $0x3c] sm:$0xf]
        %v5252 = vunpack.c.l.b16 %v5234
        %v5253 = vpack.c.b16 %v5252, %v4905
        %v5271 = vunpack.c.l.b16 %v5236
        %v5272 = vunpack.c.l.b16 %v5237
        %v5273 = vunpack.c.l.b16 %v5238
        %v5274 = vunpack.c.l.b16 %v5239
        %v5275 = vunpack.c.l.b16 %v5240
        %v5276 = vunpack.c.l.b16 %v5241
        %v5277 = vunpack.c.l.b16 %v5242
        %v5278 = vunpack.c.l.b16 %v5243
        %v5279 = vunpack.c.l.b16 %v5244
        %v5280 = vunpack.c.l.b16 %v5245
        %v5281 = vunpack.c.l.b16 %v5246
        %v5282 = vunpack.c.l.b16 %v5247
        %v5283 = vunpack.c.l.b16 %v5248
        %v5284 = vunpack.c.l.b16 %v5249
        %v5285 = vunpack.c.l.b16 %v5250
        %v5286 = vunpack.c.l.b16 %v5251
        %v5287 = vpack.c.b16 %v5272, %v5271
        %v5288 = vpack.c.b16 %v5274, %v5273
        %v5289 = vpack.c.b16 %v5276, %v5275
        %v5290 = vpack.c.b16 %v5278, %v5277
        %v5291 = vpack.c.b16 %v5280, %v5279
        %v5292 = vpack.c.b16 %v5282, %v5281
        %v5293 = vpack.c.b16 %v5284, %v5283
        %v5294 = vpack.c.b16 %v5286, %v5285
        %5303 = vmatpush.bf16.msra.mxu0 %v5294
        %5304 = vmatpush.bf16.msra.mxu0 %v5293
        %5305 = vmatpush.bf16.msra.mxu0 %v5292
        %5306 = vmatpush.bf16.msra.mxu0 %v5291
        %5307 = vmatpush.bf16.msra.mxu0 %v5290
        %5308 = vmatpush.bf16.msra.mxu0 %v5289
        %5309 = vmatpush.bf16.msra.mxu0 %v5288
        %5310 = vmatpush.bf16.msra.mxu0 %v5287
        %5311 = vmatmul.bf16.gmra.mxu0 %v4419
        %v5312 = vpop.f32.mrf.mxu0
        %v5313 = vadd.f32 0.0, %v5312
        %v5314 = vpop.f32.mrf.mxu0
        %v5315 = vadd.f32 0.0, %v5314
        %5316 = vmatmul.bf16.gmra.mxu0 %v4420
        %v5317 = vpop.f32.mrf.mxu0
        %v5318 = vadd.f32 0.0, %v5317
        %v5319 = vpop.f32.mrf.mxu0
        %v5320 = vadd.f32 0.0, %v5319
        %5321 = vmatmul.bf16.gmra.mxu0 %v4421
        %v5322 = vpop.f32.mrf.mxu0
        %v5323 = vadd.f32 0.0, %v5322
        %v5324 = vpop.f32.mrf.mxu0
        %v5325 = vadd.f32 0.0, %v5324
        %5326 = vmatmul.bf16.gmra.mxu0 %v5253
        %v5327 = vpop.f32.mrf.mxu0
        %v5328 = vadd.f32 0.0, %v5327
        %v5329 = vpop.f32.mrf.mxu0
        %v5330 = vadd.f32 0.0, %v5329
        %5331 = vdwg.mxu0
        %v5332 = vadd.f32 %v5213, %v5313
        %v5333 = vadd.f32 %v5214, %v5315
        %v5334 = vadd.f32 %v5215, %v5318
        %v5335 = vadd.f32 %v5216, %v5320
        %v5336 = vadd.f32 %v5217, %v5323
        %v5337 = vadd.f32 %v5218, %v5325
        %v5338 = vadd.f32 %v5219, %v5328
        %v5339 = vadd.f32 %v5220, %v5330
        %v5341 = vrot.slane %v4254, 5
        %v5342 = vrot.slane %v5341, 4
        %v5343 = vrot.slane %v4264, 5
        %v5344 = vsel %vm1714, %v5342, %v5343
        %s5345 = scalar_lea.vmem [#allocation7], 512
        %v5346 = vld [vmem:[%s5345] sm:$0xf]
        %v5347 = vld [vmem:[%s5345 + $0x4] sm:$0xf]
        %v5348 = vld [vmem:[%s5345 + $0x8] sm:$0xf]
        %v5349 = vld [vmem:[%s5345 + $0xc] sm:$0xf]
        %v5350 = vld [vmem:[%s5345 + $0x10] sm:$0xf]
        %v5351 = vld [vmem:[%s5345 + $0x14] sm:$0xf]
        %v5352 = vld [vmem:[%s5345 + $0x18] sm:$0xf]
        %v5353 = vld [vmem:[%s5345 + $0x1c] sm:$0xf]
        %v5354 = vld [vmem:[%s5345 + $0x20] sm:$0xf]
        %v5355 = vld [vmem:[%s5345 + $0x24] sm:$0xf]
        %v5356 = vld [vmem:[%s5345 + $0x28] sm:$0xf]
        %v5357 = vld [vmem:[%s5345 + $0x2c] sm:$0xf]
        %v5358 = vld [vmem:[%s5345 + $0x30] sm:$0xf]
        %v5359 = vld [vmem:[%s5345 + $0x34] sm:$0xf]
        %v5360 = vld [vmem:[%s5345 + $0x38] sm:$0xf]
        %v5361 = vld [vmem:[%s5345 + $0x3c] sm:$0xf]
        %v5362 = vunpack.c.l.b16 %v5344
        %v5363 = vpack.c.b16 %v5362, %v5021
        %v5381 = vunpack.c.l.b16 %v5346
        %v5382 = vunpack.c.l.b16 %v5347
        %v5383 = vunpack.c.l.b16 %v5348
        %v5384 = vunpack.c.l.b16 %v5349
        %v5385 = vunpack.c.l.b16 %v5350
        %v5386 = vunpack.c.l.b16 %v5351
        %v5387 = vunpack.c.l.b16 %v5352
        %v5388 = vunpack.c.l.b16 %v5353
        %v5389 = vunpack.c.l.b16 %v5354
        %v5390 = vunpack.c.l.b16 %v5355
        %v5391 = vunpack.c.l.b16 %v5356
        %v5392 = vunpack.c.l.b16 %v5357
        %v5393 = vunpack.c.l.b16 %v5358
        %v5394 = vunpack.c.l.b16 %v5359
        %v5395 = vunpack.c.l.b16 %v5360
        %v5396 = vunpack.c.l.b16 %v5361
        %v5397 = vpack.c.b16 %v5382, %v5381
        %v5398 = vpack.c.b16 %v5384, %v5383
        %v5399 = vpack.c.b16 %v5386, %v5385
        %v5400 = vpack.c.b16 %v5388, %v5387
        %v5401 = vpack.c.b16 %v5390, %v5389
        %v5402 = vpack.c.b16 %v5392, %v5391
        %v5403 = vpack.c.b16 %v5394, %v5393
        %v5404 = vpack.c.b16 %v5396, %v5395
        %5413 = vmatpush.bf16.msra.mxu0 %v5404
        %5414 = vmatpush.bf16.msra.mxu0 %v5403
        %5415 = vmatpush.bf16.msra.mxu0 %v5402
        %5416 = vmatpush.bf16.msra.mxu0 %v5401
        %5417 = vmatpush.bf16.msra.mxu0 %v5400
        %5418 = vmatpush.bf16.msra.mxu0 %v5399
        %5419 = vmatpush.bf16.msra.mxu0 %v5398
        %5420 = vmatpush.bf16.msra.mxu0 %v5397
        %5421 = vmatmul.bf16.gmra.mxu0 %v4670
        %v5422 = vpop.f32.mrf.mxu0
        %v5423 = vadd.f32 0.0, %v5422
        %v5424 = vpop.f32.mrf.mxu0
        %v5425 = vadd.f32 0.0, %v5424
        %5426 = vmatmul.bf16.gmra.mxu0 %v4671
        %v5427 = vpop.f32.mrf.mxu0
        %v5428 = vadd.f32 0.0, %v5427
        %v5429 = vpop.f32.mrf.mxu0
        %v5430 = vadd.f32 0.0, %v5429
        %5431 = vmatmul.bf16.gmra.mxu0 %v4672
        %v5432 = vpop.f32.mrf.mxu0
        %v5433 = vadd.f32 0.0, %v5432
        %v5434 = vpop.f32.mrf.mxu0
        %v5435 = vadd.f32 0.0, %v5434
        %5436 = vmatmul.bf16.gmra.mxu0 %v5363
        %v5437 = vpop.f32.mrf.mxu0
        %v5438 = vadd.f32 0.0, %v5437
        %v5439 = vpop.f32.mrf.mxu0
        %v5440 = vadd.f32 0.0, %v5439
        %5441 = vdwg.mxu0
        %v5442 = vadd.f32 %v5332, %v5423
        %v5443 = vadd.f32 %v5333, %v5425
        %v5444 = vadd.f32 %v5334, %v5428
        %v5445 = vadd.f32 %v5335, %v5430
        %v5446 = vadd.f32 %v5336, %v5433
        %v5447 = vadd.f32 %v5337, %v5435
        %v5448 = vadd.f32 %v5338, %v5438
        %v5449 = vadd.f32 %v5339, %v5440
        %v5450 = vld [vmem:[%s5] sm:$0x1]
        %v5452 = vperm.slane %v5450, 0
        %v5454 = vmul.f32 %v5442, %v5452
        %v5455 = vmul.f32 %v5443, %v5452
        %v5456 = vmul.f32 %v5444, %v5452
        %v5457 = vmul.f32 %v5445, %v5452
        %v5458 = vmul.f32 %v5446, %v5452
        %v5459 = vmul.f32 %v5447, %v5452
        %v5460 = vmul.f32 %v5448, %v5452
        %v5461 = vmul.f32 %v5449, %v5452
        %v5462 = vld [vmem:[%s6] sm:$0x1]
        %v5464 = vperm.slane %v5462, 0
        %v5466 = vadd.f32 %v5454, %v5464
        %v5467 = vadd.f32 %v5455, %v5464
        %v5468 = vadd.f32 %v5456, %v5464
        %v5469 = vadd.f32 %v5457, %v5464
        %v5470 = vadd.f32 %v5458, %v5464
        %v5471 = vadd.f32 %v5459, %v5464
        %v5472 = vadd.f32 %v5460, %v5464
        %v5473 = vadd.f32 %v5461, %v5464
        %v5474 = vmax.f32 %v5466, 0.0
        %v5475 = vmax.f32 %v5467, 0.0
        %v5476 = vmax.f32 %v5468, 0.0
        %v5477 = vmax.f32 %v5469, 0.0
        %v5478 = vmax.f32 %v5470, 0.0
        %v5479 = vmax.f32 %v5471, 0.0
        %v5480 = vmax.f32 %v5472, 0.0
        %v5481 = vmax.f32 %v5473, 0.0
        %v5490 = vrot.slane %v5474, 2
        %v5491 = vrot.slane %v5474, 4
        %v5492 = vrot.slane %v5474, 6
        %v5493 = vrot.slane %v5475, 2
        %v5494 = vrot.slane %v5475, 4
        %v5495 = vrot.slane %v5475, 6
        %v5496 = vrot.slane %v5476, 2
        %v5497 = vrot.slane %v5476, 4
        %v5498 = vrot.slane %v5476, 6
        %v5499 = vrot.slane %v5477, 2
        %v5500 = vrot.slane %v5477, 4
        %v5501 = vrot.slane %v5477, 6
        %v5502 = vrot.slane %v5478, 2
        %v5503 = vrot.slane %v5478, 4
        %v5504 = vrot.slane %v5478, 6
        %v5505 = vrot.slane %v5479, 2
        %v5506 = vrot.slane %v5479, 4
        %v5507 = vrot.slane %v5479, 6
        %v5508 = vrot.slane %v5480, 2
        %v5509 = vrot.slane %v5480, 4
        %v5510 = vrot.slane %v5480, 6
        %v5511 = vrot.slane %v5481, 2
        %v5512 = vrot.slane %v5481, 4
        %v5513 = vrot.slane %v5481, 6
        %v5538 = vmax.f32 %v5474, %v5475
        %v5539 = vmax.f32 %v5490, %v5493
        %v5540 = vmax.f32 %v5491, %v5494
        %v5541 = vmax.f32 %v5492, %v5495
        %v5542 = vmax.f32 %v5476, %v5477
        %v5543 = vmax.f32 %v5496, %v5499
        %v5544 = vmax.f32 %v5497, %v5500
        %v5545 = vmax.f32 %v5498, %v5501
        %v5546 = vmax.f32 %v5478, %v5479
        %v5547 = vmax.f32 %v5502, %v5505
        %v5548 = vmax.f32 %v5503, %v5506
        %v5549 = vmax.f32 %v5504, %v5507
        %v5550 = vmax.f32 %v5480, %v5481
        %v5551 = vmax.f32 %v5508, %v5511
        %v5552 = vmax.f32 %v5509, %v5512
        %v5553 = vmax.f32 %v5510, %v5513
        %v5570 = vrot.slane %v5538, 7
        %v5571 = vrot.slane %v5570, 2
        %v5572 = vrot.slane %v5539, 7
        %v5573 = vrot.slane %v5572, 2
        %v5574 = vrot.slane %v5540, 7
        %v5575 = vrot.slane %v5574, 2
        %v5576 = vrot.slane %v5541, 7
        %v5577 = vrot.slane %v5576, 2
        %v5578 = vrot.slane %v5542, 7
        %v5579 = vrot.slane %v5578, 2
        %v5580 = vrot.slane %v5543, 7
        %v5581 = vrot.slane %v5580, 2
        %v5582 = vrot.slane %v5544, 7
        %v5583 = vrot.slane %v5582, 2
        %v5584 = vrot.slane %v5545, 7
        %v5585 = vrot.slane %v5584, 2
        %v5586 = vrot.slane %v5546, 7
        %v5587 = vrot.slane %v5586, 2
        %v5588 = vrot.slane %v5547, 7
        %v5589 = vrot.slane %v5588, 2
        %v5590 = vrot.slane %v5548, 7
        %v5591 = vrot.slane %v5590, 2
        %v5592 = vrot.slane %v5549, 7
        %v5593 = vrot.slane %v5592, 2
        %v5594 = vrot.slane %v5550, 7
        %v5595 = vrot.slane %v5594, 2
        %v5596 = vrot.slane %v5551, 7
        %v5597 = vrot.slane %v5596, 2
        %v5598 = vrot.slane %v5552, 7
        %v5599 = vrot.slane %v5598, 2
        %v5600 = vrot.slane %v5553, 7
        %v5601 = vrot.slane %v5600, 2
        %v5618 = vmax.f32 %v5538, %v5571
        %v5619 = vmax.f32 %v5539, %v5573
        %v5620 = vmax.f32 %v5540, %v5575
        %v5621 = vmax.f32 %v5541, %v5577
        %v5622 = vmax.f32 %v5542, %v5579
        %v5623 = vmax.f32 %v5543, %v5581
        %v5624 = vmax.f32 %v5544, %v5583
        %v5625 = vmax.f32 %v5545, %v5585
        %v5626 = vmax.f32 %v5546, %v5587
        %v5627 = vmax.f32 %v5547, %v5589
        %v5628 = vmax.f32 %v5548, %v5591
        %v5629 = vmax.f32 %v5549, %v5593
        %v5630 = vmax.f32 %v5550, %v5595
        %v5631 = vmax.f32 %v5551, %v5597
        %v5632 = vmax.f32 %v5552, %v5599
        %v5633 = vmax.f32 %v5553, %v5601
        %5634 = vst [vmem:[#allocation4] sm:$0x3f] 0.0
        %5635 = vst [vmem:[#allocation4 + $0x8] sm:$0x3f] 0.0
        %5636 = vst [vmem:[#allocation4 + $0x10] sm:$0x3f] 0.0
        %5637 = vst [vmem:[#allocation4 + $0x18] sm:$0x3f] 0.0
        %5638 = vst [vmem:[#allocation4 + $0x20] sm:$0x3f] 0.0
        %5639 = vst [vmem:[#allocation4 + $0x28] sm:$0x3f] 0.0
        %v5656 = vperm.slane %v5618, 0
        %v5657 = vperm.slane %v5619, 0
        %v5658 = vperm.slane %v5620, 0
        %v5659 = vperm.slane %v5621, 0
        %v5660 = vperm.slane %v5622, 0
        %v5661 = vperm.slane %v5623, 0
        %v5662 = vperm.slane %v5624, 0
        %v5663 = vperm.slane %v5625, 0
        %v5664 = vperm.slane %v5626, 0
        %v5665 = vperm.slane %v5627, 0
        %v5666 = vperm.slane %v5628, 0
        %v5667 = vperm.slane %v5629, 0
        %v5668 = vperm.slane %v5630, 0
        %v5669 = vperm.slane %v5631, 0
        %v5670 = vperm.slane %v5632, 0
        %v5671 = vperm.slane %v5633, 0
        %v5672 = vsel %vm4145, %v5657, %v5656
        %v5673 = vsel %vm4147, %v5658, %v5672
        %v5674 = vsel %vm4149, %v5659, %v5673
        %v5675 = vsel %vm4145, %v5661, %v5660
        %v5676 = vsel %vm4147, %v5662, %v5675
        %v5677 = vsel %vm4149, %v5663, %v5676
        %v5678 = vsel %vm4145, %v5665, %v5664
        %v5679 = vsel %vm4147, %v5666, %v5678
        %v5680 = vsel %vm4149, %v5667, %v5679
        %v5681 = vsel %vm4145, %v5669, %v5668
        %v5682 = vsel %vm4147, %v5670, %v5681
        %v5683 = vsel %vm4149, %v5671, %v5682
        %s5688 = scalar_lea.vmem [#allocation4], 8
        %5689 = vst [vmem:[%s5688 + $0x1] sm:$0xf] %v5674
        %5690 = vst [vmem:[%s5688 + $0x9] sm:$0xf] %v5677
        %5691 = vst [vmem:[%s5688 + $0x11] sm:$0xf] %v5680
        %5692 = vst [vmem:[%s5688 + $0x19] sm:$0xf] %v5683
        %v5693 = vld [vmem:[#allocation4] sm:$0x3f]
        %v5694 = vld [vmem:[#allocation4 + $0x8] sm:$0x3f]
        %v5695 = vld [vmem:[#allocation4 + $0x10] sm:$0x3f]
        %v5696 = vld [vmem:[#allocation4 + $0x18] sm:$0x3f]
        %v5697 = vld [vmem:[#allocation4 + $0x20] sm:$0x3f]
        %v5698 = vld [vmem:[#allocation4 + $0x28] sm:$0x3f]
        %v5699 = vpack.c.bf16 %v5693, %v5693
        %v5700 = vpack.c.bf16 %v5694, %v5694
        %v5701 = vpack.c.bf16 %v5695, %v5695
        %v5702 = vpack.c.bf16 %v5696, %v5696
        %v5703 = vpack.c.bf16 %v5697, %v5697
        %v5704 = vpack.c.bf16 %v5698, %v5698
        %v5705 = vld [vmem:[#allocation9] sm:$0xf]
        %v5706 = vld [vmem:[#allocation9 + $0x4] sm:$0xf]
        %v5707 = vld [vmem:[#allocation9 + $0x8] sm:$0xf]
        %v5708 = vld [vmem:[#allocation9 + $0xc] sm:$0xf]
        %v5709 = vld [vmem:[#allocation9 + $0x10] sm:$0xf]
        %v5710 = vld [vmem:[#allocation9 + $0x14] sm:$0xf]
        %v5711 = vld [vmem:[#allocation9 + $0x18] sm:$0xf]
        %v5712 = vld [vmem:[#allocation9 + $0x1c] sm:$0xf]
        %v5713 = vld [vmem:[#allocation9 + $0x20] sm:$0xf]
        %v5714 = vld [vmem:[#allocation9 + $0x24] sm:$0xf]
        %v5715 = vld [vmem:[#allocation9 + $0x28] sm:$0xf]
        %v5716 = vld [vmem:[#allocation9 + $0x2c] sm:$0xf]
        %v5717 = vld [vmem:[#allocation9 + $0x30] sm:$0xf]
        %v5718 = vld [vmem:[#allocation9 + $0x34] sm:$0xf]
        %v5719 = vld [vmem:[#allocation9 + $0x38] sm:$0xf]
        %v5720 = vld [vmem:[#allocation9 + $0x3c] sm:$0xf]
        %v5725 = vrot.slane %v5699, 2
        %v5726 = vrot.slane %v5700, 2
        %v5727 = vrot.slane %v5701, 2
        %v5728 = vrot.slane %v5702, 2
        %vm5729 = vcmask 1041408
        %v5732 = vsel %vm5729, %v5699, %v5725
        %vm5733 = vcmask 1043458
        %v5734 = vsel %vm5733, %v5699, %v5725
        %v5736 = vrot.slane %v5734, 2
        %v5739 = vsel %vm5729, %v5700, %v5726
        %v5740 = vsel %vm5733, %v5700, %v5726
        %v5742 = vrot.slane %v5740, 2
        %v5745 = vsel %vm5729, %v5701, %v5727
        %v5746 = vsel %vm5733, %v5701, %v5727
        %v5748 = vrot.slane %v5746, 2
        %v5751 = vsel %vm5729, %v5702, %v5728
        %v5752 = vsel %vm5733, %v5702, %v5728
        %v5754 = vrot.slane %v5752, 2
        %vm5755 = vsmask.f32 1280
        %vm5756 = vsmask.f32 3336
        %vm5757 = vmor %vm5755, %vm5756
        %vm5758 = vsmask.f32 5392
        %vm5759 = vmor %vm5757, %vm5758
        %vm5760 = vsmask.f32 7448
        %vm5761 = vmor %vm5759, %vm5760
        %v5762 = vshrl.u32 %v5732, 16
        %v5764 = vrot.slane %v5762, 6
        %v5765 = vshll.u32 %v5732, 16
        %v5767 = vrot.slane %v5765, 7
        %v5768 = vor.u32 %v5764, %v5767
        %v5769 = vrot.slane %v5768, 2
        %v5771 = vshll.u32 %v5736, 16
        %v5773 = vrot.slane %v5771, 7
        %v5774 = vsel %vm5761, %v5769, %v5773
        %v5775 = vshrl.u32 %v5739, 16
        %v5777 = vrot.slane %v5775, 6
        %v5778 = vshll.u32 %v5739, 16
        %v5780 = vrot.slane %v5778, 7
        %v5781 = vor.u32 %v5777, %v5780
        %v5782 = vrot.slane %v5781, 2
        %v5784 = vshll.u32 %v5742, 16
        %v5786 = vrot.slane %v5784, 7
        %v5787 = vsel %vm5761, %v5782, %v5786
        %v5788 = vshrl.u32 %v5745, 16
        %v5790 = vrot.slane %v5788, 6
        %v5791 = vshll.u32 %v5745, 16
        %v5793 = vrot.slane %v5791, 7
        %v5794 = vor.u32 %v5790, %v5793
        %v5795 = vrot.slane %v5794, 2
        %v5797 = vshll.u32 %v5748, 16
        %v5799 = vrot.slane %v5797, 7
        %v5800 = vsel %vm5761, %v5795, %v5799
        %v5801 = vshrl.u32 %v5751, 16
        %v5803 = vrot.slane %v5801, 6
        %v5804 = vshll.u32 %v5751, 16
        %v5806 = vrot.slane %v5804, 7
        %v5807 = vor.u32 %v5803, %v5806
        %v5808 = vrot.slane %v5807, 2
        %v5810 = vshll.u32 %v5754, 16
        %v5812 = vrot.slane %v5810, 7
        %v5813 = vsel %vm5761, %v5808, %v5812
        %s5814 = scalar_lea.vmem [#allocation9], 64
        %v5815 = vld [vmem:[%s5814] sm:$0xf]
        %v5816 = vld [vmem:[%s5814 + $0x4] sm:$0xf]
        %v5817 = vld [vmem:[%s5814 + $0x8] sm:$0xf]
        %v5818 = vld [vmem:[%s5814 + $0xc] sm:$0xf]
        %v5819 = vld [vmem:[%s5814 + $0x10] sm:$0xf]
        %v5820 = vld [vmem:[%s5814 + $0x14] sm:$0xf]
        %v5821 = vld [vmem:[%s5814 + $0x18] sm:$0xf]
        %v5822 = vld [vmem:[%s5814 + $0x1c] sm:$0xf]
        %v5823 = vld [vmem:[%s5814 + $0x20] sm:$0xf]
        %v5824 = vld [vmem:[%s5814 + $0x24] sm:$0xf]
        %v5825 = vld [vmem:[%s5814 + $0x28] sm:$0xf]
        %v5826 = vld [vmem:[%s5814 + $0x2c] sm:$0xf]
        %v5827 = vld [vmem:[%s5814 + $0x30] sm:$0xf]
        %v5828 = vld [vmem:[%s5814 + $0x34] sm:$0xf]
        %v5829 = vld [vmem:[%s5814 + $0x38] sm:$0xf]
        %v5830 = vld [vmem:[%s5814 + $0x3c] sm:$0xf]
        %5832 = vst [vmem:[#allocation1] ss:$4 sm:$0xff] %v5774
        %s5834 = scalar_lea.vmem [#allocation1], 1
        %5835 = vst [vmem:[%s5834] ss:$4 sm:$0xff] %v5787
        %s5837 = scalar_lea.vmem [#allocation1], 2
        %5838 = vst [vmem:[%s5837] ss:$4 sm:$0xff] %v5800
        %s5840 = scalar_lea.vmem [#allocation1], 3
        %5841 = vst [vmem:[%s5840] ss:$4 sm:$0xff] %v5813
        %v5842 = vld.sshfl [vmem:[#allocation1] sm:$0xff pattern:$0x73625140]
        %v5860 = vunpack.c.l.b16 %v5815
        %v5861 = vunpack.c.l.b16 %v5816
        %v5862 = vunpack.c.l.b16 %v5817
        %v5863 = vunpack.c.l.b16 %v5818
        %v5864 = vunpack.c.l.b16 %v5819
        %v5865 = vunpack.c.l.b16 %v5820
        %v5866 = vunpack.c.l.b16 %v5821
        %v5867 = vunpack.c.l.b16 %v5822
        %v5868 = vunpack.c.l.b16 %v5823
        %v5869 = vunpack.c.l.b16 %v5824
        %v5870 = vunpack.c.l.b16 %v5825
        %v5871 = vunpack.c.l.b16 %v5826
        %v5872 = vunpack.c.l.b16 %v5827
        %v5873 = vunpack.c.l.b16 %v5828
        %v5874 = vunpack.c.l.b16 %v5829
        %v5875 = vunpack.c.l.b16 %v5830
        %v5876 = vpack.c.b16 %v5861, %v5860
        %v5877 = vpack.c.b16 %v5863, %v5862
        %v5878 = vpack.c.b16 %v5865, %v5864
        %v5879 = vpack.c.b16 %v5867, %v5866
        %v5880 = vpack.c.b16 %v5869, %v5868
        %v5881 = vpack.c.b16 %v5871, %v5870
        %v5882 = vpack.c.b16 %v5873, %v5872
        %v5883 = vpack.c.b16 %v5875, %v5874
        %5892 = vmatpush.bf16.msra.mxu0 %v5883
        %5893 = vmatpush.bf16.msra.mxu0 %v5882
        %5894 = vmatpush.bf16.msra.mxu0 %v5881
        %5895 = vmatpush.bf16.msra.mxu0 %v5880
        %5896 = vmatpush.bf16.msra.mxu0 %v5879
        %5897 = vmatpush.bf16.msra.mxu0 %v5878
        %5898 = vmatpush.bf16.msra.mxu0 %v5877
        %5899 = vmatpush.bf16.msra.mxu0 %v5876
        %5900 = vmatmul.bf16.gmra.mxu0 %v5842
        %v5901 = vpop.f32.mrf.mxu0
        %v5902 = vadd.f32 0.0, %v5901
        %v5903 = vpop.f32.mrf.mxu0
        %v5904 = vadd.f32 0.0, %v5903
        %5905 = vdwg.mxu0
        %5906 = vst [vmem:[#allocation1] ss:$4 sm:$0xff] %v5699
        %s5907 = scalar_lea.vmem [#allocation1], 1
        %5908 = vst [vmem:[%s5907] ss:$4 sm:$0xff] %v5700
        %s5909 = scalar_lea.vmem [#allocation1], 2
        %5910 = vst [vmem:[%s5909] ss:$4 sm:$0xff] %v5701
        %s5911 = scalar_lea.vmem [#allocation1], 3
        %5912 = vst [vmem:[%s5911] ss:$4 sm:$0xff] %v5702
        %v5913 = vld.sshfl [vmem:[#allocation1] sm:$0xff pattern:$0x73625140]
        %v5931 = vunpack.c.l.b16 %v5705
        %v5932 = vunpack.c.l.b16 %v5706
        %v5933 = vunpack.c.l.b16 %v5707
        %v5934 = vunpack.c.l.b16 %v5708
        %v5935 = vunpack.c.l.b16 %v5709
        %v5936 = vunpack.c.l.b16 %v5710
        %v5937 = vunpack.c.l.b16 %v5711
        %v5938 = vunpack.c.l.b16 %v5712
        %v5939 = vunpack.c.l.b16 %v5713
        %v5940 = vunpack.c.l.b16 %v5714
        %v5941 = vunpack.c.l.b16 %v5715
        %v5942 = vunpack.c.l.b16 %v5716
        %v5943 = vunpack.c.l.b16 %v5717
        %v5944 = vunpack.c.l.b16 %v5718
        %v5945 = vunpack.c.l.b16 %v5719
        %v5946 = vunpack.c.l.b16 %v5720
        %v5947 = vpack.c.b16 %v5932, %v5931
        %v5948 = vpack.c.b16 %v5934, %v5933
        %v5949 = vpack.c.b16 %v5936, %v5935
        %v5950 = vpack.c.b16 %v5938, %v5937
        %v5951 = vpack.c.b16 %v5940, %v5939
        %v5952 = vpack.c.b16 %v5942, %v5941
        %v5953 = vpack.c.b16 %v5944, %v5943
        %v5954 = vpack.c.b16 %v5946, %v5945
        %5963 = vmatpush.bf16.msra.mxu0 %v5954
        %5964 = vmatpush.bf16.msra.mxu0 %v5953
        %5965 = vmatpush.bf16.msra.mxu0 %v5952
        %5966 = vmatpush.bf16.msra.mxu0 %v5951
        %5967 = vmatpush.bf16.msra.mxu0 %v5950
        %5968 = vmatpush.bf16.msra.mxu0 %v5949
        %5969 = vmatpush.bf16.msra.mxu0 %v5948
        %5970 = vmatpush.bf16.msra.mxu0 %v5947
        %5971 = vmatmul.bf16.gmra.mxu0 %v5913
        %v5972 = vpop.f32.mrf.mxu0
        %v5973 = vadd.f32 %v5902, %v5972
        %v5974 = vpop.f32.mrf.mxu0
        %v5975 = vadd.f32 %v5904, %v5974
        %5976 = vdwg.mxu0
        %vm5981 = vcmask 1040384
        %vm5982 = vcmask 1042434
        %vm5983 = vmor %vm5981, %vm5982
        %vm5984 = vcmask 1044484
        %vm5985 = vmor %vm5983, %vm5984
        %vm5986 = vcmask 1046534
        %vm5987 = vmor %vm5985, %vm5986
        %v5988 = vrot.slane %v5732, 7
        %v5989 = vrot.slane %v5988, 2
        %v5990 = vrot.slane %v5736, 7
        %v5991 = vsel %vm5987, %v5989, %v5990
        %v5992 = vrot.slane %v5739, 7
        %v5993 = vrot.slane %v5992, 2
        %v5994 = vrot.slane %v5742, 7
        %v5995 = vsel %vm5987, %v5993, %v5994
        %v5996 = vrot.slane %v5745, 7
        %v5997 = vrot.slane %v5996, 2
        %v5998 = vrot.slane %v5748, 7
        %v5999 = vsel %vm5987, %v5997, %v5998
        %v6000 = vrot.slane %v5751, 7
        %v6001 = vrot.slane %v6000, 2
        %v6002 = vrot.slane %v5754, 7
        %v6003 = vsel %vm5987, %v6001, %v6002
        %s6004 = scalar_lea.vmem [#allocation9], 128
        %v6005 = vld [vmem:[%s6004] sm:$0xf]
        %v6006 = vld [vmem:[%s6004 + $0x4] sm:$0xf]
        %v6007 = vld [vmem:[%s6004 + $0x8] sm:$0xf]
        %v6008 = vld [vmem:[%s6004 + $0xc] sm:$0xf]
        %v6009 = vld [vmem:[%s6004 + $0x10] sm:$0xf]
        %v6010 = vld [vmem:[%s6004 + $0x14] sm:$0xf]
        %v6011 = vld [vmem:[%s6004 + $0x18] sm:$0xf]
        %v6012 = vld [vmem:[%s6004 + $0x1c] sm:$0xf]
        %v6013 = vld [vmem:[%s6004 + $0x20] sm:$0xf]
        %v6014 = vld [vmem:[%s6004 + $0x24] sm:$0xf]
        %v6015 = vld [vmem:[%s6004 + $0x28] sm:$0xf]
        %v6016 = vld [vmem:[%s6004 + $0x2c] sm:$0xf]
        %v6017 = vld [vmem:[%s6004 + $0x30] sm:$0xf]
        %v6018 = vld [vmem:[%s6004 + $0x34] sm:$0xf]
        %v6019 = vld [vmem:[%s6004 + $0x38] sm:$0xf]
        %v6020 = vld [vmem:[%s6004 + $0x3c] sm:$0xf]
        %6022 = vst [vmem:[#allocation1] ss:$4 sm:$0xff] %v5991
        %s6024 = scalar_lea.vmem [#allocation1], 1
        %6025 = vst [vmem:[%s6024] ss:$4 sm:$0xff] %v5995
        %s6027 = scalar_lea.vmem [#allocation1], 2
        %6028 = vst [vmem:[%s6027] ss:$4 sm:$0xff] %v5999
        %s6030 = scalar_lea.vmem [#allocation1], 3
        %6031 = vst [vmem:[%s6030] ss:$4 sm:$0xff] %v6003
        %v6032 = vld.sshfl [vmem:[#allocation1] sm:$0xff pattern:$0x73625140]
        %v6050 = vunpack.c.l.b16 %v6005
        %v6051 = vunpack.c.l.b16 %v6006
        %v6052 = vunpack.c.l.b16 %v6007
        %v6053 = vunpack.c.l.b16 %v6008
        %v6054 = vunpack.c.l.b16 %v6009
        %v6055 = vunpack.c.l.b16 %v6010
        %v6056 = vunpack.c.l.b16 %v6011
        %v6057 = vunpack.c.l.b16 %v6012
        %v6058 = vunpack.c.l.b16 %v6013
        %v6059 = vunpack.c.l.b16 %v6014
        %v6060 = vunpack.c.l.b16 %v6015
        %v6061 = vunpack.c.l.b16 %v6016
        %v6062 = vunpack.c.l.b16 %v6017
        %v6063 = vunpack.c.l.b16 %v6018
        %v6064 = vunpack.c.l.b16 %v6019
        %v6065 = vunpack.c.l.b16 %v6020
        %v6066 = vpack.c.b16 %v6051, %v6050
        %v6067 = vpack.c.b16 %v6053, %v6052
        %v6068 = vpack.c.b16 %v6055, %v6054
        %v6069 = vpack.c.b16 %v6057, %v6056
        %v6070 = vpack.c.b16 %v6059, %v6058
        %v6071 = vpack.c.b16 %v6061, %v6060
        %v6072 = vpack.c.b16 %v6063, %v6062
        %v6073 = vpack.c.b16 %v6065, %v6064
        %6082 = vmatpush.bf16.msra.mxu0 %v6073
        %6083 = vmatpush.bf16.msra.mxu0 %v6072
        %6084 = vmatpush.bf16.msra.mxu0 %v6071
        %6085 = vmatpush.bf16.msra.mxu0 %v6070
        %6086 = vmatpush.bf16.msra.mxu0 %v6069
        %6087 = vmatpush.bf16.msra.mxu0 %v6068
        %6088 = vmatpush.bf16.msra.mxu0 %v6067
        %6089 = vmatpush.bf16.msra.mxu0 %v6066
        %6090 = vmatmul.bf16.gmra.mxu0 %v6032
        %v6091 = vpop.f32.mrf.mxu0
        %v6092 = vadd.f32 0.0, %v6091
        %v6093 = vpop.f32.mrf.mxu0
        %v6094 = vadd.f32 0.0, %v6093
        %6095 = vdwg.mxu0
        %v6096 = vadd.f32 %v5973, %v6092
        %v6097 = vadd.f32 %v5975, %v6094
        %s6098 = scalar_lea.vmem [#allocation9], 192
        %v6099 = vld [vmem:[%s6098] sm:$0xf]
        %v6100 = vld [vmem:[%s6098 + $0x4] sm:$0xf]
        %v6101 = vld [vmem:[%s6098 + $0x8] sm:$0xf]
        %v6102 = vld [vmem:[%s6098 + $0xc] sm:$0xf]
        %v6103 = vld [vmem:[%s6098 + $0x10] sm:$0xf]
        %v6104 = vld [vmem:[%s6098 + $0x14] sm:$0xf]
        %v6105 = vld [vmem:[%s6098 + $0x18] sm:$0xf]
        %v6106 = vld [vmem:[%s6098 + $0x1c] sm:$0xf]
        %v6107 = vld [vmem:[%s6098 + $0x20] sm:$0xf]
        %v6108 = vld [vmem:[%s6098 + $0x24] sm:$0xf]
        %v6109 = vld [vmem:[%s6098 + $0x28] sm:$0xf]
        %v6110 = vld [vmem:[%s6098 + $0x2c] sm:$0xf]
        %v6111 = vld [vmem:[%s6098 + $0x30] sm:$0xf]
        %v6112 = vld [vmem:[%s6098 + $0x34] sm:$0xf]
        %v6113 = vld [vmem:[%s6098 + $0x38] sm:$0xf]
        %v6114 = vld [vmem:[%s6098 + $0x3c] sm:$0xf]
        %6115 = vst [vmem:[#allocation1] ss:$4 sm:$0xff] %v5700
        %s6116 = scalar_lea.vmem [#allocation1], 1
        %6117 = vst [vmem:[%s6116] ss:$4 sm:$0xff] %v5701
        %s6118 = scalar_lea.vmem [#allocation1], 2
        %6119 = vst [vmem:[%s6118] ss:$4 sm:$0xff] %v5702
        %s6121 = scalar_lea.vmem [#allocation1], 3
        %6122 = vst [vmem:[%s6121] ss:$4 sm:$0xff] %v5703
        %v6123 = vld.sshfl [vmem:[#allocation1] sm:$0xff pattern:$0x73625140]
        %v6141 = vunpack.c.l.b16 %v6099
        %v6142 = vunpack.c.l.b16 %v6100
        %v6143 = vunpack.c.l.b16 %v6101
        %v6144 = vunpack.c.l.b16 %v6102
        %v6145 = vunpack.c.l.b16 %v6103
        %v6146 = vunpack.c.l.b16 %v6104
        %v6147 = vunpack.c.l.b16 %v6105
        %v6148 = vunpack.c.l.b16 %v6106
        %v6149 = vunpack.c.l.b16 %v6107
        %v6150 = vunpack.c.l.b16 %v6108
        %v6151 = vunpack.c.l.b16 %v6109
        %v6152 = vunpack.c.l.b16 %v6110
        %v6153 = vunpack.c.l.b16 %v6111
        %v6154 = vunpack.c.l.b16 %v6112
        %v6155 = vunpack.c.l.b16 %v6113
        %v6156 = vunpack.c.l.b16 %v6114
        %v6157 = vpack.c.b16 %v6142, %v6141
        %v6158 = vpack.c.b16 %v6144, %v6143
        %v6159 = vpack.c.b16 %v6146, %v6145
        %v6160 = vpack.c.b16 %v6148, %v6147
        %v6161 = vpack.c.b16 %v6150, %v6149
        %v6162 = vpack.c.b16 %v6152, %v6151
        %v6163 = vpack.c.b16 %v6154, %v6153
        %v6164 = vpack.c.b16 %v6156, %v6155
        %6173 = vmatpush.bf16.msra.mxu0 %v6164
        %6174 = vmatpush.bf16.msra.mxu0 %v6163
        %6175 = vmatpush.bf16.msra.mxu0 %v6162
        %6176 = vmatpush.bf16.msra.mxu0 %v6161
        %6177 = vmatpush.bf16.msra.mxu0 %v6160
        %6178 = vmatpush.bf16.msra.mxu0 %v6159
        %6179 = vmatpush.bf16.msra.mxu0 %v6158
        %6180 = vmatpush.bf16.msra.mxu0 %v6157
        %6181 = vmatmul.bf16.gmra.mxu0 %v6123
        %v6182 = vpop.f32.mrf.mxu0
        %v6183 = vadd.f32 0.0, %v6182
        %v6184 = vpop.f32.mrf.mxu0
        %v6185 = vadd.f32 0.0, %v6184
        %6186 = vdwg.mxu0
        %v6187 = vadd.f32 %v6096, %v6183
        %v6188 = vadd.f32 %v6097, %v6185
        %v6190 = vrot.slane %v5703, 2
        %v6192 = vsel %vm5729, %v5703, %v6190
        %v6193 = vsel %vm5733, %v5703, %v6190
        %v6195 = vrot.slane %v6193, 2
        %v6196 = vshrl.u32 %v6192, 16
        %v6198 = vrot.slane %v6196, 6
        %v6199 = vshll.u32 %v6192, 16
        %v6201 = vrot.slane %v6199, 7
        %v6202 = vor.u32 %v6198, %v6201
        %v6203 = vrot.slane %v6202, 2
        %v6205 = vshll.u32 %v6195, 16
        %v6207 = vrot.slane %v6205, 7
        %v6208 = vsel %vm5761, %v6203, %v6207
        %s6209 = scalar_lea.vmem [#allocation9], 256
        %v6210 = vld [vmem:[%s6209] sm:$0xf]
        %v6211 = vld [vmem:[%s6209 + $0x4] sm:$0xf]
        %v6212 = vld [vmem:[%s6209 + $0x8] sm:$0xf]
        %v6213 = vld [vmem:[%s6209 + $0xc] sm:$0xf]
        %v6214 = vld [vmem:[%s6209 + $0x10] sm:$0xf]
        %v6215 = vld [vmem:[%s6209 + $0x14] sm:$0xf]
        %v6216 = vld [vmem:[%s6209 + $0x18] sm:$0xf]
        %v6217 = vld [vmem:[%s6209 + $0x1c] sm:$0xf]
        %v6218 = vld [vmem:[%s6209 + $0x20] sm:$0xf]
        %v6219 = vld [vmem:[%s6209 + $0x24] sm:$0xf]
        %v6220 = vld [vmem:[%s6209 + $0x28] sm:$0xf]
        %v6221 = vld [vmem:[%s6209 + $0x2c] sm:$0xf]
        %v6222 = vld [vmem:[%s6209 + $0x30] sm:$0xf]
        %v6223 = vld [vmem:[%s6209 + $0x34] sm:$0xf]
        %v6224 = vld [vmem:[%s6209 + $0x38] sm:$0xf]
        %v6225 = vld [vmem:[%s6209 + $0x3c] sm:$0xf]
        %6226 = vst [vmem:[#allocation1] ss:$4 sm:$0xff] %v5787
        %s6227 = scalar_lea.vmem [#allocation1], 1
        %6228 = vst [vmem:[%s6227] ss:$4 sm:$0xff] %v5800
        %s6229 = scalar_lea.vmem [#allocation1], 2
        %6230 = vst [vmem:[%s6229] ss:$4 sm:$0xff] %v5813
        %s6232 = scalar_lea.vmem [#allocation1], 3
        %6233 = vst [vmem:[%s6232] ss:$4 sm:$0xff] %v6208
        %v6234 = vld.sshfl [vmem:[#allocation1] sm:$0xff pattern:$0x73625140]
        %v6252 = vunpack.c.l.b16 %v6210
        %v6253 = vunpack.c.l.b16 %v6211
        %v6254 = vunpack.c.l.b16 %v6212
        %v6255 = vunpack.c.l.b16 %v6213
        %v6256 = vunpack.c.l.b16 %v6214
        %v6257 = vunpack.c.l.b16 %v6215
        %v6258 = vunpack.c.l.b16 %v6216
        %v6259 = vunpack.c.l.b16 %v6217
        %v6260 = vunpack.c.l.b16 %v6218
        %v6261 = vunpack.c.l.b16 %v6219
        %v6262 = vunpack.c.l.b16 %v6220
        %v6263 = vunpack.c.l.b16 %v6221
        %v6264 = vunpack.c.l.b16 %v6222
        %v6265 = vunpack.c.l.b16 %v6223
        %v6266 = vunpack.c.l.b16 %v6224
        %v6267 = vunpack.c.l.b16 %v6225
        %v6268 = vpack.c.b16 %v6253, %v6252
        %v6269 = vpack.c.b16 %v6255, %v6254
        %v6270 = vpack.c.b16 %v6257, %v6256
        %v6271 = vpack.c.b16 %v6259, %v6258
        %v6272 = vpack.c.b16 %v6261, %v6260
        %v6273 = vpack.c.b16 %v6263, %v6262
        %v6274 = vpack.c.b16 %v6265, %v6264
        %v6275 = vpack.c.b16 %v6267, %v6266
        %6284 = vmatpush.bf16.msra.mxu0 %v6275
        %6285 = vmatpush.bf16.msra.mxu0 %v6274
        %6286 = vmatpush.bf16.msra.mxu0 %v6273
        %6287 = vmatpush.bf16.msra.mxu0 %v6272
        %6288 = vmatpush.bf16.msra.mxu0 %v6271
        %6289 = vmatpush.bf16.msra.mxu0 %v6270
        %6290 = vmatpush.bf16.msra.mxu0 %v6269
        %6291 = vmatpush.bf16.msra.mxu0 %v6268
        %6292 = vmatmul.bf16.gmra.mxu0 %v6234
        %v6293 = vpop.f32.mrf.mxu0
        %v6294 = vadd.f32 0.0, %v6293
        %v6295 = vpop.f32.mrf.mxu0
        %v6296 = vadd.f32 0.0, %v6295
        %6297 = vdwg.mxu0
        %v6298 = vadd.f32 %v6187, %v6294
        %v6299 = vadd.f32 %v6188, %v6296
        %v6301 = vrot.slane %v6192, 7
        %v6302 = vrot.slane %v6301, 2
        %v6303 = vrot.slane %v6195, 7
        %v6304 = vsel %vm5987, %v6302, %v6303
        %s6305 = scalar_lea.vmem [#allocation9], 320
        %v6306 = vld [vmem:[%s6305] sm:$0xf]
        %v6307 = vld [vmem:[%s6305 + $0x4] sm:$0xf]
        %v6308 = vld [vmem:[%s6305 + $0x8] sm:$0xf]
        %v6309 = vld [vmem:[%s6305 + $0xc] sm:$0xf]
        %v6310 = vld [vmem:[%s6305 + $0x10] sm:$0xf]
        %v6311 = vld [vmem:[%s6305 + $0x14] sm:$0xf]
        %v6312 = vld [vmem:[%s6305 + $0x18] sm:$0xf]
        %v6313 = vld [vmem:[%s6305 + $0x1c] sm:$0xf]
        %v6314 = vld [vmem:[%s6305 + $0x20] sm:$0xf]
        %v6315 = vld [vmem:[%s6305 + $0x24] sm:$0xf]
        %v6316 = vld [vmem:[%s6305 + $0x28] sm:$0xf]
        %v6317 = vld [vmem:[%s6305 + $0x2c] sm:$0xf]
        %v6318 = vld [vmem:[%s6305 + $0x30] sm:$0xf]
        %v6319 = vld [vmem:[%s6305 + $0x34] sm:$0xf]
        %v6320 = vld [vmem:[%s6305 + $0x38] sm:$0xf]
        %v6321 = vld [vmem:[%s6305 + $0x3c] sm:$0xf]
        %6322 = vst [vmem:[#allocation1] ss:$4 sm:$0xff] %v5995
        %s6323 = scalar_lea.vmem [#allocation1], 1
        %6324 = vst [vmem:[%s6323] ss:$4 sm:$0xff] %v5999
        %s6325 = scalar_lea.vmem [#allocation1], 2
        %6326 = vst [vmem:[%s6325] ss:$4 sm:$0xff] %v6003
        %s6328 = scalar_lea.vmem [#allocation1], 3
        %6329 = vst [vmem:[%s6328] ss:$4 sm:$0xff] %v6304
        %v6330 = vld.sshfl [vmem:[#allocation1] sm:$0xff pattern:$0x73625140]
        %v6348 = vunpack.c.l.b16 %v6306
        %v6349 = vunpack.c.l.b16 %v6307
        %v6350 = vunpack.c.l.b16 %v6308
        %v6351 = vunpack.c.l.b16 %v6309
        %v6352 = vunpack.c.l.b16 %v6310
        %v6353 = vunpack.c.l.b16 %v6311
        %v6354 = vunpack.c.l.b16 %v6312
        %v6355 = vunpack.c.l.b16 %v6313
        %v6356 = vunpack.c.l.b16 %v6314
        %v6357 = vunpack.c.l.b16 %v6315
        %v6358 = vunpack.c.l.b16 %v6316
        %v6359 = vunpack.c.l.b16 %v6317
        %v6360 = vunpack.c.l.b16 %v6318
        %v6361 = vunpack.c.l.b16 %v6319
        %v6362 = vunpack.c.l.b16 %v6320
        %v6363 = vunpack.c.l.b16 %v6321
        %v6364 = vpack.c.b16 %v6349, %v6348
        %v6365 = vpack.c.b16 %v6351, %v6350
        %v6366 = vpack.c.b16 %v6353, %v6352
        %v6367 = vpack.c.b16 %v6355, %v6354
        %v6368 = vpack.c.b16 %v6357, %v6356
        %v6369 = vpack.c.b16 %v6359, %v6358
        %v6370 = vpack.c.b16 %v6361, %v6360
        %v6371 = vpack.c.b16 %v6363, %v6362
        %6380 = vmatpush.bf16.msra.mxu0 %v6371
        %6381 = vmatpush.bf16.msra.mxu0 %v6370
        %6382 = vmatpush.bf16.msra.mxu0 %v6369
        %6383 = vmatpush.bf16.msra.mxu0 %v6368
        %6384 = vmatpush.bf16.msra.mxu0 %v6367
        %6385 = vmatpush.bf16.msra.mxu0 %v6366
        %6386 = vmatpush.bf16.msra.mxu0 %v6365
        %6387 = vmatpush.bf16.msra.mxu0 %v6364
        %6388 = vmatmul.bf16.gmra.mxu0 %v6330
        %v6389 = vpop.f32.mrf.mxu0
        %v6390 = vadd.f32 0.0, %v6389
        %v6391 = vpop.f32.mrf.mxu0
        %v6392 = vadd.f32 0.0, %v6391
        %6393 = vdwg.mxu0
        %v6394 = vadd.f32 %v6298, %v6390
        %v6395 = vadd.f32 %v6299, %v6392
        %s6396 = scalar_lea.vmem [#allocation9], 384
        %v6397 = vld [vmem:[%s6396] sm:$0xf]
        %v6398 = vld [vmem:[%s6396 + $0x4] sm:$0xf]
        %v6399 = vld [vmem:[%s6396 + $0x8] sm:$0xf]
        %v6400 = vld [vmem:[%s6396 + $0xc] sm:$0xf]
        %v6401 = vld [vmem:[%s6396 + $0x10] sm:$0xf]
        %v6402 = vld [vmem:[%s6396 + $0x14] sm:$0xf]
        %v6403 = vld [vmem:[%s6396 + $0x18] sm:$0xf]
        %v6404 = vld [vmem:[%s6396 + $0x1c] sm:$0xf]
        %v6405 = vld [vmem:[%s6396 + $0x20] sm:$0xf]
        %v6406 = vld [vmem:[%s6396 + $0x24] sm:$0xf]
        %v6407 = vld [vmem:[%s6396 + $0x28] sm:$0xf]
        %v6408 = vld [vmem:[%s6396 + $0x2c] sm:$0xf]
        %v6409 = vld [vmem:[%s6396 + $0x30] sm:$0xf]
        %v6410 = vld [vmem:[%s6396 + $0x34] sm:$0xf]
        %v6411 = vld [vmem:[%s6396 + $0x38] sm:$0xf]
        %v6412 = vld [vmem:[%s6396 + $0x3c] sm:$0xf]
        %6413 = vst [vmem:[#allocation1] ss:$4 sm:$0xff] %v5701
        %s6414 = scalar_lea.vmem [#allocation1], 1
        %6415 = vst [vmem:[%s6414] ss:$4 sm:$0xff] %v5702
        %s6416 = scalar_lea.vmem [#allocation1], 2
        %6417 = vst [vmem:[%s6416] ss:$4 sm:$0xff] %v5703
        %s6419 = scalar_lea.vmem [#allocation1], 3
        %6420 = vst [vmem:[%s6419] ss:$4 sm:$0xff] %v5704
        %v6421 = vld.sshfl [vmem:[#allocation1] sm:$0xff pattern:$0x73625140]
        %v6439 = vunpack.c.l.b16 %v6397
        %v6440 = vunpack.c.l.b16 %v6398
        %v6441 = vunpack.c.l.b16 %v6399
        %v6442 = vunpack.c.l.b16 %v6400
        %v6443 = vunpack.c.l.b16 %v6401
        %v6444 = vunpack.c.l.b16 %v6402
        %v6445 = vunpack.c.l.b16 %v6403
        %v6446 = vunpack.c.l.b16 %v6404
        %v6447 = vunpack.c.l.b16 %v6405
        %v6448 = vunpack.c.l.b16 %v6406
        %v6449 = vunpack.c.l.b16 %v6407
        %v6450 = vunpack.c.l.b16 %v6408
        %v6451 = vunpack.c.l.b16 %v6409
        %v6452 = vunpack.c.l.b16 %v6410
        %v6453 = vunpack.c.l.b16 %v6411
        %v6454 = vunpack.c.l.b16 %v6412
        %v6455 = vpack.c.b16 %v6440, %v6439
        %v6456 = vpack.c.b16 %v6442, %v6441
        %v6457 = vpack.c.b16 %v6444, %v6443
        %v6458 = vpack.c.b16 %v6446, %v6445
        %v6459 = vpack.c.b16 %v6448, %v6447
        %v6460 = vpack.c.b16 %v6450, %v6449
        %v6461 = vpack.c.b16 %v6452, %v6451
        %v6462 = vpack.c.b16 %v6454, %v6453
        %6471 = vmatpush.bf16.msra.mxu0 %v6462
        %6472 = vmatpush.bf16.msra.mxu0 %v6461
        %6473 = vmatpush.bf16.msra.mxu0 %v6460
        %6474 = vmatpush.bf16.msra.mxu0 %v6459
        %6475 = vmatpush.bf16.msra.mxu0 %v6458
        %6476 = vmatpush.bf16.msra.mxu0 %v6457
        %6477 = vmatpush.bf16.msra.mxu0 %v6456
        %6478 = vmatpush.bf16.msra.mxu0 %v6455
        %6479 = vmatmul.bf16.gmra.mxu0 %v6421
        %v6480 = vpop.f32.mrf.mxu0
        %v6481 = vadd.f32 0.0, %v6480
        %v6482 = vpop.f32.mrf.mxu0
        %v6483 = vadd.f32 0.0, %v6482
        %6484 = vdwg.mxu0
        %v6485 = vadd.f32 %v6394, %v6481
        %v6486 = vadd.f32 %v6395, %v6483
        %v6488 = vrot.slane %v5704, 2
        %v6490 = vsel %vm5729, %v5704, %v6488
        %v6491 = vsel %vm5733, %v5704, %v6488
        %v6493 = vrot.slane %v6491, 2
        %v6494 = vshrl.u32 %v6490, 16
        %v6496 = vrot.slane %v6494, 6
        %v6497 = vshll.u32 %v6490, 16
        %v6499 = vrot.slane %v6497, 7
        %v6500 = vor.u32 %v6496, %v6499
        %v6501 = vrot.slane %v6500, 2
        %v6503 = vshll.u32 %v6493, 16
        %v6505 = vrot.slane %v6503, 7
        %v6506 = vsel %vm5761, %v6501, %v6505
        %s6507 = scalar_lea.vmem [#allocation9], 448
        %v6508 = vld [vmem:[%s6507] sm:$0xf]
        %v6509 = vld [vmem:[%s6507 + $0x4] sm:$0xf]
        %v6510 = vld [vmem:[%s6507 + $0x8] sm:$0xf]
        %v6511 = vld [vmem:[%s6507 + $0xc] sm:$0xf]
        %v6512 = vld [vmem:[%s6507 + $0x10] sm:$0xf]
        %v6513 = vld [vmem:[%s6507 + $0x14] sm:$0xf]
        %v6514 = vld [vmem:[%s6507 + $0x18] sm:$0xf]
        %v6515 = vld [vmem:[%s6507 + $0x1c] sm:$0xf]
        %v6516 = vld [vmem:[%s6507 + $0x20] sm:$0xf]
        %v6517 = vld [vmem:[%s6507 + $0x24] sm:$0xf]
        %v6518 = vld [vmem:[%s6507 + $0x28] sm:$0xf]
        %v6519 = vld [vmem:[%s6507 + $0x2c] sm:$0xf]
        %v6520 = vld [vmem:[%s6507 + $0x30] sm:$0xf]
        %v6521 = vld [vmem:[%s6507 + $0x34] sm:$0xf]
        %v6522 = vld [vmem:[%s6507 + $0x38] sm:$0xf]
        %v6523 = vld [vmem:[%s6507 + $0x3c] sm:$0xf]
        %6524 = vst [vmem:[#allocation1] ss:$4 sm:$0xff] %v5800
        %s6525 = scalar_lea.vmem [#allocation1], 1
        %6526 = vst [vmem:[%s6525] ss:$4 sm:$0xff] %v5813
        %s6527 = scalar_lea.vmem [#allocation1], 2
        %6528 = vst [vmem:[%s6527] ss:$4 sm:$0xff] %v6208
        %s6530 = scalar_lea.vmem [#allocation1], 3
        %6531 = vst [vmem:[%s6530] ss:$4 sm:$0xff] %v6506
        %v6532 = vld.sshfl [vmem:[#allocation1] sm:$0xff pattern:$0x73625140]
        %v6550 = vunpack.c.l.b16 %v6508
        %v6551 = vunpack.c.l.b16 %v6509
        %v6552 = vunpack.c.l.b16 %v6510
        %v6553 = vunpack.c.l.b16 %v6511
        %v6554 = vunpack.c.l.b16 %v6512
        %v6555 = vunpack.c.l.b16 %v6513
        %v6556 = vunpack.c.l.b16 %v6514
        %v6557 = vunpack.c.l.b16 %v6515
        %v6558 = vunpack.c.l.b16 %v6516
        %v6559 = vunpack.c.l.b16 %v6517
        %v6560 = vunpack.c.l.b16 %v6518
        %v6561 = vunpack.c.l.b16 %v6519
        %v6562 = vunpack.c.l.b16 %v6520
        %v6563 = vunpack.c.l.b16 %v6521
        %v6564 = vunpack.c.l.b16 %v6522
        %v6565 = vunpack.c.l.b16 %v6523
        %v6566 = vpack.c.b16 %v6551, %v6550
        %v6567 = vpack.c.b16 %v6553, %v6552
        %v6568 = vpack.c.b16 %v6555, %v6554
        %v6569 = vpack.c.b16 %v6557, %v6556
        %v6570 = vpack.c.b16 %v6559, %v6558
        %v6571 = vpack.c.b16 %v6561, %v6560
        %v6572 = vpack.c.b16 %v6563, %v6562
        %v6573 = vpack.c.b16 %v6565, %v6564
        %6582 = vmatpush.bf16.msra.mxu0 %v6573
        %6583 = vmatpush.bf16.msra.mxu0 %v6572
        %6584 = vmatpush.bf16.msra.mxu0 %v6571
        %6585 = vmatpush.bf16.msra.mxu0 %v6570
        %6586 = vmatpush.bf16.msra.mxu0 %v6569
        %6587 = vmatpush.bf16.msra.mxu0 %v6568
        %6588 = vmatpush.bf16.msra.mxu0 %v6567
        %6589 = vmatpush.bf16.msra.mxu0 %v6566
        %6590 = vmatmul.bf16.gmra.mxu0 %v6532
        %v6591 = vpop.f32.mrf.mxu0
        %v6592 = vadd.f32 0.0, %v6591
        %v6593 = vpop.f32.mrf.mxu0
        %v6594 = vadd.f32 0.0, %v6593
        %6595 = vdwg.mxu0
        %v6596 = vadd.f32 %v6485, %v6592
        %v6597 = vadd.f32 %v6486, %v6594
        %v6599 = vrot.slane %v6490, 7
        %v6600 = vrot.slane %v6599, 2
        %v6601 = vrot.slane %v6493, 7
        %v6602 = vsel %vm5987, %v6600, %v6601
        %s6603 = scalar_lea.vmem [#allocation9], 512
        %v6604 = vld [vmem:[%s6603] sm:$0xf]
        %v6605 = vld [vmem:[%s6603 + $0x4] sm:$0xf]
        %v6606 = vld [vmem:[%s6603 + $0x8] sm:$0xf]
        %v6607 = vld [vmem:[%s6603 + $0xc] sm:$0xf]
        %v6608 = vld [vmem:[%s6603 + $0x10] sm:$0xf]
        %v6609 = vld [vmem:[%s6603 + $0x14] sm:$0xf]
        %v6610 = vld [vmem:[%s6603 + $0x18] sm:$0xf]
        %v6611 = vld [vmem:[%s6603 + $0x1c] sm:$0xf]
        %v6612 = vld [vmem:[%s6603 + $0x20] sm:$0xf]
        %v6613 = vld [vmem:[%s6603 + $0x24] sm:$0xf]
        %v6614 = vld [vmem:[%s6603 + $0x28] sm:$0xf]
        %v6615 = vld [vmem:[%s6603 + $0x2c] sm:$0xf]
        %v6616 = vld [vmem:[%s6603 + $0x30] sm:$0xf]
        %v6617 = vld [vmem:[%s6603 + $0x34] sm:$0xf]
        %v6618 = vld [vmem:[%s6603 + $0x38] sm:$0xf]
        %v6619 = vld [vmem:[%s6603 + $0x3c] sm:$0xf]
        %6620 = vst [vmem:[#allocation1] ss:$4 sm:$0xff] %v5999
        %s6621 = scalar_lea.vmem [#allocation1], 1
        %6622 = vst [vmem:[%s6621] ss:$4 sm:$0xff] %v6003
        %s6623 = scalar_lea.vmem [#allocation1], 2
        %6624 = vst [vmem:[%s6623] ss:$4 sm:$0xff] %v6304
        %s6626 = scalar_lea.vmem [#allocation1], 3
        %6627 = vst [vmem:[%s6626] ss:$4 sm:$0xff] %v6602
        %v6628 = vld.sshfl [vmem:[#allocation1] sm:$0xff pattern:$0x73625140]
        %v6646 = vunpack.c.l.b16 %v6604
        %v6647 = vunpack.c.l.b16 %v6605
        %v6648 = vunpack.c.l.b16 %v6606
        %v6649 = vunpack.c.l.b16 %v6607
        %v6650 = vunpack.c.l.b16 %v6608
        %v6651 = vunpack.c.l.b16 %v6609
        %v6652 = vunpack.c.l.b16 %v6610
        %v6653 = vunpack.c.l.b16 %v6611
        %v6654 = vunpack.c.l.b16 %v6612
        %v6655 = vunpack.c.l.b16 %v6613
        %v6656 = vunpack.c.l.b16 %v6614
        %v6657 = vunpack.c.l.b16 %v6615
        %v6658 = vunpack.c.l.b16 %v6616
        %v6659 = vunpack.c.l.b16 %v6617
        %v6660 = vunpack.c.l.b16 %v6618
        %v6661 = vunpack.c.l.b16 %v6619
        %v6662 = vpack.c.b16 %v6647, %v6646
        %v6663 = vpack.c.b16 %v6649, %v6648
        %v6664 = vpack.c.b16 %v6651, %v6650
        %v6665 = vpack.c.b16 %v6653, %v6652
        %v6666 = vpack.c.b16 %v6655, %v6654
        %v6667 = vpack.c.b16 %v6657, %v6656
        %v6668 = vpack.c.b16 %v6659, %v6658
        %v6669 = vpack.c.b16 %v6661, %v6660
        %6678 = vmatpush.bf16.msra.mxu0 %v6669
        %6679 = vmatpush.bf16.msra.mxu0 %v6668
        %6680 = vmatpush.bf16.msra.mxu0 %v6667
        %6681 = vmatpush.bf16.msra.mxu0 %v6666
        %6682 = vmatpush.bf16.msra.mxu0 %v6665
        %6683 = vmatpush.bf16.msra.mxu0 %v6664
        %6684 = vmatpush.bf16.msra.mxu0 %v6663
        %6685 = vmatpush.bf16.msra.mxu0 %v6662
        %6686 = vmatmul.bf16.gmra.mxu0 %v6628
        %v6687 = vpop.f32.mrf.mxu0
        %v6688 = vadd.f32 0.0, %v6687
        %v6689 = vpop.f32.mrf.mxu0
        %v6690 = vadd.f32 0.0, %v6689
        %6691 = vdwg.mxu0
        %v6692 = vadd.f32 %v6596, %v6688
        %v6693 = vadd.f32 %v6597, %v6690
        %v6694 = vld [vmem:[%s8] sm:$0x1]
        %v6696 = vperm.slane %v6694, 0
        %v6698 = vmul.f32 %v6692, %v6696
        %v6699 = vmul.f32 %v6693, %v6696
        %v6700 = vld [vmem:[%s9] sm:$0x1]
        %v6702 = vperm.slane %v6700, 0
        %v6704 = vadd.f32 %v6698, %v6702
        %v6705 = vadd.f32 %v6699, %v6702
        %v6706 = vmax.f32 %v6704, 0.0
        %v6707 = vmax.f32 %v6705, 0.0
        %v6710 = vrot.slane %v6706, 2
        %v6711 = vrot.slane %v6706, 4
        %v6712 = vrot.slane %v6706, 6
        %v6713 = vrot.slane %v6707, 2
        %v6714 = vrot.slane %v6707, 4
        %v6715 = vrot.slane %v6707, 6
        %v6722 = vmax.f32 %v6706, %v6711
        %v6723 = vmax.f32 %v6710, %v6712
        %v6724 = vmax.f32 %v6707, %v6714
        %v6725 = vmax.f32 %v6713, %v6715
        %v6730 = vrot.slane %v6722, 7
        %v6731 = vrot.slane %v6730, 2
        %v6732 = vrot.slane %v6723, 7
        %v6733 = vrot.slane %v6732, 2
        %v6734 = vrot.slane %v6724, 7
        %v6735 = vrot.slane %v6734, 2
        %v6736 = vrot.slane %v6725, 7
        %v6737 = vrot.slane %v6736, 2
        %v6742 = vmax.f32 %v6722, %v6731
        %v6743 = vmax.f32 %v6723, %v6733
        %v6744 = vmax.f32 %v6724, %v6735
        %v6745 = vmax.f32 %v6725, %v6737
        %6746 = vst [vmem:[#allocation5] sm:$0xf] 0.0
        %6747 = vst [vmem:[#allocation5 + $0x4] sm:$0xf] 0.0
        %6748 = vst [vmem:[#allocation5 + $0x8] sm:$0xf] 0.0
        %6749 = vst [vmem:[#allocation5 + $0xc] sm:$0xf] 0.0
        %v6754 = vperm.slane %v6742, 0
        %v6755 = vperm.slane %v6743, 0
        %v6756 = vperm.slane %v6744, 0
        %v6757 = vperm.slane %v6745, 0
        %v6758 = vsel %vm4145, %v6755, %v6754
        %v6759 = vsel %vm4145, %v6757, %v6756
        %s6762 = scalar_lea.vmem [#allocation5], 4
        %6763 = vst [vmem:[%s6762 + $0x1] sm:$0x3] %v6758
        %6764 = vst [vmem:[%s6762 + $0x5] sm:$0x3] %v6759
        %v6765 = vld [vmem:[#allocation5] sm:$0xf]
        %v6766 = vld [vmem:[#allocation5 + $0x4] sm:$0xf]
        %v6767 = vld [vmem:[#allocation5 + $0x8] sm:$0xf]
        %v6768 = vld [vmem:[#allocation5 + $0xc] sm:$0xf]
        %v6769 = vpack.c.bf16 %v6765, %v6765
        %v6770 = vpack.c.bf16 %v6766, %v6766
        %v6771 = vpack.c.bf16 %v6767, %v6767
        %v6772 = vpack.c.bf16 %v6768, %v6768
        %v6773 = vld [vmem:[#allocation11] sm:$0xf]
        %v6774 = vld [vmem:[#allocation11 + $0x4] sm:$0xf]
        %v6775 = vld [vmem:[#allocation11 + $0x8] sm:$0xf]
        %v6776 = vld [vmem:[#allocation11 + $0xc] sm:$0xf]
        %v6777 = vld [vmem:[#allocation11 + $0x10] sm:$0xf]
        %v6778 = vld [vmem:[#allocation11 + $0x14] sm:$0xf]
        %v6779 = vld [vmem:[#allocation11 + $0x18] sm:$0xf]
        %v6780 = vld [vmem:[#allocation11 + $0x1c] sm:$0xf]
        %v6781 = vld [vmem:[#allocation11 + $0x20] sm:$0xf]
        %v6782 = vld [vmem:[#allocation11 + $0x24] sm:$0xf]
        %v6783 = vld [vmem:[#allocation11 + $0x28] sm:$0xf]
        %v6784 = vld [vmem:[#allocation11 + $0x2c] sm:$0xf]
        %v6785 = vld [vmem:[#allocation11 + $0x30] sm:$0xf]
        %v6786 = vld [vmem:[#allocation11 + $0x34] sm:$0xf]
        %v6787 = vld [vmem:[#allocation11 + $0x38] sm:$0xf]
        %v6788 = vld [vmem:[#allocation11 + $0x3c] sm:$0xf]
        %v6791 = vrot.slane %v6769, 3
        %v6792 = vrot.slane %v6770, 3
        %vm6793 = vcmask 1040384
        %v6796 = vsel %vm6793, %v6769, %v6791
        %v6797 = vsel %vm4145, %v6769, %v6791
        %v6799 = vrot.slane %v6797, 1
        %v6802 = vsel %vm6793, %v6770, %v6792
        %v6803 = vsel %vm4145, %v6770, %v6792
        %v6805 = vrot.slane %v6803, 1
        %vm6806 = vsmask.f32 256
        %vm6807 = vsmask.f32 1284
        %vm6808 = vmor %vm6806, %vm6807
        %vm6809 = vsmask.f32 2312
        %vm6810 = vmor %vm6808, %vm6809
        %vm6811 = vsmask.f32 3340
        %vm6812 = vmor %vm6810, %vm6811
        %vm6813 = vsmask.f32 4368
        %vm6814 = vmor %vm6812, %vm6813
        %vm6815 = vsmask.f32 5396
        %vm6816 = vmor %vm6814, %vm6815
        %vm6817 = vsmask.f32 6424
        %vm6818 = vmor %vm6816, %vm6817
        %vm6819 = vsmask.f32 7452
        %vm6820 = vmor %vm6818, %vm6819
        %v6821 = vshrl.u32 %v6796, 16
        %v6823 = vrot.slane %v6821, 7
        %v6824 = vrot.slane %v6823, 1
        %v6826 = vshll.u32 %v6799, 16
        %v6828 = vsel %vm6820, %v6824, %v6826
        %v6829 = vshrl.u32 %v6802, 16
        %v6831 = vrot.slane %v6829, 7
        %v6832 = vrot.slane %v6831, 1
        %v6834 = vshll.u32 %v6805, 16
        %v6836 = vsel %vm6820, %v6832, %v6834
        %s6837 = scalar_lea.vmem [#allocation11], 64
        %v6838 = vld [vmem:[%s6837] sm:$0xf]
        %v6839 = vld [vmem:[%s6837 + $0x4] sm:$0xf]
        %v6840 = vld [vmem:[%s6837 + $0x8] sm:$0xf]
        %v6841 = vld [vmem:[%s6837 + $0xc] sm:$0xf]
        %v6842 = vld [vmem:[%s6837 + $0x10] sm:$0xf]
        %v6843 = vld [vmem:[%s6837 + $0x14] sm:$0xf]
        %v6844 = vld [vmem:[%s6837 + $0x18] sm:$0xf]
        %v6845 = vld [vmem:[%s6837 + $0x1c] sm:$0xf]
        %v6846 = vld [vmem:[%s6837 + $0x20] sm:$0xf]
        %v6847 = vld [vmem:[%s6837 + $0x24] sm:$0xf]
        %v6848 = vld [vmem:[%s6837 + $0x28] sm:$0xf]
        %v6849 = vld [vmem:[%s6837 + $0x2c] sm:$0xf]
        %v6850 = vld [vmem:[%s6837 + $0x30] sm:$0xf]
        %v6851 = vld [vmem:[%s6837 + $0x34] sm:$0xf]
        %v6852 = vld [vmem:[%s6837 + $0x38] sm:$0xf]
        %v6853 = vld [vmem:[%s6837 + $0x3c] sm:$0xf]
        %6855 = vst [vmem:[#allocation1] ss:$9 sm:$0xff] %v6828
        %s6857 = scalar_lea.vmem [#allocation1], 1
        %6858 = vst [vmem:[%s6857] ss:$9 sm:$0xff] %v6836
        %v6859 = vld [vmem:[#allocation1] sm:$0xff]
        %v6877 = vunpack.c.l.b16 %v6838
        %v6878 = vunpack.c.l.b16 %v6839
        %v6879 = vunpack.c.l.b16 %v6840
        %v6880 = vunpack.c.l.b16 %v6841
        %v6881 = vunpack.c.l.b16 %v6842
        %v6882 = vunpack.c.l.b16 %v6843
        %v6883 = vunpack.c.l.b16 %v6844
        %v6884 = vunpack.c.l.b16 %v6845
        %v6885 = vunpack.c.l.b16 %v6846
        %v6886 = vunpack.c.l.b16 %v6847
        %v6887 = vunpack.c.l.b16 %v6848
        %v6888 = vunpack.c.l.b16 %v6849
        %v6889 = vunpack.c.l.b16 %v6850
        %v6890 = vunpack.c.l.b16 %v6851
        %v6891 = vunpack.c.l.b16 %v6852
        %v6892 = vunpack.c.l.b16 %v6853
        %v6893 = vpack.c.b16 %v6878, %v6877
        %v6894 = vpack.c.b16 %v6880, %v6879
        %v6895 = vpack.c.b16 %v6882, %v6881
        %v6896 = vpack.c.b16 %v6884, %v6883
        %v6897 = vpack.c.b16 %v6886, %v6885
        %v6898 = vpack.c.b16 %v6888, %v6887
        %v6899 = vpack.c.b16 %v6890, %v6889
        %v6900 = vpack.c.b16 %v6892, %v6891
        %6909 = vmatpush.bf16.msra.mxu0 %v6900
        %6910 = vmatpush.bf16.msra.mxu0 %v6899
        %6911 = vmatpush.bf16.msra.mxu0 %v6898
        %6912 = vmatpush.bf16.msra.mxu0 %v6897
        %6913 = vmatpush.bf16.msra.mxu0 %v6896
        %6914 = vmatpush.bf16.msra.mxu0 %v6895
        %6915 = vmatpush.bf16.msra.mxu0 %v6894
        %6916 = vmatpush.bf16.msra.mxu0 %v6893
        %6917 = vmatmul.bf16.gmra.mxu0 %v6859
        %v6918 = vpop.f32.mrf.mxu0
        %v6919 = vadd.f32 0.0, %v6918
        %v6920 = vpop.f32.mrf.mxu0
        %6921 = vdwg.mxu0
        %6922 = vst [vmem:[#allocation1] ss:$9 sm:$0xff] %v6769
        %s6923 = scalar_lea.vmem [#allocation1], 1
        %6924 = vst [vmem:[%s6923] ss:$9 sm:$0xff] %v6770
        %v6925 = vld [vmem:[#allocation1] sm:$0xff]
        %v6943 = vunpack.c.l.b16 %v6773
        %v6944 = vunpack.c.l.b16 %v6774
        %v6945 = vunpack.c.l.b16 %v6775
        %v6946 = vunpack.c.l.b16 %v6776
        %v6947 = vunpack.c.l.b16 %v6777
        %v6948 = vunpack.c.l.b16 %v6778
        %v6949 = vunpack.c.l.b16 %v6779
        %v6950 = vunpack.c.l.b16 %v6780
        %v6951 = vunpack.c.l.b16 %v6781
        %v6952 = vunpack.c.l.b16 %v6782
        %v6953 = vunpack.c.l.b16 %v6783
        %v6954 = vunpack.c.l.b16 %v6784
        %v6955 = vunpack.c.l.b16 %v6785
        %v6956 = vunpack.c.l.b16 %v6786
        %v6957 = vunpack.c.l.b16 %v6787
        %v6958 = vunpack.c.l.b16 %v6788
        %v6959 = vpack.c.b16 %v6944, %v6943
        %v6960 = vpack.c.b16 %v6946, %v6945
        %v6961 = vpack.c.b16 %v6948, %v6947
        %v6962 = vpack.c.b16 %v6950, %v6949
        %v6963 = vpack.c.b16 %v6952, %v6951
        %v6964 = vpack.c.b16 %v6954, %v6953
        %v6965 = vpack.c.b16 %v6956, %v6955
        %v6966 = vpack.c.b16 %v6958, %v6957
        %6975 = vmatpush.bf16.msra.mxu0 %v6966
        %6976 = vmatpush.bf16.msra.mxu0 %v6965
        %6977 = vmatpush.bf16.msra.mxu0 %v6964
        %6978 = vmatpush.bf16.msra.mxu0 %v6963
        %6979 = vmatpush.bf16.msra.mxu0 %v6962
        %6980 = vmatpush.bf16.msra.mxu0 %v6961
        %6981 = vmatpush.bf16.msra.mxu0 %v6960
        %6982 = vmatpush.bf16.msra.mxu0 %v6959
        %6983 = vmatmul.bf16.gmra.mxu0 %v6925
        %v6984 = vpop.f32.mrf.mxu0
        %v6985 = vadd.f32 %v6919, %v6984
        %v6986 = vpop.f32.mrf.mxu0
        %6987 = vdwg.mxu0
        %6988 = vst [vmem:[#allocation1] sm:$0xff] %v6769
        %s6989 = scalar_lea.vmem [#allocation1], 1
        %v6990 = vld [vmem:[%s6989] ss:$4 sm:$0xff]
        %6991 = vst [vmem:[#allocation1 + $0x20] sm:$0xff] %v6770
        %s6992 = scalar_lea.vmem [#allocation1], 33
        %v6993 = vld [vmem:[%s6992] ss:$4 sm:$0xff]
        %s6994 = scalar_lea.vmem [#allocation11], 128
        %v6995 = vld [vmem:[%s6994] sm:$0xf]
        %v6996 = vld [vmem:[%s6994 + $0x4] sm:$0xf]
        %v6997 = vld [vmem:[%s6994 + $0x8] sm:$0xf]
        %v6998 = vld [vmem:[%s6994 + $0xc] sm:$0xf]
        %v6999 = vld [vmem:[%s6994 + $0x10] sm:$0xf]
        %v7000 = vld [vmem:[%s6994 + $0x14] sm:$0xf]
        %v7001 = vld [vmem:[%s6994 + $0x18] sm:$0xf]
        %v7002 = vld [vmem:[%s6994 + $0x1c] sm:$0xf]
        %v7003 = vld [vmem:[%s6994 + $0x20] sm:$0xf]
        %v7004 = vld [vmem:[%s6994 + $0x24] sm:$0xf]
        %v7005 = vld [vmem:[%s6994 + $0x28] sm:$0xf]
        %v7006 = vld [vmem:[%s6994 + $0x2c] sm:$0xf]
        %v7007 = vld [vmem:[%s6994 + $0x30] sm:$0xf]
        %v7008 = vld [vmem:[%s6994 + $0x34] sm:$0xf]
        %v7009 = vld [vmem:[%s6994 + $0x38] sm:$0xf]
        %v7010 = vld [vmem:[%s6994 + $0x3c] sm:$0xf]
        %7011 = vst [vmem:[#allocation1] ss:$9 sm:$0xff] %v6990
        %s7012 = scalar_lea.vmem [#allocation1], 1
        %7013 = vst [vmem:[%s7012] ss:$9 sm:$0xff] %v6993
        %v7014 = vld [vmem:[#allocation1] sm:$0xff]
        %v7032 = vunpack.c.l.b16 %v6995
        %v7033 = vunpack.c.l.b16 %v6996
        %v7034 = vunpack.c.l.b16 %v6997
        %v7035 = vunpack.c.l.b16 %v6998
        %v7036 = vunpack.c.l.b16 %v6999
        %v7037 = vunpack.c.l.b16 %v7000
        %v7038 = vunpack.c.l.b16 %v7001
        %v7039 = vunpack.c.l.b16 %v7002
        %v7040 = vunpack.c.l.b16 %v7003
        %v7041 = vunpack.c.l.b16 %v7004
        %v7042 = vunpack.c.l.b16 %v7005
        %v7043 = vunpack.c.l.b16 %v7006
        %v7044 = vunpack.c.l.b16 %v7007
        %v7045 = vunpack.c.l.b16 %v7008
        %v7046 = vunpack.c.l.b16 %v7009
        %v7047 = vunpack.c.l.b16 %v7010
        %v7048 = vpack.c.b16 %v7033, %v7032
        %v7049 = vpack.c.b16 %v7035, %v7034
        %v7050 = vpack.c.b16 %v7037, %v7036
        %v7051 = vpack.c.b16 %v7039, %v7038
        %v7052 = vpack.c.b16 %v7041, %v7040
        %v7053 = vpack.c.b16 %v7043, %v7042
        %v7054 = vpack.c.b16 %v7045, %v7044
        %v7055 = vpack.c.b16 %v7047, %v7046
        %7064 = vmatpush.bf16.msra.mxu0 %v7055
        %7065 = vmatpush.bf16.msra.mxu0 %v7054
        %7066 = vmatpush.bf16.msra.mxu0 %v7053
        %7067 = vmatpush.bf16.msra.mxu0 %v7052
        %7068 = vmatpush.bf16.msra.mxu0 %v7051
        %7069 = vmatpush.bf16.msra.mxu0 %v7050
        %7070 = vmatpush.bf16.msra.mxu0 %v7049
        %7071 = vmatpush.bf16.msra.mxu0 %v7048
        %7072 = vmatmul.bf16.gmra.mxu0 %v7014
        %v7073 = vpop.f32.mrf.mxu0
        %v7074 = vadd.f32 0.0, %v7073
        %v7075 = vpop.f32.mrf.mxu0
        %7076 = vdwg.mxu0
        %v7077 = vadd.f32 %v6985, %v7074
        %s7078 = scalar_lea.vmem [#allocation11], 192
        %v7079 = vld [vmem:[%s7078] sm:$0xf]
        %v7080 = vld [vmem:[%s7078 + $0x4] sm:$0xf]
        %v7081 = vld [vmem:[%s7078 + $0x8] sm:$0xf]
        %v7082 = vld [vmem:[%s7078 + $0xc] sm:$0xf]
        %v7083 = vld [vmem:[%s7078 + $0x10] sm:$0xf]
        %v7084 = vld [vmem:[%s7078 + $0x14] sm:$0xf]
        %v7085 = vld [vmem:[%s7078 + $0x18] sm:$0xf]
        %v7086 = vld [vmem:[%s7078 + $0x1c] sm:$0xf]
        %v7087 = vld [vmem:[%s7078 + $0x20] sm:$0xf]
        %v7088 = vld [vmem:[%s7078 + $0x24] sm:$0xf]
        %v7089 = vld [vmem:[%s7078 + $0x28] sm:$0xf]
        %v7090 = vld [vmem:[%s7078 + $0x2c] sm:$0xf]
        %v7091 = vld [vmem:[%s7078 + $0x30] sm:$0xf]
        %v7092 = vld [vmem:[%s7078 + $0x34] sm:$0xf]
        %v7093 = vld [vmem:[%s7078 + $0x38] sm:$0xf]
        %v7094 = vld [vmem:[%s7078 + $0x3c] sm:$0xf]
        %7095 = vst [vmem:[#allocation1] ss:$9 sm:$0xff] %v6770
        %s7097 = scalar_lea.vmem [#allocation1], 1
        %7098 = vst [vmem:[%s7097] ss:$9 sm:$0xff] %v6771
        %v7099 = vld [vmem:[#allocation1] sm:$0xff]
        %v7117 = vunpack.c.l.b16 %v7079
        %v7118 = vunpack.c.l.b16 %v7080
        %v7119 = vunpack.c.l.b16 %v7081
        %v7120 = vunpack.c.l.b16 %v7082
        %v7121 = vunpack.c.l.b16 %v7083
        %v7122 = vunpack.c.l.b16 %v7084
        %v7123 = vunpack.c.l.b16 %v7085
        %v7124 = vunpack.c.l.b16 %v7086
        %v7125 = vunpack.c.l.b16 %v7087
        %v7126 = vunpack.c.l.b16 %v7088
        %v7127 = vunpack.c.l.b16 %v7089
        %v7128 = vunpack.c.l.b16 %v7090
        %v7129 = vunpack.c.l.b16 %v7091
        %v7130 = vunpack.c.l.b16 %v7092
        %v7131 = vunpack.c.l.b16 %v7093
        %v7132 = vunpack.c.l.b16 %v7094
        %v7133 = vpack.c.b16 %v7118, %v7117
        %v7134 = vpack.c.b16 %v7120, %v7119
        %v7135 = vpack.c.b16 %v7122, %v7121
        %v7136 = vpack.c.b16 %v7124, %v7123
        %v7137 = vpack.c.b16 %v7126, %v7125
        %v7138 = vpack.c.b16 %v7128, %v7127
        %v7139 = vpack.c.b16 %v7130, %v7129
        %v7140 = vpack.c.b16 %v7132, %v7131
        %7149 = vmatpush.bf16.msra.mxu0 %v7140
        %7150 = vmatpush.bf16.msra.mxu0 %v7139
        %7151 = vmatpush.bf16.msra.mxu0 %v7138
        %7152 = vmatpush.bf16.msra.mxu0 %v7137
        %7153 = vmatpush.bf16.msra.mxu0 %v7136
        %7154 = vmatpush.bf16.msra.mxu0 %v7135
        %7155 = vmatpush.bf16.msra.mxu0 %v7134
        %7156 = vmatpush.bf16.msra.mxu0 %v7133
        %7157 = vmatmul.bf16.gmra.mxu0 %v7099
        %v7158 = vpop.f32.mrf.mxu0
        %v7159 = vadd.f32 0.0, %v7158
        %v7160 = vpop.f32.mrf.mxu0
        %7161 = vdwg.mxu0
        %v7162 = vadd.f32 %v7077, %v7159
        %v7164 = vrot.slane %v6771, 3
        %v7166 = vsel %vm6793, %v6771, %v7164
        %v7167 = vsel %vm4145, %v6771, %v7164
        %v7169 = vrot.slane %v7167, 1
        %v7170 = vshrl.u32 %v7166, 16
        %v7172 = vrot.slane %v7170, 7
        %v7173 = vrot.slane %v7172, 1
        %v7175 = vshll.u32 %v7169, 16
        %v7177 = vsel %vm6820, %v7173, %v7175
        %s7178 = scalar_lea.vmem [#allocation11], 256
        %v7179 = vld [vmem:[%s7178] sm:$0xf]
        %v7180 = vld [vmem:[%s7178 + $0x4] sm:$0xf]
        %v7181 = vld [vmem:[%s7178 + $0x8] sm:$0xf]
        %v7182 = vld [vmem:[%s7178 + $0xc] sm:$0xf]
        %v7183 = vld [vmem:[%s7178 + $0x10] sm:$0xf]
        %v7184 = vld [vmem:[%s7178 + $0x14] sm:$0xf]
        %v7185 = vld [vmem:[%s7178 + $0x18] sm:$0xf]
        %v7186 = vld [vmem:[%s7178 + $0x1c] sm:$0xf]
        %v7187 = vld [vmem:[%s7178 + $0x20] sm:$0xf]
        %v7188 = vld [vmem:[%s7178 + $0x24] sm:$0xf]
        %v7189 = vld [vmem:[%s7178 + $0x28] sm:$0xf]
        %v7190 = vld [vmem:[%s7178 + $0x2c] sm:$0xf]
        %v7191 = vld [vmem:[%s7178 + $0x30] sm:$0xf]
        %v7192 = vld [vmem:[%s7178 + $0x34] sm:$0xf]
        %v7193 = vld [vmem:[%s7178 + $0x38] sm:$0xf]
        %v7194 = vld [vmem:[%s7178 + $0x3c] sm:$0xf]
        %7195 = vst [vmem:[#allocation1] ss:$9 sm:$0xff] %v6836
        %s7197 = scalar_lea.vmem [#allocation1], 1
        %7198 = vst [vmem:[%s7197] ss:$9 sm:$0xff] %v7177
        %v7199 = vld [vmem:[#allocation1] sm:$0xff]
        %v7217 = vunpack.c.l.b16 %v7179
        %v7218 = vunpack.c.l.b16 %v7180
        %v7219 = vunpack.c.l.b16 %v7181
        %v7220 = vunpack.c.l.b16 %v7182
        %v7221 = vunpack.c.l.b16 %v7183
        %v7222 = vunpack.c.l.b16 %v7184
        %v7223 = vunpack.c.l.b16 %v7185
        %v7224 = vunpack.c.l.b16 %v7186
        %v7225 = vunpack.c.l.b16 %v7187
        %v7226 = vunpack.c.l.b16 %v7188
        %v7227 = vunpack.c.l.b16 %v7189
        %v7228 = vunpack.c.l.b16 %v7190
        %v7229 = vunpack.c.l.b16 %v7191
        %v7230 = vunpack.c.l.b16 %v7192
        %v7231 = vunpack.c.l.b16 %v7193
        %v7232 = vunpack.c.l.b16 %v7194
        %v7233 = vpack.c.b16 %v7218, %v7217
        %v7234 = vpack.c.b16 %v7220, %v7219
        %v7235 = vpack.c.b16 %v7222, %v7221
        %v7236 = vpack.c.b16 %v7224, %v7223
        %v7237 = vpack.c.b16 %v7226, %v7225
        %v7238 = vpack.c.b16 %v7228, %v7227
        %v7239 = vpack.c.b16 %v7230, %v7229
        %v7240 = vpack.c.b16 %v7232, %v7231
        %7249 = vmatpush.bf16.msra.mxu0 %v7240
        %7250 = vmatpush.bf16.msra.mxu0 %v7239
        %7251 = vmatpush.bf16.msra.mxu0 %v7238
        %7252 = vmatpush.bf16.msra.mxu0 %v7237
        %7253 = vmatpush.bf16.msra.mxu0 %v7236
        %7254 = vmatpush.bf16.msra.mxu0 %v7235
        %7255 = vmatpush.bf16.msra.mxu0 %v7234
        %7256 = vmatpush.bf16.msra.mxu0 %v7233
        %7257 = vmatmul.bf16.gmra.mxu0 %v7199
        %v7258 = vpop.f32.mrf.mxu0
        %v7259 = vadd.f32 0.0, %v7258
        %v7260 = vpop.f32.mrf.mxu0
        %7261 = vdwg.mxu0
        %v7262 = vadd.f32 %v7162, %v7259
        %7263 = vst [vmem:[#allocation1] sm:$0xff] %v6770
        %s7264 = scalar_lea.vmem [#allocation1], 1
        %v7265 = vld [vmem:[%s7264] ss:$4 sm:$0xff]
        %7266 = vst [vmem:[#allocation1 + $0x20] sm:$0xff] %v6771
        %s7267 = scalar_lea.vmem [#allocation1], 33
        %v7268 = vld [vmem:[%s7267] ss:$4 sm:$0xff]
        %s7269 = scalar_lea.vmem [#allocation11], 320
        %v7270 = vld [vmem:[%s7269] sm:$0xf]
        %v7271 = vld [vmem:[%s7269 + $0x4] sm:$0xf]
        %v7272 = vld [vmem:[%s7269 + $0x8] sm:$0xf]
        %v7273 = vld [vmem:[%s7269 + $0xc] sm:$0xf]
        %v7274 = vld [vmem:[%s7269 + $0x10] sm:$0xf]
        %v7275 = vld [vmem:[%s7269 + $0x14] sm:$0xf]
        %v7276 = vld [vmem:[%s7269 + $0x18] sm:$0xf]
        %v7277 = vld [vmem:[%s7269 + $0x1c] sm:$0xf]
        %v7278 = vld [vmem:[%s7269 + $0x20] sm:$0xf]
        %v7279 = vld [vmem:[%s7269 + $0x24] sm:$0xf]
        %v7280 = vld [vmem:[%s7269 + $0x28] sm:$0xf]
        %v7281 = vld [vmem:[%s7269 + $0x2c] sm:$0xf]
        %v7282 = vld [vmem:[%s7269 + $0x30] sm:$0xf]
        %v7283 = vld [vmem:[%s7269 + $0x34] sm:$0xf]
        %v7284 = vld [vmem:[%s7269 + $0x38] sm:$0xf]
        %v7285 = vld [vmem:[%s7269 + $0x3c] sm:$0xf]
        %7286 = vst [vmem:[#allocation1] ss:$9 sm:$0xff] %v7265
        %s7287 = scalar_lea.vmem [#allocation1], 1
        %7288 = vst [vmem:[%s7287] ss:$9 sm:$0xff] %v7268
        %v7289 = vld [vmem:[#allocation1] sm:$0xff]
        %v7307 = vunpack.c.l.b16 %v7270
        %v7308 = vunpack.c.l.b16 %v7271
        %v7309 = vunpack.c.l.b16 %v7272
        %v7310 = vunpack.c.l.b16 %v7273
        %v7311 = vunpack.c.l.b16 %v7274
        %v7312 = vunpack.c.l.b16 %v7275
        %v7313 = vunpack.c.l.b16 %v7276
        %v7314 = vunpack.c.l.b16 %v7277
        %v7315 = vunpack.c.l.b16 %v7278
        %v7316 = vunpack.c.l.b16 %v7279
        %v7317 = vunpack.c.l.b16 %v7280
        %v7318 = vunpack.c.l.b16 %v7281
        %v7319 = vunpack.c.l.b16 %v7282
        %v7320 = vunpack.c.l.b16 %v7283
        %v7321 = vunpack.c.l.b16 %v7284
        %v7322 = vunpack.c.l.b16 %v7285
        %v7323 = vpack.c.b16 %v7308, %v7307
        %v7324 = vpack.c.b16 %v7310, %v7309
        %v7325 = vpack.c.b16 %v7312, %v7311
        %v7326 = vpack.c.b16 %v7314, %v7313
        %v7327 = vpack.c.b16 %v7316, %v7315
        %v7328 = vpack.c.b16 %v7318, %v7317
        %v7329 = vpack.c.b16 %v7320, %v7319
        %v7330 = vpack.c.b16 %v7322, %v7321
        %7339 = vmatpush.bf16.msra.mxu0 %v7330
        %7340 = vmatpush.bf16.msra.mxu0 %v7329
        %7341 = vmatpush.bf16.msra.mxu0 %v7328
        %7342 = vmatpush.bf16.msra.mxu0 %v7327
        %7343 = vmatpush.bf16.msra.mxu0 %v7326
        %7344 = vmatpush.bf16.msra.mxu0 %v7325
        %7345 = vmatpush.bf16.msra.mxu0 %v7324
        %7346 = vmatpush.bf16.msra.mxu0 %v7323
        %7347 = vmatmul.bf16.gmra.mxu0 %v7289
        %v7348 = vpop.f32.mrf.mxu0
        %v7349 = vadd.f32 0.0, %v7348
        %v7350 = vpop.f32.mrf.mxu0
        %7351 = vdwg.mxu0
        %v7352 = vadd.f32 %v7262, %v7349
        %s7353 = scalar_lea.vmem [#allocation11], 384
        %v7354 = vld [vmem:[%s7353] sm:$0xf]
        %v7355 = vld [vmem:[%s7353 + $0x4] sm:$0xf]
        %v7356 = vld [vmem:[%s7353 + $0x8] sm:$0xf]
        %v7357 = vld [vmem:[%s7353 + $0xc] sm:$0xf]
        %v7358 = vld [vmem:[%s7353 + $0x10] sm:$0xf]
        %v7359 = vld [vmem:[%s7353 + $0x14] sm:$0xf]
        %v7360 = vld [vmem:[%s7353 + $0x18] sm:$0xf]
        %v7361 = vld [vmem:[%s7353 + $0x1c] sm:$0xf]
        %v7362 = vld [vmem:[%s7353 + $0x20] sm:$0xf]
        %v7363 = vld [vmem:[%s7353 + $0x24] sm:$0xf]
        %v7364 = vld [vmem:[%s7353 + $0x28] sm:$0xf]
        %v7365 = vld [vmem:[%s7353 + $0x2c] sm:$0xf]
        %v7366 = vld [vmem:[%s7353 + $0x30] sm:$0xf]
        %v7367 = vld [vmem:[%s7353 + $0x34] sm:$0xf]
        %v7368 = vld [vmem:[%s7353 + $0x38] sm:$0xf]
        %v7369 = vld [vmem:[%s7353 + $0x3c] sm:$0xf]
        %7370 = vst [vmem:[#allocation1] ss:$9 sm:$0xff] %v6771
        %s7372 = scalar_lea.vmem [#allocation1], 1
        %7373 = vst [vmem:[%s7372] ss:$9 sm:$0xff] %v6772
        %v7374 = vld [vmem:[#allocation1] sm:$0xff]
        %v7392 = vunpack.c.l.b16 %v7354
        %v7393 = vunpack.c.l.b16 %v7355
        %v7394 = vunpack.c.l.b16 %v7356
        %v7395 = vunpack.c.l.b16 %v7357
        %v7396 = vunpack.c.l.b16 %v7358
        %v7397 = vunpack.c.l.b16 %v7359
        %v7398 = vunpack.c.l.b16 %v7360
        %v7399 = vunpack.c.l.b16 %v7361
        %v7400 = vunpack.c.l.b16 %v7362
        %v7401 = vunpack.c.l.b16 %v7363
        %v7402 = vunpack.c.l.b16 %v7364
        %v7403 = vunpack.c.l.b16 %v7365
        %v7404 = vunpack.c.l.b16 %v7366
        %v7405 = vunpack.c.l.b16 %v7367
        %v7406 = vunpack.c.l.b16 %v7368
        %v7407 = vunpack.c.l.b16 %v7369
        %v7408 = vpack.c.b16 %v7393, %v7392
        %v7409 = vpack.c.b16 %v7395, %v7394
        %v7410 = vpack.c.b16 %v7397, %v7396
        %v7411 = vpack.c.b16 %v7399, %v7398
        %v7412 = vpack.c.b16 %v7401, %v7400
        %v7413 = vpack.c.b16 %v7403, %v7402
        %v7414 = vpack.c.b16 %v7405, %v7404
        %v7415 = vpack.c.b16 %v7407, %v7406
        %7424 = vmatpush.bf16.msra.mxu0 %v7415
        %7425 = vmatpush.bf16.msra.mxu0 %v7414
        %7426 = vmatpush.bf16.msra.mxu0 %v7413
        %7427 = vmatpush.bf16.msra.mxu0 %v7412
        %7428 = vmatpush.bf16.msra.mxu0 %v7411
        %7429 = vmatpush.bf16.msra.mxu0 %v7410
        %7430 = vmatpush.bf16.msra.mxu0 %v7409
        %7431 = vmatpush.bf16.msra.mxu0 %v7408
        %7432 = vmatmul.bf16.gmra.mxu0 %v7374
        %v7433 = vpop.f32.mrf.mxu0
        %v7434 = vadd.f32 0.0, %v7433
        %v7435 = vpop.f32.mrf.mxu0
        %7436 = vdwg.mxu0
        %v7437 = vadd.f32 %v7352, %v7434
        %v7439 = vrot.slane %v6772, 3
        %v7441 = vsel %vm6793, %v6772, %v7439
        %v7442 = vsel %vm4145, %v6772, %v7439
        %v7444 = vrot.slane %v7442, 1
        %v7445 = vshrl.u32 %v7441, 16
        %v7447 = vrot.slane %v7445, 7
        %v7448 = vrot.slane %v7447, 1
        %v7450 = vshll.u32 %v7444, 16
        %v7452 = vsel %vm6820, %v7448, %v7450
        %s7453 = scalar_lea.vmem [#allocation11], 448
        %v7454 = vld [vmem:[%s7453] sm:$0xf]
        %v7455 = vld [vmem:[%s7453 + $0x4] sm:$0xf]
        %v7456 = vld [vmem:[%s7453 + $0x8] sm:$0xf]
        %v7457 = vld [vmem:[%s7453 + $0xc] sm:$0xf]
        %v7458 = vld [vmem:[%s7453 + $0x10] sm:$0xf]
        %v7459 = vld [vmem:[%s7453 + $0x14] sm:$0xf]
        %v7460 = vld [vmem:[%s7453 + $0x18] sm:$0xf]
        %v7461 = vld [vmem:[%s7453 + $0x1c] sm:$0xf]
        %v7462 = vld [vmem:[%s7453 + $0x20] sm:$0xf]
        %v7463 = vld [vmem:[%s7453 + $0x24] sm:$0xf]
        %v7464 = vld [vmem:[%s7453 + $0x28] sm:$0xf]
        %v7465 = vld [vmem:[%s7453 + $0x2c] sm:$0xf]
        %v7466 = vld [vmem:[%s7453 + $0x30] sm:$0xf]
        %v7467 = vld [vmem:[%s7453 + $0x34] sm:$0xf]
        %v7468 = vld [vmem:[%s7453 + $0x38] sm:$0xf]
        %v7469 = vld [vmem:[%s7453 + $0x3c] sm:$0xf]
        %7470 = vst [vmem:[#allocation1] ss:$9 sm:$0xff] %v7177
        %s7472 = scalar_lea.vmem [#allocation1], 1
        %7473 = vst [vmem:[%s7472] ss:$9 sm:$0xff] %v7452
        %v7474 = vld [vmem:[#allocation1] sm:$0xff]
        %v7492 = vunpack.c.l.b16 %v7454
        %v7493 = vunpack.c.l.b16 %v7455
        %v7494 = vunpack.c.l.b16 %v7456
        %v7495 = vunpack.c.l.b16 %v7457
        %v7496 = vunpack.c.l.b16 %v7458
        %v7497 = vunpack.c.l.b16 %v7459
        %v7498 = vunpack.c.l.b16 %v7460
        %v7499 = vunpack.c.l.b16 %v7461
        %v7500 = vunpack.c.l.b16 %v7462
        %v7501 = vunpack.c.l.b16 %v7463
        %v7502 = vunpack.c.l.b16 %v7464
        %v7503 = vunpack.c.l.b16 %v7465
        %v7504 = vunpack.c.l.b16 %v7466
        %v7505 = vunpack.c.l.b16 %v7467
        %v7506 = vunpack.c.l.b16 %v7468
        %v7507 = vunpack.c.l.b16 %v7469
        %v7508 = vpack.c.b16 %v7493, %v7492
        %v7509 = vpack.c.b16 %v7495, %v7494
        %v7510 = vpack.c.b16 %v7497, %v7496
        %v7511 = vpack.c.b16 %v7499, %v7498
        %v7512 = vpack.c.b16 %v7501, %v7500
        %v7513 = vpack.c.b16 %v7503, %v7502
        %v7514 = vpack.c.b16 %v7505, %v7504
        %v7515 = vpack.c.b16 %v7507, %v7506
        %7524 = vmatpush.bf16.msra.mxu0 %v7515
        %7525 = vmatpush.bf16.msra.mxu0 %v7514
        %7526 = vmatpush.bf16.msra.mxu0 %v7513
        %7527 = vmatpush.bf16.msra.mxu0 %v7512
        %7528 = vmatpush.bf16.msra.mxu0 %v7511
        %7529 = vmatpush.bf16.msra.mxu0 %v7510
        %7530 = vmatpush.bf16.msra.mxu0 %v7509
        %7531 = vmatpush.bf16.msra.mxu0 %v7508
        %7532 = vmatmul.bf16.gmra.mxu0 %v7474
        %v7533 = vpop.f32.mrf.mxu0
        %v7534 = vadd.f32 0.0, %v7533
        %v7535 = vpop.f32.mrf.mxu0
        %7536 = vdwg.mxu0
        %v7537 = vadd.f32 %v7437, %v7534
        %7538 = vst [vmem:[#allocation1] sm:$0xff] %v6771
        %s7539 = scalar_lea.vmem [#allocation1], 1
        %v7540 = vld [vmem:[%s7539] ss:$4 sm:$0xff]
        %7541 = vst [vmem:[#allocation1 + $0x20] sm:$0xff] %v6772
        %s7542 = scalar_lea.vmem [#allocation1], 33
        %v7543 = vld [vmem:[%s7542] ss:$4 sm:$0xff]
        %s7544 = scalar_lea.vmem [#allocation11], 512
        %v7545 = vld [vmem:[%s7544] sm:$0xf]
        %v7546 = vld [vmem:[%s7544 + $0x4] sm:$0xf]
        %v7547 = vld [vmem:[%s7544 + $0x8] sm:$0xf]
        %v7548 = vld [vmem:[%s7544 + $0xc] sm:$0xf]
        %v7549 = vld [vmem:[%s7544 + $0x10] sm:$0xf]
        %v7550 = vld [vmem:[%s7544 + $0x14] sm:$0xf]
        %v7551 = vld [vmem:[%s7544 + $0x18] sm:$0xf]
        %v7552 = vld [vmem:[%s7544 + $0x1c] sm:$0xf]
        %v7553 = vld [vmem:[%s7544 + $0x20] sm:$0xf]
        %v7554 = vld [vmem:[%s7544 + $0x24] sm:$0xf]
        %v7555 = vld [vmem:[%s7544 + $0x28] sm:$0xf]
        %v7556 = vld [vmem:[%s7544 + $0x2c] sm:$0xf]
        %v7557 = vld [vmem:[%s7544 + $0x30] sm:$0xf]
        %v7558 = vld [vmem:[%s7544 + $0x34] sm:$0xf]
        %v7559 = vld [vmem:[%s7544 + $0x38] sm:$0xf]
        %v7560 = vld [vmem:[%s7544 + $0x3c] sm:$0xf]
        %7561 = vst [vmem:[#allocation1] ss:$9 sm:$0xff] %v7540
        %s7562 = scalar_lea.vmem [#allocation1], 1
        %7563 = vst [vmem:[%s7562] ss:$9 sm:$0xff] %v7543
        %v7564 = vld [vmem:[#allocation1] sm:$0xff]
        %v7582 = vunpack.c.l.b16 %v7545
        %v7583 = vunpack.c.l.b16 %v7546
        %v7584 = vunpack.c.l.b16 %v7547
        %v7585 = vunpack.c.l.b16 %v7548
        %v7586 = vunpack.c.l.b16 %v7549
        %v7587 = vunpack.c.l.b16 %v7550
        %v7588 = vunpack.c.l.b16 %v7551
        %v7589 = vunpack.c.l.b16 %v7552
        %v7590 = vunpack.c.l.b16 %v7553
        %v7591 = vunpack.c.l.b16 %v7554
        %v7592 = vunpack.c.l.b16 %v7555
        %v7593 = vunpack.c.l.b16 %v7556
        %v7594 = vunpack.c.l.b16 %v7557
        %v7595 = vunpack.c.l.b16 %v7558
        %v7596 = vunpack.c.l.b16 %v7559
        %v7597 = vunpack.c.l.b16 %v7560
        %v7598 = vpack.c.b16 %v7583, %v7582
        %v7599 = vpack.c.b16 %v7585, %v7584
        %v7600 = vpack.c.b16 %v7587, %v7586
        %v7601 = vpack.c.b16 %v7589, %v7588
        %v7602 = vpack.c.b16 %v7591, %v7590
        %v7603 = vpack.c.b16 %v7593, %v7592
        %v7604 = vpack.c.b16 %v7595, %v7594
        %v7605 = vpack.c.b16 %v7597, %v7596
        %7614 = vmatpush.bf16.msra.mxu0 %v7605
        %7615 = vmatpush.bf16.msra.mxu0 %v7604
        %7616 = vmatpush.bf16.msra.mxu0 %v7603
        %7617 = vmatpush.bf16.msra.mxu0 %v7602
        %7618 = vmatpush.bf16.msra.mxu0 %v7601
        %7619 = vmatpush.bf16.msra.mxu0 %v7600
        %7620 = vmatpush.bf16.msra.mxu0 %v7599
        %7621 = vmatpush.bf16.msra.mxu0 %v7598
        %7622 = vmatmul.bf16.gmra.mxu0 %v7564
        %v7623 = vpop.f32.mrf.mxu0
        %v7624 = vadd.f32 0.0, %v7623
        %v7625 = vpop.f32.mrf.mxu0
        %7626 = vdwg.mxu0
        %v7627 = vadd.f32 %v7537, %v7624
        %v7628 = vld [vmem:[%s11] sm:$0x1]
        %v7630 = vperm.slane %v7628, 0
        %v7632 = vmul.f32 %v7627, %v7630
        %v7633 = vld [vmem:[%s12] sm:$0x1]
        %v7635 = vperm.slane %v7633, 0
        %v7637 = vadd.f32 %v7632, %v7635
        %v7638 = vmax.f32 %v7637, 0.0
        %v7640 = vrot.slane %v7638, 2
        %v7642 = vmax.f32 %v7638, %v7640
        %v7644 = vrot.slane %v7642, 7
        %v7645 = vrot.slane %v7644, 2
        %v7647 = vmax.f32 %v7642, %v7645
        %v7648 = vpack.c.bf16 %v7647, %v7647
        %v7649 = vld [vmem:[#allocation12] sm:$0xff]
        %v7650 = vld [vmem:[#allocation12 + $0x8] sm:$0xff]
        %v7651 = vld [vmem:[#allocation12 + $0x10] sm:$0xff]
        %v7652 = vld [vmem:[#allocation12 + $0x18] sm:$0xff]
        %v7653 = vld [vmem:[#allocation12 + $0x20] sm:$0xff]
        %v7654 = vld [vmem:[#allocation12 + $0x28] sm:$0xff]
        %v7655 = vld [vmem:[#allocation12 + $0x30] sm:$0xff]
        %v7656 = vld [vmem:[#allocation12 + $0x38] sm:$0xff]
        %v7657 = vld [vmem:[#allocation12 + $0x40] sm:$0xff]
        %v7658 = vld [vmem:[#allocation12 + $0x48] sm:$0xff]
        %v7659 = vld [vmem:[#allocation12 + $0x50] sm:$0xff]
        %v7660 = vld [vmem:[#allocation12 + $0x58] sm:$0xff]
        %v7661 = vld [vmem:[#allocation12 + $0x60] sm:$0xff]
        %v7662 = vld [vmem:[#allocation12 + $0x68] sm:$0xff]
        %v7663 = vld [vmem:[#allocation12 + $0x70] sm:$0xff]
        %v7664 = vld [vmem:[#allocation12 + $0x78] sm:$0xff]
        %v7665 = vld [vmem:[#allocation12 + $0x80] sm:$0xff]
        %v7666 = vld [vmem:[#allocation12 + $0x88] sm:$0xff]
        %v7667 = vld [vmem:[#allocation12 + $0x90] sm:$0xff]
        %v7668 = vld [vmem:[#allocation12 + $0x98] sm:$0xff]
        %v7669 = vld [vmem:[#allocation12 + $0xa0] sm:$0xff]
        %v7670 = vld [vmem:[#allocation12 + $0xa8] sm:$0xff]
        %v7671 = vld [vmem:[#allocation12 + $0xb0] sm:$0xff]
        %v7672 = vld [vmem:[#allocation12 + $0xb8] sm:$0xff]
        %v7673 = vld [vmem:[#allocation12 + $0xc0] sm:$0xff]
        %v7674 = vld [vmem:[#allocation12 + $0xc8] sm:$0xff]
        %v7675 = vld [vmem:[#allocation12 + $0xd0] sm:$0xff]
        %v7676 = vld [vmem:[#allocation12 + $0xd8] sm:$0xff]
        %v7677 = vld [vmem:[#allocation12 + $0xe0] sm:$0xff]
        %v7678 = vld [vmem:[#allocation12 + $0xe8] sm:$0xff]
        %v7679 = vld [vmem:[#allocation12 + $0xf0] sm:$0xff]
        %v7680 = vld [vmem:[#allocation12 + $0xf8] sm:$0xff]
        %v7681 = vld [vmem:[%s14] sm:$0xf]
        %v7714 = vunpack.c.l.b16 %v7649
        %v7715 = vunpack.c.h.b16 %v7649
        %v7716 = vunpack.c.l.b16 %v7650
        %v7717 = vunpack.c.h.b16 %v7650
        %v7718 = vunpack.c.l.b16 %v7651
        %v7719 = vunpack.c.h.b16 %v7651
        %v7720 = vunpack.c.l.b16 %v7652
        %v7721 = vunpack.c.h.b16 %v7652
        %v7722 = vunpack.c.l.b16 %v7653
        %v7723 = vunpack.c.h.b16 %v7653
        %v7724 = vunpack.c.l.b16 %v7654
        %v7725 = vunpack.c.h.b16 %v7654
        %v7726 = vunpack.c.l.b16 %v7655
        %v7727 = vunpack.c.h.b16 %v7655
        %v7728 = vunpack.c.l.b16 %v7656
        %v7729 = vunpack.c.h.b16 %v7656
        %v7730 = vunpack.c.l.b16 %v7657
        %v7731 = vunpack.c.h.b16 %v7657
        %v7732 = vunpack.c.l.b16 %v7658
        %v7733 = vunpack.c.h.b16 %v7658
        %v7734 = vunpack.c.l.b16 %v7659
        %v7735 = vunpack.c.h.b16 %v7659
        %v7736 = vunpack.c.l.b16 %v7660
        %v7737 = vunpack.c.h.b16 %v7660
        %v7738 = vunpack.c.l.b16 %v7661
        %v7739 = vunpack.c.h.b16 %v7661
        %v7740 = vunpack.c.l.b16 %v7662
        %v7741 = vunpack.c.h.b16 %v7662
        %v7742 = vunpack.c.l.b16 %v7663
        %v7743 = vunpack.c.h.b16 %v7663
        %v7744 = vunpack.c.l.b16 %v7664
        %v7745 = vunpack.c.h.b16 %v7664
        %v7746 = vunpack.c.l.b16 %v7665
        %v7747 = vunpack.c.h.b16 %v7665
        %v7748 = vunpack.c.l.b16 %v7666
        %v7749 = vunpack.c.h.b16 %v7666
        %v7750 = vunpack.c.l.b16 %v7667
        %v7751 = vunpack.c.h.b16 %v7667
        %v7752 = vunpack.c.l.b16 %v7668
        %v7753 = vunpack.c.h.b16 %v7668
        %v7754 = vunpack.c.l.b16 %v7669
        %v7755 = vunpack.c.h.b16 %v7669
        %v7756 = vunpack.c.l.b16 %v7670
        %v7757 = vunpack.c.h.b16 %v7670
        %v7758 = vunpack.c.l.b16 %v7671
        %v7759 = vunpack.c.h.b16 %v7671
        %v7760 = vunpack.c.l.b16 %v7672
        %v7761 = vunpack.c.h.b16 %v7672
        %v7762 = vunpack.c.l.b16 %v7673
        %v7763 = vunpack.c.h.b16 %v7673
        %v7764 = vunpack.c.l.b16 %v7674
        %v7765 = vunpack.c.h.b16 %v7674
        %v7766 = vunpack.c.l.b16 %v7675
        %v7767 = vunpack.c.h.b16 %v7675
        %v7768 = vunpack.c.l.b16 %v7676
        %v7769 = vunpack.c.h.b16 %v7676
        %v7770 = vunpack.c.l.b16 %v7677
        %v7771 = vunpack.c.h.b16 %v7677
        %v7772 = vunpack.c.l.b16 %v7678
        %v7773 = vunpack.c.h.b16 %v7678
        %v7774 = vunpack.c.l.b16 %v7679
        %v7775 = vunpack.c.h.b16 %v7679
        %v7776 = vunpack.c.l.b16 %v7680
        %v7777 = vunpack.c.h.b16 %v7680
        %v7778 = vpack.c.b16 %v7718, %v7714
        %v7779 = vpack.c.b16 %v7719, %v7715
        %v7780 = vpack.c.b16 %v7720, %v7716
        %v7781 = vpack.c.b16 %v7721, %v7717
        %v7782 = vpack.c.b16 %v7726, %v7722
        %v7783 = vpack.c.b16 %v7727, %v7723
        %v7784 = vpack.c.b16 %v7728, %v7724
        %v7785 = vpack.c.b16 %v7729, %v7725
        %v7786 = vpack.c.b16 %v7734, %v7730
        %v7787 = vpack.c.b16 %v7735, %v7731
        %v7788 = vpack.c.b16 %v7736, %v7732
        %v7789 = vpack.c.b16 %v7737, %v7733
        %v7790 = vpack.c.b16 %v7742, %v7738
        %v7791 = vpack.c.b16 %v7743, %v7739
        %v7792 = vpack.c.b16 %v7744, %v7740
        %v7793 = vpack.c.b16 %v7745, %v7741
        %v7794 = vpack.c.b16 %v7750, %v7746
        %v7795 = vpack.c.b16 %v7751, %v7747
        %v7796 = vpack.c.b16 %v7752, %v7748
        %v7797 = vpack.c.b16 %v7753, %v7749
        %v7798 = vpack.c.b16 %v7758, %v7754
        %v7799 = vpack.c.b16 %v7759, %v7755
        %v7800 = vpack.c.b16 %v7760, %v7756
        %v7801 = vpack.c.b16 %v7761, %v7757
        %v7802 = vpack.c.b16 %v7766, %v7762
        %v7803 = vpack.c.b16 %v7767, %v7763
        %v7804 = vpack.c.b16 %v7768, %v7764
        %v7805 = vpack.c.b16 %v7769, %v7765
        %v7806 = vpack.c.b16 %v7774, %v7770
        %v7807 = vpack.c.b16 %v7775, %v7771
        %v7808 = vpack.c.b16 %v7776, %v7772
        %v7809 = vpack.c.b16 %v7777, %v7773
        %v7843 = vperm.slane %v7681, 0
        %v7844 = vperm.slane %v7681, 1
        %v7845 = vperm.slane %v7681, 2
        %v7846 = vperm.slane %v7681, 3
        %7851 = vmatpush.bf16.msra.mxu0 %v7806
        %7852 = vmatpush.bf16.msra.mxu0 %v7802
        %7853 = vmatpush.bf16.msra.mxu0 %v7798
        %7854 = vmatpush.bf16.msra.mxu0 %v7794
        %7855 = vmatpush.bf16.msra.mxu0 %v7790
        %7856 = vmatpush.bf16.msra.mxu0 %v7786
        %7857 = vmatpush.bf16.msra.mxu0 %v7782
        %7858 = vmatpush.bf16.msra.mxu0 %v7778
        %7859 = vmatmul.bf16.gmra.mxu0 %v7648
        %v7860 = vpop.f32.mrf.mxu0
        %v7861 = vadd.f32 %v7843, %v7860
        %v7862 = vpop.f32.mrf.mxu0
        %7863 = vdwg.mxu0
        %7864 = vmatpush.bf16.msra.mxu0 %v7807
        %7865 = vmatpush.bf16.msra.mxu0 %v7803
        %7866 = vmatpush.bf16.msra.mxu0 %v7799
        %7867 = vmatpush.bf16.msra.mxu0 %v7795
        %7868 = vmatpush.bf16.msra.mxu0 %v7791
        %7869 = vmatpush.bf16.msra.mxu0 %v7787
        %7870 = vmatpush.bf16.msra.mxu0 %v7783
        %7871 = vmatpush.bf16.msra.mxu0 %v7779
        %7872 = vmatmul.bf16.gmra.mxu0 %v7648
        %v7873 = vpop.f32.mrf.mxu0
        %v7874 = vadd.f32 %v7844, %v7873
        %v7875 = vpop.f32.mrf.mxu0
        %7876 = vdwg.mxu0
        %7877 = vmatpush.bf16.msra.mxu0 %v7808
        %7878 = vmatpush.bf16.msra.mxu0 %v7804
        %7879 = vmatpush.bf16.msra.mxu0 %v7800
        %7880 = vmatpush.bf16.msra.mxu0 %v7796
        %7881 = vmatpush.bf16.msra.mxu0 %v7792
        %7882 = vmatpush.bf16.msra.mxu0 %v7788
        %7883 = vmatpush.bf16.msra.mxu0 %v7784
        %7884 = vmatpush.bf16.msra.mxu0 %v7780
        %7885 = vmatmul.bf16.gmra.mxu0 %v7648
        %v7886 = vpop.f32.mrf.mxu0
        %v7887 = vadd.f32 %v7845, %v7886
        %v7888 = vpop.f32.mrf.mxu0
        %7889 = vdwg.mxu0
        %7890 = vmatpush.bf16.msra.mxu0 %v7809
        %7891 = vmatpush.bf16.msra.mxu0 %v7805
        %7892 = vmatpush.bf16.msra.mxu0 %v7801
        %7893 = vmatpush.bf16.msra.mxu0 %v7797
        %7894 = vmatpush.bf16.msra.mxu0 %v7793
        %7895 = vmatpush.bf16.msra.mxu0 %v7789
        %7896 = vmatpush.bf16.msra.mxu0 %v7785
        %7897 = vmatpush.bf16.msra.mxu0 %v7781
        %7898 = vmatmul.bf16.gmra.mxu0 %v7648
        %v7899 = vpop.f32.mrf.mxu0
        %v7900 = vadd.f32 %v7846, %v7899
        %v7901 = vpop.f32.mrf.mxu0
        %7902 = vdwg.mxu0
        %v7903 = vmax.f32 %v7861, 0.0
        %v7904 = vmax.f32 %v7874, 0.0
        %v7905 = vmax.f32 %v7887, 0.0
        %v7906 = vmax.f32 %v7900, 0.0
        %v7907 = vld [vmem:[%s15] sm:$0xf]
        %v7909 = vperm.slane %v7907, 0
        %v7910 = vperm.slane %v7907, 1
        %v7911 = vperm.slane %v7907, 2
        %v7912 = vperm.slane %v7907, 3
        %v7917 = vmul.f32 %v7903, %v7909
        %v7918 = vmul.f32 %v7904, %v7910
        %v7919 = vmul.f32 %v7905, %v7911
        %v7920 = vmul.f32 %v7906, %v7912
        %v7921 = vsel %vm6793, %v7917, 0.0
        %v7922 = vsel %vm6793, %v7918, 0.0
        %v7923 = vadd.f32 %v7921, %v7922
        %v7924 = vsel %vm6793, %v7919, 0.0
        %v7925 = vadd.f32 %v7923, %v7924
        %v7926 = vsel %vm6793, %v7920, 0.0
        %v7927 = vadd.f32 %v7925, %v7926
        %7928 = vadd.xlane.f32.xlu0 %v7927
        %v7929 = vpop.xlane.xlu0 %7928
        %v7930 = vld [vmem:[#allocation6] sm:$0x1]
        %v7931 = vadd.f32 %v7929, %v7930
        %vm7932 = vcmask 0
        %7933 = vst.msk [vmem:[%s613] sm:$0x1] %vm7932, %v7931
        %p7934 = scmp.lt.s32.totalorder %s33, 1
        %s7935 = scalar_select %p7934, %s33, 1
        %s7936 = scalar_lea.vmem %s17, %s7935
        // Predicated region
        $region105: #{cnn_4c_forward.1} parent=87 // pred_check
          %p7937 = pneg %p413
        $region106: #{cnn_4c_forward.1} parent=87 // pred_check_branch
          %7939 = sbr.rel (%p7937) target = $region108
        $region107: #{cnn_4c_forward.1} parent=87 // pred_region
          _
        $region108: #{cnn_4c_forward.1} parent=87 // pred_fallthru
          _
      $region88: #{cnn_4c_forward.1} parent=5 // pred_fallthru
        _
      %p7940 = scmp.le.s32.totalorder 2, %s28
      // Predicated region
      $region109: #{cnn_4c_forward.1} parent=5 // pred_check
        %p7941 = pneg %p7940
      $region110: #{cnn_4c_forward.1} parent=5 // pred_check_branch
        %7943 = sbr.rel (%p7941) target = $region112
      $region111: #{cnn_4c_forward.1} parent=5 // pred_region
        %s7944 = ssub.s32 %s28, 2
        // Predicated region
        $region113: #{cnn_4c_forward.1} parent=111 // pred_check
          %p7945 = pneg %p419
        $region114: #{cnn_4c_forward.1} parent=111 // pred_check_branch
          %7947 = sbr.rel (%p7945) target = $region116
        $region115: #{cnn_4c_forward.1} parent=111 // pred_region
          %p7948 = scmp.lt.s32.totalorder %s34, 1
          %s7949 = scalar_select %p7948, %s34, 1
          %s7950 = scalar_lea.vmem %s17, %s7949
        $region116: #{cnn_4c_forward.1} parent=111 // pred_fallthru
          _
      $region112: #{cnn_4c_forward.1} parent=5 // pred_fallthru
        _
    $region6: #{cnn_4c_forward.1} parent=1 // loop_footer
      %s32 = sadd.s32 1, %s28
    $region7: #{cnn_4c_forward.1} parent=1 // loop_footer_branch
      %27 = sbr.rel target = $region3
    $region8: #{cnn_4c_forward.1} parent=1 // loop_exit
      _
    %7951 = vsyncpa [#allocation8], 1
    %s7952 = scalar_lea.sflag [#allocation8], 1
    %7953 = vsyncpa %s7952, 1
    %7954 = vsyncpa [#allocation10], 1
    %7955 = vsyncpa [#allocation13], 1

</llo_original>
